<compile_context>
chip_gen: v7x
topology: tpu7x:2x2x1
jax: 0.10.0
libtpu: 0.0.40
codegen_flags: <defaults>
</compile_context>

<pallas_src>
import functools

import numpy as np
import jax
import jax.numpy as jnp
from jax import lax
from jax.experimental import pallas as pl
from jax.experimental.pallas import tpu as pltpu

_H = _W = 7
_LANE = 128


def _round_up(x, m):
    return ((x + m - 1) // m) * m


def _cdiv(a, b):
    return -(-a // b)


# ---------------------------------------------------------------------------
# Fused Pallas kernel: conv1 + conv2 (as dense matmuls) + fc1 + fc2
# ---------------------------------------------------------------------------
def _fused_forward_kernel(x_ref, act_ref,
                          t1_ref, b1_ref, t2_ref, b2_ref,
                          w1c_ref, w1a_ref, bf1_ref, w2_ref, bf2_ref,
                          o_ref):
    """x:[Bt,147](bf16) act:[Bt,A](bf16) -> o:[Bt,128](f32, lane-padded classes)."""
    cdt = t1_ref.dtype                       # MXU operand dtype (bf16)

    # conv1 (3->16, 3x3, SAME) as [Bt,147] @ [147,784]; bias + ReLU in f32.
    h1 = jnp.dot(x_ref[...], t1_ref[...],
                 preferred_element_type=jnp.float32) + b1_ref[...]
    h1 = jnp.maximum(h1, 0.0).astype(cdt)

    # conv2 (16->32): columns already in NCHW flatten order == fc1 input order.
    h2 = jnp.dot(h1, t2_ref[...],
                 preferred_element_type=jnp.float32) + b2_ref[...]
    h2 = jnp.maximum(h2, 0.0).astype(cdt)

    # fc1 split: conv-feature part + action part (no concat buffer), ReLU.
    y = jnp.dot(h2, w1c_ref[...], preferred_element_type=jnp.float32)
    y = y + jnp.dot(act_ref[...], w1a_ref[...],
                    preferred_element_type=jnp.float32)
    y = jnp.maximum(y + bf1_ref[...], 0.0).astype(cdt)

    # fc2 — output columns zero-padded to 128 lanes -> unmasked vector stores.
    o_ref[...] = (jnp.dot(y, w2_ref[...], preferred_element_type=jnp.float32)
                  + bf2_ref[...]).astype(o_ref.dtype)


# ---------------------------------------------------------------------------
# One-time parameter preparation (outside the per-call hot path)
# ---------------------------------------------------------------------------
def _conv3x3_same_as_matmul(w_oihw, H=_H, W=_W):
    """Conv2d(k=3, pad=1) weights [Cout,Cin,3,3] -> dense [Cin*H*W, Cout*H*W].

    Row index = ci*H*W + hi*W + wi (input NCHW flatten order);
    column index = co*H*W + ho*W + wo (output NCHW flatten order).
    """
    w = np.asarray(w_oihw, dtype=np.float32)
    cout, cin, kh, kw = w.shape
    t = np.zeros((cin, H, W, cout, H, W), dtype=np.float32)
    for ky in range(kh):
        for kx in range(kw):
            wt = w[:, :, ky, kx].T                    # [Cin, Cout]
            for ho in range(H):
                hi = ho + ky - 1
                if hi < 0 or hi >= H:
                    continue
                for wo in range(W):
                    wi = wo + kx - 1
                    if wi < 0 or wi >= W:
                        continue
                    t[:, hi, wi, :, ho, wo] = wt
    return jnp.asarray(t.reshape(cin * H * W, cout * H * W))


def prepare_params(params, compute_dtype=jnp.bfloat16):
    """Convert PyTorch-layout params into kernel-ready (pre-permuted) matrices."""
    H, W = _H, _W
    t1 = _conv3x3_same_as_matmul(params["conv1_w"], H, W)          # [147, 784]
    t2 = _conv3x3_same_as_matmul(params["conv2_w"], H, W)          # [784, 1568]
    b1 = jnp.repeat(params["conv1_b"], H * W)[None, :].astype(jnp.float32)
    b2 = jnp.repeat(params["conv2_b"], H * W)[None, :].astype(jnp.float32)
    conv_feat = params["conv2_w"].shape[0] * H * W                 # 1568
    fc1_w = params["fc1_w"]                                        # [128, 1568+A]

    num_classes = params["fc2_w"].shape[0]
    hidden = params["fc2_w"].shape[1]                              # 128
    out_pad = _round_up(num_classes, _LANE)                        # lane-dense out
    w2 = jnp.zeros((hidden, out_pad), jnp.float32)
    w2 = w2.at[:, :num_classes].set(params["fc2_w"].T)
    bf2 = jnp.zeros((1, out_pad), jnp.float32)
    bf2 = bf2.at[:, :num_classes].set(params["fc2_b"])

    return {
        "t1": t1.astype(compute_dtype),
        "b1": b1,
        "t2": t2.astype(compute_dtype),
        "b2": b2,
        "w1c": fc1_w[:, :conv_feat].T.astype(compute_dtype),       # [1568, 128]
        "w1a": fc1_w[:, conv_feat:].T.astype(compute_dtype),       # [A, 128]
        "bf1": params["fc1_b"][None, :].astype(jnp.float32),
        "w2": w2.astype(compute_dtype),                            # [128, 128]
        "bf2": bf2,                                                # [1, 128]
    }


# ---------------------------------------------------------------------------
# Forward wrapper: batch-tiled single pallas_call
# ---------------------------------------------------------------------------
@functools.partial(
    jax.jit, static_argnames=("num_classes", "block_n", "single_buffer_weights"))
def _forward_jit(obs_grid, action, prepped, num_classes, block_n,
                 single_buffer_weights):
    n = obs_grid.shape[0]
    in_feat = obs_grid.shape[1] * obs_grid.shape[2] * obs_grid.shape[3]   # 147
    act_dim = action.shape[1]
    out_pad = prepped["w2"].shape[1]                                      # 128
    cdt = prepped["t1"].dtype

    # NCHW flatten is a pure row-major reshape (matches the Toeplitz row order).
    # Cast operands to the MXU dtype here: halves input DMA, no in-kernel cast.
    x = obs_grid.reshape(n, in_feat).astype(cdt)
    act = action.astype(cdt)

    # Balanced batch tiles: multiple of 8, <= block_n, and >= 2 grid steps when
    # N exceeds one tile (feeds both v7x TensorCores, minimal padding waste).
    num_tiles = max(1, _cdiv(n, block_n))
    bt = min(_round_up(_cdiv(n, num_tiles), 8), _round_up(n, 8))
    n_pad = _round_up(n, bt)
    if n_pad != n:
        x = jnp.pad(x, ((0, n_pad - n), (0, 0)))
        act = jnp.pad(act, ((0, n_pad - n), (0, 0)))

    def batch_spec(cols):
        return pl.BlockSpec((bt, cols), lambda i: (i, 0))

    def resident(arr):
        # Constant index map -> fetched once, stays in VMEM for every step.
        # Single-buffer it: no point double-buffering a constant block.
        if single_buffer_weights:
            return pl.BlockSpec(arr.shape, lambda i: (0, 0),
                                pipeline_mode=pl.Buffered(1))
        return pl.BlockSpec(arr.shape, lambda i: (0, 0))

    c1 = prepped["t1"].shape[1]       # 784
    c2 = prepped["t2"].shape[1]       # 1568
    hid = prepped["w1c"].shape[1]     # 128
    weight_bytes = sum(int(v.size) * v.dtype.itemsize for v in prepped.values())
    cost = pl.CostEstimate(
        flops=2 * n_pad * (in_feat * c1 + c1 * c2 + c2 * hid
                           + act_dim * hid + hid * out_pad),
        transcendentals=0,
        bytes_accessed=n_pad * (in_feat * 2 + act_dim * 2 + out_pad * 4)
        + weight_bytes)

    out = pl.pallas_call(
        _fused_forward_kernel,
        out_shape=jax.ShapeDtypeStruct((n_pad, out_pad), jnp.float32),
        grid=(n_pad // bt,),
        in_specs=[
            batch_spec(in_feat),
            batch_spec(act_dim),
            resident(prepped["t1"]),
            resident(prepped["b1"]),
            resident(prepped["t2"]),
            resident(prepped["b2"]),
            resident(prepped["w1c"]),
            resident(prepped["w1a"]),
            resident(prepped["bf1"]),
            resident(prepped["w2"]),
            resident(prepped["bf2"]),
        ],
        out_specs=batch_spec(out_pad),
        compiler_params=pltpu.CompilerParams(
            dimension_semantics=("parallel",),
            vmem_limit_bytes=48 * 1024 * 1024,
        ),
        cost_estimate=cost,
    )(x, act,
      prepped["t1"], prepped["b1"], prepped["t2"], prepped["b2"],
      prepped["w1c"], prepped["w1a"], prepped["bf1"],
      prepped["w2"], prepped["bf2"])

    # Drop padded batch rows and padded output lanes.
    return out[:n, :num_classes]


def pursuit_grouping_cnn_forward(obs_grid, action, prepped, num_classes,
                                 block_n=512):
    """obs_grid:[N,3,7,7] (NCHW), action:[N,A] -> [N,num_classes] (f32)."""
    try:
        return _forward_jit(obs_grid, action, prepped, num_classes, block_n, True)
    except Exception:
        # Fallback for JAX builds that reject pipeline_mode=pl.Buffered(1) on a
        # BlockSpec: identical semantics, weights just stay double-buffered.
        return _forward_jit(obs_grid, action, prepped, num_classes, block_n, False)


# ---------------------------------------------------------------------------
# Pure-JAX reference (correctness check only)
# ---------------------------------------------------------------------------
def reference_forward(obs_grid, action, params):
    x = lax.conv_general_dilated(
        obs_grid, params["conv1_w"], (1, 1), "SAME",
        dimension_numbers=("NCHW", "OIHW", "NCHW"))
    x = jnp.maximum(x + params["conv1_b"][None, :, None, None], 0.0)
    x = lax.conv_general_dilated(
        x, params["conv2_w"], (1, 1), "SAME",
        dimension_numbers=("NCHW", "OIHW", "NCHW"))
    x = jnp.maximum(x + params["conv2_b"][None, :, None, None], 0.0)
    x = x.reshape(x.shape[0], -1)
    x = jnp.concatenate([x, action], axis=-1)
    h = jnp.maximum(x @ params["fc1_w"].T + params["fc1_b"], 0.0)
    return h @ params["fc2_w"].T + params["fc2_b"]


# ---------------------------------------------------------------------------
# Deterministic parameter init + driver
# ---------------------------------------------------------------------------
def init_params(key, act_dim=5, num_classes=3):
    ks = jax.random.split(key, 8)
    scale = 0.05
    return {
        "conv1_w": scale * jax.random.normal(ks[0], (16, 3, 3, 3), jnp.float32),
        "conv1_b": scale * jax.random.normal(ks[1], (16,), jnp.float32),
        "conv2_w": scale * jax.random.normal(ks[2], (32, 16, 3, 3), jnp.float32),
        "conv2_b": scale * jax.random.normal(ks[3], (32,), jnp.float32),
        "fc1_w": scale * jax.random.normal(ks[4], (128, 1568 + act_dim), jnp.float32),
        "fc1_b": scale * jax.random.normal(ks[5], (128,), jnp.float32),
        "fc2_w": scale * jax.random.normal(ks[6], (num_classes, 128), jnp.float32),
        "fc2_b": scale * jax.random.normal(ks[7], (num_classes,), jnp.float32),
    }


if __name__ == "__main__":
    key = jax.random.PRNGKey(0)
    k_obs, k_act, k_par = jax.random.split(key, 3)

    N, act_dim, num_classes = 4, 5, 3
    obs_grid = jax.random.normal(k_obs, (N, 3, 7, 7), jnp.float32)
    action = jax.random.normal(k_act, (N, act_dim), jnp.float32)
    params = init_params(k_par, act_dim=act_dim, num_classes=num_classes)
    prepped = prepare_params(params)          # one-time weight prep (bf16 operands)

    out = jax.block_until_ready(
        pursuit_grouping_cnn_forward(obs_grid, action, prepped, num_classes))
    ref = jax.block_until_ready(reference_forward(obs_grid, action, params))

    assert out.shape == (N, num_classes) and out.dtype == jnp.float32
    # Tolerance accounts for bf16 MXU operands (f32 accumulation/bias/ReLU).
    if not jnp.allclose(out, ref, atol=2e-2, rtol=2e-2):
        max_err = float(jnp.max(jnp.abs(out - ref)))
        raise AssertionError(f"Pallas output does not match reference (max err {max_err})")

    print("KERNEL_OK")
</pallas_src>

<mosaic_0001>
module attributes {stable_mosaic.version = 11 : i64} {
  func.func @_fused_forward_kernel(%arg0: i32, %arg1: memref<8x147xbf16, #tpu.memory_space<vmem>>, %arg2: memref<8x5xbf16, #tpu.memory_space<vmem>>, %arg3: memref<147x784xbf16, #tpu.memory_space<vmem>>, %arg4: memref<1x784xf32, #tpu.memory_space<vmem>>, %arg5: memref<784x1568xbf16, #tpu.memory_space<vmem>>, %arg6: memref<1x1568xf32, #tpu.memory_space<vmem>>, %arg7: memref<1568x128xbf16, #tpu.memory_space<vmem>>, %arg8: memref<5x128xbf16, #tpu.memory_space<vmem>>, %arg9: memref<1x128xf32, #tpu.memory_space<vmem>>, %arg10: memref<128x128xbf16, #tpu.memory_space<vmem>>, %arg11: memref<1x128xf32, #tpu.memory_space<vmem>>, %arg12: memref<8x128xf32, #tpu.memory_space<vmem>>) attributes {dimension_semantics = [#tpu.dimension_semantics<parallel>], iteration_bounds = array<i64: 1>, scalar_prefetch = 0 : i64, scratch_operands = 0 : i64, tpu.core_type = #tpu.core_type<tc>, window_params = [{transform_indices = @transform_0, window_bounds = array<i64: 8, 147>}, {transform_indices = @transform_1, window_bounds = array<i64: 8, 5>}, {pipeline_mode = #tpu.pipeline_mode<synchronous>, transform_indices = @transform_2, window_bounds = array<i64: 147, 784>}, {pipeline_mode = #tpu.pipeline_mode<synchronous>, transform_indices = @transform_3, window_bounds = array<i64: 1, 784>}, {pipeline_mode = #tpu.pipeline_mode<synchronous>, transform_indices = @transform_4, window_bounds = array<i64: 784, 1568>}, {pipeline_mode = #tpu.pipeline_mode<synchronous>, transform_indices = @transform_5, window_bounds = array<i64: 1, 1568>}, {pipeline_mode = #tpu.pipeline_mode<synchronous>, transform_indices = @transform_6, window_bounds = array<i64: 1568, 128>}, {pipeline_mode = #tpu.pipeline_mode<synchronous>, transform_indices = @transform_7, window_bounds = array<i64: 5, 128>}, {pipeline_mode = #tpu.pipeline_mode<synchronous>, transform_indices = @transform_8, window_bounds = array<i64: 1, 128>}, {pipeline_mode = #tpu.pipeline_mode<synchronous>, transform_indices = @transform_9, window_bounds = array<i64: 128, 128>}, {pipeline_mode = #tpu.pipeline_mode<synchronous>, transform_indices = @transform_10, window_bounds = array<i64: 1, 128>}, {transform_indices = @transform_11, window_bounds = array<i64: 8, 128>}]} {
    %c0 = arith.constant 0 : index
    %c0_0 = arith.constant 0 : index
    %0 = vector.load %arg1[%c0, %c0_0] : memref<8x147xbf16, #tpu.memory_space<vmem>>, vector<8x147xbf16>
    %c0_1 = arith.constant 0 : index
    %c0_2 = arith.constant 0 : index
    %1 = vector.load %arg3[%c0_1, %c0_2] : memref<147x784xbf16, #tpu.memory_space<vmem>>, vector<147x784xbf16>
    %cst = arith.constant dense<0.000000e+00> : vector<8x784xf32>
    %2 = tpu.matmul %0, %1, %cst {dimension_numbers = #tpu.dot_dimension_numbers<[1], [0], [0], [1], [0, 0, 1, 1], [], []>} : vector<8x147xbf16>, vector<147x784xbf16>, vector<8x784xf32> -> vector<8x784xf32>
    %c0_3 = arith.constant 0 : index
    %c0_4 = arith.constant 0 : index
    %3 = vector.load %arg4[%c0_3, %c0_4] : memref<1x784xf32, #tpu.memory_space<vmem>>, vector<1x784xf32>
    %4 = vector.broadcast %3 : vector<1x784xf32> to vector<8x784xf32>
    %5 = arith.addf %2, %4 : vector<8x784xf32>
    %cst_5 = arith.constant 0.000000e+00 : f32
    %6 = vector.broadcast %cst_5 : f32 to vector<8x784xf32>
    %7 = arith.maximumf %5, %6 : vector<8x784xf32>
    %8 = arith.truncf %7 : vector<8x784xf32> to vector<8x784xbf16>
    %c0_6 = arith.constant 0 : index
    %c0_7 = arith.constant 0 : index
    %9 = vector.load %arg5[%c0_6, %c0_7] : memref<784x1568xbf16, #tpu.memory_space<vmem>>, vector<784x1568xbf16>
    %cst_8 = arith.constant dense<0.000000e+00> : vector<8x1568xf32>
    %10 = tpu.matmul %8, %9, %cst_8 {dimension_numbers = #tpu.dot_dimension_numbers<[1], [0], [0], [1], [0, 0, 1, 1], [], []>} : vector<8x784xbf16>, vector<784x1568xbf16>, vector<8x1568xf32> -> vector<8x1568xf32>
    %c0_9 = arith.constant 0 : index
    %c0_10 = arith.constant 0 : index
    %11 = vector.load %arg6[%c0_9, %c0_10] : memref<1x1568xf32, #tpu.memory_space<vmem>>, vector<1x1568xf32>
    %12 = vector.broadcast %11 : vector<1x1568xf32> to vector<8x1568xf32>
    %13 = arith.addf %10, %12 : vector<8x1568xf32>
    %cst_11 = arith.constant 0.000000e+00 : f32
    %14 = vector.broadcast %cst_11 : f32 to vector<8x1568xf32>
    %15 = arith.maximumf %13, %14 : vector<8x1568xf32>
    %16 = arith.truncf %15 : vector<8x1568xf32> to vector<8x1568xbf16>
    %c0_12 = arith.constant 0 : index
    %c0_13 = arith.constant 0 : index
    %17 = vector.load %arg7[%c0_12, %c0_13] : memref<1568x128xbf16, #tpu.memory_space<vmem>>, vector<1568x128xbf16>
    %cst_14 = arith.constant dense<0.000000e+00> : vector<8x128xf32>
    %18 = tpu.matmul %16, %17, %cst_14 {dimension_numbers = #tpu.dot_dimension_numbers<[1], [0], [0], [1], [0, 0, 1, 1], [], []>} : vector<8x1568xbf16>, vector<1568x128xbf16>, vector<8x128xf32> -> vector<8x128xf32>
    %c0_15 = arith.constant 0 : index
    %c0_16 = arith.constant 0 : index
    %19 = vector.load %arg2[%c0_15, %c0_16] : memref<8x5xbf16, #tpu.memory_space<vmem>>, vector<8x5xbf16>
    %c0_17 = arith.constant 0 : index
    %c0_18 = arith.constant 0 : index
    %20 = vector.load %arg8[%c0_17, %c0_18] : memref<5x128xbf16, #tpu.memory_space<vmem>>, vector<5x128xbf16>
    %cst_19 = arith.constant dense<0.000000e+00> : vector<8x128xf32>
    %21 = tpu.matmul %19, %20, %cst_19 {dimension_numbers = #tpu.dot_dimension_numbers<[1], [0], [0], [1], [0, 0, 1, 1], [], []>} : vector<8x5xbf16>, vector<5x128xbf16>, vector<8x128xf32> -> vector<8x128xf32>
    %22 = arith.addf %18, %21 : vector<8x128xf32>
    %c0_20 = arith.constant 0 : index
    %c0_21 = arith.constant 0 : index
    %23 = vector.load %arg9[%c0_20, %c0_21] : memref<1x128xf32, #tpu.memory_space<vmem>>, vector<1x128xf32>
    %24 = vector.broadcast %23 : vector<1x128xf32> to vector<8x128xf32>
    %25 = arith.addf %22, %24 : vector<8x128xf32>
    %cst_22 = arith.constant 0.000000e+00 : f32
    %26 = vector.broadcast %cst_22 : f32 to vector<8x128xf32>
    %27 = arith.maximumf %25, %26 : vector<8x128xf32>
    %28 = arith.truncf %27 : vector<8x128xf32> to vector<8x128xbf16>
    %c0_23 = arith.constant 0 : index
    %c0_24 = arith.constant 0 : index
    %29 = vector.load %arg10[%c0_23, %c0_24] : memref<128x128xbf16, #tpu.memory_space<vmem>>, vector<128x128xbf16>
    %cst_25 = arith.constant dense<0.000000e+00> : vector<8x128xf32>
    %30 = tpu.matmul %28, %29, %cst_25 {dimension_numbers = #tpu.dot_dimension_numbers<[1], [0], [0], [1], [0, 0, 1, 1], [], []>} : vector<8x128xbf16>, vector<128x128xbf16>, vector<8x128xf32> -> vector<8x128xf32>
    %c0_26 = arith.constant 0 : index
    %c0_27 = arith.constant 0 : index
    %31 = vector.load %arg11[%c0_26, %c0_27] : memref<1x128xf32, #tpu.memory_space<vmem>>, vector<1x128xf32>
    %32 = vector.broadcast %31 : vector<1x128xf32> to vector<8x128xf32>
    %33 = arith.addf %30, %32 : vector<8x128xf32>
    %c0_28 = arith.constant 0 : index
    %c0_29 = arith.constant 0 : index
    %34 = vector.load %arg12[%c0_28, %c0_29] : memref<8x128xf32, #tpu.memory_space<vmem>>, vector<8x128xf32>
    tpu.vector_store %arg12[%c0_28, %c0_29], %33 {strides = array<i32>} : memref<8x128xf32, #tpu.memory_space<vmem>>, vector<8x128xf32>,
    return
  }
  func.func @transform_0(%arg0: i32) -> (i32, i32) {
    %c0_i32 = arith.constant 0 : i32
    %c0_i32_0 = arith.constant 0 : i32
    return %arg0, %c0_i32 : i32, i32
  }
  func.func @transform_1(%arg0: i32) -> (i32, i32) {
    %c0_i32 = arith.constant 0 : i32
    %c0_i32_0 = arith.constant 0 : i32
    return %arg0, %c0_i32 : i32, i32
  }
  func.func @transform_2(%arg0: i32) -> (i32, i32) {
    %c0_i32 = arith.constant 0 : i32
    %c0_i32_0 = arith.constant 0 : i32
    %c0_i32_1 = arith.constant 0 : i32
    return %c0_i32, %c0_i32_0 : i32, i32
  }
  func.func @transform_3(%arg0: i32) -> (i32, i32) {
    %c0_i32 = arith.constant 0 : i32
    %c0_i32_0 = arith.constant 0 : i32
    %c0_i32_1 = arith.constant 0 : i32
    return %c0_i32, %c0_i32_0 : i32, i32
  }
  func.func @transform_4(%arg0: i32) -> (i32, i32) {
    %c0_i32 = arith.constant 0 : i32
    %c0_i32_0 = arith.constant 0 : i32
    %c0_i32_1 = arith.constant 0 : i32
    return %c0_i32, %c0_i32_0 : i32, i32
  }
  func.func @transform_5(%arg0: i32) -> (i32, i32) {
    %c0_i32 = arith.constant 0 : i32
    %c0_i32_0 = arith.constant 0 : i32
    %c0_i32_1 = arith.constant 0 : i32
    return %c0_i32, %c0_i32_0 : i32, i32
  }
  func.func @transform_6(%arg0: i32) -> (i32, i32) {
    %c0_i32 = arith.constant 0 : i32
    %c0_i32_0 = arith.constant 0 : i32
    %c0_i32_1 = arith.constant 0 : i32
    return %c0_i32, %c0_i32_0 : i32, i32
  }
  func.func @transform_7(%arg0: i32) -> (i32, i32) {
    %c0_i32 = arith.constant 0 : i32
    %c0_i32_0 = arith.constant 0 : i32
    %c0_i32_1 = arith.constant 0 : i32
    return %c0_i32, %c0_i32_0 : i32, i32
  }
  func.func @transform_8(%arg0: i32) -> (i32, i32) {
    %c0_i32 = arith.constant 0 : i32
    %c0_i32_0 = arith.constant 0 : i32
    %c0_i32_1 = arith.constant 0 : i32
    return %c0_i32, %c0_i32_0 : i32, i32
  }
  func.func @transform_9(%arg0: i32) -> (i32, i32) {
    %c0_i32 = arith.constant 0 : i32
    %c0_i32_0 = arith.constant 0 : i32
    %c0_i32_1 = arith.constant 0 : i32
    return %c0_i32, %c0_i32_0 : i32, i32
  }
  func.func @transform_10(%arg0: i32) -> (i32, i32) {
    %c0_i32 = arith.constant 0 : i32
    %c0_i32_0 = arith.constant 0 : i32
    %c0_i32_1 = arith.constant 0 : i32
    return %c0_i32, %c0_i32_0 : i32, i32
  }
  func.func @transform_11(%arg0: i32) -> (i32, i32) {
    %c0_i32 = arith.constant 0 : i32
    %c0_i32_0 = arith.constant 0 : i32
    return %arg0, %c0_i32 : i32, i32
  }
}

module attributes {stable_mosaic.version = 11 : i64} {
  func.func @_fused_forward_kernel(%arg0: i32, %arg1: memref<8x147xbf16, #tpu.memory_space<vmem>>, %arg2: memref<8x5xbf16, #tpu.memory_space<vmem>>, %arg3: memref<147x784xbf16, #tpu.memory_space<vmem>>, %arg4: memref<1x784xf32, #tpu.memory_space<vmem>>, %arg5: memref<784x1568xbf16, #tpu.memory_space<vmem>>, %arg6: memref<1x1568xf32, #tpu.memory_space<vmem>>, %arg7: memref<1568x128xbf16, #tpu.memory_space<vmem>>, %arg8: memref<5x128xbf16, #tpu.memory_space<vmem>>, %arg9: memref<1x128xf32, #tpu.memory_space<vmem>>, %arg10: memref<128x128xbf16, #tpu.memory_space<vmem>>, %arg11: memref<1x128xf32, #tpu.memory_space<vmem>>, %arg12: memref<8x128xf32, #tpu.memory_space<vmem>>) attributes {dimension_semantics = [#tpu.dimension_semantics<parallel>], iteration_bounds = array<i64: 1>, scalar_prefetch = 0 : i64, scratch_operands = 0 : i64, tpu.core_type = #tpu.core_type<tc>, window_params = [{transform_indices = @transform_0, window_bounds = array<i64: 8, 147>}, {transform_indices = @transform_1, window_bounds = array<i64: 8, 5>}, {pipeline_mode = #tpu.pipeline_mode<synchronous>, transform_indices = @transform_2, window_bounds = array<i64: 147, 784>}, {pipeline_mode = #tpu.pipeline_mode<synchronous>, transform_indices = @transform_3, window_bounds = array<i64: 1, 784>}, {pipeline_mode = #tpu.pipeline_mode<synchronous>, transform_indices = @transform_4, window_bounds = array<i64: 784, 1568>}, {pipeline_mode = #tpu.pipeline_mode<synchronous>, transform_indices = @transform_5, window_bounds = array<i64: 1, 1568>}, {pipeline_mode = #tpu.pipeline_mode<synchronous>, transform_indices = @transform_6, window_bounds = array<i64: 1568, 128>}, {pipeline_mode = #tpu.pipeline_mode<synchronous>, transform_indices = @transform_7, window_bounds = array<i64: 5, 128>}, {pipeline_mode = #tpu.pipeline_mode<synchronous>, transform_indices = @transform_8, window_bounds = array<i64: 1, 128>}, {pipeline_mode = #tpu.pipeline_mode<synchronous>, transform_indices = @transform_9, window_bounds = array<i64: 128, 128>}, {pipeline_mode = #tpu.pipeline_mode<synchronous>, transform_indices = @transform_10, window_bounds = array<i64: 1, 128>}, {transform_indices = @transform_11, window_bounds = array<i64: 8, 128>}]} {
    %c0 = arith.constant 0 : index
    %c0_0 = arith.constant 0 : index
    %0 = vector.load %arg1[%c0, %c0_0] : memref<8x147xbf16, #tpu.memory_space<vmem>>, vector<8x147xbf16>
    %c0_1 = arith.constant 0 : index
    %c0_2 = arith.constant 0 : index
    %1 = vector.load %arg3[%c0_1, %c0_2] : memref<147x784xbf16, #tpu.memory_space<vmem>>, vector<147x784xbf16>
    %cst = arith.constant dense<0.000000e+00> : vector<8x784xf32>
    %2 = tpu.matmul %0, %1, %cst {dimension_numbers = #tpu.dot_dimension_numbers<[1], [0], [0], [1], [0, 0, 1, 1], [], []>} : vector<8x147xbf16>, vector<147x784xbf16>, vector<8x784xf32> -> vector<8x784xf32>
    %c0_3 = arith.constant 0 : index
    %c0_4 = arith.constant 0 : index
    %3 = vector.load %arg4[%c0_3, %c0_4] : memref<1x784xf32, #tpu.memory_space<vmem>>, vector<1x784xf32>
    %4 = vector.broadcast %3 : vector<1x784xf32> to vector<8x784xf32>
    %5 = arith.addf %2, %4 : vector<8x784xf32>
    %cst_5 = arith.constant 0.000000e+00 : f32
    %6 = vector.broadcast %cst_5 : f32 to vector<8x784xf32>
    %7 = arith.maximumf %5, %6 : vector<8x784xf32>
    %8 = arith.truncf %7 : vector<8x784xf32> to vector<8x784xbf16>
    %c0_6 = arith.constant 0 : index
    %c0_7 = arith.constant 0 : index
    %9 = vector.load %arg5[%c0_6, %c0_7] : memref<784x1568xbf16, #tpu.memory_space<vmem>>, vector<784x1568xbf16>
    %cst_8 = arith.constant dense<0.000000e+00> : vector<8x1568xf32>
    %10 = tpu.matmul %8, %9, %cst_8 {dimension_numbers = #tpu.dot_dimension_numbers<[1], [0], [0], [1], [0, 0, 1, 1], [], []>} : vector<8x784xbf16>, vector<784x1568xbf16>, vector<8x1568xf32> -> vector<8x1568xf32>
    %c0_9 = arith.constant 0 : index
    %c0_10 = arith.constant 0 : index
    %11 = vector.load %arg6[%c0_9, %c0_10] : memref<1x1568xf32, #tpu.memory_space<vmem>>, vector<1x1568xf32>
    %12 = vector.broadcast %11 : vector<1x1568xf32> to vector<8x1568xf32>
    %13 = arith.addf %10, %12 : vector<8x1568xf32>
    %cst_11 = arith.constant 0.000000e+00 : f32
    %14 = vector.broadcast %cst_11 : f32 to vector<8x1568xf32>
    %15 = arith.maximumf %13, %14 : vector<8x1568xf32>
    %16 = arith.truncf %15 : vector<8x1568xf32> to vector<8x1568xbf16>
    %c0_12 = arith.constant 0 : index
    %c0_13 = arith.constant 0 : index
    %17 = vector.load %arg7[%c0_12, %c0_13] : memref<1568x128xbf16, #tpu.memory_space<vmem>>, vector<1568x128xbf16>
    %cst_14 = arith.constant dense<0.000000e+00> : vector<8x128xf32>
    %18 = tpu.matmul %16, %17, %cst_14 {dimension_numbers = #tpu.dot_dimension_numbers<[1], [0], [0], [1], [0, 0, 1, 1], [], []>} : vector<8x1568xbf16>, vector<1568x128xbf16>, vector<8x128xf32> -> vector<8x128xf32>
    %c0_15 = arith.constant 0 : index
    %c0_16 = arith.constant 0 : index
    %19 = vector.load %arg2[%c0_15, %c0_16] : memref<8x5xbf16, #tpu.memory_space<vmem>>, vector<8x5xbf16>
    %c0_17 = arith.constant 0 : index
    %c0_18 = arith.constant 0 : index
    %20 = vector.load %arg8[%c0_17, %c0_18] : memref<5x128xbf16, #tpu.memory_space<vmem>>, vector<5x128xbf16>
    %cst_19 = arith.constant dense<0.000000e+00> : vector<8x128xf32>
    %21 = tpu.matmul %19, %20, %cst_19 {dimension_numbers = #tpu.dot_dimension_numbers<[1], [0], [0], [1], [0, 0, 1, 1], [], []>} : vector<8x5xbf16>, vector<5x128xbf16>, vector<8x128xf32> -> vector<8x128xf32>
    %22 = arith.addf %18, %21 : vector<8x128xf32>
    %c0_20 = arith.constant 0 : index
    %c0_21 = arith.constant 0 : index
    %23 = vector.load %arg9[%c0_20, %c0_21] : memref<1x128xf32, #tpu.memory_space<vmem>>, vector<1x128xf32>
    %24 = vector.broadcast %23 : vector<1x128xf32> to vector<8x128xf32>
    %25 = arith.addf %22, %24 : vector<8x128xf32>
    %cst_22 = arith.constant 0.000000e+00 : f32
    %26 = vector.broadcast %cst_22 : f32 to vector<8x128xf32>
    %27 = arith.maximumf %25, %26 : vector<8x128xf32>
    %28 = arith.truncf %27 : vector<8x128xf32> to vector<8x128xbf16>
    %c0_23 = arith.constant 0 : index
    %c0_24 = arith.constant 0 : index
    %29 = vector.load %arg10[%c0_23, %c0_24] : memref<128x128xbf16, #tpu.memory_space<vmem>>, vector<128x128xbf16>
    %cst_25 = arith.constant dense<0.000000e+00> : vector<8x128xf32>
    %30 = tpu.matmul %28, %29, %cst_25 {dimension_numbers = #tpu.dot_dimension_numbers<[1], [0], [0], [1], [0, 0, 1, 1], [], []>} : vector<8x128xbf16>, vector<128x128xbf16>, vector<8x128xf32> -> vector<8x128xf32>
    %c0_26 = arith.constant 0 : index
    %c0_27 = arith.constant 0 : index
    %31 = vector.load %arg11[%c0_26, %c0_27] : memref<1x128xf32, #tpu.memory_space<vmem>>, vector<1x128xf32>
    %32 = vector.broadcast %31 : vector<1x128xf32> to vector<8x128xf32>
    %33 = arith.addf %30, %32 : vector<8x128xf32>
    %c0_28 = arith.constant 0 : index
    %c0_29 = arith.constant 0 : index
    %34 = vector.load %arg12[%c0_28, %c0_29] : memref<8x128xf32, #tpu.memory_space<vmem>>, vector<8x128xf32>
    tpu.vector_store %arg12[%c0_28, %c0_29], %33 {strides = array<i32>} : memref<8x128xf32, #tpu.memory_space<vmem>>, vector<8x128xf32>,
    return
  }
  func.func @transform_0(%arg0: i32) -> (i32, i32) {
    %c0_i32 = arith.constant 0 : i32
    %c0_i32_0 = arith.constant 0 : i32
    return %arg0, %c0_i32 : i32, i32
  }
  func.func @transform_1(%arg0: i32) -> (i32, i32) {
    %c0_i32 = arith.constant 0 : i32
    %c0_i32_0 = arith.constant 0 : i32
    return %arg0, %c0_i32 : i32, i32
  }
  func.func @transform_2(%arg0: i32) -> (i32, i32) {
    %c0_i32 = arith.constant 0 : i32
    %c0_i32_0 = arith.constant 0 : i32
    %c0_i32_1 = arith.constant 0 : i32
    return %c0_i32, %c0_i32_0 : i32, i32
  }
  func.func @transform_3(%arg0: i32) -> (i32, i32) {
    %c0_i32 = arith.constant 0 : i32
    %c0_i32_0 = arith.constant 0 : i32
    %c0_i32_1 = arith.constant 0 : i32
    return %c0_i32, %c0_i32_0 : i32, i32
  }
  func.func @transform_4(%arg0: i32) -> (i32, i32) {
    %c0_i32 = arith.constant 0 : i32
    %c0_i32_0 = arith.constant 0 : i32
    %c0_i32_1 = arith.constant 0 : i32
    return %c0_i32, %c0_i32_0 : i32, i32
  }
  func.func @transform_5(%arg0: i32) -> (i32, i32) {
    %c0_i32 = arith.constant 0 : i32
    %c0_i32_0 = arith.constant 0 : i32
    %c0_i32_1 = arith.constant 0 : i32
    return %c0_i32, %c0_i32_0 : i32, i32
  }
  func.func @transform_6(%arg0: i32) -> (i32, i32) {
    %c0_i32 = arith.constant 0 : i32
    %c0_i32_0 = arith.constant 0 : i32
    %c0_i32_1 = arith.constant 0 : i32
    return %c0_i32, %c0_i32_0 : i32, i32
  }
  func.func @transform_7(%arg0: i32) -> (i32, i32) {
    %c0_i32 = arith.constant 0 : i32
    %c0_i32_0 = arith.constant 0 : i32
    %c0_i32_1 = arith.constant 0 : i32
    return %c0_i32, %c0_i32_0 : i32, i32
  }
  func.func @transform_8(%arg0: i32) -> (i32, i32) {
    %c0_i32 = arith.constant 0 : i32
    %c0_i32_0 = arith.constant 0 : i32
    %c0_i32_1 = arith.constant 0 : i32
    return %c0_i32, %c0_i32_0 : i32, i32
  }
  func.func @transform_9(%arg0: i32) -> (i32, i32) {
    %c0_i32 = arith.constant 0 : i32
    %c0_i32_0 = arith.constant 0 : i32
    %c0_i32_1 = arith.constant 0 : i32
    return %c0_i32, %c0_i32_0 : i32, i32
  }
  func.func @transform_10(%arg0: i32) -> (i32, i32) {
    %c0_i32 = arith.constant 0 : i32
    %c0_i32_0 = arith.constant 0 : i32
    %c0_i32_1 = arith.constant 0 : i32
    return %c0_i32, %c0_i32_0 : i32, i32
  }
  func.func @transform_11(%arg0: i32) -> (i32, i32) {
    %c0_i32 = arith.constant 0 : i32
    %c0_i32_0 = arith.constant 0 : i32
    return %arg0, %c0_i32 : i32, i32
  }
}

</mosaic_0001>

<llo_original>
// kernel: _forward_jit.1
$region0: #{_forward_jit.1}
  #allocation0 [shape = 'u32[]', space=smem, size = 0x4, offset = 0x4, fixed_abs, tag = 'smem constant byte address 0x4 - core index']
  #allocation1 [shape = 'u32[144,128]{1,0:T(1,128)}', space=vmem, size = 0x12000, scoped, tag = 'internal scratch']
  %s0 = inlined_call_operand.vmem [shape: bf16[8,147], index: 0, kind: input, shape index: {}]
  %s1 = inlined_call_operand.vmem [shape: bf16[8,5], index: 1, kind: input, shape index: {}]
  %s2 = inlined_call_operand.hbm [shape: bf16[147,784], index: 2, kind: input, shape index: {}]
  %s3 = inlined_call_operand.hbm [shape: f32[1,784], index: 3, kind: input, shape index: {}]
  %s4 = inlined_call_operand.hbm [shape: bf16[784,1568], index: 4, kind: input, shape index: {}]
  %s5 = inlined_call_operand.hbm [shape: f32[1,1568], index: 5, kind: input, shape index: {}]
  %s6 = inlined_call_operand.hbm [shape: bf16[1568,128], index: 6, kind: input, shape index: {}]
  %s7 = inlined_call_operand.hbm [shape: bf16[5,128], index: 7, kind: input, shape index: {}]
  %s8 = inlined_call_operand.hbm [shape: f32[1,128], index: 8, kind: input, shape index: {}]
  %s9 = inlined_call_operand.hbm [shape: bf16[128,128], index: 9, kind: input, shape index: {}]
  %s10 = inlined_call_operand.hbm [shape: f32[1,128], index: 10, kind: input, shape index: {}]
  %s11 = inlined_call_operand.vmem [shape: f32[8,128], index: 11, kind: output, shape index: {}]
  %s12 = sld [smem:[#allocation0]]
  $region90: #{_forward_jit.1} parent=0
    _
  %s14 = ssub.s32 1, %s12
  %s15 = scalar_select 0, %s14, %s12
  $region1: #{_forward_jit.1} parent=0
    #allocation2 [shape = 'u8[272384]{0}', space=vmem, size = 0x42800, scoped, tag = 'input window, operand 2, single buffered']
    #allocation3 [shape = 's32[1]{0}', space=sflag, size = 0x4, scoped, tag = 'scoped memory for _forward_jit.1']
    #allocation4 [shape = 'u8[3584]{0}', space=vmem, size = 0x1000, scoped, tag = 'input window, operand 3, single buffered']
    #allocation5 [shape = 's32[1]{0}', space=sflag, size = 0x4, scoped, tag = 'scoped memory for _forward_jit.1']
    #allocation6 [shape = 'u8[2609152]{0}', space=vmem, size = 0x27d000, scoped, tag = 'input window, operand 4, single buffered']
    #allocation7 [shape = 'u8[6656]{0}', space=vmem, size = 0x1c00, scoped, tag = 'input window, operand 5, single buffered']
    #allocation8 [shape = 's32[1]{0}', space=sflag, size = 0x4, scoped, tag = 'scoped memory for _forward_jit.1']
    #allocation9 [shape = 'u8[401408]{0}', space=vmem, size = 0x62000, scoped, tag = 'input window, operand 6, single buffered']
    #allocation10 [shape = 'u8[2048]{0}', space=vmem, size = 0x800, scoped, tag = 'input window, operand 7, single buffered']
    #allocation11 [shape = 's32[1]{0}', space=sflag, size = 0x4, scoped, tag = 'scoped memory for _forward_jit.1']
    #allocation12 [shape = 'u8[512]{0}', space=vmem, size = 0x400, scoped, tag = 'input window, operand 8, single buffered']
    #allocation13 [shape = 'u8[32768]{0}', space=vmem, size = 0x8000, scoped, tag = 'input window, operand 9, single buffered']
    #allocation14 [shape = 's32[1]{0}', space=sflag, size = 0x4, scoped, tag = 'scoped memory for _forward_jit.1']
    #allocation15 [shape = 'u8[512]{0}', space=vmem, size = 0x400, scoped, tag = 'input window, operand 10, single buffered']
    %16 = vsyncpa [#allocation3], 0
    %17 = vsyncpa [#allocation5], 0
    %18 = vsyncpa [#allocation8], 0
    %19 = vsyncpa [#allocation11], 0
    %20 = vsyncpa [#allocation14], 0
    // Predicated region
    $region2: #{_forward_jit.1} parent=1 // pred_check
      _
    $region3: #{_forward_jit.1} parent=1 // pred_check_branch
      %22 = sbr.rel (0) target = $region5
    $region4: #{_forward_jit.1} parent=1 // pred_region
      _
    $region5: #{_forward_jit.1} parent=1 // pred_fallthru
      _
    // Predicated region
    $region6: #{_forward_jit.1} parent=1 // pred_check
      _
    $region7: #{_forward_jit.1} parent=1 // pred_check_branch
      %24 = sbr.rel (0) target = $region9
    $region8: #{_forward_jit.1} parent=1 // pred_region
      _
    $region9: #{_forward_jit.1} parent=1 // pred_fallthru
      _
    // Predicated region
    $region10: #{_forward_jit.1} parent=1 // pred_check
      _
    $region11: #{_forward_jit.1} parent=1 // pred_check_branch
      %26 = sbr.rel (0) target = $region13
    $region12: #{_forward_jit.1} parent=1 // pred_region
      %s28 = ssub.s32 8512, 8512
      %29 = vsyncadd [#allocation3], %s28
      %s30 = sshll.u32 [#allocation2], 4
      %s31 = int_to_ptr.vmem [resolvable:$true] %s30
      %36 = dma.hbm_to_vmem [thread:$0]  %s2, 8512, %s31, [#allocation3], 448, 448, 28
    $region13: #{_forward_jit.1} parent=1 // pred_fallthru
      _
    // Predicated region
    $region14: #{_forward_jit.1} parent=1 // pred_check
      _
    $region15: #{_forward_jit.1} parent=1 // pred_check_branch
      %38 = sbr.rel (0) target = $region17
    $region16: #{_forward_jit.1} parent=1 // pred_region
      %s40 = ssub.s32 112, 112
      %41 = vsyncadd [#allocation5], %s40
      %s43 = sshll.u32 [#allocation4], 4
      %s44 = int_to_ptr.vmem [resolvable:$true] %s43
      %46 = dma.hbm_to_vmem [thread:$0]  %s3, 112, %s44, [#allocation5]
    $region17: #{_forward_jit.1} parent=1 // pred_fallthru
      _
    // Predicated region
    $region18: #{_forward_jit.1} parent=1 // pred_check
      _
    $region19: #{_forward_jit.1} parent=1 // pred_check_branch
      %48 = sbr.rel (0) target = $region21
    $region20: #{_forward_jit.1} parent=1 // pred_region
      %s50 = ssub.s32 81536, 81536
      %51 = vsyncadd [#allocation5], %s50
      %s52 = sshll.u32 [#allocation6], 4
      %s53 = int_to_ptr.vmem [resolvable:$true] %s52
      %58 = dma.hbm_to_vmem [thread:$0]  %s4, 81536, %s53, [#allocation5], 832, 832, 52
    $region21: #{_forward_jit.1} parent=1 // pred_fallthru
      _
    // Predicated region
    $region22: #{_forward_jit.1} parent=1 // pred_check
      _
    $region23: #{_forward_jit.1} parent=1 // pred_check_branch
      %60 = sbr.rel (0) target = $region25
    $region24: #{_forward_jit.1} parent=1 // pred_region
      %s62 = ssub.s32 208, 208
      %63 = vsyncadd [#allocation8], %s62
      %s65 = sshll.u32 [#allocation7], 4
      %s66 = int_to_ptr.vmem [resolvable:$true] %s65
      %68 = dma.hbm_to_vmem [thread:$0]  %s5, 208, %s66, [#allocation8]
    $region25: #{_forward_jit.1} parent=1 // pred_fallthru
      _
    // Predicated region
    $region26: #{_forward_jit.1} parent=1 // pred_check
      _
    $region27: #{_forward_jit.1} parent=1 // pred_check_branch
      %70 = sbr.rel (0) target = $region29
    $region28: #{_forward_jit.1} parent=1 // pred_region
      %s72 = ssub.s32 12544, 12544
      %73 = vsyncadd [#allocation8], %s72
      %s74 = sshll.u32 [#allocation9], 4
      %s75 = int_to_ptr.vmem [resolvable:$true] %s74
      %80 = dma.hbm_to_vmem [thread:$0]  %s6, 12544, %s75, [#allocation8], 64, 64, 4
    $region29: #{_forward_jit.1} parent=1 // pred_fallthru
      _
    // Predicated region
    $region30: #{_forward_jit.1} parent=1 // pred_check
      _
    $region31: #{_forward_jit.1} parent=1 // pred_check_branch
      %82 = sbr.rel (0) target = $region33
    $region32: #{_forward_jit.1} parent=1 // pred_region
      %s84 = ssub.s32 64, 64
      %85 = vsyncadd [#allocation11], %s84
      %s87 = sshll.u32 [#allocation10], 4
      %s88 = int_to_ptr.vmem [resolvable:$true] %s87
      %90 = dma.hbm_to_vmem [thread:$0]  %s7, 64, %s88, [#allocation11]
    $region33: #{_forward_jit.1} parent=1 // pred_fallthru
      _
    // Predicated region
    $region34: #{_forward_jit.1} parent=1 // pred_check
      _
    $region35: #{_forward_jit.1} parent=1 // pred_check_branch
      %92 = sbr.rel (0) target = $region37
    $region36: #{_forward_jit.1} parent=1 // pred_region
      %s94 = ssub.s32 16, 16
      %95 = vsyncadd [#allocation11], %s94
      %s97 = sshll.u32 [#allocation12], 4
      %s98 = int_to_ptr.vmem [resolvable:$true] %s97
      %100 = dma.hbm_to_vmem [thread:$0]  %s8, 16, %s98, [#allocation11]
    $region37: #{_forward_jit.1} parent=1 // pred_fallthru
      _
    // Predicated region
    $region38: #{_forward_jit.1} parent=1 // pred_check
      _
    $region39: #{_forward_jit.1} parent=1 // pred_check_branch
      %102 = sbr.rel (0) target = $region41
    $region40: #{_forward_jit.1} parent=1 // pred_region
      %s104 = ssub.s32 1024, 1024
      %105 = vsyncadd [#allocation14], %s104
      %s106 = sshll.u32 [#allocation13], 4
      %s107 = int_to_ptr.vmem [resolvable:$true] %s106
      %112 = dma.hbm_to_vmem [thread:$0]  %s9, 1024, %s107, [#allocation14], 64, 64, 4
    $region41: #{_forward_jit.1} parent=1 // pred_fallthru
      _
    // Predicated region
    $region42: #{_forward_jit.1} parent=1 // pred_check
      _
    $region43: #{_forward_jit.1} parent=1 // pred_check_branch
      %114 = sbr.rel (0) target = $region45
    $region44: #{_forward_jit.1} parent=1 // pred_region
      %s116 = ssub.s32 16, 16
      %117 = vsyncadd [#allocation14], %s116
      %s119 = sshll.u32 [#allocation15], 4
      %s120 = int_to_ptr.vmem [resolvable:$true] %s119
      %122 = dma.hbm_to_vmem [thread:$0]  %s10, 16, %s120, [#allocation14]
    $region45: #{_forward_jit.1} parent=1 // pred_fallthru
      _
    // Predicated region
    $region46: #{_forward_jit.1} parent=1 // pred_check
      _
    $region47: #{_forward_jit.1} parent=1 // pred_check_branch
      %124 = sbr.rel (0) target = $region49
    $region48: #{_forward_jit.1} parent=1 // pred_region
      %125 = dma.done [#allocation3], 8512
    $region49: #{_forward_jit.1} parent=1 // pred_fallthru
      _
    // Predicated region
    $region50: #{_forward_jit.1} parent=1 // pred_check
      _
    $region51: #{_forward_jit.1} parent=1 // pred_check_branch
      %127 = sbr.rel (0) target = $region53
    $region52: #{_forward_jit.1} parent=1 // pred_region
      %128 = dma.done [#allocation5], 112
    $region53: #{_forward_jit.1} parent=1 // pred_fallthru
      _
    // Predicated region
    $region54: #{_forward_jit.1} parent=1 // pred_check
      _
    $region55: #{_forward_jit.1} parent=1 // pred_check_branch
      %130 = sbr.rel (0) target = $region57
    $region56: #{_forward_jit.1} parent=1 // pred_region
      %131 = dma.done [#allocation5], 81536
    $region57: #{_forward_jit.1} parent=1 // pred_fallthru
      _
    // Predicated region
    $region58: #{_forward_jit.1} parent=1 // pred_check
      _
    $region59: #{_forward_jit.1} parent=1 // pred_check_branch
      %133 = sbr.rel (0) target = $region61
    $region60: #{_forward_jit.1} parent=1 // pred_region
      %134 = dma.done [#allocation8], 208
    $region61: #{_forward_jit.1} parent=1 // pred_fallthru
      _
    // Predicated region
    $region62: #{_forward_jit.1} parent=1 // pred_check
      _
    $region63: #{_forward_jit.1} parent=1 // pred_check_branch
      %136 = sbr.rel (0) target = $region65
    $region64: #{_forward_jit.1} parent=1 // pred_region
      %137 = dma.done [#allocation8], 12544
    $region65: #{_forward_jit.1} parent=1 // pred_fallthru
      _
    // Predicated region
    $region66: #{_forward_jit.1} parent=1 // pred_check
      _
    $region67: #{_forward_jit.1} parent=1 // pred_check_branch
      %139 = sbr.rel (0) target = $region69
    $region68: #{_forward_jit.1} parent=1 // pred_region
      %140 = dma.done [#allocation11], 64
    $region69: #{_forward_jit.1} parent=1 // pred_fallthru
      _
    // Predicated region
    $region70: #{_forward_jit.1} parent=1 // pred_check
      _
    $region71: #{_forward_jit.1} parent=1 // pred_check_branch
      %142 = sbr.rel (0) target = $region73
    $region72: #{_forward_jit.1} parent=1 // pred_region
      %143 = dma.done [#allocation11], 16
    $region73: #{_forward_jit.1} parent=1 // pred_fallthru
      _
    // Predicated region
    $region74: #{_forward_jit.1} parent=1 // pred_check
      _
    $region75: #{_forward_jit.1} parent=1 // pred_check_branch
      %145 = sbr.rel (0) target = $region77
    $region76: #{_forward_jit.1} parent=1 // pred_region
      %146 = dma.done [#allocation14], 1024
    $region77: #{_forward_jit.1} parent=1 // pred_fallthru
      _
    // Predicated region
    $region78: #{_forward_jit.1} parent=1 // pred_check
      _
    $region79: #{_forward_jit.1} parent=1 // pred_check_branch
      %148 = sbr.rel (0) target = $region81
    $region80: #{_forward_jit.1} parent=1 // pred_region
      %149 = dma.done [#allocation14], 16
    $region81: #{_forward_jit.1} parent=1 // pred_fallthru
      _
    %v151 = vld [vmem:[%s0] sm:$0xff]
    %v152 = vld [vmem:[#allocation2] sm:$0xff]
    %v153 = vld [vmem:[#allocation2 + $0x8] sm:$0xff]
    %v154 = vld [vmem:[#allocation2 + $0x10] sm:$0xff]
    %v155 = vld [vmem:[#allocation2 + $0x18] sm:$0xf]
    %v156 = vld [vmem:[#allocation2 + $0x1c] sm:$0xff]
    %v157 = vld [vmem:[#allocation2 + $0x24] sm:$0xff]
    %v158 = vld [vmem:[#allocation2 + $0x2c] sm:$0xff]
    %v159 = vld [vmem:[#allocation2 + $0x34] sm:$0xf]
    %v160 = vld [vmem:[#allocation2 + $0x38] sm:$0xff]
    %v161 = vld [vmem:[#allocation2 + $0x40] sm:$0xff]
    %v162 = vld [vmem:[#allocation2 + $0x48] sm:$0xff]
    %v163 = vld [vmem:[#allocation2 + $0x50] sm:$0xf]
    %v164 = vld [vmem:[#allocation2 + $0x54] sm:$0xff]
    %v165 = vld [vmem:[#allocation2 + $0x5c] sm:$0xff]
    %v166 = vld [vmem:[#allocation2 + $0x64] sm:$0xff]
    %v167 = vld [vmem:[#allocation2 + $0x6c] sm:$0xf]
    %v168 = vld [vmem:[#allocation2 + $0x70] sm:$0xff]
    %v169 = vld [vmem:[#allocation2 + $0x78] sm:$0xff]
    %v170 = vld [vmem:[#allocation2 + $0x80] sm:$0xff]
    %v171 = vld [vmem:[#allocation2 + $0x88] sm:$0xf]
    %v172 = vld [vmem:[#allocation2 + $0x8c] sm:$0xff]
    %v173 = vld [vmem:[#allocation2 + $0x94] sm:$0xff]
    %v174 = vld [vmem:[#allocation2 + $0x9c] sm:$0xff]
    %v175 = vld [vmem:[#allocation2 + $0xa4] sm:$0xf]
    %v176 = vld [vmem:[#allocation2 + $0xa8] sm:$0xff]
    %v177 = vld [vmem:[#allocation2 + $0xb0] sm:$0xff]
    %v178 = vld [vmem:[#allocation2 + $0xb8] sm:$0xff]
    %v179 = vld [vmem:[#allocation2 + $0xc0] sm:$0xf]
    %v180 = vld [vmem:[#allocation2 + $0xc4] sm:$0xff]
    %v181 = vld [vmem:[#allocation2 + $0xcc] sm:$0xff]
    %v182 = vld [vmem:[#allocation2 + $0xd4] sm:$0xff]
    %v183 = vld [vmem:[#allocation2 + $0xdc] sm:$0xf]
    %v184 = vld [vmem:[#allocation2 + $0xe0] sm:$0xff]
    %v185 = vld [vmem:[#allocation2 + $0xe8] sm:$0xff]
    %v186 = vld [vmem:[#allocation2 + $0xf0] sm:$0xff]
    %v187 = vld [vmem:[#allocation2 + $0xf8] sm:$0xf]
    %v188 = vld [vmem:[#allocation2 + $0xfc] sm:$0xff]
    %v189 = vld [vmem:[#allocation2 + $0x104] sm:$0xff]
    %v190 = vld [vmem:[#allocation2 + $0x10c] sm:$0xff]
    %v191 = vld [vmem:[#allocation2 + $0x114] sm:$0xf]
    %v192 = vld [vmem:[#allocation2 + $0x118] sm:$0xff]
    %v193 = vld [vmem:[#allocation2 + $0x120] sm:$0xff]
    %v194 = vld [vmem:[#allocation2 + $0x128] sm:$0xff]
    %v195 = vld [vmem:[#allocation2 + $0x130] sm:$0xf]
    %v196 = vld [vmem:[#allocation2 + $0x134] sm:$0xff]
    %v197 = vld [vmem:[#allocation2 + $0x13c] sm:$0xff]
    %v198 = vld [vmem:[#allocation2 + $0x144] sm:$0xff]
    %v199 = vld [vmem:[#allocation2 + $0x14c] sm:$0xf]
    %v200 = vld [vmem:[#allocation2 + $0x150] sm:$0xff]
    %v201 = vld [vmem:[#allocation2 + $0x158] sm:$0xff]
    %v202 = vld [vmem:[#allocation2 + $0x160] sm:$0xff]
    %v203 = vld [vmem:[#allocation2 + $0x168] sm:$0xf]
    %v204 = vld [vmem:[#allocation2 + $0x16c] sm:$0xff]
    %v205 = vld [vmem:[#allocation2 + $0x174] sm:$0xff]
    %v206 = vld [vmem:[#allocation2 + $0x17c] sm:$0xff]
    %v207 = vld [vmem:[#allocation2 + $0x184] sm:$0xf]
    %v208 = vld [vmem:[#allocation2 + $0x188] sm:$0xff]
    %v209 = vld [vmem:[#allocation2 + $0x190] sm:$0xff]
    %v210 = vld [vmem:[#allocation2 + $0x198] sm:$0xff]
    %v211 = vld [vmem:[#allocation2 + $0x1a0] sm:$0xf]
    %v212 = vld [vmem:[#allocation2 + $0x1a4] sm:$0xff]
    %v213 = vld [vmem:[#allocation2 + $0x1ac] sm:$0xff]
    %v214 = vld [vmem:[#allocation2 + $0x1b4] sm:$0xff]
    %v215 = vld [vmem:[#allocation2 + $0x1bc] sm:$0xf]
    %v216 = vld [vmem:[#allocation2 + $0x1c0] sm:$0xff]
    %v217 = vld [vmem:[#allocation2 + $0x1c8] sm:$0xff]
    %v218 = vld [vmem:[#allocation2 + $0x1d0] sm:$0xff]
    %v219 = vld [vmem:[#allocation2 + $0x1d8] sm:$0xf]
    %v220 = vld [vmem:[#allocation2 + $0x1dc] sm:$0xff]
    %v221 = vld [vmem:[#allocation2 + $0x1e4] sm:$0xff]
    %v222 = vld [vmem:[#allocation2 + $0x1ec] sm:$0xff]
    %v223 = vld [vmem:[#allocation2 + $0x1f4] sm:$0xf]
    %v224 = vld [vmem:[#allocation2 + $0x1f8] sm:$0x33]
    %v225 = vld [vmem:[#allocation2 + $0x200] sm:$0x33]
    %v226 = vld [vmem:[#allocation2 + $0x208] sm:$0x33]
    %v227 = vld [vmem:[#allocation2 + $0x210] sm:$0x3]
    %v228 = vld [vmem:[#allocation4] sm:$0x7f]
    %v230 = vlaneseq
    %v231 = vshrl.u32 %v230, 7
    %v232 = vsub.s32 0, %v231
    %v233 = vrot.slane %v228, %v232
    %v234 = vlaneseq
    %v235 = vshrl.u32 %v234, 7
    %v236 = vsub.s32 1, %v235
    %v237 = vrot.slane %v228, %v236
    %v238 = vlaneseq
    %v239 = vshrl.u32 %v238, 7
    %v240 = vsub.s32 2, %v239
    %v241 = vrot.slane %v228, %v240
    %v242 = vlaneseq
    %v243 = vshrl.u32 %v242, 7
    %v244 = vsub.s32 3, %v243
    %v245 = vrot.slane %v228, %v244
    %v246 = vlaneseq
    %v247 = vshrl.u32 %v246, 7
    %v248 = vsub.s32 4, %v247
    %v249 = vrot.slane %v228, %v248
    %v250 = vlaneseq
    %v251 = vshrl.u32 %v250, 7
    %v252 = vsub.s32 5, %v251
    %v253 = vrot.slane %v228, %v252
    %v254 = vlaneseq
    %v255 = vshrl.u32 %v254, 7
    %v256 = vsub.s32 6, %v255
    %v257 = vrot.slane %v228, %v256
    %v266 = vunpack.c.l.b16 %v151
    %v267 = vunpack.c.h.b16 %v151
    %v268 = vpack.c.b16 %v266, %v266
    %v269 = vpack.c.b16 %v267, %v267
    %v347 = vunpack.c.l.b16 %v152
    %v348 = vunpack.c.h.b16 %v152
    %v349 = vunpack.c.l.b16 %v153
    %v350 = vunpack.c.h.b16 %v153
    %v351 = vunpack.c.l.b16 %v154
    %v352 = vunpack.c.h.b16 %v154
    %v353 = vunpack.c.l.b16 %v155
    %v354 = vunpack.c.l.b16 %v156
    %v355 = vunpack.c.h.b16 %v156
    %v356 = vunpack.c.l.b16 %v157
    %v357 = vunpack.c.h.b16 %v157
    %v358 = vunpack.c.l.b16 %v158
    %v359 = vunpack.c.h.b16 %v158
    %v360 = vunpack.c.l.b16 %v159
    %v361 = vunpack.c.l.b16 %v160
    %v362 = vunpack.c.h.b16 %v160
    %v363 = vunpack.c.l.b16 %v161
    %v364 = vunpack.c.h.b16 %v161
    %v365 = vunpack.c.l.b16 %v162
    %v366 = vunpack.c.h.b16 %v162
    %v367 = vunpack.c.l.b16 %v163
    %v368 = vunpack.c.l.b16 %v164
    %v369 = vunpack.c.h.b16 %v164
    %v370 = vunpack.c.l.b16 %v165
    %v371 = vunpack.c.h.b16 %v165
    %v372 = vunpack.c.l.b16 %v166
    %v373 = vunpack.c.h.b16 %v166
    %v374 = vunpack.c.l.b16 %v167
    %v375 = vunpack.c.l.b16 %v168
    %v376 = vunpack.c.h.b16 %v168
    %v377 = vunpack.c.l.b16 %v169
    %v378 = vunpack.c.h.b16 %v169
    %v379 = vunpack.c.l.b16 %v170
    %v380 = vunpack.c.h.b16 %v170
    %v381 = vunpack.c.l.b16 %v171
    %v382 = vunpack.c.l.b16 %v172
    %v383 = vunpack.c.h.b16 %v172
    %v384 = vunpack.c.l.b16 %v173
    %v385 = vunpack.c.h.b16 %v173
    %v386 = vunpack.c.l.b16 %v174
    %v387 = vunpack.c.h.b16 %v174
    %v388 = vunpack.c.l.b16 %v175
    %v389 = vunpack.c.l.b16 %v176
    %v390 = vunpack.c.h.b16 %v176
    %v391 = vunpack.c.l.b16 %v177
    %v392 = vunpack.c.h.b16 %v177
    %v393 = vunpack.c.l.b16 %v178
    %v394 = vunpack.c.h.b16 %v178
    %v395 = vunpack.c.l.b16 %v179
    %v396 = vunpack.c.l.b16 %v180
    %v397 = vunpack.c.h.b16 %v180
    %v398 = vunpack.c.l.b16 %v181
    %v399 = vunpack.c.h.b16 %v181
    %v400 = vunpack.c.l.b16 %v182
    %v401 = vunpack.c.h.b16 %v182
    %v402 = vunpack.c.l.b16 %v183
    %v403 = vunpack.c.l.b16 %v184
    %v404 = vunpack.c.h.b16 %v184
    %v405 = vunpack.c.l.b16 %v185
    %v406 = vunpack.c.h.b16 %v185
    %v407 = vunpack.c.l.b16 %v186
    %v408 = vunpack.c.h.b16 %v186
    %v409 = vunpack.c.l.b16 %v187
    %v410 = vunpack.c.l.b16 %v188
    %v411 = vunpack.c.h.b16 %v188
    %v412 = vunpack.c.l.b16 %v189
    %v413 = vunpack.c.h.b16 %v189
    %v414 = vunpack.c.l.b16 %v190
    %v415 = vunpack.c.h.b16 %v190
    %v416 = vunpack.c.l.b16 %v191
    %v417 = vunpack.c.l.b16 %v192
    %v418 = vunpack.c.h.b16 %v192
    %v419 = vunpack.c.l.b16 %v193
    %v420 = vunpack.c.h.b16 %v193
    %v421 = vunpack.c.l.b16 %v194
    %v422 = vunpack.c.h.b16 %v194
    %v423 = vunpack.c.l.b16 %v195
    %v424 = vunpack.c.l.b16 %v196
    %v425 = vunpack.c.h.b16 %v196
    %v426 = vunpack.c.l.b16 %v197
    %v427 = vunpack.c.h.b16 %v197
    %v428 = vunpack.c.l.b16 %v198
    %v429 = vunpack.c.h.b16 %v198
    %v430 = vunpack.c.l.b16 %v199
    %v431 = vunpack.c.l.b16 %v200
    %v432 = vunpack.c.h.b16 %v200
    %v433 = vunpack.c.l.b16 %v201
    %v434 = vunpack.c.h.b16 %v201
    %v435 = vunpack.c.l.b16 %v202
    %v436 = vunpack.c.h.b16 %v202
    %v437 = vunpack.c.l.b16 %v203
    %v438 = vunpack.c.l.b16 %v204
    %v439 = vunpack.c.h.b16 %v204
    %v440 = vunpack.c.l.b16 %v205
    %v441 = vunpack.c.h.b16 %v205
    %v442 = vunpack.c.l.b16 %v206
    %v443 = vunpack.c.h.b16 %v206
    %v444 = vunpack.c.l.b16 %v207
    %v445 = vunpack.c.l.b16 %v208
    %v446 = vunpack.c.h.b16 %v208
    %v447 = vunpack.c.l.b16 %v209
    %v448 = vunpack.c.h.b16 %v209
    %v449 = vunpack.c.l.b16 %v210
    %v450 = vunpack.c.h.b16 %v210
    %v451 = vunpack.c.l.b16 %v211
    %v452 = vunpack.c.l.b16 %v212
    %v453 = vunpack.c.h.b16 %v212
    %v454 = vunpack.c.l.b16 %v213
    %v455 = vunpack.c.h.b16 %v213
    %v456 = vunpack.c.l.b16 %v214
    %v457 = vunpack.c.h.b16 %v214
    %v458 = vunpack.c.l.b16 %v215
    %v459 = vunpack.c.l.b16 %v216
    %v460 = vunpack.c.h.b16 %v216
    %v461 = vunpack.c.l.b16 %v217
    %v462 = vunpack.c.h.b16 %v217
    %v463 = vunpack.c.l.b16 %v218
    %v464 = vunpack.c.h.b16 %v218
    %v465 = vunpack.c.l.b16 %v219
    %v466 = vunpack.c.l.b16 %v220
    %v467 = vunpack.c.h.b16 %v220
    %v468 = vunpack.c.l.b16 %v221
    %v469 = vunpack.c.h.b16 %v221
    %v470 = vunpack.c.l.b16 %v222
    %v471 = vunpack.c.h.b16 %v222
    %v472 = vunpack.c.l.b16 %v223
    %v473 = vunpack.c.l.b16 %v224
    %v474 = vunpack.c.h.b16 %v224
    %v475 = vunpack.c.l.b16 %v225
    %v476 = vunpack.c.h.b16 %v225
    %v477 = vunpack.c.l.b16 %v226
    %v478 = vunpack.c.h.b16 %v226
    %v479 = vunpack.c.l.b16 %v227
    %v480 = vpack.c.b16 %v354, %v347
    %v481 = vpack.c.b16 %v355, %v348
    %v482 = vpack.c.b16 %v356, %v349
    %v483 = vpack.c.b16 %v357, %v350
    %v484 = vpack.c.b16 %v358, %v351
    %v485 = vpack.c.b16 %v359, %v352
    %v486 = vpack.c.b16 %v360, %v353
    %v487 = vpack.c.b16 %v368, %v361
    %v488 = vpack.c.b16 %v369, %v362
    %v489 = vpack.c.b16 %v370, %v363
    %v490 = vpack.c.b16 %v371, %v364
    %v491 = vpack.c.b16 %v372, %v365
    %v492 = vpack.c.b16 %v373, %v366
    %v493 = vpack.c.b16 %v374, %v367
    %v494 = vpack.c.b16 %v382, %v375
    %v495 = vpack.c.b16 %v383, %v376
    %v496 = vpack.c.b16 %v384, %v377
    %v497 = vpack.c.b16 %v385, %v378
    %v498 = vpack.c.b16 %v386, %v379
    %v499 = vpack.c.b16 %v387, %v380
    %v500 = vpack.c.b16 %v388, %v381
    %v501 = vpack.c.b16 %v396, %v389
    %v502 = vpack.c.b16 %v397, %v390
    %v503 = vpack.c.b16 %v398, %v391
    %v504 = vpack.c.b16 %v399, %v392
    %v505 = vpack.c.b16 %v400, %v393
    %v506 = vpack.c.b16 %v401, %v394
    %v507 = vpack.c.b16 %v402, %v395
    %v508 = vpack.c.b16 %v410, %v403
    %v509 = vpack.c.b16 %v411, %v404
    %v510 = vpack.c.b16 %v412, %v405
    %v511 = vpack.c.b16 %v413, %v406
    %v512 = vpack.c.b16 %v414, %v407
    %v513 = vpack.c.b16 %v415, %v408
    %v514 = vpack.c.b16 %v416, %v409
    %v515 = vpack.c.b16 %v424, %v417
    %v516 = vpack.c.b16 %v425, %v418
    %v517 = vpack.c.b16 %v426, %v419
    %v518 = vpack.c.b16 %v427, %v420
    %v519 = vpack.c.b16 %v428, %v421
    %v520 = vpack.c.b16 %v429, %v422
    %v521 = vpack.c.b16 %v430, %v423
    %v522 = vpack.c.b16 %v438, %v431
    %v523 = vpack.c.b16 %v439, %v432
    %v524 = vpack.c.b16 %v440, %v433
    %v525 = vpack.c.b16 %v441, %v434
    %v526 = vpack.c.b16 %v442, %v435
    %v527 = vpack.c.b16 %v443, %v436
    %v528 = vpack.c.b16 %v444, %v437
    %v529 = vpack.c.b16 %v452, %v445
    %v530 = vpack.c.b16 %v453, %v446
    %v531 = vpack.c.b16 %v454, %v447
    %v532 = vpack.c.b16 %v455, %v448
    %v533 = vpack.c.b16 %v456, %v449
    %v534 = vpack.c.b16 %v457, %v450
    %v535 = vpack.c.b16 %v458, %v451
    %v536 = vpack.c.b16 %v466, %v459
    %v537 = vpack.c.b16 %v467, %v460
    %v538 = vpack.c.b16 %v468, %v461
    %v539 = vpack.c.b16 %v469, %v462
    %v540 = vpack.c.b16 %v470, %v463
    %v541 = vpack.c.b16 %v471, %v464
    %v542 = vpack.c.b16 %v472, %v465
    %v543 = vpack.c.b16 %v473, %v473
    %v544 = vpack.c.b16 %v474, %v474
    %v545 = vpack.c.b16 %v475, %v475
    %v546 = vpack.c.b16 %v476, %v476
    %v547 = vpack.c.b16 %v477, %v477
    %v548 = vpack.c.b16 %v478, %v478
    %v549 = vpack.c.b16 %v479, %v479
    %vm613 = vcmask 154624
    %v615 = vsel %vm613, %v269, 0
    %vm617 = vcmask 1040384
    %vm618 = vcmask 1041408
    %v619 = vsel %vm617, 4294967295, 65535
    %v620 = vsel %vm618, %v619, 0
    %v622 = vand.u32 %v543, %v620
    %v625 = vand.u32 %v544, %v620
    %v628 = vand.u32 %v545, %v620
    %v631 = vand.u32 %v546, %v620
    %v634 = vand.u32 %v547, %v620
    %v637 = vand.u32 %v548, %v620
    %v640 = vand.u32 %v549, %v620
    %642 = vmatprep.subr.bf16.mxu0 %v481
    %643 = vmatpush1.bf16.msra.mxu0 %v480
    %644 = vmatprep.subr.bf16.mxu0 %v488
    %645 = vmatpush1.bf16.msra.mxu0 %v487
    %646 = vmatprep.subr.bf16.mxu0 %v495
    %647 = vmatpush1.bf16.msra.mxu0 %v494
    %648 = vmatprep.subr.bf16.mxu0 %v502
    %649 = vmatpush1.bf16.msra.mxu0 %v501
    %650 = vmatprep.subr.bf16.mxu0 %v509
    %651 = vmatpush1.bf16.msra.mxu0 %v508
    %652 = vmatprep.subr.bf16.mxu0 %v516
    %653 = vmatpush1.bf16.msra.mxu0 %v515
    %654 = vmatprep.subr.bf16.mxu0 %v523
    %655 = vmatpush1.bf16.msra.mxu0 %v522
    %656 = vmatprep.subr.bf16.mxu0 %v530
    %657 = vmatpush1.bf16.msra.mxu0 %v529
    %658 = vmatprep.subr.bf16.mxu0 %v537
    %659 = vmatpush1.bf16.msra.mxu0 %v536
    %660 = vmatprep.subr.bf16.mxu0 %v625
    %661 = vmatpush1.bf16.msra.mxu0 %v622
    %662 = vmatprep.subr.bf16.mxu0 0
    %663 = vmatpush1.bf16.msra.mxu0 0
    %664 = vmatprep.subr.bf16.mxu0 0
    %665 = vmatpush1.bf16.msra.mxu0 0
    %666 = vmatprep.subr.bf16.mxu0 0
    %667 = vmatpush1.bf16.msra.mxu0 0
    %668 = vmatprep.subr.bf16.mxu0 0
    %669 = vmatpush1.bf16.msra.mxu0 0
    %670 = vmatprep.subr.bf16.mxu0 0
    %671 = vmatpush1.bf16.msra.mxu0 0
    %672 = vmatprep.subr.bf16.mxu0 0
    %673 = vmatpush1.bf16.msra.mxu0 0
    %674 = vmatprep.mubr.bf16.mxu0 %v615
    %675 = vmatmul.mubr.bf16.gmra.mrb[0].mxu0 %v268
    %v676 = vpop.f32.mrb[0].mxu0
    %v677 = vadd.f32 %v233, %v676
    %v678 = vpop.f32.mrb[0].mxu0
    %v679 = vadd.f32 %v237, %v678
    %v680 = vpop.f32.mrb[0].mxu0
    %v681 = vpop.f32.mrb[0].mxu0
    %682 = vdwg.mxu0
    %683 = vmatprep.subr.bf16.mxu0 %v483
    %684 = vmatpush1.bf16.msra.mxu0 %v482
    %685 = vmatprep.subr.bf16.mxu0 %v490
    %686 = vmatpush1.bf16.msra.mxu0 %v489
    %687 = vmatprep.subr.bf16.mxu0 %v497
    %688 = vmatpush1.bf16.msra.mxu0 %v496
    %689 = vmatprep.subr.bf16.mxu0 %v504
    %690 = vmatpush1.bf16.msra.mxu0 %v503
    %691 = vmatprep.subr.bf16.mxu0 %v511
    %692 = vmatpush1.bf16.msra.mxu0 %v510
    %693 = vmatprep.subr.bf16.mxu0 %v518
    %694 = vmatpush1.bf16.msra.mxu0 %v517
    %695 = vmatprep.subr.bf16.mxu0 %v525
    %696 = vmatpush1.bf16.msra.mxu0 %v524
    %697 = vmatprep.subr.bf16.mxu0 %v532
    %698 = vmatpush1.bf16.msra.mxu0 %v531
    %699 = vmatprep.subr.bf16.mxu0 %v539
    %700 = vmatpush1.bf16.msra.mxu0 %v538
    %701 = vmatprep.subr.bf16.mxu0 %v631
    %702 = vmatpush1.bf16.msra.mxu0 %v628
    %703 = vmatprep.subr.bf16.mxu0 0
    %704 = vmatpush1.bf16.msra.mxu0 0
    %705 = vmatprep.subr.bf16.mxu0 0
    %706 = vmatpush1.bf16.msra.mxu0 0
    %707 = vmatprep.subr.bf16.mxu0 0
    %708 = vmatpush1.bf16.msra.mxu0 0
    %709 = vmatprep.subr.bf16.mxu0 0
    %710 = vmatpush1.bf16.msra.mxu0 0
    %711 = vmatprep.subr.bf16.mxu0 0
    %712 = vmatpush1.bf16.msra.mxu0 0
    %713 = vmatprep.subr.bf16.mxu0 0
    %714 = vmatpush1.bf16.msra.mxu0 0
    %715 = vmatprep.mubr.bf16.mxu0 %v615
    %716 = vmatmul.mubr.bf16.gmra.mrb[0].mxu0 %v268
    %v717 = vpop.f32.mrb[0].mxu0
    %v718 = vadd.f32 %v241, %v717
    %v719 = vpop.f32.mrb[0].mxu0
    %v720 = vadd.f32 %v245, %v719
    %v721 = vpop.f32.mrb[0].mxu0
    %v722 = vpop.f32.mrb[0].mxu0
    %723 = vdwg.mxu0
    %724 = vmatprep.subr.bf16.mxu0 %v485
    %725 = vmatpush1.bf16.msra.mxu0 %v484
    %726 = vmatprep.subr.bf16.mxu0 %v492
    %727 = vmatpush1.bf16.msra.mxu0 %v491
    %728 = vmatprep.subr.bf16.mxu0 %v499
    %729 = vmatpush1.bf16.msra.mxu0 %v498
    %730 = vmatprep.subr.bf16.mxu0 %v506
    %731 = vmatpush1.bf16.msra.mxu0 %v505
    %732 = vmatprep.subr.bf16.mxu0 %v513
    %733 = vmatpush1.bf16.msra.mxu0 %v512
    %734 = vmatprep.subr.bf16.mxu0 %v520
    %735 = vmatpush1.bf16.msra.mxu0 %v519
    %736 = vmatprep.subr.bf16.mxu0 %v527
    %737 = vmatpush1.bf16.msra.mxu0 %v526
    %738 = vmatprep.subr.bf16.mxu0 %v534
    %739 = vmatpush1.bf16.msra.mxu0 %v533
    %740 = vmatprep.subr.bf16.mxu0 %v541
    %741 = vmatpush1.bf16.msra.mxu0 %v540
    %742 = vmatprep.subr.bf16.mxu0 %v637
    %743 = vmatpush1.bf16.msra.mxu0 %v634
    %744 = vmatprep.subr.bf16.mxu0 0
    %745 = vmatpush1.bf16.msra.mxu0 0
    %746 = vmatprep.subr.bf16.mxu0 0
    %747 = vmatpush1.bf16.msra.mxu0 0
    %748 = vmatprep.subr.bf16.mxu0 0
    %749 = vmatpush1.bf16.msra.mxu0 0
    %750 = vmatprep.subr.bf16.mxu0 0
    %751 = vmatpush1.bf16.msra.mxu0 0
    %752 = vmatprep.subr.bf16.mxu0 0
    %753 = vmatpush1.bf16.msra.mxu0 0
    %754 = vmatprep.subr.bf16.mxu0 0
    %755 = vmatpush1.bf16.msra.mxu0 0
    %756 = vmatprep.mubr.bf16.mxu0 %v615
    %757 = vmatmul.mubr.bf16.gmra.mrb[0].mxu0 %v268
    %v758 = vpop.f32.mrb[0].mxu0
    %v759 = vadd.f32 %v249, %v758
    %v760 = vpop.f32.mrb[0].mxu0
    %v761 = vadd.f32 %v253, %v760
    %v762 = vpop.f32.mrb[0].mxu0
    %v763 = vpop.f32.mrb[0].mxu0
    %764 = vdwg.mxu0
    %765 = vmatprep.subr.bf16.mxu0 0
    %766 = vmatpush1.bf16.msra.mxu0 %v486
    %767 = vmatprep.subr.bf16.mxu0 0
    %768 = vmatpush1.bf16.msra.mxu0 %v493
    %769 = vmatprep.subr.bf16.mxu0 0
    %770 = vmatpush1.bf16.msra.mxu0 %v500
    %771 = vmatprep.subr.bf16.mxu0 0
    %772 = vmatpush1.bf16.msra.mxu0 %v507
    %773 = vmatprep.subr.bf16.mxu0 0
    %774 = vmatpush1.bf16.msra.mxu0 %v514
    %775 = vmatprep.subr.bf16.mxu0 0
    %776 = vmatpush1.bf16.msra.mxu0 %v521
    %777 = vmatprep.subr.bf16.mxu0 0
    %778 = vmatpush1.bf16.msra.mxu0 %v528
    %779 = vmatprep.subr.bf16.mxu0 0
    %780 = vmatpush1.bf16.msra.mxu0 %v535
    %781 = vmatprep.subr.bf16.mxu0 0
    %782 = vmatpush1.bf16.msra.mxu0 %v542
    %783 = vmatprep.subr.bf16.mxu0 0
    %784 = vmatpush1.bf16.msra.mxu0 %v640
    %785 = vmatprep.subr.bf16.mxu0 0
    %786 = vmatpush1.bf16.msra.mxu0 0
    %787 = vmatprep.subr.bf16.mxu0 0
    %788 = vmatpush1.bf16.msra.mxu0 0
    %789 = vmatprep.subr.bf16.mxu0 0
    %790 = vmatpush1.bf16.msra.mxu0 0
    %791 = vmatprep.subr.bf16.mxu0 0
    %792 = vmatpush1.bf16.msra.mxu0 0
    %793 = vmatprep.subr.bf16.mxu0 0
    %794 = vmatpush1.bf16.msra.mxu0 0
    %795 = vmatprep.subr.bf16.mxu0 0
    %796 = vmatpush1.bf16.msra.mxu0 0
    %797 = vmatprep.mubr.bf16.mxu0 %v615
    %798 = vmatmul.mubr.bf16.gmra.mrb[0].mxu0 %v268
    %v799 = vpop.f32.mrb[0].mxu0
    %v800 = vadd.f32 %v257, %v799
    %v801 = vpop.f32.mrb[0].mxu0
    %v802 = vpop.f32.mrb[0].mxu0
    %v803 = vpop.f32.mrb[0].mxu0
    %804 = vdwg.mxu0
    %v805 = vmax.f32 %v677, 0.0
    %v806 = vmax.f32 %v679, 0.0
    %v807 = vmax.f32 %v718, 0.0
    %v808 = vmax.f32 %v720, 0.0
    %v809 = vmax.f32 %v759, 0.0
    %v810 = vmax.f32 %v761, 0.0
    %v811 = vmax.f32 %v800, 0.0
    %v812 = vpack.c.bf16 %v805, %v805
    %v813 = vpack.c.bf16 %v806, %v806
    %v814 = vpack.c.bf16 %v807, %v807
    %v815 = vpack.c.bf16 %v808, %v808
    %v816 = vpack.c.bf16 %v809, %v809
    %v817 = vpack.c.bf16 %v810, %v810
    %v818 = vpack.c.bf16 %v811, %v811
    %v819 = vld [vmem:[#allocation6] sm:$0xff]
    %v820 = vld [vmem:[#allocation6 + $0x8] sm:$0xff]
    %v821 = vld [vmem:[#allocation6 + $0x10] sm:$0xff]
    %v822 = vld [vmem:[#allocation6 + $0x18] sm:$0xff]
    %v823 = vld [vmem:[#allocation6 + $0x20] sm:$0xff]
    %v824 = vld [vmem:[#allocation6 + $0x28] sm:$0xff]
    %v825 = vld [vmem:[#allocation6 + $0x30] sm:$0xf]
    %v826 = vld [vmem:[#allocation6 + $0x34] sm:$0xff]
    %v827 = vld [vmem:[#allocation6 + $0x3c] sm:$0xff]
    %v828 = vld [vmem:[#allocation6 + $0x44] sm:$0xff]
    %v829 = vld [vmem:[#allocation6 + $0x4c] sm:$0xff]
    %v830 = vld [vmem:[#allocation6 + $0x54] sm:$0xff]
    %v831 = vld [vmem:[#allocation6 + $0x5c] sm:$0xff]
    %v832 = vld [vmem:[#allocation6 + $0x64] sm:$0xf]
    %v833 = vld [vmem:[#allocation6 + $0x68] sm:$0xff]
    %v834 = vld [vmem:[#allocation6 + $0x70] sm:$0xff]
    %v835 = vld [vmem:[#allocation6 + $0x78] sm:$0xff]
    %v836 = vld [vmem:[#allocation6 + $0x80] sm:$0xff]
    %v837 = vld [vmem:[#allocation6 + $0x88] sm:$0xff]
    %v838 = vld [vmem:[#allocation6 + $0x90] sm:$0xff]
    %v839 = vld [vmem:[#allocation6 + $0x98] sm:$0xf]
    %v840 = vld [vmem:[#allocation6 + $0x9c] sm:$0xff]
    %v841 = vld [vmem:[#allocation6 + $0xa4] sm:$0xff]
    %v842 = vld [vmem:[#allocation6 + $0xac] sm:$0xff]
    %v843 = vld [vmem:[#allocation6 + $0xb4] sm:$0xff]
    %v844 = vld [vmem:[#allocation6 + $0xbc] sm:$0xff]
    %v845 = vld [vmem:[#allocation6 + $0xc4] sm:$0xff]
    %v846 = vld [vmem:[#allocation6 + $0xcc] sm:$0xf]
    %v847 = vld [vmem:[#allocation6 + $0xd0] sm:$0xff]
    %v848 = vld [vmem:[#allocation6 + $0xd8] sm:$0xff]
    %v849 = vld [vmem:[#allocation6 + $0xe0] sm:$0xff]
    %v850 = vld [vmem:[#allocation6 + $0xe8] sm:$0xff]
    %v851 = vld [vmem:[#allocation6 + $0xf0] sm:$0xff]
    %v852 = vld [vmem:[#allocation6 + $0xf8] sm:$0xff]
    %v853 = vld [vmem:[#allocation6 + $0x100] sm:$0xf]
    %v854 = vld [vmem:[#allocation6 + $0x104] sm:$0xff]
    %v855 = vld [vmem:[#allocation6 + $0x10c] sm:$0xff]
    %v856 = vld [vmem:[#allocation6 + $0x114] sm:$0xff]
    %v857 = vld [vmem:[#allocation6 + $0x11c] sm:$0xff]
    %v858 = vld [vmem:[#allocation6 + $0x124] sm:$0xff]
    %v859 = vld [vmem:[#allocation6 + $0x12c] sm:$0xff]
    %v860 = vld [vmem:[#allocation6 + $0x134] sm:$0xf]
    %v861 = vld [vmem:[#allocation6 + $0x138] sm:$0xff]
    %v862 = vld [vmem:[#allocation6 + $0x140] sm:$0xff]
    %v863 = vld [vmem:[#allocation6 + $0x148] sm:$0xff]
    %v864 = vld [vmem:[#allocation6 + $0x150] sm:$0xff]
    %v865 = vld [vmem:[#allocation6 + $0x158] sm:$0xff]
    %v866 = vld [vmem:[#allocation6 + $0x160] sm:$0xff]
    %v867 = vld [vmem:[#allocation6 + $0x168] sm:$0xf]
    %v868 = vld [vmem:[#allocation6 + $0x16c] sm:$0xff]
    %v869 = vld [vmem:[#allocation6 + $0x174] sm:$0xff]
    %v870 = vld [vmem:[#allocation6 + $0x17c] sm:$0xff]
    %v871 = vld [vmem:[#allocation6 + $0x184] sm:$0xff]
    %v872 = vld [vmem:[#allocation6 + $0x18c] sm:$0xff]
    %v873 = vld [vmem:[#allocation6 + $0x194] sm:$0xff]
    %v874 = vld [vmem:[#allocation6 + $0x19c] sm:$0xf]
    %v875 = vld [vmem:[#allocation6 + $0x1a0] sm:$0xff]
    %v876 = vld [vmem:[#allocation6 + $0x1a8] sm:$0xff]
    %v877 = vld [vmem:[#allocation6 + $0x1b0] sm:$0xff]
    %v878 = vld [vmem:[#allocation6 + $0x1b8] sm:$0xff]
    %v879 = vld [vmem:[#allocation6 + $0x1c0] sm:$0xff]
    %v880 = vld [vmem:[#allocation6 + $0x1c8] sm:$0xff]
    %v881 = vld [vmem:[#allocation6 + $0x1d0] sm:$0xf]
    %v882 = vld [vmem:[#allocation6 + $0x1d4] sm:$0xff]
    %v883 = vld [vmem:[#allocation6 + $0x1dc] sm:$0xff]
    %v884 = vld [vmem:[#allocation6 + $0x1e4] sm:$0xff]
    %v885 = vld [vmem:[#allocation6 + $0x1ec] sm:$0xff]
    %v886 = vld [vmem:[#allocation6 + $0x1f4] sm:$0xff]
    %v887 = vld [vmem:[#allocation6 + $0x1fc] sm:$0xff]
    %v888 = vld [vmem:[#allocation6 + $0x204] sm:$0xf]
    %v889 = vld [vmem:[#allocation6 + $0x208] sm:$0xff]
    %v890 = vld [vmem:[#allocation6 + $0x210] sm:$0xff]
    %v891 = vld [vmem:[#allocation6 + $0x218] sm:$0xff]
    %v892 = vld [vmem:[#allocation6 + $0x220] sm:$0xff]
    %v893 = vld [vmem:[#allocation6 + $0x228] sm:$0xff]
    %v894 = vld [vmem:[#allocation6 + $0x230] sm:$0xff]
    %v895 = vld [vmem:[#allocation6 + $0x238] sm:$0xf]
    %v896 = vld [vmem:[#allocation6 + $0x23c] sm:$0xff]
    %v897 = vld [vmem:[#allocation6 + $0x244] sm:$0xff]
    %v898 = vld [vmem:[#allocation6 + $0x24c] sm:$0xff]
    %v899 = vld [vmem:[#allocation6 + $0x254] sm:$0xff]
    %v900 = vld [vmem:[#allocation6 + $0x25c] sm:$0xff]
    %v901 = vld [vmem:[#allocation6 + $0x264] sm:$0xff]
    %v902 = vld [vmem:[#allocation6 + $0x26c] sm:$0xf]
    %v903 = vld [vmem:[#allocation6 + $0x270] sm:$0xff]
    %v904 = vld [vmem:[#allocation6 + $0x278] sm:$0xff]
    %v905 = vld [vmem:[#allocation6 + $0x280] sm:$0xff]
    %v906 = vld [vmem:[#allocation6 + $0x288] sm:$0xff]
    %v907 = vld [vmem:[#allocation6 + $0x290] sm:$0xff]
    %v908 = vld [vmem:[#allocation6 + $0x298] sm:$0xff]
    %v909 = vld [vmem:[#allocation6 + $0x2a0] sm:$0xf]
    %v910 = vld [vmem:[#allocation6 + $0x2a4] sm:$0xff]
    %v911 = vld [vmem:[#allocation6 + $0x2ac] sm:$0xff]
    %v912 = vld [vmem:[#allocation6 + $0x2b4] sm:$0xff]
    %v913 = vld [vmem:[#allocation6 + $0x2bc] sm:$0xff]
    %v914 = vld [vmem:[#allocation6 + $0x2c4] sm:$0xff]
    %v915 = vld [vmem:[#allocation6 + $0x2cc] sm:$0xff]
    %v916 = vld [vmem:[#allocation6 + $0x2d4] sm:$0xf]
    %v917 = vld [vmem:[#allocation6 + $0x2d8] sm:$0xff]
    %v918 = vld [vmem:[#allocation6 + $0x2e0] sm:$0xff]
    %v919 = vld [vmem:[#allocation6 + $0x2e8] sm:$0xff]
    %v920 = vld [vmem:[#allocation6 + $0x2f0] sm:$0xff]
    %v921 = vld [vmem:[#allocation6 + $0x2f8] sm:$0xff]
    %v922 = vld [vmem:[#allocation6 + $0x300] sm:$0xff]
    %v923 = vld [vmem:[#allocation6 + $0x308] sm:$0xf]
    %v924 = vld [vmem:[#allocation6 + $0x30c] sm:$0xff]
    %v925 = vld [vmem:[#allocation6 + $0x314] sm:$0xff]
    %v926 = vld [vmem:[#allocation6 + $0x31c] sm:$0xff]
    %v927 = vld [vmem:[#allocation6 + $0x324] sm:$0xff]
    %v928 = vld [vmem:[#allocation6 + $0x32c] sm:$0xff]
    %v929 = vld [vmem:[#allocation6 + $0x334] sm:$0xff]
    %v930 = vld [vmem:[#allocation6 + $0x33c] sm:$0xf]
    %v931 = vld [vmem:[#allocation6 + $0x340] sm:$0xff]
    %v932 = vld [vmem:[#allocation6 + $0x348] sm:$0xff]
    %v933 = vld [vmem:[#allocation6 + $0x350] sm:$0xff]
    %v934 = vld [vmem:[#allocation6 + $0x358] sm:$0xff]
    %v935 = vld [vmem:[#allocation6 + $0x360] sm:$0xff]
    %v936 = vld [vmem:[#allocation6 + $0x368] sm:$0xff]
    %v937 = vld [vmem:[#allocation6 + $0x370] sm:$0xf]
    %v938 = vld [vmem:[#allocation6 + $0x374] sm:$0xff]
    %v939 = vld [vmem:[#allocation6 + $0x37c] sm:$0xff]
    %v940 = vld [vmem:[#allocation6 + $0x384] sm:$0xff]
    %v941 = vld [vmem:[#allocation6 + $0x38c] sm:$0xff]
    %v942 = vld [vmem:[#allocation6 + $0x394] sm:$0xff]
    %v943 = vld [vmem:[#allocation6 + $0x39c] sm:$0xff]
    %v944 = vld [vmem:[#allocation6 + $0x3a4] sm:$0xf]
    %v945 = vld [vmem:[#allocation6 + $0x3a8] sm:$0xff]
    %v946 = vld [vmem:[#allocation6 + $0x3b0] sm:$0xff]
    %v947 = vld [vmem:[#allocation6 + $0x3b8] sm:$0xff]
    %v948 = vld [vmem:[#allocation6 + $0x3c0] sm:$0xff]
    %v949 = vld [vmem:[#allocation6 + $0x3c8] sm:$0xff]
    %v950 = vld [vmem:[#allocation6 + $0x3d0] sm:$0xff]
    %v951 = vld [vmem:[#allocation6 + $0x3d8] sm:$0xf]
    %v952 = vld [vmem:[#allocation6 + $0x3dc] sm:$0xff]
    %v953 = vld [vmem:[#allocation6 + $0x3e4] sm:$0xff]
    %v954 = vld [vmem:[#allocation6 + $0x3ec] sm:$0xff]
    %v955 = vld [vmem:[#allocation6 + $0x3f4] sm:$0xff]
    %v956 = vld [vmem:[#allocation6 + $0x3fc] sm:$0xff]
    %v957 = vld [vmem:[#allocation6 + $0x404] sm:$0xff]
    %v958 = vld [vmem:[#allocation6 + $0x40c] sm:$0xf]
    %v959 = vld [vmem:[#allocation6 + $0x410] sm:$0xff]
    %v960 = vld [vmem:[#allocation6 + $0x418] sm:$0xff]
    %v961 = vld [vmem:[#allocation6 + $0x420] sm:$0xff]
    %v962 = vld [vmem:[#allocation6 + $0x428] sm:$0xff]
    %v963 = vld [vmem:[#allocation6 + $0x430] sm:$0xff]
    %v964 = vld [vmem:[#allocation6 + $0x438] sm:$0xff]
    %v965 = vld [vmem:[#allocation6 + $0x440] sm:$0xf]
    %v966 = vld [vmem:[#allocation6 + $0x444] sm:$0xff]
    %v967 = vld [vmem:[#allocation6 + $0x44c] sm:$0xff]
    %v968 = vld [vmem:[#allocation6 + $0x454] sm:$0xff]
    %v969 = vld [vmem:[#allocation6 + $0x45c] sm:$0xff]
    %v970 = vld [vmem:[#allocation6 + $0x464] sm:$0xff]
    %v971 = vld [vmem:[#allocation6 + $0x46c] sm:$0xff]
    %v972 = vld [vmem:[#allocation6 + $0x474] sm:$0xf]
    %v973 = vld [vmem:[#allocation6 + $0x478] sm:$0xff]
    %v974 = vld [vmem:[#allocation6 + $0x480] sm:$0xff]
    %v975 = vld [vmem:[#allocation6 + $0x488] sm:$0xff]
    %v976 = vld [vmem:[#allocation6 + $0x490] sm:$0xff]
    %v977 = vld [vmem:[#allocation6 + $0x498] sm:$0xff]
    %v978 = vld [vmem:[#allocation6 + $0x4a0] sm:$0xff]
    %v979 = vld [vmem:[#allocation6 + $0x4a8] sm:$0xf]
    %v980 = vld [vmem:[#allocation6 + $0x4ac] sm:$0xff]
    %v981 = vld [vmem:[#allocation6 + $0x4b4] sm:$0xff]
    %v982 = vld [vmem:[#allocation6 + $0x4bc] sm:$0xff]
    %v983 = vld [vmem:[#allocation6 + $0x4c4] sm:$0xff]
    %v984 = vld [vmem:[#allocation6 + $0x4cc] sm:$0xff]
    %v985 = vld [vmem:[#allocation6 + $0x4d4] sm:$0xff]
    %v986 = vld [vmem:[#allocation6 + $0x4dc] sm:$0xf]
    %v987 = vld [vmem:[#allocation6 + $0x4e0] sm:$0xff]
    %v988 = vld [vmem:[#allocation6 + $0x4e8] sm:$0xff]
    %v989 = vld [vmem:[#allocation6 + $0x4f0] sm:$0xff]
    %v990 = vld [vmem:[#allocation6 + $0x4f8] sm:$0xff]
    %v991 = vld [vmem:[#allocation6 + $0x500] sm:$0xff]
    %v992 = vld [vmem:[#allocation6 + $0x508] sm:$0xff]
    %v993 = vld [vmem:[#allocation6 + $0x510] sm:$0xf]
    %v994 = vld [vmem:[#allocation6 + $0x514] sm:$0xff]
    %v995 = vld [vmem:[#allocation6 + $0x51c] sm:$0xff]
    %v996 = vld [vmem:[#allocation6 + $0x524] sm:$0xff]
    %v997 = vld [vmem:[#allocation6 + $0x52c] sm:$0xff]
    %v998 = vld [vmem:[#allocation6 + $0x534] sm:$0xff]
    %v999 = vld [vmem:[#allocation6 + $0x53c] sm:$0xff]
    %v1000 = vld [vmem:[#allocation6 + $0x544] sm:$0xf]
    %v1001 = vld [vmem:[#allocation6 + $0x548] sm:$0xff]
    %v1002 = vld [vmem:[#allocation6 + $0x550] sm:$0xff]
    %v1003 = vld [vmem:[#allocation6 + $0x558] sm:$0xff]
    %v1004 = vld [vmem:[#allocation6 + $0x560] sm:$0xff]
    %v1005 = vld [vmem:[#allocation6 + $0x568] sm:$0xff]
    %v1006 = vld [vmem:[#allocation6 + $0x570] sm:$0xff]
    %v1007 = vld [vmem:[#allocation6 + $0x578] sm:$0xf]
    %v1008 = vld [vmem:[#allocation6 + $0x57c] sm:$0xff]
    %v1009 = vld [vmem:[#allocation6 + $0x584] sm:$0xff]
    %v1010 = vld [vmem:[#allocation6 + $0x58c] sm:$0xff]
    %v1011 = vld [vmem:[#allocation6 + $0x594] sm:$0xff]
    %v1012 = vld [vmem:[#allocation6 + $0x59c] sm:$0xff]
    %v1013 = vld [vmem:[#allocation6 + $0x5a4] sm:$0xff]
    %v1014 = vld [vmem:[#allocation6 + $0x5ac] sm:$0xf]
    %v1015 = vld [vmem:[#allocation6 + $0x5b0] sm:$0xff]
    %v1016 = vld [vmem:[#allocation6 + $0x5b8] sm:$0xff]
    %v1017 = vld [vmem:[#allocation6 + $0x5c0] sm:$0xff]
    %v1018 = vld [vmem:[#allocation6 + $0x5c8] sm:$0xff]
    %v1019 = vld [vmem:[#allocation6 + $0x5d0] sm:$0xff]
    %v1020 = vld [vmem:[#allocation6 + $0x5d8] sm:$0xff]
    %v1021 = vld [vmem:[#allocation6 + $0x5e0] sm:$0xf]
    %v1022 = vld [vmem:[#allocation6 + $0x5e4] sm:$0xff]
    %v1023 = vld [vmem:[#allocation6 + $0x5ec] sm:$0xff]
    %v1024 = vld [vmem:[#allocation6 + $0x5f4] sm:$0xff]
    %v1025 = vld [vmem:[#allocation6 + $0x5fc] sm:$0xff]
    %v1026 = vld [vmem:[#allocation6 + $0x604] sm:$0xff]
    %v1027 = vld [vmem:[#allocation6 + $0x60c] sm:$0xff]
    %v1028 = vld [vmem:[#allocation6 + $0x614] sm:$0xf]
    %v1029 = vld [vmem:[#allocation6 + $0x618] sm:$0xff]
    %v1030 = vld [vmem:[#allocation6 + $0x620] sm:$0xff]
    %v1031 = vld [vmem:[#allocation6 + $0x628] sm:$0xff]
    %v1032 = vld [vmem:[#allocation6 + $0x630] sm:$0xff]
    %v1033 = vld [vmem:[#allocation6 + $0x638] sm:$0xff]
    %v1034 = vld [vmem:[#allocation6 + $0x640] sm:$0xff]
    %v1035 = vld [vmem:[#allocation6 + $0x648] sm:$0xf]
    %v1036 = vld [vmem:[#allocation6 + $0x64c] sm:$0xff]
    %v1037 = vld [vmem:[#allocation6 + $0x654] sm:$0xff]
    %v1038 = vld [vmem:[#allocation6 + $0x65c] sm:$0xff]
    %v1039 = vld [vmem:[#allocation6 + $0x664] sm:$0xff]
    %v1040 = vld [vmem:[#allocation6 + $0x66c] sm:$0xff]
    %v1041 = vld [vmem:[#allocation6 + $0x674] sm:$0xff]
    %v1042 = vld [vmem:[#allocation6 + $0x67c] sm:$0xf]
    %v1043 = vld [vmem:[#allocation6 + $0x680] sm:$0xff]
    %v1044 = vld [vmem:[#allocation6 + $0x688] sm:$0xff]
    %v1045 = vld [vmem:[#allocation6 + $0x690] sm:$0xff]
    %v1046 = vld [vmem:[#allocation6 + $0x698] sm:$0xff]
    %v1047 = vld [vmem:[#allocation6 + $0x6a0] sm:$0xff]
    %v1048 = vld [vmem:[#allocation6 + $0x6a8] sm:$0xff]
    %v1049 = vld [vmem:[#allocation6 + $0x6b0] sm:$0xf]
    %v1050 = vld [vmem:[#allocation6 + $0x6b4] sm:$0xff]
    %v1051 = vld [vmem:[#allocation6 + $0x6bc] sm:$0xff]
    %v1052 = vld [vmem:[#allocation6 + $0x6c4] sm:$0xff]
    %v1053 = vld [vmem:[#allocation6 + $0x6cc] sm:$0xff]
    %v1054 = vld [vmem:[#allocation6 + $0x6d4] sm:$0xff]
    %v1055 = vld [vmem:[#allocation6 + $0x6dc] sm:$0xff]
    %v1056 = vld [vmem:[#allocation6 + $0x6e4] sm:$0xf]
    %v1057 = vld [vmem:[#allocation6 + $0x6e8] sm:$0xff]
    %v1058 = vld [vmem:[#allocation6 + $0x6f0] sm:$0xff]
    %v1059 = vld [vmem:[#allocation6 + $0x6f8] sm:$0xff]
    %v1060 = vld [vmem:[#allocation6 + $0x700] sm:$0xff]
    %v1061 = vld [vmem:[#allocation6 + $0x708] sm:$0xff]
    %v1062 = vld [vmem:[#allocation6 + $0x710] sm:$0xff]
    %v1063 = vld [vmem:[#allocation6 + $0x718] sm:$0xf]
    %v1064 = vld [vmem:[#allocation6 + $0x71c] sm:$0xff]
    %v1065 = vld [vmem:[#allocation6 + $0x724] sm:$0xff]
    %v1066 = vld [vmem:[#allocation6 + $0x72c] sm:$0xff]
    %v1067 = vld [vmem:[#allocation6 + $0x734] sm:$0xff]
    %v1068 = vld [vmem:[#allocation6 + $0x73c] sm:$0xff]
    %v1069 = vld [vmem:[#allocation6 + $0x744] sm:$0xff]
    %v1070 = vld [vmem:[#allocation6 + $0x74c] sm:$0xf]
    %v1071 = vld [vmem:[#allocation6 + $0x750] sm:$0xff]
    %v1072 = vld [vmem:[#allocation6 + $0x758] sm:$0xff]
    %v1073 = vld [vmem:[#allocation6 + $0x760] sm:$0xff]
    %v1074 = vld [vmem:[#allocation6 + $0x768] sm:$0xff]
    %v1075 = vld [vmem:[#allocation6 + $0x770] sm:$0xff]
    %v1076 = vld [vmem:[#allocation6 + $0x778] sm:$0xff]
    %v1077 = vld [vmem:[#allocation6 + $0x780] sm:$0xf]
    %v1078 = vld [vmem:[#allocation6 + $0x784] sm:$0xff]
    %v1079 = vld [vmem:[#allocation6 + $0x78c] sm:$0xff]
    %v1080 = vld [vmem:[#allocation6 + $0x794] sm:$0xff]
    %v1081 = vld [vmem:[#allocation6 + $0x79c] sm:$0xff]
    %v1082 = vld [vmem:[#allocation6 + $0x7a4] sm:$0xff]
    %v1083 = vld [vmem:[#allocation6 + $0x7ac] sm:$0xff]
    %v1084 = vld [vmem:[#allocation6 + $0x7b4] sm:$0xf]
    %v1085 = vld [vmem:[#allocation6 + $0x7b8] sm:$0xff]
    %v1086 = vld [vmem:[#allocation6 + $0x7c0] sm:$0xff]
    %v1087 = vld [vmem:[#allocation6 + $0x7c8] sm:$0xff]
    %v1088 = vld [vmem:[#allocation6 + $0x7d0] sm:$0xff]
    %v1089 = vld [vmem:[#allocation6 + $0x7d8] sm:$0xff]
    %v1090 = vld [vmem:[#allocation6 + $0x7e0] sm:$0xff]
    %v1091 = vld [vmem:[#allocation6 + $0x7e8] sm:$0xf]
    %v1092 = vld [vmem:[#allocation6 + $0x7ec] sm:$0xff]
    %v1093 = vld [vmem:[#allocation6 + $0x7f4] sm:$0xff]
    %v1094 = vld [vmem:[#allocation6 + $0x7fc] sm:$0xff]
    %v1095 = vld [vmem:[#allocation6 + $0x804] sm:$0xff]
    %v1096 = vld [vmem:[#allocation6 + $0x80c] sm:$0xff]
    %v1097 = vld [vmem:[#allocation6 + $0x814] sm:$0xff]
    %v1098 = vld [vmem:[#allocation6 + $0x81c] sm:$0xf]
    %v1099 = vld [vmem:[#allocation6 + $0x820] sm:$0xff]
    %v1100 = vld [vmem:[#allocation6 + $0x828] sm:$0xff]
    %v1101 = vld [vmem:[#allocation6 + $0x830] sm:$0xff]
    %v1102 = vld [vmem:[#allocation6 + $0x838] sm:$0xff]
    %v1103 = vld [vmem:[#allocation6 + $0x840] sm:$0xff]
    %v1104 = vld [vmem:[#allocation6 + $0x848] sm:$0xff]
    %v1105 = vld [vmem:[#allocation6 + $0x850] sm:$0xf]
    %v1106 = vld [vmem:[#allocation6 + $0x854] sm:$0xff]
    %v1107 = vld [vmem:[#allocation6 + $0x85c] sm:$0xff]
    %v1108 = vld [vmem:[#allocation6 + $0x864] sm:$0xff]
    %v1109 = vld [vmem:[#allocation6 + $0x86c] sm:$0xff]
    %v1110 = vld [vmem:[#allocation6 + $0x874] sm:$0xff]
    %v1111 = vld [vmem:[#allocation6 + $0x87c] sm:$0xff]
    %v1112 = vld [vmem:[#allocation6 + $0x884] sm:$0xf]
    %v1113 = vld [vmem:[#allocation6 + $0x888] sm:$0xff]
    %v1114 = vld [vmem:[#allocation6 + $0x890] sm:$0xff]
    %v1115 = vld [vmem:[#allocation6 + $0x898] sm:$0xff]
    %v1116 = vld [vmem:[#allocation6 + $0x8a0] sm:$0xff]
    %v1117 = vld [vmem:[#allocation6 + $0x8a8] sm:$0xff]
    %v1118 = vld [vmem:[#allocation6 + $0x8b0] sm:$0xff]
    %v1119 = vld [vmem:[#allocation6 + $0x8b8] sm:$0xf]
    %v1120 = vld [vmem:[#allocation6 + $0x8bc] sm:$0xff]
    %v1121 = vld [vmem:[#allocation6 + $0x8c4] sm:$0xff]
    %v1122 = vld [vmem:[#allocation6 + $0x8cc] sm:$0xff]
    %v1123 = vld [vmem:[#allocation6 + $0x8d4] sm:$0xff]
    %v1124 = vld [vmem:[#allocation6 + $0x8dc] sm:$0xff]
    %v1125 = vld [vmem:[#allocation6 + $0x8e4] sm:$0xff]
    %v1126 = vld [vmem:[#allocation6 + $0x8ec] sm:$0xf]
    %v1127 = vld [vmem:[#allocation6 + $0x8f0] sm:$0xff]
    %v1128 = vld [vmem:[#allocation6 + $0x8f8] sm:$0xff]
    %v1129 = vld [vmem:[#allocation6 + $0x900] sm:$0xff]
    %v1130 = vld [vmem:[#allocation6 + $0x908] sm:$0xff]
    %v1131 = vld [vmem:[#allocation6 + $0x910] sm:$0xff]
    %v1132 = vld [vmem:[#allocation6 + $0x918] sm:$0xff]
    %v1133 = vld [vmem:[#allocation6 + $0x920] sm:$0xf]
    %v1134 = vld [vmem:[#allocation6 + $0x924] sm:$0xff]
    %v1135 = vld [vmem:[#allocation6 + $0x92c] sm:$0xff]
    %v1136 = vld [vmem:[#allocation6 + $0x934] sm:$0xff]
    %v1137 = vld [vmem:[#allocation6 + $0x93c] sm:$0xff]
    %v1138 = vld [vmem:[#allocation6 + $0x944] sm:$0xff]
    %v1139 = vld [vmem:[#allocation6 + $0x94c] sm:$0xff]
    %v1140 = vld [vmem:[#allocation6 + $0x954] sm:$0xf]
    %v1141 = vld [vmem:[#allocation6 + $0x958] sm:$0xff]
    %v1142 = vld [vmem:[#allocation6 + $0x960] sm:$0xff]
    %v1143 = vld [vmem:[#allocation6 + $0x968] sm:$0xff]
    %v1144 = vld [vmem:[#allocation6 + $0x970] sm:$0xff]
    %v1145 = vld [vmem:[#allocation6 + $0x978] sm:$0xff]
    %v1146 = vld [vmem:[#allocation6 + $0x980] sm:$0xff]
    %v1147 = vld [vmem:[#allocation6 + $0x988] sm:$0xf]
    %v1148 = vld [vmem:[#allocation6 + $0x98c] sm:$0xff]
    %v1149 = vld [vmem:[#allocation6 + $0x994] sm:$0xff]
    %v1150 = vld [vmem:[#allocation6 + $0x99c] sm:$0xff]
    %v1151 = vld [vmem:[#allocation6 + $0x9a4] sm:$0xff]
    %v1152 = vld [vmem:[#allocation6 + $0x9ac] sm:$0xff]
    %v1153 = vld [vmem:[#allocation6 + $0x9b4] sm:$0xff]
    %v1154 = vld [vmem:[#allocation6 + $0x9bc] sm:$0xf]
    %v1155 = vld [vmem:[#allocation6 + $0x9c0] sm:$0xff]
    %v1156 = vld [vmem:[#allocation6 + $0x9c8] sm:$0xff]
    %v1157 = vld [vmem:[#allocation6 + $0x9d0] sm:$0xff]
    %v1158 = vld [vmem:[#allocation6 + $0x9d8] sm:$0xff]
    %v1159 = vld [vmem:[#allocation6 + $0x9e0] sm:$0xff]
    %v1160 = vld [vmem:[#allocation6 + $0x9e8] sm:$0xff]
    %v1161 = vld [vmem:[#allocation6 + $0x9f0] sm:$0xf]
    %v1162 = vld [vmem:[#allocation6 + $0x9f4] sm:$0xff]
    %v1163 = vld [vmem:[#allocation6 + $0x9fc] sm:$0xff]
    %v1164 = vld [vmem:[#allocation6 + $0xa04] sm:$0xff]
    %v1165 = vld [vmem:[#allocation6 + $0xa0c] sm:$0xff]
    %v1166 = vld [vmem:[#allocation6 + $0xa14] sm:$0xff]
    %v1167 = vld [vmem:[#allocation6 + $0xa1c] sm:$0xff]
    %v1168 = vld [vmem:[#allocation6 + $0xa24] sm:$0xf]
    %v1169 = vld [vmem:[#allocation6 + $0xa28] sm:$0xff]
    %v1170 = vld [vmem:[#allocation6 + $0xa30] sm:$0xff]
    %v1171 = vld [vmem:[#allocation6 + $0xa38] sm:$0xff]
    %v1172 = vld [vmem:[#allocation6 + $0xa40] sm:$0xff]
    %v1173 = vld [vmem:[#allocation6 + $0xa48] sm:$0xff]
    %v1174 = vld [vmem:[#allocation6 + $0xa50] sm:$0xff]
    %v1175 = vld [vmem:[#allocation6 + $0xa58] sm:$0xf]
    %v1176 = vld [vmem:[#allocation6 + $0xa5c] sm:$0xff]
    %v1177 = vld [vmem:[#allocation6 + $0xa64] sm:$0xff]
    %v1178 = vld [vmem:[#allocation6 + $0xa6c] sm:$0xff]
    %v1179 = vld [vmem:[#allocation6 + $0xa74] sm:$0xff]
    %v1180 = vld [vmem:[#allocation6 + $0xa7c] sm:$0xff]
    %v1181 = vld [vmem:[#allocation6 + $0xa84] sm:$0xff]
    %v1182 = vld [vmem:[#allocation6 + $0xa8c] sm:$0xf]
    %v1183 = vld [vmem:[#allocation6 + $0xa90] sm:$0xff]
    %v1184 = vld [vmem:[#allocation6 + $0xa98] sm:$0xff]
    %v1185 = vld [vmem:[#allocation6 + $0xaa0] sm:$0xff]
    %v1186 = vld [vmem:[#allocation6 + $0xaa8] sm:$0xff]
    %v1187 = vld [vmem:[#allocation6 + $0xab0] sm:$0xff]
    %v1188 = vld [vmem:[#allocation6 + $0xab8] sm:$0xff]
    %v1189 = vld [vmem:[#allocation6 + $0xac0] sm:$0xf]
    %v1190 = vld [vmem:[#allocation6 + $0xac4] sm:$0xff]
    %v1191 = vld [vmem:[#allocation6 + $0xacc] sm:$0xff]
    %v1192 = vld [vmem:[#allocation6 + $0xad4] sm:$0xff]
    %v1193 = vld [vmem:[#allocation6 + $0xadc] sm:$0xff]
    %v1194 = vld [vmem:[#allocation6 + $0xae4] sm:$0xff]
    %v1195 = vld [vmem:[#allocation6 + $0xaec] sm:$0xff]
    %v1196 = vld [vmem:[#allocation6 + $0xaf4] sm:$0xf]
    %v1197 = vld [vmem:[#allocation6 + $0xaf8] sm:$0xff]
    %v1198 = vld [vmem:[#allocation6 + $0xb00] sm:$0xff]
    %v1199 = vld [vmem:[#allocation6 + $0xb08] sm:$0xff]
    %v1200 = vld [vmem:[#allocation6 + $0xb10] sm:$0xff]
    %v1201 = vld [vmem:[#allocation6 + $0xb18] sm:$0xff]
    %v1202 = vld [vmem:[#allocation6 + $0xb20] sm:$0xff]
    %v1203 = vld [vmem:[#allocation6 + $0xb28] sm:$0xf]
    %v1204 = vld [vmem:[#allocation6 + $0xb2c] sm:$0xff]
    %v1205 = vld [vmem:[#allocation6 + $0xb34] sm:$0xff]
    %v1206 = vld [vmem:[#allocation6 + $0xb3c] sm:$0xff]
    %v1207 = vld [vmem:[#allocation6 + $0xb44] sm:$0xff]
    %v1208 = vld [vmem:[#allocation6 + $0xb4c] sm:$0xff]
    %v1209 = vld [vmem:[#allocation6 + $0xb54] sm:$0xff]
    %v1210 = vld [vmem:[#allocation6 + $0xb5c] sm:$0xf]
    %v1211 = vld [vmem:[#allocation6 + $0xb60] sm:$0xff]
    %v1212 = vld [vmem:[#allocation6 + $0xb68] sm:$0xff]
    %v1213 = vld [vmem:[#allocation6 + $0xb70] sm:$0xff]
    %v1214 = vld [vmem:[#allocation6 + $0xb78] sm:$0xff]
    %v1215 = vld [vmem:[#allocation6 + $0xb80] sm:$0xff]
    %v1216 = vld [vmem:[#allocation6 + $0xb88] sm:$0xff]
    %v1217 = vld [vmem:[#allocation6 + $0xb90] sm:$0xf]
    %v1218 = vld [vmem:[#allocation6 + $0xb94] sm:$0xff]
    %v1219 = vld [vmem:[#allocation6 + $0xb9c] sm:$0xff]
    %v1220 = vld [vmem:[#allocation6 + $0xba4] sm:$0xff]
    %v1221 = vld [vmem:[#allocation6 + $0xbac] sm:$0xff]
    %v1222 = vld [vmem:[#allocation6 + $0xbb4] sm:$0xff]
    %v1223 = vld [vmem:[#allocation6 + $0xbbc] sm:$0xff]
    %v1224 = vld [vmem:[#allocation6 + $0xbc4] sm:$0xf]
    %v1225 = vld [vmem:[#allocation6 + $0xbc8] sm:$0xff]
    %v1226 = vld [vmem:[#allocation6 + $0xbd0] sm:$0xff]
    %v1227 = vld [vmem:[#allocation6 + $0xbd8] sm:$0xff]
    %v1228 = vld [vmem:[#allocation6 + $0xbe0] sm:$0xff]
    %v1229 = vld [vmem:[#allocation6 + $0xbe8] sm:$0xff]
    %v1230 = vld [vmem:[#allocation6 + $0xbf0] sm:$0xff]
    %v1231 = vld [vmem:[#allocation6 + $0xbf8] sm:$0xf]
    %v1232 = vld [vmem:[#allocation6 + $0xbfc] sm:$0xff]
    %v1233 = vld [vmem:[#allocation6 + $0xc04] sm:$0xff]
    %v1234 = vld [vmem:[#allocation6 + $0xc0c] sm:$0xff]
    %v1235 = vld [vmem:[#allocation6 + $0xc14] sm:$0xff]
    %v1236 = vld [vmem:[#allocation6 + $0xc1c] sm:$0xff]
    %v1237 = vld [vmem:[#allocation6 + $0xc24] sm:$0xff]
    %v1238 = vld [vmem:[#allocation6 + $0xc2c] sm:$0xf]
    %v1239 = vld [vmem:[#allocation6 + $0xc30] sm:$0xff]
    %v1240 = vld [vmem:[#allocation6 + $0xc38] sm:$0xff]
    %v1241 = vld [vmem:[#allocation6 + $0xc40] sm:$0xff]
    %v1242 = vld [vmem:[#allocation6 + $0xc48] sm:$0xff]
    %v1243 = vld [vmem:[#allocation6 + $0xc50] sm:$0xff]
    %v1244 = vld [vmem:[#allocation6 + $0xc58] sm:$0xff]
    %v1245 = vld [vmem:[#allocation6 + $0xc60] sm:$0xf]
    %v1246 = vld [vmem:[#allocation6 + $0xc64] sm:$0xff]
    %v1247 = vld [vmem:[#allocation6 + $0xc6c] sm:$0xff]
    %v1248 = vld [vmem:[#allocation6 + $0xc74] sm:$0xff]
    %v1249 = vld [vmem:[#allocation6 + $0xc7c] sm:$0xff]
    %v1250 = vld [vmem:[#allocation6 + $0xc84] sm:$0xff]
    %v1251 = vld [vmem:[#allocation6 + $0xc8c] sm:$0xff]
    %v1252 = vld [vmem:[#allocation6 + $0xc94] sm:$0xf]
    %v1253 = vld [vmem:[#allocation6 + $0xc98] sm:$0xff]
    %v1254 = vld [vmem:[#allocation6 + $0xca0] sm:$0xff]
    %v1255 = vld [vmem:[#allocation6 + $0xca8] sm:$0xff]
    %v1256 = vld [vmem:[#allocation6 + $0xcb0] sm:$0xff]
    %v1257 = vld [vmem:[#allocation6 + $0xcb8] sm:$0xff]
    %v1258 = vld [vmem:[#allocation6 + $0xcc0] sm:$0xff]
    %v1259 = vld [vmem:[#allocation6 + $0xcc8] sm:$0xf]
    %v1260 = vld [vmem:[#allocation6 + $0xccc] sm:$0xff]
    %v1261 = vld [vmem:[#allocation6 + $0xcd4] sm:$0xff]
    %v1262 = vld [vmem:[#allocation6 + $0xcdc] sm:$0xff]
    %v1263 = vld [vmem:[#allocation6 + $0xce4] sm:$0xff]
    %v1264 = vld [vmem:[#allocation6 + $0xcec] sm:$0xff]
    %v1265 = vld [vmem:[#allocation6 + $0xcf4] sm:$0xff]
    %v1266 = vld [vmem:[#allocation6 + $0xcfc] sm:$0xf]
    %v1267 = vld [vmem:[#allocation6 + $0xd00] sm:$0xff]
    %v1268 = vld [vmem:[#allocation6 + $0xd08] sm:$0xff]
    %v1269 = vld [vmem:[#allocation6 + $0xd10] sm:$0xff]
    %v1270 = vld [vmem:[#allocation6 + $0xd18] sm:$0xff]
    %v1271 = vld [vmem:[#allocation6 + $0xd20] sm:$0xff]
    %v1272 = vld [vmem:[#allocation6 + $0xd28] sm:$0xff]
    %v1273 = vld [vmem:[#allocation6 + $0xd30] sm:$0xf]
    %v1274 = vld [vmem:[#allocation6 + $0xd34] sm:$0xff]
    %v1275 = vld [vmem:[#allocation6 + $0xd3c] sm:$0xff]
    %v1276 = vld [vmem:[#allocation6 + $0xd44] sm:$0xff]
    %v1277 = vld [vmem:[#allocation6 + $0xd4c] sm:$0xff]
    %v1278 = vld [vmem:[#allocation6 + $0xd54] sm:$0xff]
    %v1279 = vld [vmem:[#allocation6 + $0xd5c] sm:$0xff]
    %v1280 = vld [vmem:[#allocation6 + $0xd64] sm:$0xf]
    %v1281 = vld [vmem:[#allocation6 + $0xd68] sm:$0xff]
    %v1282 = vld [vmem:[#allocation6 + $0xd70] sm:$0xff]
    %v1283 = vld [vmem:[#allocation6 + $0xd78] sm:$0xff]
    %v1284 = vld [vmem:[#allocation6 + $0xd80] sm:$0xff]
    %v1285 = vld [vmem:[#allocation6 + $0xd88] sm:$0xff]
    %v1286 = vld [vmem:[#allocation6 + $0xd90] sm:$0xff]
    %v1287 = vld [vmem:[#allocation6 + $0xd98] sm:$0xf]
    %v1288 = vld [vmem:[#allocation6 + $0xd9c] sm:$0xff]
    %v1289 = vld [vmem:[#allocation6 + $0xda4] sm:$0xff]
    %v1290 = vld [vmem:[#allocation6 + $0xdac] sm:$0xff]
    %v1291 = vld [vmem:[#allocation6 + $0xdb4] sm:$0xff]
    %v1292 = vld [vmem:[#allocation6 + $0xdbc] sm:$0xff]
    %v1293 = vld [vmem:[#allocation6 + $0xdc4] sm:$0xff]
    %v1294 = vld [vmem:[#allocation6 + $0xdcc] sm:$0xf]
    %v1295 = vld [vmem:[#allocation6 + $0xdd0] sm:$0xff]
    %v1296 = vld [vmem:[#allocation6 + $0xdd8] sm:$0xff]
    %v1297 = vld [vmem:[#allocation6 + $0xde0] sm:$0xff]
    %v1298 = vld [vmem:[#allocation6 + $0xde8] sm:$0xff]
    %v1299 = vld [vmem:[#allocation6 + $0xdf0] sm:$0xff]
    %v1300 = vld [vmem:[#allocation6 + $0xdf8] sm:$0xff]
    %v1301 = vld [vmem:[#allocation6 + $0xe00] sm:$0xf]
    %v1302 = vld [vmem:[#allocation6 + $0xe04] sm:$0xff]
    %v1303 = vld [vmem:[#allocation6 + $0xe0c] sm:$0xff]
    %v1304 = vld [vmem:[#allocation6 + $0xe14] sm:$0xff]
    %v1305 = vld [vmem:[#allocation6 + $0xe1c] sm:$0xff]
    %v1306 = vld [vmem:[#allocation6 + $0xe24] sm:$0xff]
    %v1307 = vld [vmem:[#allocation6 + $0xe2c] sm:$0xff]
    %v1308 = vld [vmem:[#allocation6 + $0xe34] sm:$0xf]
    %v1309 = vld [vmem:[#allocation6 + $0xe38] sm:$0xff]
    %v1310 = vld [vmem:[#allocation6 + $0xe40] sm:$0xff]
    %v1311 = vld [vmem:[#allocation6 + $0xe48] sm:$0xff]
    %v1312 = vld [vmem:[#allocation6 + $0xe50] sm:$0xff]
    %v1313 = vld [vmem:[#allocation6 + $0xe58] sm:$0xff]
    %v1314 = vld [vmem:[#allocation6 + $0xe60] sm:$0xff]
    %v1315 = vld [vmem:[#allocation6 + $0xe68] sm:$0xf]
    %v1316 = vld [vmem:[#allocation6 + $0xe6c] sm:$0xff]
    %v1317 = vld [vmem:[#allocation6 + $0xe74] sm:$0xff]
    %v1318 = vld [vmem:[#allocation6 + $0xe7c] sm:$0xff]
    %v1319 = vld [vmem:[#allocation6 + $0xe84] sm:$0xff]
    %v1320 = vld [vmem:[#allocation6 + $0xe8c] sm:$0xff]
    %v1321 = vld [vmem:[#allocation6 + $0xe94] sm:$0xff]
    %v1322 = vld [vmem:[#allocation6 + $0xe9c] sm:$0xf]
    %v1323 = vld [vmem:[#allocation6 + $0xea0] sm:$0xff]
    %v1324 = vld [vmem:[#allocation6 + $0xea8] sm:$0xff]
    %v1325 = vld [vmem:[#allocation6 + $0xeb0] sm:$0xff]
    %v1326 = vld [vmem:[#allocation6 + $0xeb8] sm:$0xff]
    %v1327 = vld [vmem:[#allocation6 + $0xec0] sm:$0xff]
    %v1328 = vld [vmem:[#allocation6 + $0xec8] sm:$0xff]
    %v1329 = vld [vmem:[#allocation6 + $0xed0] sm:$0xf]
    %v1330 = vld [vmem:[#allocation6 + $0xed4] sm:$0xff]
    %v1331 = vld [vmem:[#allocation6 + $0xedc] sm:$0xff]
    %v1332 = vld [vmem:[#allocation6 + $0xee4] sm:$0xff]
    %v1333 = vld [vmem:[#allocation6 + $0xeec] sm:$0xff]
    %v1334 = vld [vmem:[#allocation6 + $0xef4] sm:$0xff]
    %v1335 = vld [vmem:[#allocation6 + $0xefc] sm:$0xff]
    %v1336 = vld [vmem:[#allocation6 + $0xf04] sm:$0xf]
    %v1337 = vld [vmem:[#allocation6 + $0xf08] sm:$0xff]
    %v1338 = vld [vmem:[#allocation6 + $0xf10] sm:$0xff]
    %v1339 = vld [vmem:[#allocation6 + $0xf18] sm:$0xff]
    %v1340 = vld [vmem:[#allocation6 + $0xf20] sm:$0xff]
    %v1341 = vld [vmem:[#allocation6 + $0xf28] sm:$0xff]
    %v1342 = vld [vmem:[#allocation6 + $0xf30] sm:$0xff]
    %v1343 = vld [vmem:[#allocation6 + $0xf38] sm:$0xf]
    %v1344 = vld [vmem:[#allocation6 + $0xf3c] sm:$0xff]
    %v1345 = vld [vmem:[#allocation6 + $0xf44] sm:$0xff]
    %v1346 = vld [vmem:[#allocation6 + $0xf4c] sm:$0xff]
    %v1347 = vld [vmem:[#allocation6 + $0xf54] sm:$0xff]
    %v1348 = vld [vmem:[#allocation6 + $0xf5c] sm:$0xff]
    %v1349 = vld [vmem:[#allocation6 + $0xf64] sm:$0xff]
    %v1350 = vld [vmem:[#allocation6 + $0xf6c] sm:$0xf]
    %v1351 = vld [vmem:[#allocation6 + $0xf70] sm:$0xff]
    %v1352 = vld [vmem:[#allocation6 + $0xf78] sm:$0xff]
    %v1353 = vld [vmem:[#allocation6 + $0xf80] sm:$0xff]
    %v1354 = vld [vmem:[#allocation6 + $0xf88] sm:$0xff]
    %v1355 = vld [vmem:[#allocation6 + $0xf90] sm:$0xff]
    %v1356 = vld [vmem:[#allocation6 + $0xf98] sm:$0xff]
    %v1357 = vld [vmem:[#allocation6 + $0xfa0] sm:$0xf]
    %v1358 = vld [vmem:[#allocation6 + $0xfa4] sm:$0xff]
    %v1359 = vld [vmem:[#allocation6 + $0xfac] sm:$0xff]
    %v1360 = vld [vmem:[#allocation6 + $0xfb4] sm:$0xff]
    %v1361 = vld [vmem:[#allocation6 + $0xfbc] sm:$0xff]
    %v1362 = vld [vmem:[#allocation6 + $0xfc4] sm:$0xff]
    %v1363 = vld [vmem:[#allocation6 + $0xfcc] sm:$0xff]
    %v1364 = vld [vmem:[#allocation6 + $0xfd4] sm:$0xf]
    %v1365 = vld [vmem:[#allocation6 + $0xfd8] sm:$0xff]
    %v1366 = vld [vmem:[#allocation6 + $0xfe0] sm:$0xff]
    %v1367 = vld [vmem:[#allocation6 + $0xfe8] sm:$0xff]
    %v1368 = vld [vmem:[#allocation6 + $0xff0] sm:$0xff]
    %v1369 = vld [vmem:[#allocation6 + $0xff8] sm:$0xff]
    %v1370 = vld [vmem:[#allocation6 + $0x1000] sm:$0xff]
    %v1371 = vld [vmem:[#allocation6 + $0x1008] sm:$0xf]
    %v1372 = vld [vmem:[#allocation6 + $0x100c] sm:$0xff]
    %v1373 = vld [vmem:[#allocation6 + $0x1014] sm:$0xff]
    %v1374 = vld [vmem:[#allocation6 + $0x101c] sm:$0xff]
    %v1375 = vld [vmem:[#allocation6 + $0x1024] sm:$0xff]
    %v1376 = vld [vmem:[#allocation6 + $0x102c] sm:$0xff]
    %v1377 = vld [vmem:[#allocation6 + $0x1034] sm:$0xff]
    %v1378 = vld [vmem:[#allocation6 + $0x103c] sm:$0xf]
    %v1379 = vld [vmem:[#allocation6 + $0x1040] sm:$0xff]
    %v1380 = vld [vmem:[#allocation6 + $0x1048] sm:$0xff]
    %v1381 = vld [vmem:[#allocation6 + $0x1050] sm:$0xff]
    %v1382 = vld [vmem:[#allocation6 + $0x1058] sm:$0xff]
    %v1383 = vld [vmem:[#allocation6 + $0x1060] sm:$0xff]
    %v1384 = vld [vmem:[#allocation6 + $0x1068] sm:$0xff]
    %v1385 = vld [vmem:[#allocation6 + $0x1070] sm:$0xf]
    %v1386 = vld [vmem:[#allocation6 + $0x1074] sm:$0xff]
    %v1387 = vld [vmem:[#allocation6 + $0x107c] sm:$0xff]
    %v1388 = vld [vmem:[#allocation6 + $0x1084] sm:$0xff]
    %v1389 = vld [vmem:[#allocation6 + $0x108c] sm:$0xff]
    %v1390 = vld [vmem:[#allocation6 + $0x1094] sm:$0xff]
    %v1391 = vld [vmem:[#allocation6 + $0x109c] sm:$0xff]
    %v1392 = vld [vmem:[#allocation6 + $0x10a4] sm:$0xf]
    %v1393 = vld [vmem:[#allocation6 + $0x10a8] sm:$0xff]
    %v1394 = vld [vmem:[#allocation6 + $0x10b0] sm:$0xff]
    %v1395 = vld [vmem:[#allocation6 + $0x10b8] sm:$0xff]
    %v1396 = vld [vmem:[#allocation6 + $0x10c0] sm:$0xff]
    %v1397 = vld [vmem:[#allocation6 + $0x10c8] sm:$0xff]
    %v1398 = vld [vmem:[#allocation6 + $0x10d0] sm:$0xff]
    %v1399 = vld [vmem:[#allocation6 + $0x10d8] sm:$0xf]
    %v1400 = vld [vmem:[#allocation6 + $0x10dc] sm:$0xff]
    %v1401 = vld [vmem:[#allocation6 + $0x10e4] sm:$0xff]
    %v1402 = vld [vmem:[#allocation6 + $0x10ec] sm:$0xff]
    %v1403 = vld [vmem:[#allocation6 + $0x10f4] sm:$0xff]
    %v1404 = vld [vmem:[#allocation6 + $0x10fc] sm:$0xff]
    %v1405 = vld [vmem:[#allocation6 + $0x1104] sm:$0xff]
    %v1406 = vld [vmem:[#allocation6 + $0x110c] sm:$0xf]
    %v1407 = vld [vmem:[#allocation6 + $0x1110] sm:$0xff]
    %v1408 = vld [vmem:[#allocation6 + $0x1118] sm:$0xff]
    %v1409 = vld [vmem:[#allocation6 + $0x1120] sm:$0xff]
    %v1410 = vld [vmem:[#allocation6 + $0x1128] sm:$0xff]
    %v1411 = vld [vmem:[#allocation6 + $0x1130] sm:$0xff]
    %v1412 = vld [vmem:[#allocation6 + $0x1138] sm:$0xff]
    %v1413 = vld [vmem:[#allocation6 + $0x1140] sm:$0xf]
    %v1414 = vld [vmem:[#allocation6 + $0x1144] sm:$0xff]
    %v1415 = vld [vmem:[#allocation6 + $0x114c] sm:$0xff]
    %v1416 = vld [vmem:[#allocation6 + $0x1154] sm:$0xff]
    %v1417 = vld [vmem:[#allocation6 + $0x115c] sm:$0xff]
    %v1418 = vld [vmem:[#allocation6 + $0x1164] sm:$0xff]
    %v1419 = vld [vmem:[#allocation6 + $0x116c] sm:$0xff]
    %v1420 = vld [vmem:[#allocation6 + $0x1174] sm:$0xf]
    %v1421 = vld [vmem:[#allocation6 + $0x1178] sm:$0xff]
    %v1422 = vld [vmem:[#allocation6 + $0x1180] sm:$0xff]
    %v1423 = vld [vmem:[#allocation6 + $0x1188] sm:$0xff]
    %v1424 = vld [vmem:[#allocation6 + $0x1190] sm:$0xff]
    %v1425 = vld [vmem:[#allocation6 + $0x1198] sm:$0xff]
    %v1426 = vld [vmem:[#allocation6 + $0x11a0] sm:$0xff]
    %v1427 = vld [vmem:[#allocation6 + $0x11a8] sm:$0xf]
    %v1428 = vld [vmem:[#allocation6 + $0x11ac] sm:$0xff]
    %v1429 = vld [vmem:[#allocation6 + $0x11b4] sm:$0xff]
    %v1430 = vld [vmem:[#allocation6 + $0x11bc] sm:$0xff]
    %v1431 = vld [vmem:[#allocation6 + $0x11c4] sm:$0xff]
    %v1432 = vld [vmem:[#allocation6 + $0x11cc] sm:$0xff]
    %v1433 = vld [vmem:[#allocation6 + $0x11d4] sm:$0xff]
    %v1434 = vld [vmem:[#allocation6 + $0x11dc] sm:$0xf]
    %v1435 = vld [vmem:[#allocation6 + $0x11e0] sm:$0xff]
    %v1436 = vld [vmem:[#allocation6 + $0x11e8] sm:$0xff]
    %v1437 = vld [vmem:[#allocation6 + $0x11f0] sm:$0xff]
    %v1438 = vld [vmem:[#allocation6 + $0x11f8] sm:$0xff]
    %v1439 = vld [vmem:[#allocation6 + $0x1200] sm:$0xff]
    %v1440 = vld [vmem:[#allocation6 + $0x1208] sm:$0xff]
    %v1441 = vld [vmem:[#allocation6 + $0x1210] sm:$0xf]
    %v1442 = vld [vmem:[#allocation6 + $0x1214] sm:$0xff]
    %v1443 = vld [vmem:[#allocation6 + $0x121c] sm:$0xff]
    %v1444 = vld [vmem:[#allocation6 + $0x1224] sm:$0xff]
    %v1445 = vld [vmem:[#allocation6 + $0x122c] sm:$0xff]
    %v1446 = vld [vmem:[#allocation6 + $0x1234] sm:$0xff]
    %v1447 = vld [vmem:[#allocation6 + $0x123c] sm:$0xff]
    %v1448 = vld [vmem:[#allocation6 + $0x1244] sm:$0xf]
    %v1449 = vld [vmem:[#allocation6 + $0x1248] sm:$0xff]
    %v1450 = vld [vmem:[#allocation6 + $0x1250] sm:$0xff]
    %v1451 = vld [vmem:[#allocation6 + $0x1258] sm:$0xff]
    %v1452 = vld [vmem:[#allocation6 + $0x1260] sm:$0xff]
    %v1453 = vld [vmem:[#allocation6 + $0x1268] sm:$0xff]
    %v1454 = vld [vmem:[#allocation6 + $0x1270] sm:$0xff]
    %v1455 = vld [vmem:[#allocation6 + $0x1278] sm:$0xf]
    %v1456 = vld [vmem:[#allocation6 + $0x127c] sm:$0xff]
    %v1457 = vld [vmem:[#allocation6 + $0x1284] sm:$0xff]
    %v1458 = vld [vmem:[#allocation6 + $0x128c] sm:$0xff]
    %v1459 = vld [vmem:[#allocation6 + $0x1294] sm:$0xff]
    %v1460 = vld [vmem:[#allocation6 + $0x129c] sm:$0xff]
    %v1461 = vld [vmem:[#allocation6 + $0x12a4] sm:$0xff]
    %v1462 = vld [vmem:[#allocation6 + $0x12ac] sm:$0xf]
    %v1463 = vld [vmem:[#allocation6 + $0x12b0] sm:$0xff]
    %v1464 = vld [vmem:[#allocation6 + $0x12b8] sm:$0xff]
    %v1465 = vld [vmem:[#allocation6 + $0x12c0] sm:$0xff]
    %v1466 = vld [vmem:[#allocation6 + $0x12c8] sm:$0xff]
    %v1467 = vld [vmem:[#allocation6 + $0x12d0] sm:$0xff]
    %v1468 = vld [vmem:[#allocation6 + $0x12d8] sm:$0xff]
    %v1469 = vld [vmem:[#allocation6 + $0x12e0] sm:$0xf]
    %v1470 = vld [vmem:[#allocation6 + $0x12e4] sm:$0xff]
    %v1471 = vld [vmem:[#allocation6 + $0x12ec] sm:$0xff]
    %v1472 = vld [vmem:[#allocation6 + $0x12f4] sm:$0xff]
    %v1473 = vld [vmem:[#allocation6 + $0x12fc] sm:$0xff]
    %v1474 = vld [vmem:[#allocation6 + $0x1304] sm:$0xff]
    %v1475 = vld [vmem:[#allocation6 + $0x130c] sm:$0xff]
    %v1476 = vld [vmem:[#allocation6 + $0x1314] sm:$0xf]
    %v1477 = vld [vmem:[#allocation6 + $0x1318] sm:$0xff]
    %v1478 = vld [vmem:[#allocation6 + $0x1320] sm:$0xff]
    %v1479 = vld [vmem:[#allocation6 + $0x1328] sm:$0xff]
    %v1480 = vld [vmem:[#allocation6 + $0x1330] sm:$0xff]
    %v1481 = vld [vmem:[#allocation6 + $0x1338] sm:$0xff]
    %v1482 = vld [vmem:[#allocation6 + $0x1340] sm:$0xff]
    %v1483 = vld [vmem:[#allocation6 + $0x1348] sm:$0xf]
    %v1484 = vld [vmem:[#allocation6 + $0x134c] sm:$0xff]
    %v1485 = vld [vmem:[#allocation6 + $0x1354] sm:$0xff]
    %v1486 = vld [vmem:[#allocation6 + $0x135c] sm:$0xff]
    %v1487 = vld [vmem:[#allocation6 + $0x1364] sm:$0xff]
    %v1488 = vld [vmem:[#allocation6 + $0x136c] sm:$0xff]
    %v1489 = vld [vmem:[#allocation6 + $0x1374] sm:$0xff]
    %v1490 = vld [vmem:[#allocation6 + $0x137c] sm:$0xf]
    %v1491 = vld [vmem:[#allocation6 + $0x1380] sm:$0xff]
    %v1492 = vld [vmem:[#allocation6 + $0x1388] sm:$0xff]
    %v1493 = vld [vmem:[#allocation6 + $0x1390] sm:$0xff]
    %v1494 = vld [vmem:[#allocation6 + $0x1398] sm:$0xff]
    %v1495 = vld [vmem:[#allocation6 + $0x13a0] sm:$0xff]
    %v1496 = vld [vmem:[#allocation6 + $0x13a8] sm:$0xff]
    %v1497 = vld [vmem:[#allocation6 + $0x13b0] sm:$0xf]
    %v1498 = vld [vmem:[#allocation6 + $0x13b4] sm:$0xff]
    %v1499 = vld [vmem:[#allocation6 + $0x13bc] sm:$0xff]
    %v1500 = vld [vmem:[#allocation6 + $0x13c4] sm:$0xff]
    %v1501 = vld [vmem:[#allocation6 + $0x13cc] sm:$0xff]
    %v1502 = vld [vmem:[#allocation6 + $0x13d4] sm:$0xff]
    %v1503 = vld [vmem:[#allocation6 + $0x13dc] sm:$0xff]
    %v1504 = vld [vmem:[#allocation6 + $0x13e4] sm:$0xf]
    %v1505 = vld [vmem:[#allocation7] sm:$0xff]
    %v1506 = vld [vmem:[#allocation7 + $0x8] sm:$0x1f]
    %v1509 = vlaneseq
    %v1510 = vshrl.u32 %v1509, 7
    %v1511 = vsub.s32 0, %v1510
    %v1512 = vrot.slane %v1505, %v1511
    %v1513 = vlaneseq
    %v1514 = vshrl.u32 %v1513, 7
    %v1515 = vsub.s32 1, %v1514
    %v1516 = vrot.slane %v1505, %v1515
    %v1517 = vlaneseq
    %v1518 = vshrl.u32 %v1517, 7
    %v1519 = vsub.s32 2, %v1518
    %v1520 = vrot.slane %v1505, %v1519
    %v1521 = vlaneseq
    %v1522 = vshrl.u32 %v1521, 7
    %v1523 = vsub.s32 3, %v1522
    %v1524 = vrot.slane %v1505, %v1523
    %v1525 = vlaneseq
    %v1526 = vshrl.u32 %v1525, 7
    %v1527 = vsub.s32 4, %v1526
    %v1528 = vrot.slane %v1505, %v1527
    %v1529 = vlaneseq
    %v1530 = vshrl.u32 %v1529, 7
    %v1531 = vsub.s32 5, %v1530
    %v1532 = vrot.slane %v1505, %v1531
    %v1533 = vlaneseq
    %v1534 = vshrl.u32 %v1533, 7
    %v1535 = vsub.s32 6, %v1534
    %v1536 = vrot.slane %v1505, %v1535
    %v1537 = vlaneseq
    %v1538 = vshrl.u32 %v1537, 7
    %v1539 = vsub.s32 7, %v1538
    %v1540 = vrot.slane %v1505, %v1539
    %v1541 = vlaneseq
    %v1542 = vshrl.u32 %v1541, 7
    %v1543 = vsub.s32 0, %v1542
    %v1544 = vrot.slane %v1506, %v1543
    %v1545 = vlaneseq
    %v1546 = vshrl.u32 %v1545, 7
    %v1547 = vsub.s32 1, %v1546
    %v1548 = vrot.slane %v1506, %v1547
    %v1549 = vlaneseq
    %v1550 = vshrl.u32 %v1549, 7
    %v1551 = vsub.s32 2, %v1550
    %v1552 = vrot.slane %v1506, %v1551
    %v1553 = vlaneseq
    %v1554 = vshrl.u32 %v1553, 7
    %v1555 = vsub.s32 3, %v1554
    %v1556 = vrot.slane %v1506, %v1555
    %v1557 = vlaneseq
    %v1558 = vshrl.u32 %v1557, 7
    %v1559 = vsub.s32 4, %v1558
    %v1560 = vrot.slane %v1506, %v1559
    %v2260 = vunpack.c.l.b16 %v819
    %v2261 = vunpack.c.h.b16 %v819
    %v2262 = vunpack.c.l.b16 %v820
    %v2263 = vunpack.c.h.b16 %v820
    %v2264 = vunpack.c.l.b16 %v821
    %v2265 = vunpack.c.h.b16 %v821
    %v2266 = vunpack.c.l.b16 %v822
    %v2267 = vunpack.c.h.b16 %v822
    %v2268 = vunpack.c.l.b16 %v823
    %v2269 = vunpack.c.h.b16 %v823
    %v2270 = vunpack.c.l.b16 %v824
    %v2271 = vunpack.c.h.b16 %v824
    %v2272 = vunpack.c.l.b16 %v825
    %v2273 = vunpack.c.l.b16 %v826
    %v2274 = vunpack.c.h.b16 %v826
    %v2275 = vunpack.c.l.b16 %v827
    %v2276 = vunpack.c.h.b16 %v827
    %v2277 = vunpack.c.l.b16 %v828
    %v2278 = vunpack.c.h.b16 %v828
    %v2279 = vunpack.c.l.b16 %v829
    %v2280 = vunpack.c.h.b16 %v829
    %v2281 = vunpack.c.l.b16 %v830
    %v2282 = vunpack.c.h.b16 %v830
    %v2283 = vunpack.c.l.b16 %v831
    %v2284 = vunpack.c.h.b16 %v831
    %v2285 = vunpack.c.l.b16 %v832
    %v2286 = vunpack.c.l.b16 %v833
    %v2287 = vunpack.c.h.b16 %v833
    %v2288 = vunpack.c.l.b16 %v834
    %v2289 = vunpack.c.h.b16 %v834
    %v2290 = vunpack.c.l.b16 %v835
    %v2291 = vunpack.c.h.b16 %v835
    %v2292 = vunpack.c.l.b16 %v836
    %v2293 = vunpack.c.h.b16 %v836
    %v2294 = vunpack.c.l.b16 %v837
    %v2295 = vunpack.c.h.b16 %v837
    %v2296 = vunpack.c.l.b16 %v838
    %v2297 = vunpack.c.h.b16 %v838
    %v2298 = vunpack.c.l.b16 %v839
    %v2299 = vunpack.c.l.b16 %v840
    %v2300 = vunpack.c.h.b16 %v840
    %v2301 = vunpack.c.l.b16 %v841
    %v2302 = vunpack.c.h.b16 %v841
    %v2303 = vunpack.c.l.b16 %v842
    %v2304 = vunpack.c.h.b16 %v842
    %v2305 = vunpack.c.l.b16 %v843
    %v2306 = vunpack.c.h.b16 %v843
    %v2307 = vunpack.c.l.b16 %v844
    %v2308 = vunpack.c.h.b16 %v844
    %v2309 = vunpack.c.l.b16 %v845
    %v2310 = vunpack.c.h.b16 %v845
    %v2311 = vunpack.c.l.b16 %v846
    %v2312 = vunpack.c.l.b16 %v847
    %v2313 = vunpack.c.h.b16 %v847
    %v2314 = vunpack.c.l.b16 %v848
    %v2315 = vunpack.c.h.b16 %v848
    %v2316 = vunpack.c.l.b16 %v849
    %v2317 = vunpack.c.h.b16 %v849
    %v2318 = vunpack.c.l.b16 %v850
    %v2319 = vunpack.c.h.b16 %v850
    %v2320 = vunpack.c.l.b16 %v851
    %v2321 = vunpack.c.h.b16 %v851
    %v2322 = vunpack.c.l.b16 %v852
    %v2323 = vunpack.c.h.b16 %v852
    %v2324 = vunpack.c.l.b16 %v853
    %v2325 = vunpack.c.l.b16 %v854
    %v2326 = vunpack.c.h.b16 %v854
    %v2327 = vunpack.c.l.b16 %v855
    %v2328 = vunpack.c.h.b16 %v855
    %v2329 = vunpack.c.l.b16 %v856
    %v2330 = vunpack.c.h.b16 %v856
    %v2331 = vunpack.c.l.b16 %v857
    %v2332 = vunpack.c.h.b16 %v857
    %v2333 = vunpack.c.l.b16 %v858
    %v2334 = vunpack.c.h.b16 %v858
    %v2335 = vunpack.c.l.b16 %v859
    %v2336 = vunpack.c.h.b16 %v859
    %v2337 = vunpack.c.l.b16 %v860
    %v2338 = vunpack.c.l.b16 %v861
    %v2339 = vunpack.c.h.b16 %v861
    %v2340 = vunpack.c.l.b16 %v862
    %v2341 = vunpack.c.h.b16 %v862
    %v2342 = vunpack.c.l.b16 %v863
    %v2343 = vunpack.c.h.b16 %v863
    %v2344 = vunpack.c.l.b16 %v864
    %v2345 = vunpack.c.h.b16 %v864
    %v2346 = vunpack.c.l.b16 %v865
    %v2347 = vunpack.c.h.b16 %v865
    %v2348 = vunpack.c.l.b16 %v866
    %v2349 = vunpack.c.h.b16 %v866
    %v2350 = vunpack.c.l.b16 %v867
    %v2351 = vunpack.c.l.b16 %v868
    %v2352 = vunpack.c.h.b16 %v868
    %v2353 = vunpack.c.l.b16 %v869
    %v2354 = vunpack.c.h.b16 %v869
    %v2355 = vunpack.c.l.b16 %v870
    %v2356 = vunpack.c.h.b16 %v870
    %v2357 = vunpack.c.l.b16 %v871
    %v2358 = vunpack.c.h.b16 %v871
    %v2359 = vunpack.c.l.b16 %v872
    %v2360 = vunpack.c.h.b16 %v872
    %v2361 = vunpack.c.l.b16 %v873
    %v2362 = vunpack.c.h.b16 %v873
    %v2363 = vunpack.c.l.b16 %v874
    %v2364 = vunpack.c.l.b16 %v875
    %v2365 = vunpack.c.h.b16 %v875
    %v2366 = vunpack.c.l.b16 %v876
    %v2367 = vunpack.c.h.b16 %v876
    %v2368 = vunpack.c.l.b16 %v877
    %v2369 = vunpack.c.h.b16 %v877
    %v2370 = vunpack.c.l.b16 %v878
    %v2371 = vunpack.c.h.b16 %v878
    %v2372 = vunpack.c.l.b16 %v879
    %v2373 = vunpack.c.h.b16 %v879
    %v2374 = vunpack.c.l.b16 %v880
    %v2375 = vunpack.c.h.b16 %v880
    %v2376 = vunpack.c.l.b16 %v881
    %v2377 = vunpack.c.l.b16 %v882
    %v2378 = vunpack.c.h.b16 %v882
    %v2379 = vunpack.c.l.b16 %v883
    %v2380 = vunpack.c.h.b16 %v883
    %v2381 = vunpack.c.l.b16 %v884
    %v2382 = vunpack.c.h.b16 %v884
    %v2383 = vunpack.c.l.b16 %v885
    %v2384 = vunpack.c.h.b16 %v885
    %v2385 = vunpack.c.l.b16 %v886
    %v2386 = vunpack.c.h.b16 %v886
    %v2387 = vunpack.c.l.b16 %v887
    %v2388 = vunpack.c.h.b16 %v887
    %v2389 = vunpack.c.l.b16 %v888
    %v2390 = vunpack.c.l.b16 %v889
    %v2391 = vunpack.c.h.b16 %v889
    %v2392 = vunpack.c.l.b16 %v890
    %v2393 = vunpack.c.h.b16 %v890
    %v2394 = vunpack.c.l.b16 %v891
    %v2395 = vunpack.c.h.b16 %v891
    %v2396 = vunpack.c.l.b16 %v892
    %v2397 = vunpack.c.h.b16 %v892
    %v2398 = vunpack.c.l.b16 %v893
    %v2399 = vunpack.c.h.b16 %v893
    %v2400 = vunpack.c.l.b16 %v894
    %v2401 = vunpack.c.h.b16 %v894
    %v2402 = vunpack.c.l.b16 %v895
    %v2403 = vunpack.c.l.b16 %v896
    %v2404 = vunpack.c.h.b16 %v896
    %v2405 = vunpack.c.l.b16 %v897
    %v2406 = vunpack.c.h.b16 %v897
    %v2407 = vunpack.c.l.b16 %v898
    %v2408 = vunpack.c.h.b16 %v898
    %v2409 = vunpack.c.l.b16 %v899
    %v2410 = vunpack.c.h.b16 %v899
    %v2411 = vunpack.c.l.b16 %v900
    %v2412 = vunpack.c.h.b16 %v900
    %v2413 = vunpack.c.l.b16 %v901
    %v2414 = vunpack.c.h.b16 %v901
    %v2415 = vunpack.c.l.b16 %v902
    %v2416 = vunpack.c.l.b16 %v903
    %v2417 = vunpack.c.h.b16 %v903
    %v2418 = vunpack.c.l.b16 %v904
    %v2419 = vunpack.c.h.b16 %v904
    %v2420 = vunpack.c.l.b16 %v905
    %v2421 = vunpack.c.h.b16 %v905
    %v2422 = vunpack.c.l.b16 %v906
    %v2423 = vunpack.c.h.b16 %v906
    %v2424 = vunpack.c.l.b16 %v907
    %v2425 = vunpack.c.h.b16 %v907
    %v2426 = vunpack.c.l.b16 %v908
    %v2427 = vunpack.c.h.b16 %v908
    %v2428 = vunpack.c.l.b16 %v909
    %v2429 = vunpack.c.l.b16 %v910
    %v2430 = vunpack.c.h.b16 %v910
    %v2431 = vunpack.c.l.b16 %v911
    %v2432 = vunpack.c.h.b16 %v911
    %v2433 = vunpack.c.l.b16 %v912
    %v2434 = vunpack.c.h.b16 %v912
    %v2435 = vunpack.c.l.b16 %v913
    %v2436 = vunpack.c.h.b16 %v913
    %v2437 = vunpack.c.l.b16 %v914
    %v2438 = vunpack.c.h.b16 %v914
    %v2439 = vunpack.c.l.b16 %v915
    %v2440 = vunpack.c.h.b16 %v915
    %v2441 = vunpack.c.l.b16 %v916
    %v2442 = vunpack.c.l.b16 %v917
    %v2443 = vunpack.c.h.b16 %v917
    %v2444 = vunpack.c.l.b16 %v918
    %v2445 = vunpack.c.h.b16 %v918
    %v2446 = vunpack.c.l.b16 %v919
    %v2447 = vunpack.c.h.b16 %v919
    %v2448 = vunpack.c.l.b16 %v920
    %v2449 = vunpack.c.h.b16 %v920
    %v2450 = vunpack.c.l.b16 %v921
    %v2451 = vunpack.c.h.b16 %v921
    %v2452 = vunpack.c.l.b16 %v922
    %v2453 = vunpack.c.h.b16 %v922
    %v2454 = vunpack.c.l.b16 %v923
    %v2455 = vunpack.c.l.b16 %v924
    %v2456 = vunpack.c.h.b16 %v924
    %v2457 = vunpack.c.l.b16 %v925
    %v2458 = vunpack.c.h.b16 %v925
    %v2459 = vunpack.c.l.b16 %v926
    %v2460 = vunpack.c.h.b16 %v926
    %v2461 = vunpack.c.l.b16 %v927
    %v2462 = vunpack.c.h.b16 %v927
    %v2463 = vunpack.c.l.b16 %v928
    %v2464 = vunpack.c.h.b16 %v928
    %v2465 = vunpack.c.l.b16 %v929
    %v2466 = vunpack.c.h.b16 %v929
    %v2467 = vunpack.c.l.b16 %v930
    %v2468 = vunpack.c.l.b16 %v931
    %v2469 = vunpack.c.h.b16 %v931
    %v2470 = vunpack.c.l.b16 %v932
    %v2471 = vunpack.c.h.b16 %v932
    %v2472 = vunpack.c.l.b16 %v933
    %v2473 = vunpack.c.h.b16 %v933
    %v2474 = vunpack.c.l.b16 %v934
    %v2475 = vunpack.c.h.b16 %v934
    %v2476 = vunpack.c.l.b16 %v935
    %v2477 = vunpack.c.h.b16 %v935
    %v2478 = vunpack.c.l.b16 %v936
    %v2479 = vunpack.c.h.b16 %v936
    %v2480 = vunpack.c.l.b16 %v937
    %v2481 = vunpack.c.l.b16 %v938
    %v2482 = vunpack.c.h.b16 %v938
    %v2483 = vunpack.c.l.b16 %v939
    %v2484 = vunpack.c.h.b16 %v939
    %v2485 = vunpack.c.l.b16 %v940
    %v2486 = vunpack.c.h.b16 %v940
    %v2487 = vunpack.c.l.b16 %v941
    %v2488 = vunpack.c.h.b16 %v941
    %v2489 = vunpack.c.l.b16 %v942
    %v2490 = vunpack.c.h.b16 %v942
    %v2491 = vunpack.c.l.b16 %v943
    %v2492 = vunpack.c.h.b16 %v943
    %v2493 = vunpack.c.l.b16 %v944
    %v2494 = vunpack.c.l.b16 %v945
    %v2495 = vunpack.c.h.b16 %v945
    %v2496 = vunpack.c.l.b16 %v946
    %v2497 = vunpack.c.h.b16 %v946
    %v2498 = vunpack.c.l.b16 %v947
    %v2499 = vunpack.c.h.b16 %v947
    %v2500 = vunpack.c.l.b16 %v948
    %v2501 = vunpack.c.h.b16 %v948
    %v2502 = vunpack.c.l.b16 %v949
    %v2503 = vunpack.c.h.b16 %v949
    %v2504 = vunpack.c.l.b16 %v950
    %v2505 = vunpack.c.h.b16 %v950
    %v2506 = vunpack.c.l.b16 %v951
    %v2507 = vunpack.c.l.b16 %v952
    %v2508 = vunpack.c.h.b16 %v952
    %v2509 = vunpack.c.l.b16 %v953
    %v2510 = vunpack.c.h.b16 %v953
    %v2511 = vunpack.c.l.b16 %v954
    %v2512 = vunpack.c.h.b16 %v954
    %v2513 = vunpack.c.l.b16 %v955
    %v2514 = vunpack.c.h.b16 %v955
    %v2515 = vunpack.c.l.b16 %v956
    %v2516 = vunpack.c.h.b16 %v956
    %v2517 = vunpack.c.l.b16 %v957
    %v2518 = vunpack.c.h.b16 %v957
    %v2519 = vunpack.c.l.b16 %v958
    %v2520 = vunpack.c.l.b16 %v959
    %v2521 = vunpack.c.h.b16 %v959
    %v2522 = vunpack.c.l.b16 %v960
    %v2523 = vunpack.c.h.b16 %v960
    %v2524 = vunpack.c.l.b16 %v961
    %v2525 = vunpack.c.h.b16 %v961
    %v2526 = vunpack.c.l.b16 %v962
    %v2527 = vunpack.c.h.b16 %v962
    %v2528 = vunpack.c.l.b16 %v963
    %v2529 = vunpack.c.h.b16 %v963
    %v2530 = vunpack.c.l.b16 %v964
    %v2531 = vunpack.c.h.b16 %v964
    %v2532 = vunpack.c.l.b16 %v965
    %v2533 = vunpack.c.l.b16 %v966
    %v2534 = vunpack.c.h.b16 %v966
    %v2535 = vunpack.c.l.b16 %v967
    %v2536 = vunpack.c.h.b16 %v967
    %v2537 = vunpack.c.l.b16 %v968
    %v2538 = vunpack.c.h.b16 %v968
    %v2539 = vunpack.c.l.b16 %v969
    %v2540 = vunpack.c.h.b16 %v969
    %v2541 = vunpack.c.l.b16 %v970
    %v2542 = vunpack.c.h.b16 %v970
    %v2543 = vunpack.c.l.b16 %v971
    %v2544 = vunpack.c.h.b16 %v971
    %v2545 = vunpack.c.l.b16 %v972
    %v2546 = vunpack.c.l.b16 %v973
    %v2547 = vunpack.c.h.b16 %v973
    %v2548 = vunpack.c.l.b16 %v974
    %v2549 = vunpack.c.h.b16 %v974
    %v2550 = vunpack.c.l.b16 %v975
    %v2551 = vunpack.c.h.b16 %v975
    %v2552 = vunpack.c.l.b16 %v976
    %v2553 = vunpack.c.h.b16 %v976
    %v2554 = vunpack.c.l.b16 %v977
    %v2555 = vunpack.c.h.b16 %v977
    %v2556 = vunpack.c.l.b16 %v978
    %v2557 = vunpack.c.h.b16 %v978
    %v2558 = vunpack.c.l.b16 %v979
    %v2559 = vunpack.c.l.b16 %v980
    %v2560 = vunpack.c.h.b16 %v980
    %v2561 = vunpack.c.l.b16 %v981
    %v2562 = vunpack.c.h.b16 %v981
    %v2563 = vunpack.c.l.b16 %v982
    %v2564 = vunpack.c.h.b16 %v982
    %v2565 = vunpack.c.l.b16 %v983
    %v2566 = vunpack.c.h.b16 %v983
    %v2567 = vunpack.c.l.b16 %v984
    %v2568 = vunpack.c.h.b16 %v984
    %v2569 = vunpack.c.l.b16 %v985
    %v2570 = vunpack.c.h.b16 %v985
    %v2571 = vunpack.c.l.b16 %v986
    %v2572 = vunpack.c.l.b16 %v987
    %v2573 = vunpack.c.h.b16 %v987
    %v2574 = vunpack.c.l.b16 %v988
    %v2575 = vunpack.c.h.b16 %v988
    %v2576 = vunpack.c.l.b16 %v989
    %v2577 = vunpack.c.h.b16 %v989
    %v2578 = vunpack.c.l.b16 %v990
    %v2579 = vunpack.c.h.b16 %v990
    %v2580 = vunpack.c.l.b16 %v991
    %v2581 = vunpack.c.h.b16 %v991
    %v2582 = vunpack.c.l.b16 %v992
    %v2583 = vunpack.c.h.b16 %v992
    %v2584 = vunpack.c.l.b16 %v993
    %v2585 = vunpack.c.l.b16 %v994
    %v2586 = vunpack.c.h.b16 %v994
    %v2587 = vunpack.c.l.b16 %v995
    %v2588 = vunpack.c.h.b16 %v995
    %v2589 = vunpack.c.l.b16 %v996
    %v2590 = vunpack.c.h.b16 %v996
    %v2591 = vunpack.c.l.b16 %v997
    %v2592 = vunpack.c.h.b16 %v997
    %v2593 = vunpack.c.l.b16 %v998
    %v2594 = vunpack.c.h.b16 %v998
    %v2595 = vunpack.c.l.b16 %v999
    %v2596 = vunpack.c.h.b16 %v999
    %v2597 = vunpack.c.l.b16 %v1000
    %v2598 = vunpack.c.l.b16 %v1001
    %v2599 = vunpack.c.h.b16 %v1001
    %v2600 = vunpack.c.l.b16 %v1002
    %v2601 = vunpack.c.h.b16 %v1002
    %v2602 = vunpack.c.l.b16 %v1003
    %v2603 = vunpack.c.h.b16 %v1003
    %v2604 = vunpack.c.l.b16 %v1004
    %v2605 = vunpack.c.h.b16 %v1004
    %v2606 = vunpack.c.l.b16 %v1005
    %v2607 = vunpack.c.h.b16 %v1005
    %v2608 = vunpack.c.l.b16 %v1006
    %v2609 = vunpack.c.h.b16 %v1006
    %v2610 = vunpack.c.l.b16 %v1007
    %v2611 = vunpack.c.l.b16 %v1008
    %v2612 = vunpack.c.h.b16 %v1008
    %v2613 = vunpack.c.l.b16 %v1009
    %v2614 = vunpack.c.h.b16 %v1009
    %v2615 = vunpack.c.l.b16 %v1010
    %v2616 = vunpack.c.h.b16 %v1010
    %v2617 = vunpack.c.l.b16 %v1011
    %v2618 = vunpack.c.h.b16 %v1011
    %v2619 = vunpack.c.l.b16 %v1012
    %v2620 = vunpack.c.h.b16 %v1012
    %v2621 = vunpack.c.l.b16 %v1013
    %v2622 = vunpack.c.h.b16 %v1013
    %v2623 = vunpack.c.l.b16 %v1014
    %v2624 = vunpack.c.l.b16 %v1015
    %v2625 = vunpack.c.h.b16 %v1015
    %v2626 = vunpack.c.l.b16 %v1016
    %v2627 = vunpack.c.h.b16 %v1016
    %v2628 = vunpack.c.l.b16 %v1017
    %v2629 = vunpack.c.h.b16 %v1017
    %v2630 = vunpack.c.l.b16 %v1018
    %v2631 = vunpack.c.h.b16 %v1018
    %v2632 = vunpack.c.l.b16 %v1019
    %v2633 = vunpack.c.h.b16 %v1019
    %v2634 = vunpack.c.l.b16 %v1020
    %v2635 = vunpack.c.h.b16 %v1020
    %v2636 = vunpack.c.l.b16 %v1021
    %v2637 = vunpack.c.l.b16 %v1022
    %v2638 = vunpack.c.h.b16 %v1022
    %v2639 = vunpack.c.l.b16 %v1023
    %v2640 = vunpack.c.h.b16 %v1023
    %v2641 = vunpack.c.l.b16 %v1024
    %v2642 = vunpack.c.h.b16 %v1024
    %v2643 = vunpack.c.l.b16 %v1025
    %v2644 = vunpack.c.h.b16 %v1025
    %v2645 = vunpack.c.l.b16 %v1026
    %v2646 = vunpack.c.h.b16 %v1026
    %v2647 = vunpack.c.l.b16 %v1027
    %v2648 = vunpack.c.h.b16 %v1027
    %v2649 = vunpack.c.l.b16 %v1028
    %v2650 = vunpack.c.l.b16 %v1029
    %v2651 = vunpack.c.h.b16 %v1029
    %v2652 = vunpack.c.l.b16 %v1030
    %v2653 = vunpack.c.h.b16 %v1030
    %v2654 = vunpack.c.l.b16 %v1031
    %v2655 = vunpack.c.h.b16 %v1031
    %v2656 = vunpack.c.l.b16 %v1032
    %v2657 = vunpack.c.h.b16 %v1032
    %v2658 = vunpack.c.l.b16 %v1033
    %v2659 = vunpack.c.h.b16 %v1033
    %v2660 = vunpack.c.l.b16 %v1034
    %v2661 = vunpack.c.h.b16 %v1034
    %v2662 = vunpack.c.l.b16 %v1035
    %v2663 = vunpack.c.l.b16 %v1036
    %v2664 = vunpack.c.h.b16 %v1036
    %v2665 = vunpack.c.l.b16 %v1037
    %v2666 = vunpack.c.h.b16 %v1037
    %v2667 = vunpack.c.l.b16 %v1038
    %v2668 = vunpack.c.h.b16 %v1038
    %v2669 = vunpack.c.l.b16 %v1039
    %v2670 = vunpack.c.h.b16 %v1039
    %v2671 = vunpack.c.l.b16 %v1040
    %v2672 = vunpack.c.h.b16 %v1040
    %v2673 = vunpack.c.l.b16 %v1041
    %v2674 = vunpack.c.h.b16 %v1041
    %v2675 = vunpack.c.l.b16 %v1042
    %v2676 = vunpack.c.l.b16 %v1043
    %v2677 = vunpack.c.h.b16 %v1043
    %v2678 = vunpack.c.l.b16 %v1044
    %v2679 = vunpack.c.h.b16 %v1044
    %v2680 = vunpack.c.l.b16 %v1045
    %v2681 = vunpack.c.h.b16 %v1045
    %v2682 = vunpack.c.l.b16 %v1046
    %v2683 = vunpack.c.h.b16 %v1046
    %v2684 = vunpack.c.l.b16 %v1047
    %v2685 = vunpack.c.h.b16 %v1047
    %v2686 = vunpack.c.l.b16 %v1048
    %v2687 = vunpack.c.h.b16 %v1048
    %v2688 = vunpack.c.l.b16 %v1049
    %v2689 = vunpack.c.l.b16 %v1050
    %v2690 = vunpack.c.h.b16 %v1050
    %v2691 = vunpack.c.l.b16 %v1051
    %v2692 = vunpack.c.h.b16 %v1051
    %v2693 = vunpack.c.l.b16 %v1052
    %v2694 = vunpack.c.h.b16 %v1052
    %v2695 = vunpack.c.l.b16 %v1053
    %v2696 = vunpack.c.h.b16 %v1053
    %v2697 = vunpack.c.l.b16 %v1054
    %v2698 = vunpack.c.h.b16 %v1054
    %v2699 = vunpack.c.l.b16 %v1055
    %v2700 = vunpack.c.h.b16 %v1055
    %v2701 = vunpack.c.l.b16 %v1056
    %v2702 = vunpack.c.l.b16 %v1057
    %v2703 = vunpack.c.h.b16 %v1057
    %v2704 = vunpack.c.l.b16 %v1058
    %v2705 = vunpack.c.h.b16 %v1058
    %v2706 = vunpack.c.l.b16 %v1059
    %v2707 = vunpack.c.h.b16 %v1059
    %v2708 = vunpack.c.l.b16 %v1060
    %v2709 = vunpack.c.h.b16 %v1060
    %v2710 = vunpack.c.l.b16 %v1061
    %v2711 = vunpack.c.h.b16 %v1061
    %v2712 = vunpack.c.l.b16 %v1062
    %v2713 = vunpack.c.h.b16 %v1062
    %v2714 = vunpack.c.l.b16 %v1063
    %v2715 = vunpack.c.l.b16 %v1064
    %v2716 = vunpack.c.h.b16 %v1064
    %v2717 = vunpack.c.l.b16 %v1065
    %v2718 = vunpack.c.h.b16 %v1065
    %v2719 = vunpack.c.l.b16 %v1066
    %v2720 = vunpack.c.h.b16 %v1066
    %v2721 = vunpack.c.l.b16 %v1067
    %v2722 = vunpack.c.h.b16 %v1067
    %v2723 = vunpack.c.l.b16 %v1068
    %v2724 = vunpack.c.h.b16 %v1068
    %v2725 = vunpack.c.l.b16 %v1069
    %v2726 = vunpack.c.h.b16 %v1069
    %v2727 = vunpack.c.l.b16 %v1070
    %v2728 = vunpack.c.l.b16 %v1071
    %v2729 = vunpack.c.h.b16 %v1071
    %v2730 = vunpack.c.l.b16 %v1072
    %v2731 = vunpack.c.h.b16 %v1072
    %v2732 = vunpack.c.l.b16 %v1073
    %v2733 = vunpack.c.h.b16 %v1073
    %v2734 = vunpack.c.l.b16 %v1074
    %v2735 = vunpack.c.h.b16 %v1074
    %v2736 = vunpack.c.l.b16 %v1075
    %v2737 = vunpack.c.h.b16 %v1075
    %v2738 = vunpack.c.l.b16 %v1076
    %v2739 = vunpack.c.h.b16 %v1076
    %v2740 = vunpack.c.l.b16 %v1077
    %v2741 = vunpack.c.l.b16 %v1078
    %v2742 = vunpack.c.h.b16 %v1078
    %v2743 = vunpack.c.l.b16 %v1079
    %v2744 = vunpack.c.h.b16 %v1079
    %v2745 = vunpack.c.l.b16 %v1080
    %v2746 = vunpack.c.h.b16 %v1080
    %v2747 = vunpack.c.l.b16 %v1081
    %v2748 = vunpack.c.h.b16 %v1081
    %v2749 = vunpack.c.l.b16 %v1082
    %v2750 = vunpack.c.h.b16 %v1082
    %v2751 = vunpack.c.l.b16 %v1083
    %v2752 = vunpack.c.h.b16 %v1083
    %v2753 = vunpack.c.l.b16 %v1084
    %v2754 = vunpack.c.l.b16 %v1085
    %v2755 = vunpack.c.h.b16 %v1085
    %v2756 = vunpack.c.l.b16 %v1086
    %v2757 = vunpack.c.h.b16 %v1086
    %v2758 = vunpack.c.l.b16 %v1087
    %v2759 = vunpack.c.h.b16 %v1087
    %v2760 = vunpack.c.l.b16 %v1088
    %v2761 = vunpack.c.h.b16 %v1088
    %v2762 = vunpack.c.l.b16 %v1089
    %v2763 = vunpack.c.h.b16 %v1089
    %v2764 = vunpack.c.l.b16 %v1090
    %v2765 = vunpack.c.h.b16 %v1090
    %v2766 = vunpack.c.l.b16 %v1091
    %v2767 = vunpack.c.l.b16 %v1092
    %v2768 = vunpack.c.h.b16 %v1092
    %v2769 = vunpack.c.l.b16 %v1093
    %v2770 = vunpack.c.h.b16 %v1093
    %v2771 = vunpack.c.l.b16 %v1094
    %v2772 = vunpack.c.h.b16 %v1094
    %v2773 = vunpack.c.l.b16 %v1095
    %v2774 = vunpack.c.h.b16 %v1095
    %v2775 = vunpack.c.l.b16 %v1096
    %v2776 = vunpack.c.h.b16 %v1096
    %v2777 = vunpack.c.l.b16 %v1097
    %v2778 = vunpack.c.h.b16 %v1097
    %v2779 = vunpack.c.l.b16 %v1098
    %v2780 = vunpack.c.l.b16 %v1099
    %v2781 = vunpack.c.h.b16 %v1099
    %v2782 = vunpack.c.l.b16 %v1100
    %v2783 = vunpack.c.h.b16 %v1100
    %v2784 = vunpack.c.l.b16 %v1101
    %v2785 = vunpack.c.h.b16 %v1101
    %v2786 = vunpack.c.l.b16 %v1102
    %v2787 = vunpack.c.h.b16 %v1102
    %v2788 = vunpack.c.l.b16 %v1103
    %v2789 = vunpack.c.h.b16 %v1103
    %v2790 = vunpack.c.l.b16 %v1104
    %v2791 = vunpack.c.h.b16 %v1104
    %v2792 = vunpack.c.l.b16 %v1105
    %v2793 = vunpack.c.l.b16 %v1106
    %v2794 = vunpack.c.h.b16 %v1106
    %v2795 = vunpack.c.l.b16 %v1107
    %v2796 = vunpack.c.h.b16 %v1107
    %v2797 = vunpack.c.l.b16 %v1108
    %v2798 = vunpack.c.h.b16 %v1108
    %v2799 = vunpack.c.l.b16 %v1109
    %v2800 = vunpack.c.h.b16 %v1109
    %v2801 = vunpack.c.l.b16 %v1110
    %v2802 = vunpack.c.h.b16 %v1110
    %v2803 = vunpack.c.l.b16 %v1111
    %v2804 = vunpack.c.h.b16 %v1111
    %v2805 = vunpack.c.l.b16 %v1112
    %v2806 = vunpack.c.l.b16 %v1113
    %v2807 = vunpack.c.h.b16 %v1113
    %v2808 = vunpack.c.l.b16 %v1114
    %v2809 = vunpack.c.h.b16 %v1114
    %v2810 = vunpack.c.l.b16 %v1115
    %v2811 = vunpack.c.h.b16 %v1115
    %v2812 = vunpack.c.l.b16 %v1116
    %v2813 = vunpack.c.h.b16 %v1116
    %v2814 = vunpack.c.l.b16 %v1117
    %v2815 = vunpack.c.h.b16 %v1117
    %v2816 = vunpack.c.l.b16 %v1118
    %v2817 = vunpack.c.h.b16 %v1118
    %v2818 = vunpack.c.l.b16 %v1119
    %v2819 = vunpack.c.l.b16 %v1120
    %v2820 = vunpack.c.h.b16 %v1120
    %v2821 = vunpack.c.l.b16 %v1121
    %v2822 = vunpack.c.h.b16 %v1121
    %v2823 = vunpack.c.l.b16 %v1122
    %v2824 = vunpack.c.h.b16 %v1122
    %v2825 = vunpack.c.l.b16 %v1123
    %v2826 = vunpack.c.h.b16 %v1123
    %v2827 = vunpack.c.l.b16 %v1124
    %v2828 = vunpack.c.h.b16 %v1124
    %v2829 = vunpack.c.l.b16 %v1125
    %v2830 = vunpack.c.h.b16 %v1125
    %v2831 = vunpack.c.l.b16 %v1126
    %v2832 = vunpack.c.l.b16 %v1127
    %v2833 = vunpack.c.h.b16 %v1127
    %v2834 = vunpack.c.l.b16 %v1128
    %v2835 = vunpack.c.h.b16 %v1128
    %v2836 = vunpack.c.l.b16 %v1129
    %v2837 = vunpack.c.h.b16 %v1129
    %v2838 = vunpack.c.l.b16 %v1130
    %v2839 = vunpack.c.h.b16 %v1130
    %v2840 = vunpack.c.l.b16 %v1131
    %v2841 = vunpack.c.h.b16 %v1131
    %v2842 = vunpack.c.l.b16 %v1132
    %v2843 = vunpack.c.h.b16 %v1132
    %v2844 = vunpack.c.l.b16 %v1133
    %v2845 = vunpack.c.l.b16 %v1134
    %v2846 = vunpack.c.h.b16 %v1134
    %v2847 = vunpack.c.l.b16 %v1135
    %v2848 = vunpack.c.h.b16 %v1135
    %v2849 = vunpack.c.l.b16 %v1136
    %v2850 = vunpack.c.h.b16 %v1136
    %v2851 = vunpack.c.l.b16 %v1137
    %v2852 = vunpack.c.h.b16 %v1137
    %v2853 = vunpack.c.l.b16 %v1138
    %v2854 = vunpack.c.h.b16 %v1138
    %v2855 = vunpack.c.l.b16 %v1139
    %v2856 = vunpack.c.h.b16 %v1139
    %v2857 = vunpack.c.l.b16 %v1140
    %v2858 = vunpack.c.l.b16 %v1141
    %v2859 = vunpack.c.h.b16 %v1141
    %v2860 = vunpack.c.l.b16 %v1142
    %v2861 = vunpack.c.h.b16 %v1142
    %v2862 = vunpack.c.l.b16 %v1143
    %v2863 = vunpack.c.h.b16 %v1143
    %v2864 = vunpack.c.l.b16 %v1144
    %v2865 = vunpack.c.h.b16 %v1144
    %v2866 = vunpack.c.l.b16 %v1145
    %v2867 = vunpack.c.h.b16 %v1145
    %v2868 = vunpack.c.l.b16 %v1146
    %v2869 = vunpack.c.h.b16 %v1146
    %v2870 = vunpack.c.l.b16 %v1147
    %v2871 = vunpack.c.l.b16 %v1148
    %v2872 = vunpack.c.h.b16 %v1148
    %v2873 = vunpack.c.l.b16 %v1149
    %v2874 = vunpack.c.h.b16 %v1149
    %v2875 = vunpack.c.l.b16 %v1150
    %v2876 = vunpack.c.h.b16 %v1150
    %v2877 = vunpack.c.l.b16 %v1151
    %v2878 = vunpack.c.h.b16 %v1151
    %v2879 = vunpack.c.l.b16 %v1152
    %v2880 = vunpack.c.h.b16 %v1152
    %v2881 = vunpack.c.l.b16 %v1153
    %v2882 = vunpack.c.h.b16 %v1153
    %v2883 = vunpack.c.l.b16 %v1154
    %v2884 = vunpack.c.l.b16 %v1155
    %v2885 = vunpack.c.h.b16 %v1155
    %v2886 = vunpack.c.l.b16 %v1156
    %v2887 = vunpack.c.h.b16 %v1156
    %v2888 = vunpack.c.l.b16 %v1157
    %v2889 = vunpack.c.h.b16 %v1157
    %v2890 = vunpack.c.l.b16 %v1158
    %v2891 = vunpack.c.h.b16 %v1158
    %v2892 = vunpack.c.l.b16 %v1159
    %v2893 = vunpack.c.h.b16 %v1159
    %v2894 = vunpack.c.l.b16 %v1160
    %v2895 = vunpack.c.h.b16 %v1160
    %v2896 = vunpack.c.l.b16 %v1161
    %v2897 = vunpack.c.l.b16 %v1162
    %v2898 = vunpack.c.h.b16 %v1162
    %v2899 = vunpack.c.l.b16 %v1163
    %v2900 = vunpack.c.h.b16 %v1163
    %v2901 = vunpack.c.l.b16 %v1164
    %v2902 = vunpack.c.h.b16 %v1164
    %v2903 = vunpack.c.l.b16 %v1165
    %v2904 = vunpack.c.h.b16 %v1165
    %v2905 = vunpack.c.l.b16 %v1166
    %v2906 = vunpack.c.h.b16 %v1166
    %v2907 = vunpack.c.l.b16 %v1167
    %v2908 = vunpack.c.h.b16 %v1167
    %v2909 = vunpack.c.l.b16 %v1168
    %v2910 = vunpack.c.l.b16 %v1169
    %v2911 = vunpack.c.h.b16 %v1169
    %v2912 = vunpack.c.l.b16 %v1170
    %v2913 = vunpack.c.h.b16 %v1170
    %v2914 = vunpack.c.l.b16 %v1171
    %v2915 = vunpack.c.h.b16 %v1171
    %v2916 = vunpack.c.l.b16 %v1172
    %v2917 = vunpack.c.h.b16 %v1172
    %v2918 = vunpack.c.l.b16 %v1173
    %v2919 = vunpack.c.h.b16 %v1173
    %v2920 = vunpack.c.l.b16 %v1174
    %v2921 = vunpack.c.h.b16 %v1174
    %v2922 = vunpack.c.l.b16 %v1175
    %v2923 = vunpack.c.l.b16 %v1176
    %v2924 = vunpack.c.h.b16 %v1176
    %v2925 = vunpack.c.l.b16 %v1177
    %v2926 = vunpack.c.h.b16 %v1177
    %v2927 = vunpack.c.l.b16 %v1178
    %v2928 = vunpack.c.h.b16 %v1178
    %v2929 = vunpack.c.l.b16 %v1179
    %v2930 = vunpack.c.h.b16 %v1179
    %v2931 = vunpack.c.l.b16 %v1180
    %v2932 = vunpack.c.h.b16 %v1180
    %v2933 = vunpack.c.l.b16 %v1181
    %v2934 = vunpack.c.h.b16 %v1181
    %v2935 = vunpack.c.l.b16 %v1182
    %v2936 = vunpack.c.l.b16 %v1183
    %v2937 = vunpack.c.h.b16 %v1183
    %v2938 = vunpack.c.l.b16 %v1184
    %v2939 = vunpack.c.h.b16 %v1184
    %v2940 = vunpack.c.l.b16 %v1185
    %v2941 = vunpack.c.h.b16 %v1185
    %v2942 = vunpack.c.l.b16 %v1186
    %v2943 = vunpack.c.h.b16 %v1186
    %v2944 = vunpack.c.l.b16 %v1187
    %v2945 = vunpack.c.h.b16 %v1187
    %v2946 = vunpack.c.l.b16 %v1188
    %v2947 = vunpack.c.h.b16 %v1188
    %v2948 = vunpack.c.l.b16 %v1189
    %v2949 = vunpack.c.l.b16 %v1190
    %v2950 = vunpack.c.h.b16 %v1190
    %v2951 = vunpack.c.l.b16 %v1191
    %v2952 = vunpack.c.h.b16 %v1191
    %v2953 = vunpack.c.l.b16 %v1192
    %v2954 = vunpack.c.h.b16 %v1192
    %v2955 = vunpack.c.l.b16 %v1193
    %v2956 = vunpack.c.h.b16 %v1193
    %v2957 = vunpack.c.l.b16 %v1194
    %v2958 = vunpack.c.h.b16 %v1194
    %v2959 = vunpack.c.l.b16 %v1195
    %v2960 = vunpack.c.h.b16 %v1195
    %v2961 = vunpack.c.l.b16 %v1196
    %v2962 = vunpack.c.l.b16 %v1197
    %v2963 = vunpack.c.h.b16 %v1197
    %v2964 = vunpack.c.l.b16 %v1198
    %v2965 = vunpack.c.h.b16 %v1198
    %v2966 = vunpack.c.l.b16 %v1199
    %v2967 = vunpack.c.h.b16 %v1199
    %v2968 = vunpack.c.l.b16 %v1200
    %v2969 = vunpack.c.h.b16 %v1200
    %v2970 = vunpack.c.l.b16 %v1201
    %v2971 = vunpack.c.h.b16 %v1201
    %v2972 = vunpack.c.l.b16 %v1202
    %v2973 = vunpack.c.h.b16 %v1202
    %v2974 = vunpack.c.l.b16 %v1203
    %v2975 = vunpack.c.l.b16 %v1204
    %v2976 = vunpack.c.h.b16 %v1204
    %v2977 = vunpack.c.l.b16 %v1205
    %v2978 = vunpack.c.h.b16 %v1205
    %v2979 = vunpack.c.l.b16 %v1206
    %v2980 = vunpack.c.h.b16 %v1206
    %v2981 = vunpack.c.l.b16 %v1207
    %v2982 = vunpack.c.h.b16 %v1207
    %v2983 = vunpack.c.l.b16 %v1208
    %v2984 = vunpack.c.h.b16 %v1208
    %v2985 = vunpack.c.l.b16 %v1209
    %v2986 = vunpack.c.h.b16 %v1209
    %v2987 = vunpack.c.l.b16 %v1210
    %v2988 = vunpack.c.l.b16 %v1211
    %v2989 = vunpack.c.h.b16 %v1211
    %v2990 = vunpack.c.l.b16 %v1212
    %v2991 = vunpack.c.h.b16 %v1212
    %v2992 = vunpack.c.l.b16 %v1213
    %v2993 = vunpack.c.h.b16 %v1213
    %v2994 = vunpack.c.l.b16 %v1214
    %v2995 = vunpack.c.h.b16 %v1214
    %v2996 = vunpack.c.l.b16 %v1215
    %v2997 = vunpack.c.h.b16 %v1215
    %v2998 = vunpack.c.l.b16 %v1216
    %v2999 = vunpack.c.h.b16 %v1216
    %v3000 = vunpack.c.l.b16 %v1217
    %v3001 = vunpack.c.l.b16 %v1218
    %v3002 = vunpack.c.h.b16 %v1218
    %v3003 = vunpack.c.l.b16 %v1219
    %v3004 = vunpack.c.h.b16 %v1219
    %v3005 = vunpack.c.l.b16 %v1220
    %v3006 = vunpack.c.h.b16 %v1220
    %v3007 = vunpack.c.l.b16 %v1221
    %v3008 = vunpack.c.h.b16 %v1221
    %v3009 = vunpack.c.l.b16 %v1222
    %v3010 = vunpack.c.h.b16 %v1222
    %v3011 = vunpack.c.l.b16 %v1223
    %v3012 = vunpack.c.h.b16 %v1223
    %v3013 = vunpack.c.l.b16 %v1224
    %v3014 = vunpack.c.l.b16 %v1225
    %v3015 = vunpack.c.h.b16 %v1225
    %v3016 = vunpack.c.l.b16 %v1226
    %v3017 = vunpack.c.h.b16 %v1226
    %v3018 = vunpack.c.l.b16 %v1227
    %v3019 = vunpack.c.h.b16 %v1227
    %v3020 = vunpack.c.l.b16 %v1228
    %v3021 = vunpack.c.h.b16 %v1228
    %v3022 = vunpack.c.l.b16 %v1229
    %v3023 = vunpack.c.h.b16 %v1229
    %v3024 = vunpack.c.l.b16 %v1230
    %v3025 = vunpack.c.h.b16 %v1230
    %v3026 = vunpack.c.l.b16 %v1231
    %v3027 = vunpack.c.l.b16 %v1232
    %v3028 = vunpack.c.h.b16 %v1232
    %v3029 = vunpack.c.l.b16 %v1233
    %v3030 = vunpack.c.h.b16 %v1233
    %v3031 = vunpack.c.l.b16 %v1234
    %v3032 = vunpack.c.h.b16 %v1234
    %v3033 = vunpack.c.l.b16 %v1235
    %v3034 = vunpack.c.h.b16 %v1235
    %v3035 = vunpack.c.l.b16 %v1236
    %v3036 = vunpack.c.h.b16 %v1236
    %v3037 = vunpack.c.l.b16 %v1237
    %v3038 = vunpack.c.h.b16 %v1237
    %v3039 = vunpack.c.l.b16 %v1238
    %v3040 = vunpack.c.l.b16 %v1239
    %v3041 = vunpack.c.h.b16 %v1239
    %v3042 = vunpack.c.l.b16 %v1240
    %v3043 = vunpack.c.h.b16 %v1240
    %v3044 = vunpack.c.l.b16 %v1241
    %v3045 = vunpack.c.h.b16 %v1241
    %v3046 = vunpack.c.l.b16 %v1242
    %v3047 = vunpack.c.h.b16 %v1242
    %v3048 = vunpack.c.l.b16 %v1243
    %v3049 = vunpack.c.h.b16 %v1243
    %v3050 = vunpack.c.l.b16 %v1244
    %v3051 = vunpack.c.h.b16 %v1244
    %v3052 = vunpack.c.l.b16 %v1245
    %v3053 = vunpack.c.l.b16 %v1246
    %v3054 = vunpack.c.h.b16 %v1246
    %v3055 = vunpack.c.l.b16 %v1247
    %v3056 = vunpack.c.h.b16 %v1247
    %v3057 = vunpack.c.l.b16 %v1248
    %v3058 = vunpack.c.h.b16 %v1248
    %v3059 = vunpack.c.l.b16 %v1249
    %v3060 = vunpack.c.h.b16 %v1249
    %v3061 = vunpack.c.l.b16 %v1250
    %v3062 = vunpack.c.h.b16 %v1250
    %v3063 = vunpack.c.l.b16 %v1251
    %v3064 = vunpack.c.h.b16 %v1251
    %v3065 = vunpack.c.l.b16 %v1252
    %v3066 = vunpack.c.l.b16 %v1253
    %v3067 = vunpack.c.h.b16 %v1253
    %v3068 = vunpack.c.l.b16 %v1254
    %v3069 = vunpack.c.h.b16 %v1254
    %v3070 = vunpack.c.l.b16 %v1255
    %v3071 = vunpack.c.h.b16 %v1255
    %v3072 = vunpack.c.l.b16 %v1256
    %v3073 = vunpack.c.h.b16 %v1256
    %v3074 = vunpack.c.l.b16 %v1257
    %v3075 = vunpack.c.h.b16 %v1257
    %v3076 = vunpack.c.l.b16 %v1258
    %v3077 = vunpack.c.h.b16 %v1258
    %v3078 = vunpack.c.l.b16 %v1259
    %v3079 = vunpack.c.l.b16 %v1260
    %v3080 = vunpack.c.h.b16 %v1260
    %v3081 = vunpack.c.l.b16 %v1261
    %v3082 = vunpack.c.h.b16 %v1261
    %v3083 = vunpack.c.l.b16 %v1262
    %v3084 = vunpack.c.h.b16 %v1262
    %v3085 = vunpack.c.l.b16 %v1263
    %v3086 = vunpack.c.h.b16 %v1263
    %v3087 = vunpack.c.l.b16 %v1264
    %v3088 = vunpack.c.h.b16 %v1264
    %v3089 = vunpack.c.l.b16 %v1265
    %v3090 = vunpack.c.h.b16 %v1265
    %v3091 = vunpack.c.l.b16 %v1266
    %v3092 = vunpack.c.l.b16 %v1267
    %v3093 = vunpack.c.h.b16 %v1267
    %v3094 = vunpack.c.l.b16 %v1268
    %v3095 = vunpack.c.h.b16 %v1268
    %v3096 = vunpack.c.l.b16 %v1269
    %v3097 = vunpack.c.h.b16 %v1269
    %v3098 = vunpack.c.l.b16 %v1270
    %v3099 = vunpack.c.h.b16 %v1270
    %v3100 = vunpack.c.l.b16 %v1271
    %v3101 = vunpack.c.h.b16 %v1271
    %v3102 = vunpack.c.l.b16 %v1272
    %v3103 = vunpack.c.h.b16 %v1272
    %v3104 = vunpack.c.l.b16 %v1273
    %v3105 = vunpack.c.l.b16 %v1274
    %v3106 = vunpack.c.h.b16 %v1274
    %v3107 = vunpack.c.l.b16 %v1275
    %v3108 = vunpack.c.h.b16 %v1275
    %v3109 = vunpack.c.l.b16 %v1276
    %v3110 = vunpack.c.h.b16 %v1276
    %v3111 = vunpack.c.l.b16 %v1277
    %v3112 = vunpack.c.h.b16 %v1277
    %v3113 = vunpack.c.l.b16 %v1278
    %v3114 = vunpack.c.h.b16 %v1278
    %v3115 = vunpack.c.l.b16 %v1279
    %v3116 = vunpack.c.h.b16 %v1279
    %v3117 = vunpack.c.l.b16 %v1280
    %v3118 = vunpack.c.l.b16 %v1281
    %v3119 = vunpack.c.h.b16 %v1281
    %v3120 = vunpack.c.l.b16 %v1282
    %v3121 = vunpack.c.h.b16 %v1282
    %v3122 = vunpack.c.l.b16 %v1283
    %v3123 = vunpack.c.h.b16 %v1283
    %v3124 = vunpack.c.l.b16 %v1284
    %v3125 = vunpack.c.h.b16 %v1284
    %v3126 = vunpack.c.l.b16 %v1285
    %v3127 = vunpack.c.h.b16 %v1285
    %v3128 = vunpack.c.l.b16 %v1286
    %v3129 = vunpack.c.h.b16 %v1286
    %v3130 = vunpack.c.l.b16 %v1287
    %v3131 = vunpack.c.l.b16 %v1288
    %v3132 = vunpack.c.h.b16 %v1288
    %v3133 = vunpack.c.l.b16 %v1289
    %v3134 = vunpack.c.h.b16 %v1289
    %v3135 = vunpack.c.l.b16 %v1290
    %v3136 = vunpack.c.h.b16 %v1290
    %v3137 = vunpack.c.l.b16 %v1291
    %v3138 = vunpack.c.h.b16 %v1291
    %v3139 = vunpack.c.l.b16 %v1292
    %v3140 = vunpack.c.h.b16 %v1292
    %v3141 = vunpack.c.l.b16 %v1293
    %v3142 = vunpack.c.h.b16 %v1293
    %v3143 = vunpack.c.l.b16 %v1294
    %v3144 = vunpack.c.l.b16 %v1295
    %v3145 = vunpack.c.h.b16 %v1295
    %v3146 = vunpack.c.l.b16 %v1296
    %v3147 = vunpack.c.h.b16 %v1296
    %v3148 = vunpack.c.l.b16 %v1297
    %v3149 = vunpack.c.h.b16 %v1297
    %v3150 = vunpack.c.l.b16 %v1298
    %v3151 = vunpack.c.h.b16 %v1298
    %v3152 = vunpack.c.l.b16 %v1299
    %v3153 = vunpack.c.h.b16 %v1299
    %v3154 = vunpack.c.l.b16 %v1300
    %v3155 = vunpack.c.h.b16 %v1300
    %v3156 = vunpack.c.l.b16 %v1301
    %v3157 = vunpack.c.l.b16 %v1302
    %v3158 = vunpack.c.h.b16 %v1302
    %v3159 = vunpack.c.l.b16 %v1303
    %v3160 = vunpack.c.h.b16 %v1303
    %v3161 = vunpack.c.l.b16 %v1304
    %v3162 = vunpack.c.h.b16 %v1304
    %v3163 = vunpack.c.l.b16 %v1305
    %v3164 = vunpack.c.h.b16 %v1305
    %v3165 = vunpack.c.l.b16 %v1306
    %v3166 = vunpack.c.h.b16 %v1306
    %v3167 = vunpack.c.l.b16 %v1307
    %v3168 = vunpack.c.h.b16 %v1307
    %v3169 = vunpack.c.l.b16 %v1308
    %v3170 = vunpack.c.l.b16 %v1309
    %v3171 = vunpack.c.h.b16 %v1309
    %v3172 = vunpack.c.l.b16 %v1310
    %v3173 = vunpack.c.h.b16 %v1310
    %v3174 = vunpack.c.l.b16 %v1311
    %v3175 = vunpack.c.h.b16 %v1311
    %v3176 = vunpack.c.l.b16 %v1312
    %v3177 = vunpack.c.h.b16 %v1312
    %v3178 = vunpack.c.l.b16 %v1313
    %v3179 = vunpack.c.h.b16 %v1313
    %v3180 = vunpack.c.l.b16 %v1314
    %v3181 = vunpack.c.h.b16 %v1314
    %v3182 = vunpack.c.l.b16 %v1315
    %v3183 = vunpack.c.l.b16 %v1316
    %v3184 = vunpack.c.h.b16 %v1316
    %v3185 = vunpack.c.l.b16 %v1317
    %v3186 = vunpack.c.h.b16 %v1317
    %v3187 = vunpack.c.l.b16 %v1318
    %v3188 = vunpack.c.h.b16 %v1318
    %v3189 = vunpack.c.l.b16 %v1319
    %v3190 = vunpack.c.h.b16 %v1319
    %v3191 = vunpack.c.l.b16 %v1320
    %v3192 = vunpack.c.h.b16 %v1320
    %v3193 = vunpack.c.l.b16 %v1321
    %v3194 = vunpack.c.h.b16 %v1321
    %v3195 = vunpack.c.l.b16 %v1322
    %v3196 = vunpack.c.l.b16 %v1323
    %v3197 = vunpack.c.h.b16 %v1323
    %v3198 = vunpack.c.l.b16 %v1324
    %v3199 = vunpack.c.h.b16 %v1324
    %v3200 = vunpack.c.l.b16 %v1325
    %v3201 = vunpack.c.h.b16 %v1325
    %v3202 = vunpack.c.l.b16 %v1326
    %v3203 = vunpack.c.h.b16 %v1326
    %v3204 = vunpack.c.l.b16 %v1327
    %v3205 = vunpack.c.h.b16 %v1327
    %v3206 = vunpack.c.l.b16 %v1328
    %v3207 = vunpack.c.h.b16 %v1328
    %v3208 = vunpack.c.l.b16 %v1329
    %v3209 = vunpack.c.l.b16 %v1330
    %v3210 = vunpack.c.h.b16 %v1330
    %v3211 = vunpack.c.l.b16 %v1331
    %v3212 = vunpack.c.h.b16 %v1331
    %v3213 = vunpack.c.l.b16 %v1332
    %v3214 = vunpack.c.h.b16 %v1332
    %v3215 = vunpack.c.l.b16 %v1333
    %v3216 = vunpack.c.h.b16 %v1333
    %v3217 = vunpack.c.l.b16 %v1334
    %v3218 = vunpack.c.h.b16 %v1334
    %v3219 = vunpack.c.l.b16 %v1335
    %v3220 = vunpack.c.h.b16 %v1335
    %v3221 = vunpack.c.l.b16 %v1336
    %v3222 = vunpack.c.l.b16 %v1337
    %v3223 = vunpack.c.h.b16 %v1337
    %v3224 = vunpack.c.l.b16 %v1338
    %v3225 = vunpack.c.h.b16 %v1338
    %v3226 = vunpack.c.l.b16 %v1339
    %v3227 = vunpack.c.h.b16 %v1339
    %v3228 = vunpack.c.l.b16 %v1340
    %v3229 = vunpack.c.h.b16 %v1340
    %v3230 = vunpack.c.l.b16 %v1341
    %v3231 = vunpack.c.h.b16 %v1341
    %v3232 = vunpack.c.l.b16 %v1342
    %v3233 = vunpack.c.h.b16 %v1342
    %v3234 = vunpack.c.l.b16 %v1343
    %v3235 = vunpack.c.l.b16 %v1344
    %v3236 = vunpack.c.h.b16 %v1344
    %v3237 = vunpack.c.l.b16 %v1345
    %v3238 = vunpack.c.h.b16 %v1345
    %v3239 = vunpack.c.l.b16 %v1346
    %v3240 = vunpack.c.h.b16 %v1346
    %v3241 = vunpack.c.l.b16 %v1347
    %v3242 = vunpack.c.h.b16 %v1347
    %v3243 = vunpack.c.l.b16 %v1348
    %v3244 = vunpack.c.h.b16 %v1348
    %v3245 = vunpack.c.l.b16 %v1349
    %v3246 = vunpack.c.h.b16 %v1349
    %v3247 = vunpack.c.l.b16 %v1350
    %v3248 = vunpack.c.l.b16 %v1351
    %v3249 = vunpack.c.h.b16 %v1351
    %v3250 = vunpack.c.l.b16 %v1352
    %v3251 = vunpack.c.h.b16 %v1352
    %v3252 = vunpack.c.l.b16 %v1353
    %v3253 = vunpack.c.h.b16 %v1353
    %v3254 = vunpack.c.l.b16 %v1354
    %v3255 = vunpack.c.h.b16 %v1354
    %v3256 = vunpack.c.l.b16 %v1355
    %v3257 = vunpack.c.h.b16 %v1355
    %v3258 = vunpack.c.l.b16 %v1356
    %v3259 = vunpack.c.h.b16 %v1356
    %v3260 = vunpack.c.l.b16 %v1357
    %v3261 = vunpack.c.l.b16 %v1358
    %v3262 = vunpack.c.h.b16 %v1358
    %v3263 = vunpack.c.l.b16 %v1359
    %v3264 = vunpack.c.h.b16 %v1359
    %v3265 = vunpack.c.l.b16 %v1360
    %v3266 = vunpack.c.h.b16 %v1360
    %v3267 = vunpack.c.l.b16 %v1361
    %v3268 = vunpack.c.h.b16 %v1361
    %v3269 = vunpack.c.l.b16 %v1362
    %v3270 = vunpack.c.h.b16 %v1362
    %v3271 = vunpack.c.l.b16 %v1363
    %v3272 = vunpack.c.h.b16 %v1363
    %v3273 = vunpack.c.l.b16 %v1364
    %v3274 = vunpack.c.l.b16 %v1365
    %v3275 = vunpack.c.h.b16 %v1365
    %v3276 = vunpack.c.l.b16 %v1366
    %v3277 = vunpack.c.h.b16 %v1366
    %v3278 = vunpack.c.l.b16 %v1367
    %v3279 = vunpack.c.h.b16 %v1367
    %v3280 = vunpack.c.l.b16 %v1368
    %v3281 = vunpack.c.h.b16 %v1368
    %v3282 = vunpack.c.l.b16 %v1369
    %v3283 = vunpack.c.h.b16 %v1369
    %v3284 = vunpack.c.l.b16 %v1370
    %v3285 = vunpack.c.h.b16 %v1370
    %v3286 = vunpack.c.l.b16 %v1371
    %v3287 = vunpack.c.l.b16 %v1372
    %v3288 = vunpack.c.h.b16 %v1372
    %v3289 = vunpack.c.l.b16 %v1373
    %v3290 = vunpack.c.h.b16 %v1373
    %v3291 = vunpack.c.l.b16 %v1374
    %v3292 = vunpack.c.h.b16 %v1374
    %v3293 = vunpack.c.l.b16 %v1375
    %v3294 = vunpack.c.h.b16 %v1375
    %v3295 = vunpack.c.l.b16 %v1376
    %v3296 = vunpack.c.h.b16 %v1376
    %v3297 = vunpack.c.l.b16 %v1377
    %v3298 = vunpack.c.h.b16 %v1377
    %v3299 = vunpack.c.l.b16 %v1378
    %v3300 = vunpack.c.l.b16 %v1379
    %v3301 = vunpack.c.h.b16 %v1379
    %v3302 = vunpack.c.l.b16 %v1380
    %v3303 = vunpack.c.h.b16 %v1380
    %v3304 = vunpack.c.l.b16 %v1381
    %v3305 = vunpack.c.h.b16 %v1381
    %v3306 = vunpack.c.l.b16 %v1382
    %v3307 = vunpack.c.h.b16 %v1382
    %v3308 = vunpack.c.l.b16 %v1383
    %v3309 = vunpack.c.h.b16 %v1383
    %v3310 = vunpack.c.l.b16 %v1384
    %v3311 = vunpack.c.h.b16 %v1384
    %v3312 = vunpack.c.l.b16 %v1385
    %v3313 = vunpack.c.l.b16 %v1386
    %v3314 = vunpack.c.h.b16 %v1386
    %v3315 = vunpack.c.l.b16 %v1387
    %v3316 = vunpack.c.h.b16 %v1387
    %v3317 = vunpack.c.l.b16 %v1388
    %v3318 = vunpack.c.h.b16 %v1388
    %v3319 = vunpack.c.l.b16 %v1389
    %v3320 = vunpack.c.h.b16 %v1389
    %v3321 = vunpack.c.l.b16 %v1390
    %v3322 = vunpack.c.h.b16 %v1390
    %v3323 = vunpack.c.l.b16 %v1391
    %v3324 = vunpack.c.h.b16 %v1391
    %v3325 = vunpack.c.l.b16 %v1392
    %v3326 = vunpack.c.l.b16 %v1393
    %v3327 = vunpack.c.h.b16 %v1393
    %v3328 = vunpack.c.l.b16 %v1394
    %v3329 = vunpack.c.h.b16 %v1394
    %v3330 = vunpack.c.l.b16 %v1395
    %v3331 = vunpack.c.h.b16 %v1395
    %v3332 = vunpack.c.l.b16 %v1396
    %v3333 = vunpack.c.h.b16 %v1396
    %v3334 = vunpack.c.l.b16 %v1397
    %v3335 = vunpack.c.h.b16 %v1397
    %v3336 = vunpack.c.l.b16 %v1398
    %v3337 = vunpack.c.h.b16 %v1398
    %v3338 = vunpack.c.l.b16 %v1399
    %v3339 = vunpack.c.l.b16 %v1400
    %v3340 = vunpack.c.h.b16 %v1400
    %v3341 = vunpack.c.l.b16 %v1401
    %v3342 = vunpack.c.h.b16 %v1401
    %v3343 = vunpack.c.l.b16 %v1402
    %v3344 = vunpack.c.h.b16 %v1402
    %v3345 = vunpack.c.l.b16 %v1403
    %v3346 = vunpack.c.h.b16 %v1403
    %v3347 = vunpack.c.l.b16 %v1404
    %v3348 = vunpack.c.h.b16 %v1404
    %v3349 = vunpack.c.l.b16 %v1405
    %v3350 = vunpack.c.h.b16 %v1405
    %v3351 = vunpack.c.l.b16 %v1406
    %v3352 = vunpack.c.l.b16 %v1407
    %v3353 = vunpack.c.h.b16 %v1407
    %v3354 = vunpack.c.l.b16 %v1408
    %v3355 = vunpack.c.h.b16 %v1408
    %v3356 = vunpack.c.l.b16 %v1409
    %v3357 = vunpack.c.h.b16 %v1409
    %v3358 = vunpack.c.l.b16 %v1410
    %v3359 = vunpack.c.h.b16 %v1410
    %v3360 = vunpack.c.l.b16 %v1411
    %v3361 = vunpack.c.h.b16 %v1411
    %v3362 = vunpack.c.l.b16 %v1412
    %v3363 = vunpack.c.h.b16 %v1412
    %v3364 = vunpack.c.l.b16 %v1413
    %v3365 = vunpack.c.l.b16 %v1414
    %v3366 = vunpack.c.h.b16 %v1414
    %v3367 = vunpack.c.l.b16 %v1415
    %v3368 = vunpack.c.h.b16 %v1415
    %v3369 = vunpack.c.l.b16 %v1416
    %v3370 = vunpack.c.h.b16 %v1416
    %v3371 = vunpack.c.l.b16 %v1417
    %v3372 = vunpack.c.h.b16 %v1417
    %v3373 = vunpack.c.l.b16 %v1418
    %v3374 = vunpack.c.h.b16 %v1418
    %v3375 = vunpack.c.l.b16 %v1419
    %v3376 = vunpack.c.h.b16 %v1419
    %v3377 = vunpack.c.l.b16 %v1420
    %v3378 = vunpack.c.l.b16 %v1421
    %v3379 = vunpack.c.h.b16 %v1421
    %v3380 = vunpack.c.l.b16 %v1422
    %v3381 = vunpack.c.h.b16 %v1422
    %v3382 = vunpack.c.l.b16 %v1423
    %v3383 = vunpack.c.h.b16 %v1423
    %v3384 = vunpack.c.l.b16 %v1424
    %v3385 = vunpack.c.h.b16 %v1424
    %v3386 = vunpack.c.l.b16 %v1425
    %v3387 = vunpack.c.h.b16 %v1425
    %v3388 = vunpack.c.l.b16 %v1426
    %v3389 = vunpack.c.h.b16 %v1426
    %v3390 = vunpack.c.l.b16 %v1427
    %v3391 = vunpack.c.l.b16 %v1428
    %v3392 = vunpack.c.h.b16 %v1428
    %v3393 = vunpack.c.l.b16 %v1429
    %v3394 = vunpack.c.h.b16 %v1429
    %v3395 = vunpack.c.l.b16 %v1430
    %v3396 = vunpack.c.h.b16 %v1430
    %v3397 = vunpack.c.l.b16 %v1431
    %v3398 = vunpack.c.h.b16 %v1431
    %v3399 = vunpack.c.l.b16 %v1432
    %v3400 = vunpack.c.h.b16 %v1432
    %v3401 = vunpack.c.l.b16 %v1433
    %v3402 = vunpack.c.h.b16 %v1433
    %v3403 = vunpack.c.l.b16 %v1434
    %v3404 = vunpack.c.l.b16 %v1435
    %v3405 = vunpack.c.h.b16 %v1435
    %v3406 = vunpack.c.l.b16 %v1436
    %v3407 = vunpack.c.h.b16 %v1436
    %v3408 = vunpack.c.l.b16 %v1437
    %v3409 = vunpack.c.h.b16 %v1437
    %v3410 = vunpack.c.l.b16 %v1438
    %v3411 = vunpack.c.h.b16 %v1438
    %v3412 = vunpack.c.l.b16 %v1439
    %v3413 = vunpack.c.h.b16 %v1439
    %v3414 = vunpack.c.l.b16 %v1440
    %v3415 = vunpack.c.h.b16 %v1440
    %v3416 = vunpack.c.l.b16 %v1441
    %v3417 = vunpack.c.l.b16 %v1442
    %v3418 = vunpack.c.h.b16 %v1442
    %v3419 = vunpack.c.l.b16 %v1443
    %v3420 = vunpack.c.h.b16 %v1443
    %v3421 = vunpack.c.l.b16 %v1444
    %v3422 = vunpack.c.h.b16 %v1444
    %v3423 = vunpack.c.l.b16 %v1445
    %v3424 = vunpack.c.h.b16 %v1445
    %v3425 = vunpack.c.l.b16 %v1446
    %v3426 = vunpack.c.h.b16 %v1446
    %v3427 = vunpack.c.l.b16 %v1447
    %v3428 = vunpack.c.h.b16 %v1447
    %v3429 = vunpack.c.l.b16 %v1448
    %v3430 = vunpack.c.l.b16 %v1449
    %v3431 = vunpack.c.h.b16 %v1449
    %v3432 = vunpack.c.l.b16 %v1450
    %v3433 = vunpack.c.h.b16 %v1450
    %v3434 = vunpack.c.l.b16 %v1451
    %v3435 = vunpack.c.h.b16 %v1451
    %v3436 = vunpack.c.l.b16 %v1452
    %v3437 = vunpack.c.h.b16 %v1452
    %v3438 = vunpack.c.l.b16 %v1453
    %v3439 = vunpack.c.h.b16 %v1453
    %v3440 = vunpack.c.l.b16 %v1454
    %v3441 = vunpack.c.h.b16 %v1454
    %v3442 = vunpack.c.l.b16 %v1455
    %v3443 = vunpack.c.l.b16 %v1456
    %v3444 = vunpack.c.h.b16 %v1456
    %v3445 = vunpack.c.l.b16 %v1457
    %v3446 = vunpack.c.h.b16 %v1457
    %v3447 = vunpack.c.l.b16 %v1458
    %v3448 = vunpack.c.h.b16 %v1458
    %v3449 = vunpack.c.l.b16 %v1459
    %v3450 = vunpack.c.h.b16 %v1459
    %v3451 = vunpack.c.l.b16 %v1460
    %v3452 = vunpack.c.h.b16 %v1460
    %v3453 = vunpack.c.l.b16 %v1461
    %v3454 = vunpack.c.h.b16 %v1461
    %v3455 = vunpack.c.l.b16 %v1462
    %v3456 = vunpack.c.l.b16 %v1463
    %v3457 = vunpack.c.h.b16 %v1463
    %v3458 = vunpack.c.l.b16 %v1464
    %v3459 = vunpack.c.h.b16 %v1464
    %v3460 = vunpack.c.l.b16 %v1465
    %v3461 = vunpack.c.h.b16 %v1465
    %v3462 = vunpack.c.l.b16 %v1466
    %v3463 = vunpack.c.h.b16 %v1466
    %v3464 = vunpack.c.l.b16 %v1467
    %v3465 = vunpack.c.h.b16 %v1467
    %v3466 = vunpack.c.l.b16 %v1468
    %v3467 = vunpack.c.h.b16 %v1468
    %v3468 = vunpack.c.l.b16 %v1469
    %v3469 = vunpack.c.l.b16 %v1470
    %v3470 = vunpack.c.h.b16 %v1470
    %v3471 = vunpack.c.l.b16 %v1471
    %v3472 = vunpack.c.h.b16 %v1471
    %v3473 = vunpack.c.l.b16 %v1472
    %v3474 = vunpack.c.h.b16 %v1472
    %v3475 = vunpack.c.l.b16 %v1473
    %v3476 = vunpack.c.h.b16 %v1473
    %v3477 = vunpack.c.l.b16 %v1474
    %v3478 = vunpack.c.h.b16 %v1474
    %v3479 = vunpack.c.l.b16 %v1475
    %v3480 = vunpack.c.h.b16 %v1475
    %v3481 = vunpack.c.l.b16 %v1476
    %v3482 = vunpack.c.l.b16 %v1477
    %v3483 = vunpack.c.h.b16 %v1477
    %v3484 = vunpack.c.l.b16 %v1478
    %v3485 = vunpack.c.h.b16 %v1478
    %v3486 = vunpack.c.l.b16 %v1479
    %v3487 = vunpack.c.h.b16 %v1479
    %v3488 = vunpack.c.l.b16 %v1480
    %v3489 = vunpack.c.h.b16 %v1480
    %v3490 = vunpack.c.l.b16 %v1481
    %v3491 = vunpack.c.h.b16 %v1481
    %v3492 = vunpack.c.l.b16 %v1482
    %v3493 = vunpack.c.h.b16 %v1482
    %v3494 = vunpack.c.l.b16 %v1483
    %v3495 = vunpack.c.l.b16 %v1484
    %v3496 = vunpack.c.h.b16 %v1484
    %v3497 = vunpack.c.l.b16 %v1485
    %v3498 = vunpack.c.h.b16 %v1485
    %v3499 = vunpack.c.l.b16 %v1486
    %v3500 = vunpack.c.h.b16 %v1486
    %v3501 = vunpack.c.l.b16 %v1487
    %v3502 = vunpack.c.h.b16 %v1487
    %v3503 = vunpack.c.l.b16 %v1488
    %v3504 = vunpack.c.h.b16 %v1488
    %v3505 = vunpack.c.l.b16 %v1489
    %v3506 = vunpack.c.h.b16 %v1489
    %v3507 = vunpack.c.l.b16 %v1490
    %v3508 = vunpack.c.l.b16 %v1491
    %v3509 = vunpack.c.h.b16 %v1491
    %v3510 = vunpack.c.l.b16 %v1492
    %v3511 = vunpack.c.h.b16 %v1492
    %v3512 = vunpack.c.l.b16 %v1493
    %v3513 = vunpack.c.h.b16 %v1493
    %v3514 = vunpack.c.l.b16 %v1494
    %v3515 = vunpack.c.h.b16 %v1494
    %v3516 = vunpack.c.l.b16 %v1495
    %v3517 = vunpack.c.h.b16 %v1495
    %v3518 = vunpack.c.l.b16 %v1496
    %v3519 = vunpack.c.h.b16 %v1496
    %v3520 = vunpack.c.l.b16 %v1497
    %v3521 = vunpack.c.l.b16 %v1498
    %v3522 = vunpack.c.h.b16 %v1498
    %v3523 = vunpack.c.l.b16 %v1499
    %v3524 = vunpack.c.h.b16 %v1499
    %v3525 = vunpack.c.l.b16 %v1500
    %v3526 = vunpack.c.h.b16 %v1500
    %v3527 = vunpack.c.l.b16 %v1501
    %v3528 = vunpack.c.h.b16 %v1501
    %v3529 = vunpack.c.l.b16 %v1502
    %v3530 = vunpack.c.h.b16 %v1502
    %v3531 = vunpack.c.l.b16 %v1503
    %v3532 = vunpack.c.h.b16 %v1503
    %v3533 = vunpack.c.l.b16 %v1504
    %v3534 = vpack.c.b16 %v2273, %v2260
    %v3535 = vpack.c.b16 %v2274, %v2261
    %v3536 = vpack.c.b16 %v2275, %v2262
    %v3537 = vpack.c.b16 %v2276, %v2263
    %v3538 = vpack.c.b16 %v2277, %v2264
    %v3539 = vpack.c.b16 %v2278, %v2265
    %v3540 = vpack.c.b16 %v2279, %v2266
    %v3541 = vpack.c.b16 %v2280, %v2267
    %v3542 = vpack.c.b16 %v2281, %v2268
    %v3543 = vpack.c.b16 %v2282, %v2269
    %v3544 = vpack.c.b16 %v2283, %v2270
    %v3545 = vpack.c.b16 %v2284, %v2271
    %v3546 = vpack.c.b16 %v2285, %v2272
    %v3547 = vpack.c.b16 %v2299, %v2286
    %v3548 = vpack.c.b16 %v2300, %v2287
    %v3549 = vpack.c.b16 %v2301, %v2288
    %v3550 = vpack.c.b16 %v2302, %v2289
    %v3551 = vpack.c.b16 %v2303, %v2290
    %v3552 = vpack.c.b16 %v2304, %v2291
    %v3553 = vpack.c.b16 %v2305, %v2292
    %v3554 = vpack.c.b16 %v2306, %v2293
    %v3555 = vpack.c.b16 %v2307, %v2294
    %v3556 = vpack.c.b16 %v2308, %v2295
    %v3557 = vpack.c.b16 %v2309, %v2296
    %v3558 = vpack.c.b16 %v2310, %v2297
    %v3559 = vpack.c.b16 %v2311, %v2298
    %v3560 = vpack.c.b16 %v2325, %v2312
    %v3561 = vpack.c.b16 %v2326, %v2313
    %v3562 = vpack.c.b16 %v2327, %v2314
    %v3563 = vpack.c.b16 %v2328, %v2315
    %v3564 = vpack.c.b16 %v2329, %v2316
    %v3565 = vpack.c.b16 %v2330, %v2317
    %v3566 = vpack.c.b16 %v2331, %v2318
    %v3567 = vpack.c.b16 %v2332, %v2319
    %v3568 = vpack.c.b16 %v2333, %v2320
    %v3569 = vpack.c.b16 %v2334, %v2321
    %v3570 = vpack.c.b16 %v2335, %v2322
    %v3571 = vpack.c.b16 %v2336, %v2323
    %v3572 = vpack.c.b16 %v2337, %v2324
    %v3573 = vpack.c.b16 %v2351, %v2338
    %v3574 = vpack.c.b16 %v2352, %v2339
    %v3575 = vpack.c.b16 %v2353, %v2340
    %v3576 = vpack.c.b16 %v2354, %v2341
    %v3577 = vpack.c.b16 %v2355, %v2342
    %v3578 = vpack.c.b16 %v2356, %v2343
    %v3579 = vpack.c.b16 %v2357, %v2344
    %v3580 = vpack.c.b16 %v2358, %v2345
    %v3581 = vpack.c.b16 %v2359, %v2346
    %v3582 = vpack.c.b16 %v2360, %v2347
    %v3583 = vpack.c.b16 %v2361, %v2348
    %v3584 = vpack.c.b16 %v2362, %v2349
    %v3585 = vpack.c.b16 %v2363, %v2350
    %v3586 = vpack.c.b16 %v2377, %v2364
    %v3587 = vpack.c.b16 %v2378, %v2365
    %v3588 = vpack.c.b16 %v2379, %v2366
    %v3589 = vpack.c.b16 %v2380, %v2367
    %v3590 = vpack.c.b16 %v2381, %v2368
    %v3591 = vpack.c.b16 %v2382, %v2369
    %v3592 = vpack.c.b16 %v2383, %v2370
    %v3593 = vpack.c.b16 %v2384, %v2371
    %v3594 = vpack.c.b16 %v2385, %v2372
    %v3595 = vpack.c.b16 %v2386, %v2373
    %v3596 = vpack.c.b16 %v2387, %v2374
    %v3597 = vpack.c.b16 %v2388, %v2375
    %v3598 = vpack.c.b16 %v2389, %v2376
    %v3599 = vpack.c.b16 %v2403, %v2390
    %v3600 = vpack.c.b16 %v2404, %v2391
    %v3601 = vpack.c.b16 %v2405, %v2392
    %v3602 = vpack.c.b16 %v2406, %v2393
    %v3603 = vpack.c.b16 %v2407, %v2394
    %v3604 = vpack.c.b16 %v2408, %v2395
    %v3605 = vpack.c.b16 %v2409, %v2396
    %v3606 = vpack.c.b16 %v2410, %v2397
    %v3607 = vpack.c.b16 %v2411, %v2398
    %v3608 = vpack.c.b16 %v2412, %v2399
    %v3609 = vpack.c.b16 %v2413, %v2400
    %v3610 = vpack.c.b16 %v2414, %v2401
    %v3611 = vpack.c.b16 %v2415, %v2402
    %v3612 = vpack.c.b16 %v2429, %v2416
    %v3613 = vpack.c.b16 %v2430, %v2417
    %v3614 = vpack.c.b16 %v2431, %v2418
    %v3615 = vpack.c.b16 %v2432, %v2419
    %v3616 = vpack.c.b16 %v2433, %v2420
    %v3617 = vpack.c.b16 %v2434, %v2421
    %v3618 = vpack.c.b16 %v2435, %v2422
    %v3619 = vpack.c.b16 %v2436, %v2423
    %v3620 = vpack.c.b16 %v2437, %v2424
    %v3621 = vpack.c.b16 %v2438, %v2425
    %v3622 = vpack.c.b16 %v2439, %v2426
    %v3623 = vpack.c.b16 %v2440, %v2427
    %v3624 = vpack.c.b16 %v2441, %v2428
    %v3625 = vpack.c.b16 %v2455, %v2442
    %v3626 = vpack.c.b16 %v2456, %v2443
    %v3627 = vpack.c.b16 %v2457, %v2444
    %v3628 = vpack.c.b16 %v2458, %v2445
    %v3629 = vpack.c.b16 %v2459, %v2446
    %v3630 = vpack.c.b16 %v2460, %v2447
    %v3631 = vpack.c.b16 %v2461, %v2448
    %v3632 = vpack.c.b16 %v2462, %v2449
    %v3633 = vpack.c.b16 %v2463, %v2450
    %v3634 = vpack.c.b16 %v2464, %v2451
    %v3635 = vpack.c.b16 %v2465, %v2452
    %v3636 = vpack.c.b16 %v2466, %v2453
    %v3637 = vpack.c.b16 %v2467, %v2454
    %v3638 = vpack.c.b16 %v2481, %v2468
    %v3639 = vpack.c.b16 %v2482, %v2469
    %v3640 = vpack.c.b16 %v2483, %v2470
    %v3641 = vpack.c.b16 %v2484, %v2471
    %v3642 = vpack.c.b16 %v2485, %v2472
    %v3643 = vpack.c.b16 %v2486, %v2473
    %v3644 = vpack.c.b16 %v2487, %v2474
    %v3645 = vpack.c.b16 %v2488, %v2475
    %v3646 = vpack.c.b16 %v2489, %v2476
    %v3647 = vpack.c.b16 %v2490, %v2477
    %v3648 = vpack.c.b16 %v2491, %v2478
    %v3649 = vpack.c.b16 %v2492, %v2479
    %v3650 = vpack.c.b16 %v2493, %v2480
    %v3651 = vpack.c.b16 %v2507, %v2494
    %v3652 = vpack.c.b16 %v2508, %v2495
    %v3653 = vpack.c.b16 %v2509, %v2496
    %v3654 = vpack.c.b16 %v2510, %v2497
    %v3655 = vpack.c.b16 %v2511, %v2498
    %v3656 = vpack.c.b16 %v2512, %v2499
    %v3657 = vpack.c.b16 %v2513, %v2500
    %v3658 = vpack.c.b16 %v2514, %v2501
    %v3659 = vpack.c.b16 %v2515, %v2502
    %v3660 = vpack.c.b16 %v2516, %v2503
    %v3661 = vpack.c.b16 %v2517, %v2504
    %v3662 = vpack.c.b16 %v2518, %v2505
    %v3663 = vpack.c.b16 %v2519, %v2506
    %v3664 = vpack.c.b16 %v2533, %v2520
    %v3665 = vpack.c.b16 %v2534, %v2521
    %v3666 = vpack.c.b16 %v2535, %v2522
    %v3667 = vpack.c.b16 %v2536, %v2523
    %v3668 = vpack.c.b16 %v2537, %v2524
    %v3669 = vpack.c.b16 %v2538, %v2525
    %v3670 = vpack.c.b16 %v2539, %v2526
    %v3671 = vpack.c.b16 %v2540, %v2527
    %v3672 = vpack.c.b16 %v2541, %v2528
    %v3673 = vpack.c.b16 %v2542, %v2529
    %v3674 = vpack.c.b16 %v2543, %v2530
    %v3675 = vpack.c.b16 %v2544, %v2531
    %v3676 = vpack.c.b16 %v2545, %v2532
    %v3677 = vpack.c.b16 %v2559, %v2546
    %v3678 = vpack.c.b16 %v2560, %v2547
    %v3679 = vpack.c.b16 %v2561, %v2548
    %v3680 = vpack.c.b16 %v2562, %v2549
    %v3681 = vpack.c.b16 %v2563, %v2550
    %v3682 = vpack.c.b16 %v2564, %v2551
    %v3683 = vpack.c.b16 %v2565, %v2552
    %v3684 = vpack.c.b16 %v2566, %v2553
    %v3685 = vpack.c.b16 %v2567, %v2554
    %v3686 = vpack.c.b16 %v2568, %v2555
    %v3687 = vpack.c.b16 %v2569, %v2556
    %v3688 = vpack.c.b16 %v2570, %v2557
    %v3689 = vpack.c.b16 %v2571, %v2558
    %v3690 = vpack.c.b16 %v2585, %v2572
    %v3691 = vpack.c.b16 %v2586, %v2573
    %v3692 = vpack.c.b16 %v2587, %v2574
    %v3693 = vpack.c.b16 %v2588, %v2575
    %v3694 = vpack.c.b16 %v2589, %v2576
    %v3695 = vpack.c.b16 %v2590, %v2577
    %v3696 = vpack.c.b16 %v2591, %v2578
    %v3697 = vpack.c.b16 %v2592, %v2579
    %v3698 = vpack.c.b16 %v2593, %v2580
    %v3699 = vpack.c.b16 %v2594, %v2581
    %v3700 = vpack.c.b16 %v2595, %v2582
    %v3701 = vpack.c.b16 %v2596, %v2583
    %v3702 = vpack.c.b16 %v2597, %v2584
    %v3703 = vpack.c.b16 %v2611, %v2598
    %v3704 = vpack.c.b16 %v2612, %v2599
    %v3705 = vpack.c.b16 %v2613, %v2600
    %v3706 = vpack.c.b16 %v2614, %v2601
    %v3707 = vpack.c.b16 %v2615, %v2602
    %v3708 = vpack.c.b16 %v2616, %v2603
    %v3709 = vpack.c.b16 %v2617, %v2604
    %v3710 = vpack.c.b16 %v2618, %v2605
    %v3711 = vpack.c.b16 %v2619, %v2606
    %v3712 = vpack.c.b16 %v2620, %v2607
    %v3713 = vpack.c.b16 %v2621, %v2608
    %v3714 = vpack.c.b16 %v2622, %v2609
    %v3715 = vpack.c.b16 %v2623, %v2610
    %v3716 = vpack.c.b16 %v2637, %v2624
    %v3717 = vpack.c.b16 %v2638, %v2625
    %v3718 = vpack.c.b16 %v2639, %v2626
    %v3719 = vpack.c.b16 %v2640, %v2627
    %v3720 = vpack.c.b16 %v2641, %v2628
    %v3721 = vpack.c.b16 %v2642, %v2629
    %v3722 = vpack.c.b16 %v2643, %v2630
    %v3723 = vpack.c.b16 %v2644, %v2631
    %v3724 = vpack.c.b16 %v2645, %v2632
    %v3725 = vpack.c.b16 %v2646, %v2633
    %v3726 = vpack.c.b16 %v2647, %v2634
    %v3727 = vpack.c.b16 %v2648, %v2635
    %v3728 = vpack.c.b16 %v2649, %v2636
    %v3729 = vpack.c.b16 %v2663, %v2650
    %v3730 = vpack.c.b16 %v2664, %v2651
    %v3731 = vpack.c.b16 %v2665, %v2652
    %v3732 = vpack.c.b16 %v2666, %v2653
    %v3733 = vpack.c.b16 %v2667, %v2654
    %v3734 = vpack.c.b16 %v2668, %v2655
    %v3735 = vpack.c.b16 %v2669, %v2656
    %v3736 = vpack.c.b16 %v2670, %v2657
    %v3737 = vpack.c.b16 %v2671, %v2658
    %v3738 = vpack.c.b16 %v2672, %v2659
    %v3739 = vpack.c.b16 %v2673, %v2660
    %v3740 = vpack.c.b16 %v2674, %v2661
    %v3741 = vpack.c.b16 %v2675, %v2662
    %v3742 = vpack.c.b16 %v2689, %v2676
    %v3743 = vpack.c.b16 %v2690, %v2677
    %v3744 = vpack.c.b16 %v2691, %v2678
    %v3745 = vpack.c.b16 %v2692, %v2679
    %v3746 = vpack.c.b16 %v2693, %v2680
    %v3747 = vpack.c.b16 %v2694, %v2681
    %v3748 = vpack.c.b16 %v2695, %v2682
    %v3749 = vpack.c.b16 %v2696, %v2683
    %v3750 = vpack.c.b16 %v2697, %v2684
    %v3751 = vpack.c.b16 %v2698, %v2685
    %v3752 = vpack.c.b16 %v2699, %v2686
    %v3753 = vpack.c.b16 %v2700, %v2687
    %v3754 = vpack.c.b16 %v2701, %v2688
    %v3755 = vpack.c.b16 %v2715, %v2702
    %v3756 = vpack.c.b16 %v2716, %v2703
    %v3757 = vpack.c.b16 %v2717, %v2704
    %v3758 = vpack.c.b16 %v2718, %v2705
    %v3759 = vpack.c.b16 %v2719, %v2706
    %v3760 = vpack.c.b16 %v2720, %v2707
    %v3761 = vpack.c.b16 %v2721, %v2708
    %v3762 = vpack.c.b16 %v2722, %v2709
    %v3763 = vpack.c.b16 %v2723, %v2710
    %v3764 = vpack.c.b16 %v2724, %v2711
    %v3765 = vpack.c.b16 %v2725, %v2712
    %v3766 = vpack.c.b16 %v2726, %v2713
    %v3767 = vpack.c.b16 %v2727, %v2714
    %v3768 = vpack.c.b16 %v2741, %v2728
    %v3769 = vpack.c.b16 %v2742, %v2729
    %v3770 = vpack.c.b16 %v2743, %v2730
    %v3771 = vpack.c.b16 %v2744, %v2731
    %v3772 = vpack.c.b16 %v2745, %v2732
    %v3773 = vpack.c.b16 %v2746, %v2733
    %v3774 = vpack.c.b16 %v2747, %v2734
    %v3775 = vpack.c.b16 %v2748, %v2735
    %v3776 = vpack.c.b16 %v2749, %v2736
    %v3777 = vpack.c.b16 %v2750, %v2737
    %v3778 = vpack.c.b16 %v2751, %v2738
    %v3779 = vpack.c.b16 %v2752, %v2739
    %v3780 = vpack.c.b16 %v2753, %v2740
    %v3781 = vpack.c.b16 %v2767, %v2754
    %v3782 = vpack.c.b16 %v2768, %v2755
    %v3783 = vpack.c.b16 %v2769, %v2756
    %v3784 = vpack.c.b16 %v2770, %v2757
    %v3785 = vpack.c.b16 %v2771, %v2758
    %v3786 = vpack.c.b16 %v2772, %v2759
    %v3787 = vpack.c.b16 %v2773, %v2760
    %v3788 = vpack.c.b16 %v2774, %v2761
    %v3789 = vpack.c.b16 %v2775, %v2762
    %v3790 = vpack.c.b16 %v2776, %v2763
    %v3791 = vpack.c.b16 %v2777, %v2764
    %v3792 = vpack.c.b16 %v2778, %v2765
    %v3793 = vpack.c.b16 %v2779, %v2766
    %v3794 = vpack.c.b16 %v2793, %v2780
    %v3795 = vpack.c.b16 %v2794, %v2781
    %v3796 = vpack.c.b16 %v2795, %v2782
    %v3797 = vpack.c.b16 %v2796, %v2783
    %v3798 = vpack.c.b16 %v2797, %v2784
    %v3799 = vpack.c.b16 %v2798, %v2785
    %v3800 = vpack.c.b16 %v2799, %v2786
    %v3801 = vpack.c.b16 %v2800, %v2787
    %v3802 = vpack.c.b16 %v2801, %v2788
    %v3803 = vpack.c.b16 %v2802, %v2789
    %v3804 = vpack.c.b16 %v2803, %v2790
    %v3805 = vpack.c.b16 %v2804, %v2791
    %v3806 = vpack.c.b16 %v2805, %v2792
    %v3807 = vpack.c.b16 %v2819, %v2806
    %v3808 = vpack.c.b16 %v2820, %v2807
    %v3809 = vpack.c.b16 %v2821, %v2808
    %v3810 = vpack.c.b16 %v2822, %v2809
    %v3811 = vpack.c.b16 %v2823, %v2810
    %v3812 = vpack.c.b16 %v2824, %v2811
    %v3813 = vpack.c.b16 %v2825, %v2812
    %v3814 = vpack.c.b16 %v2826, %v2813
    %v3815 = vpack.c.b16 %v2827, %v2814
    %v3816 = vpack.c.b16 %v2828, %v2815
    %v3817 = vpack.c.b16 %v2829, %v2816
    %v3818 = vpack.c.b16 %v2830, %v2817
    %v3819 = vpack.c.b16 %v2831, %v2818
    %v3820 = vpack.c.b16 %v2845, %v2832
    %v3821 = vpack.c.b16 %v2846, %v2833
    %v3822 = vpack.c.b16 %v2847, %v2834
    %v3823 = vpack.c.b16 %v2848, %v2835
    %v3824 = vpack.c.b16 %v2849, %v2836
    %v3825 = vpack.c.b16 %v2850, %v2837
    %v3826 = vpack.c.b16 %v2851, %v2838
    %v3827 = vpack.c.b16 %v2852, %v2839
    %v3828 = vpack.c.b16 %v2853, %v2840
    %v3829 = vpack.c.b16 %v2854, %v2841
    %v3830 = vpack.c.b16 %v2855, %v2842
    %v3831 = vpack.c.b16 %v2856, %v2843
    %v3832 = vpack.c.b16 %v2857, %v2844
    %v3833 = vpack.c.b16 %v2871, %v2858
    %v3834 = vpack.c.b16 %v2872, %v2859
    %v3835 = vpack.c.b16 %v2873, %v2860
    %v3836 = vpack.c.b16 %v2874, %v2861
    %v3837 = vpack.c.b16 %v2875, %v2862
    %v3838 = vpack.c.b16 %v2876, %v2863
    %v3839 = vpack.c.b16 %v2877, %v2864
    %v3840 = vpack.c.b16 %v2878, %v2865
    %v3841 = vpack.c.b16 %v2879, %v2866
    %v3842 = vpack.c.b16 %v2880, %v2867
    %v3843 = vpack.c.b16 %v2881, %v2868
    %v3844 = vpack.c.b16 %v2882, %v2869
    %v3845 = vpack.c.b16 %v2883, %v2870
    %v3846 = vpack.c.b16 %v2897, %v2884
    %v3847 = vpack.c.b16 %v2898, %v2885
    %v3848 = vpack.c.b16 %v2899, %v2886
    %v3849 = vpack.c.b16 %v2900, %v2887
    %v3850 = vpack.c.b16 %v2901, %v2888
    %v3851 = vpack.c.b16 %v2902, %v2889
    %v3852 = vpack.c.b16 %v2903, %v2890
    %v3853 = vpack.c.b16 %v2904, %v2891
    %v3854 = vpack.c.b16 %v2905, %v2892
    %v3855 = vpack.c.b16 %v2906, %v2893
    %v3856 = vpack.c.b16 %v2907, %v2894
    %v3857 = vpack.c.b16 %v2908, %v2895
    %v3858 = vpack.c.b16 %v2909, %v2896
    %v3859 = vpack.c.b16 %v2923, %v2910
    %v3860 = vpack.c.b16 %v2924, %v2911
    %v3861 = vpack.c.b16 %v2925, %v2912
    %v3862 = vpack.c.b16 %v2926, %v2913
    %v3863 = vpack.c.b16 %v2927, %v2914
    %v3864 = vpack.c.b16 %v2928, %v2915
    %v3865 = vpack.c.b16 %v2929, %v2916
    %v3866 = vpack.c.b16 %v2930, %v2917
    %v3867 = vpack.c.b16 %v2931, %v2918
    %v3868 = vpack.c.b16 %v2932, %v2919
    %v3869 = vpack.c.b16 %v2933, %v2920
    %v3870 = vpack.c.b16 %v2934, %v2921
    %v3871 = vpack.c.b16 %v2935, %v2922
    %v3872 = vpack.c.b16 %v2949, %v2936
    %v3873 = vpack.c.b16 %v2950, %v2937
    %v3874 = vpack.c.b16 %v2951, %v2938
    %v3875 = vpack.c.b16 %v2952, %v2939
    %v3876 = vpack.c.b16 %v2953, %v2940
    %v3877 = vpack.c.b16 %v2954, %v2941
    %v3878 = vpack.c.b16 %v2955, %v2942
    %v3879 = vpack.c.b16 %v2956, %v2943
    %v3880 = vpack.c.b16 %v2957, %v2944
    %v3881 = vpack.c.b16 %v2958, %v2945
    %v3882 = vpack.c.b16 %v2959, %v2946
    %v3883 = vpack.c.b16 %v2960, %v2947
    %v3884 = vpack.c.b16 %v2961, %v2948
    %v3885 = vpack.c.b16 %v2975, %v2962
    %v3886 = vpack.c.b16 %v2976, %v2963
    %v3887 = vpack.c.b16 %v2977, %v2964
    %v3888 = vpack.c.b16 %v2978, %v2965
    %v3889 = vpack.c.b16 %v2979, %v2966
    %v3890 = vpack.c.b16 %v2980, %v2967
    %v3891 = vpack.c.b16 %v2981, %v2968
    %v3892 = vpack.c.b16 %v2982, %v2969
    %v3893 = vpack.c.b16 %v2983, %v2970
    %v3894 = vpack.c.b16 %v2984, %v2971
    %v3895 = vpack.c.b16 %v2985, %v2972
    %v3896 = vpack.c.b16 %v2986, %v2973
    %v3897 = vpack.c.b16 %v2987, %v2974
    %v3898 = vpack.c.b16 %v3001, %v2988
    %v3899 = vpack.c.b16 %v3002, %v2989
    %v3900 = vpack.c.b16 %v3003, %v2990
    %v3901 = vpack.c.b16 %v3004, %v2991
    %v3902 = vpack.c.b16 %v3005, %v2992
    %v3903 = vpack.c.b16 %v3006, %v2993
    %v3904 = vpack.c.b16 %v3007, %v2994
    %v3905 = vpack.c.b16 %v3008, %v2995
    %v3906 = vpack.c.b16 %v3009, %v2996
    %v3907 = vpack.c.b16 %v3010, %v2997
    %v3908 = vpack.c.b16 %v3011, %v2998
    %v3909 = vpack.c.b16 %v3012, %v2999
    %v3910 = vpack.c.b16 %v3013, %v3000
    %v3911 = vpack.c.b16 %v3027, %v3014
    %v3912 = vpack.c.b16 %v3028, %v3015
    %v3913 = vpack.c.b16 %v3029, %v3016
    %v3914 = vpack.c.b16 %v3030, %v3017
    %v3915 = vpack.c.b16 %v3031, %v3018
    %v3916 = vpack.c.b16 %v3032, %v3019
    %v3917 = vpack.c.b16 %v3033, %v3020
    %v3918 = vpack.c.b16 %v3034, %v3021
    %v3919 = vpack.c.b16 %v3035, %v3022
    %v3920 = vpack.c.b16 %v3036, %v3023
    %v3921 = vpack.c.b16 %v3037, %v3024
    %v3922 = vpack.c.b16 %v3038, %v3025
    %v3923 = vpack.c.b16 %v3039, %v3026
    %v3924 = vpack.c.b16 %v3053, %v3040
    %v3925 = vpack.c.b16 %v3054, %v3041
    %v3926 = vpack.c.b16 %v3055, %v3042
    %v3927 = vpack.c.b16 %v3056, %v3043
    %v3928 = vpack.c.b16 %v3057, %v3044
    %v3929 = vpack.c.b16 %v3058, %v3045
    %v3930 = vpack.c.b16 %v3059, %v3046
    %v3931 = vpack.c.b16 %v3060, %v3047
    %v3932 = vpack.c.b16 %v3061, %v3048
    %v3933 = vpack.c.b16 %v3062, %v3049
    %v3934 = vpack.c.b16 %v3063, %v3050
    %v3935 = vpack.c.b16 %v3064, %v3051
    %v3936 = vpack.c.b16 %v3065, %v3052
    %v3937 = vpack.c.b16 %v3079, %v3066
    %v3938 = vpack.c.b16 %v3080, %v3067
    %v3939 = vpack.c.b16 %v3081, %v3068
    %v3940 = vpack.c.b16 %v3082, %v3069
    %v3941 = vpack.c.b16 %v3083, %v3070
    %v3942 = vpack.c.b16 %v3084, %v3071
    %v3943 = vpack.c.b16 %v3085, %v3072
    %v3944 = vpack.c.b16 %v3086, %v3073
    %v3945 = vpack.c.b16 %v3087, %v3074
    %v3946 = vpack.c.b16 %v3088, %v3075
    %v3947 = vpack.c.b16 %v3089, %v3076
    %v3948 = vpack.c.b16 %v3090, %v3077
    %v3949 = vpack.c.b16 %v3091, %v3078
    %v3950 = vpack.c.b16 %v3105, %v3092
    %v3951 = vpack.c.b16 %v3106, %v3093
    %v3952 = vpack.c.b16 %v3107, %v3094
    %v3953 = vpack.c.b16 %v3108, %v3095
    %v3954 = vpack.c.b16 %v3109, %v3096
    %v3955 = vpack.c.b16 %v3110, %v3097
    %v3956 = vpack.c.b16 %v3111, %v3098
    %v3957 = vpack.c.b16 %v3112, %v3099
    %v3958 = vpack.c.b16 %v3113, %v3100
    %v3959 = vpack.c.b16 %v3114, %v3101
    %v3960 = vpack.c.b16 %v3115, %v3102
    %v3961 = vpack.c.b16 %v3116, %v3103
    %v3962 = vpack.c.b16 %v3117, %v3104
    %v3963 = vpack.c.b16 %v3131, %v3118
    %v3964 = vpack.c.b16 %v3132, %v3119
    %v3965 = vpack.c.b16 %v3133, %v3120
    %v3966 = vpack.c.b16 %v3134, %v3121
    %v3967 = vpack.c.b16 %v3135, %v3122
    %v3968 = vpack.c.b16 %v3136, %v3123
    %v3969 = vpack.c.b16 %v3137, %v3124
    %v3970 = vpack.c.b16 %v3138, %v3125
    %v3971 = vpack.c.b16 %v3139, %v3126
    %v3972 = vpack.c.b16 %v3140, %v3127
    %v3973 = vpack.c.b16 %v3141, %v3128
    %v3974 = vpack.c.b16 %v3142, %v3129
    %v3975 = vpack.c.b16 %v3143, %v3130
    %v3976 = vpack.c.b16 %v3157, %v3144
    %v3977 = vpack.c.b16 %v3158, %v3145
    %v3978 = vpack.c.b16 %v3159, %v3146
    %v3979 = vpack.c.b16 %v3160, %v3147
    %v3980 = vpack.c.b16 %v3161, %v3148
    %v3981 = vpack.c.b16 %v3162, %v3149
    %v3982 = vpack.c.b16 %v3163, %v3150
    %v3983 = vpack.c.b16 %v3164, %v3151
    %v3984 = vpack.c.b16 %v3165, %v3152
    %v3985 = vpack.c.b16 %v3166, %v3153
    %v3986 = vpack.c.b16 %v3167, %v3154
    %v3987 = vpack.c.b16 %v3168, %v3155
    %v3988 = vpack.c.b16 %v3169, %v3156
    %v3989 = vpack.c.b16 %v3183, %v3170
    %v3990 = vpack.c.b16 %v3184, %v3171
    %v3991 = vpack.c.b16 %v3185, %v3172
    %v3992 = vpack.c.b16 %v3186, %v3173
    %v3993 = vpack.c.b16 %v3187, %v3174
    %v3994 = vpack.c.b16 %v3188, %v3175
    %v3995 = vpack.c.b16 %v3189, %v3176
    %v3996 = vpack.c.b16 %v3190, %v3177
    %v3997 = vpack.c.b16 %v3191, %v3178
    %v3998 = vpack.c.b16 %v3192, %v3179
    %v3999 = vpack.c.b16 %v3193, %v3180
    %v4000 = vpack.c.b16 %v3194, %v3181
    %v4001 = vpack.c.b16 %v3195, %v3182
    %v4002 = vpack.c.b16 %v3209, %v3196
    %v4003 = vpack.c.b16 %v3210, %v3197
    %v4004 = vpack.c.b16 %v3211, %v3198
    %v4005 = vpack.c.b16 %v3212, %v3199
    %v4006 = vpack.c.b16 %v3213, %v3200
    %v4007 = vpack.c.b16 %v3214, %v3201
    %v4008 = vpack.c.b16 %v3215, %v3202
    %v4009 = vpack.c.b16 %v3216, %v3203
    %v4010 = vpack.c.b16 %v3217, %v3204
    %v4011 = vpack.c.b16 %v3218, %v3205
    %v4012 = vpack.c.b16 %v3219, %v3206
    %v4013 = vpack.c.b16 %v3220, %v3207
    %v4014 = vpack.c.b16 %v3221, %v3208
    %v4015 = vpack.c.b16 %v3235, %v3222
    %v4016 = vpack.c.b16 %v3236, %v3223
    %v4017 = vpack.c.b16 %v3237, %v3224
    %v4018 = vpack.c.b16 %v3238, %v3225
    %v4019 = vpack.c.b16 %v3239, %v3226
    %v4020 = vpack.c.b16 %v3240, %v3227
    %v4021 = vpack.c.b16 %v3241, %v3228
    %v4022 = vpack.c.b16 %v3242, %v3229
    %v4023 = vpack.c.b16 %v3243, %v3230
    %v4024 = vpack.c.b16 %v3244, %v3231
    %v4025 = vpack.c.b16 %v3245, %v3232
    %v4026 = vpack.c.b16 %v3246, %v3233
    %v4027 = vpack.c.b16 %v3247, %v3234
    %v4028 = vpack.c.b16 %v3261, %v3248
    %v4029 = vpack.c.b16 %v3262, %v3249
    %v4030 = vpack.c.b16 %v3263, %v3250
    %v4031 = vpack.c.b16 %v3264, %v3251
    %v4032 = vpack.c.b16 %v3265, %v3252
    %v4033 = vpack.c.b16 %v3266, %v3253
    %v4034 = vpack.c.b16 %v3267, %v3254
    %v4035 = vpack.c.b16 %v3268, %v3255
    %v4036 = vpack.c.b16 %v3269, %v3256
    %v4037 = vpack.c.b16 %v3270, %v3257
    %v4038 = vpack.c.b16 %v3271, %v3258
    %v4039 = vpack.c.b16 %v3272, %v3259
    %v4040 = vpack.c.b16 %v3273, %v3260
    %v4041 = vpack.c.b16 %v3287, %v3274
    %v4042 = vpack.c.b16 %v3288, %v3275
    %v4043 = vpack.c.b16 %v3289, %v3276
    %v4044 = vpack.c.b16 %v3290, %v3277
    %v4045 = vpack.c.b16 %v3291, %v3278
    %v4046 = vpack.c.b16 %v3292, %v3279
    %v4047 = vpack.c.b16 %v3293, %v3280
    %v4048 = vpack.c.b16 %v3294, %v3281
    %v4049 = vpack.c.b16 %v3295, %v3282
    %v4050 = vpack.c.b16 %v3296, %v3283
    %v4051 = vpack.c.b16 %v3297, %v3284
    %v4052 = vpack.c.b16 %v3298, %v3285
    %v4053 = vpack.c.b16 %v3299, %v3286
    %v4054 = vpack.c.b16 %v3313, %v3300
    %v4055 = vpack.c.b16 %v3314, %v3301
    %v4056 = vpack.c.b16 %v3315, %v3302
    %v4057 = vpack.c.b16 %v3316, %v3303
    %v4058 = vpack.c.b16 %v3317, %v3304
    %v4059 = vpack.c.b16 %v3318, %v3305
    %v4060 = vpack.c.b16 %v3319, %v3306
    %v4061 = vpack.c.b16 %v3320, %v3307
    %v4062 = vpack.c.b16 %v3321, %v3308
    %v4063 = vpack.c.b16 %v3322, %v3309
    %v4064 = vpack.c.b16 %v3323, %v3310
    %v4065 = vpack.c.b16 %v3324, %v3311
    %v4066 = vpack.c.b16 %v3325, %v3312
    %v4067 = vpack.c.b16 %v3339, %v3326
    %v4068 = vpack.c.b16 %v3340, %v3327
    %v4069 = vpack.c.b16 %v3341, %v3328
    %v4070 = vpack.c.b16 %v3342, %v3329
    %v4071 = vpack.c.b16 %v3343, %v3330
    %v4072 = vpack.c.b16 %v3344, %v3331
    %v4073 = vpack.c.b16 %v3345, %v3332
    %v4074 = vpack.c.b16 %v3346, %v3333
    %v4075 = vpack.c.b16 %v3347, %v3334
    %v4076 = vpack.c.b16 %v3348, %v3335
    %v4077 = vpack.c.b16 %v3349, %v3336
    %v4078 = vpack.c.b16 %v3350, %v3337
    %v4079 = vpack.c.b16 %v3351, %v3338
    %v4080 = vpack.c.b16 %v3365, %v3352
    %v4081 = vpack.c.b16 %v3366, %v3353
    %v4082 = vpack.c.b16 %v3367, %v3354
    %v4083 = vpack.c.b16 %v3368, %v3355
    %v4084 = vpack.c.b16 %v3369, %v3356
    %v4085 = vpack.c.b16 %v3370, %v3357
    %v4086 = vpack.c.b16 %v3371, %v3358
    %v4087 = vpack.c.b16 %v3372, %v3359
    %v4088 = vpack.c.b16 %v3373, %v3360
    %v4089 = vpack.c.b16 %v3374, %v3361
    %v4090 = vpack.c.b16 %v3375, %v3362
    %v4091 = vpack.c.b16 %v3376, %v3363
    %v4092 = vpack.c.b16 %v3377, %v3364
    %v4093 = vpack.c.b16 %v3391, %v3378
    %v4094 = vpack.c.b16 %v3392, %v3379
    %v4095 = vpack.c.b16 %v3393, %v3380
    %v4096 = vpack.c.b16 %v3394, %v3381
    %v4097 = vpack.c.b16 %v3395, %v3382
    %v4098 = vpack.c.b16 %v3396, %v3383
    %v4099 = vpack.c.b16 %v3397, %v3384
    %v4100 = vpack.c.b16 %v3398, %v3385
    %v4101 = vpack.c.b16 %v3399, %v3386
    %v4102 = vpack.c.b16 %v3400, %v3387
    %v4103 = vpack.c.b16 %v3401, %v3388
    %v4104 = vpack.c.b16 %v3402, %v3389
    %v4105 = vpack.c.b16 %v3403, %v3390
    %v4106 = vpack.c.b16 %v3417, %v3404
    %v4107 = vpack.c.b16 %v3418, %v3405
    %v4108 = vpack.c.b16 %v3419, %v3406
    %v4109 = vpack.c.b16 %v3420, %v3407
    %v4110 = vpack.c.b16 %v3421, %v3408
    %v4111 = vpack.c.b16 %v3422, %v3409
    %v4112 = vpack.c.b16 %v3423, %v3410
    %v4113 = vpack.c.b16 %v3424, %v3411
    %v4114 = vpack.c.b16 %v3425, %v3412
    %v4115 = vpack.c.b16 %v3426, %v3413
    %v4116 = vpack.c.b16 %v3427, %v3414
    %v4117 = vpack.c.b16 %v3428, %v3415
    %v4118 = vpack.c.b16 %v3429, %v3416
    %v4119 = vpack.c.b16 %v3443, %v3430
    %v4120 = vpack.c.b16 %v3444, %v3431
    %v4121 = vpack.c.b16 %v3445, %v3432
    %v4122 = vpack.c.b16 %v3446, %v3433
    %v4123 = vpack.c.b16 %v3447, %v3434
    %v4124 = vpack.c.b16 %v3448, %v3435
    %v4125 = vpack.c.b16 %v3449, %v3436
    %v4126 = vpack.c.b16 %v3450, %v3437
    %v4127 = vpack.c.b16 %v3451, %v3438
    %v4128 = vpack.c.b16 %v3452, %v3439
    %v4129 = vpack.c.b16 %v3453, %v3440
    %v4130 = vpack.c.b16 %v3454, %v3441
    %v4131 = vpack.c.b16 %v3455, %v3442
    %v4132 = vpack.c.b16 %v3469, %v3456
    %v4133 = vpack.c.b16 %v3470, %v3457
    %v4134 = vpack.c.b16 %v3471, %v3458
    %v4135 = vpack.c.b16 %v3472, %v3459
    %v4136 = vpack.c.b16 %v3473, %v3460
    %v4137 = vpack.c.b16 %v3474, %v3461
    %v4138 = vpack.c.b16 %v3475, %v3462
    %v4139 = vpack.c.b16 %v3476, %v3463
    %v4140 = vpack.c.b16 %v3477, %v3464
    %v4141 = vpack.c.b16 %v3478, %v3465
    %v4142 = vpack.c.b16 %v3479, %v3466
    %v4143 = vpack.c.b16 %v3480, %v3467
    %v4144 = vpack.c.b16 %v3481, %v3468
    %v4145 = vpack.c.b16 %v3495, %v3482
    %v4146 = vpack.c.b16 %v3496, %v3483
    %v4147 = vpack.c.b16 %v3497, %v3484
    %v4148 = vpack.c.b16 %v3498, %v3485
    %v4149 = vpack.c.b16 %v3499, %v3486
    %v4150 = vpack.c.b16 %v3500, %v3487
    %v4151 = vpack.c.b16 %v3501, %v3488
    %v4152 = vpack.c.b16 %v3502, %v3489
    %v4153 = vpack.c.b16 %v3503, %v3490
    %v4154 = vpack.c.b16 %v3504, %v3491
    %v4155 = vpack.c.b16 %v3505, %v3492
    %v4156 = vpack.c.b16 %v3506, %v3493
    %v4157 = vpack.c.b16 %v3507, %v3494
    %v4158 = vpack.c.b16 %v3521, %v3508
    %v4159 = vpack.c.b16 %v3522, %v3509
    %v4160 = vpack.c.b16 %v3523, %v3510
    %v4161 = vpack.c.b16 %v3524, %v3511
    %v4162 = vpack.c.b16 %v3525, %v3512
    %v4163 = vpack.c.b16 %v3526, %v3513
    %v4164 = vpack.c.b16 %v3527, %v3514
    %v4165 = vpack.c.b16 %v3528, %v3515
    %v4166 = vpack.c.b16 %v3529, %v3516
    %v4167 = vpack.c.b16 %v3530, %v3517
    %v4168 = vpack.c.b16 %v3531, %v3518
    %v4169 = vpack.c.b16 %v3532, %v3519
    %v4170 = vpack.c.b16 %v3533, %v3520
    %vm4808 = vcmask 130048
    %v4810 = vsel %vm4808, %v818, 0
    %4812 = vmatprep.subr.bf16.mxu0 %v3535
    %4813 = vmatpush1.bf16.msra.mxu0 %v3534
    %4814 = vmatprep.subr.bf16.mxu0 %v3548
    %4815 = vmatpush1.bf16.msra.mxu0 %v3547
    %4816 = vmatprep.subr.bf16.mxu0 %v3561
    %4817 = vmatpush1.bf16.msra.mxu0 %v3560
    %4818 = vmatprep.subr.bf16.mxu0 %v3574
    %4819 = vmatpush1.bf16.msra.mxu0 %v3573
    %4820 = vmatprep.subr.bf16.mxu0 %v3587
    %4821 = vmatpush1.bf16.msra.mxu0 %v3586
    %4822 = vmatprep.subr.bf16.mxu0 %v3600
    %4823 = vmatpush1.bf16.msra.mxu0 %v3599
    %4824 = vmatprep.subr.bf16.mxu0 %v3613
    %4825 = vmatpush1.bf16.msra.mxu0 %v3612
    %4826 = vmatprep.subr.bf16.mxu0 %v3626
    %4827 = vmatpush1.bf16.msra.mxu0 %v3625
    %4828 = vmatprep.subr.bf16.mxu0 %v3639
    %4829 = vmatpush1.bf16.msra.mxu0 %v3638
    %4830 = vmatprep.subr.bf16.mxu0 %v3652
    %4831 = vmatpush1.bf16.msra.mxu0 %v3651
    %4832 = vmatprep.subr.bf16.mxu0 %v3665
    %4833 = vmatpush1.bf16.msra.mxu0 %v3664
    %4834 = vmatprep.subr.bf16.mxu0 %v3678
    %4835 = vmatpush1.bf16.msra.mxu0 %v3677
    %4836 = vmatprep.subr.bf16.mxu0 %v3691
    %4837 = vmatpush1.bf16.msra.mxu0 %v3690
    %4838 = vmatprep.subr.bf16.mxu0 %v3704
    %4839 = vmatpush1.bf16.msra.mxu0 %v3703
    %4840 = vmatprep.subr.bf16.mxu0 %v3717
    %4841 = vmatpush1.bf16.msra.mxu0 %v3716
    %4842 = vmatprep.subr.bf16.mxu0 %v3730
    %4843 = vmatpush1.bf16.msra.mxu0 %v3729
    %4844 = vmatprep.mubr.bf16.mxu0 %v813
    %4845 = vmatmul.mubr.bf16.gmra.mrb[0].mxu0 %v812
    %v4846 = vpop.f32.mrb[0].mxu0
    %v4847 = vadd.f32 %v1512, %v4846
    %v4848 = vpop.f32.mrb[0].mxu0
    %v4849 = vadd.f32 %v1516, %v4848
    %v4850 = vpop.f32.mrb[0].mxu0
    %v4851 = vpop.f32.mrb[0].mxu0
    %4852 = vdwg.mxu0
    %4853 = vmatprep.subr.bf16.mxu0 %v3743
    %4854 = vmatpush1.bf16.msra.mxu0 %v3742
    %4855 = vmatprep.subr.bf16.mxu0 %v3756
    %4856 = vmatpush1.bf16.msra.mxu0 %v3755
    %4857 = vmatprep.subr.bf16.mxu0 %v3769
    %4858 = vmatpush1.bf16.msra.mxu0 %v3768
    %4859 = vmatprep.subr.bf16.mxu0 %v3782
    %4860 = vmatpush1.bf16.msra.mxu0 %v3781
    %4861 = vmatprep.subr.bf16.mxu0 %v3795
    %4862 = vmatpush1.bf16.msra.mxu0 %v3794
    %4863 = vmatprep.subr.bf16.mxu0 %v3808
    %4864 = vmatpush1.bf16.msra.mxu0 %v3807
    %4865 = vmatprep.subr.bf16.mxu0 %v3821
    %4866 = vmatpush1.bf16.msra.mxu0 %v3820
    %4867 = vmatprep.subr.bf16.mxu0 %v3834
    %4868 = vmatpush1.bf16.msra.mxu0 %v3833
    %4869 = vmatprep.subr.bf16.mxu0 %v3847
    %4870 = vmatpush1.bf16.msra.mxu0 %v3846
    %4871 = vmatprep.subr.bf16.mxu0 %v3860
    %4872 = vmatpush1.bf16.msra.mxu0 %v3859
    %4873 = vmatprep.subr.bf16.mxu0 %v3873
    %4874 = vmatpush1.bf16.msra.mxu0 %v3872
    %4875 = vmatprep.subr.bf16.mxu0 %v3886
    %4876 = vmatpush1.bf16.msra.mxu0 %v3885
    %4877 = vmatprep.subr.bf16.mxu0 %v3899
    %4878 = vmatpush1.bf16.msra.mxu0 %v3898
    %4879 = vmatprep.subr.bf16.mxu0 %v3912
    %4880 = vmatpush1.bf16.msra.mxu0 %v3911
    %4881 = vmatprep.subr.bf16.mxu0 %v3925
    %4882 = vmatpush1.bf16.msra.mxu0 %v3924
    %4883 = vmatprep.subr.bf16.mxu0 %v3938
    %4884 = vmatpush1.bf16.msra.mxu0 %v3937
    %4885 = vmatprep.mubr.bf16.mxu0 %v815
    %4886 = vmatmul.mubr.bf16.gmra.mrb[0].mxu0 %v814
    %v4887 = vpop.f32.mrb[0].mxu0
    %v4888 = vadd.f32 %v4847, %v4887
    %v4889 = vpop.f32.mrb[0].mxu0
    %v4890 = vadd.f32 %v4849, %v4889
    %v4891 = vpop.f32.mrb[0].mxu0
    %v4892 = vpop.f32.mrb[0].mxu0
    %4893 = vdwg.mxu0
    %4894 = vmatprep.subr.bf16.mxu0 %v3951
    %4895 = vmatpush1.bf16.msra.mxu0 %v3950
    %4896 = vmatprep.subr.bf16.mxu0 %v3964
    %4897 = vmatpush1.bf16.msra.mxu0 %v3963
    %4898 = vmatprep.subr.bf16.mxu0 %v3977
    %4899 = vmatpush1.bf16.msra.mxu0 %v3976
    %4900 = vmatprep.subr.bf16.mxu0 %v3990
    %4901 = vmatpush1.bf16.msra.mxu0 %v3989
    %4902 = vmatprep.subr.bf16.mxu0 %v4003
    %4903 = vmatpush1.bf16.msra.mxu0 %v4002
    %4904 = vmatprep.subr.bf16.mxu0 %v4016
    %4905 = vmatpush1.bf16.msra.mxu0 %v4015
    %4906 = vmatprep.subr.bf16.mxu0 %v4029
    %4907 = vmatpush1.bf16.msra.mxu0 %v4028
    %4908 = vmatprep.subr.bf16.mxu0 %v4042
    %4909 = vmatpush1.bf16.msra.mxu0 %v4041
    %4910 = vmatprep.subr.bf16.mxu0 %v4055
    %4911 = vmatpush1.bf16.msra.mxu0 %v4054
    %4912 = vmatprep.subr.bf16.mxu0 %v4068
    %4913 = vmatpush1.bf16.msra.mxu0 %v4067
    %4914 = vmatprep.subr.bf16.mxu0 %v4081
    %4915 = vmatpush1.bf16.msra.mxu0 %v4080
    %4916 = vmatprep.subr.bf16.mxu0 %v4094
    %4917 = vmatpush1.bf16.msra.mxu0 %v4093
    %4918 = vmatprep.subr.bf16.mxu0 %v4107
    %4919 = vmatpush1.bf16.msra.mxu0 %v4106
    %4920 = vmatprep.subr.bf16.mxu0 %v4120
    %4921 = vmatpush1.bf16.msra.mxu0 %v4119
    %4922 = vmatprep.subr.bf16.mxu0 %v4133
    %4923 = vmatpush1.bf16.msra.mxu0 %v4132
    %4924 = vmatprep.subr.bf16.mxu0 %v4146
    %4925 = vmatpush1.bf16.msra.mxu0 %v4145
    %4926 = vmatprep.mubr.bf16.mxu0 %v817
    %4927 = vmatmul.mubr.bf16.gmra.mrb[0].mxu0 %v816
    %v4928 = vpop.f32.mrb[0].mxu0
    %v4929 = vadd.f32 %v4888, %v4928
    %v4930 = vpop.f32.mrb[0].mxu0
    %v4931 = vadd.f32 %v4890, %v4930
    %v4932 = vpop.f32.mrb[0].mxu0
    %v4933 = vpop.f32.mrb[0].mxu0
    %4934 = vdwg.mxu0
    %4935 = vmatprep.subr.bf16.mxu0 %v4159
    %4936 = vmatpush1.bf16.msra.mxu0 %v4158
    %4937 = vmatprep.subr.bf16.mxu0 0
    %4938 = vmatpush1.bf16.msra.mxu0 0
    %4939 = vmatprep.subr.bf16.mxu0 0
    %4940 = vmatpush1.bf16.msra.mxu0 0
    %4941 = vmatprep.subr.bf16.mxu0 0
    %4942 = vmatpush1.bf16.msra.mxu0 0
    %4943 = vmatprep.subr.bf16.mxu0 0
    %4944 = vmatpush1.bf16.msra.mxu0 0
    %4945 = vmatprep.subr.bf16.mxu0 0
    %4946 = vmatpush1.bf16.msra.mxu0 0
    %4947 = vmatprep.subr.bf16.mxu0 0
    %4948 = vmatpush1.bf16.msra.mxu0 0
    %4949 = vmatprep.subr.bf16.mxu0 0
    %4950 = vmatpush1.bf16.msra.mxu0 0
    %4951 = vmatprep.subr.bf16.mxu0 0
    %4952 = vmatpush1.bf16.msra.mxu0 0
    %4953 = vmatprep.subr.bf16.mxu0 0
    %4954 = vmatpush1.bf16.msra.mxu0 0
    %4955 = vmatprep.subr.bf16.mxu0 0
    %4956 = vmatpush1.bf16.msra.mxu0 0
    %4957 = vmatprep.subr.bf16.mxu0 0
    %4958 = vmatpush1.bf16.msra.mxu0 0
    %4959 = vmatprep.subr.bf16.mxu0 0
    %4960 = vmatpush1.bf16.msra.mxu0 0
    %4961 = vmatprep.subr.bf16.mxu0 0
    %4962 = vmatpush1.bf16.msra.mxu0 0
    %4963 = vmatprep.subr.bf16.mxu0 0
    %4964 = vmatpush1.bf16.msra.mxu0 0
    %4965 = vmatprep.subr.bf16.mxu0 0
    %4966 = vmatpush1.bf16.msra.mxu0 0
    %4967 = vmatprep.mubr.bf16.mxu0 0
    %4968 = vmatmul.mubr.bf16.gmra.mrb[0].mxu0 %v4810
    %v4969 = vpop.f32.mrb[0].mxu0
    %v4970 = vadd.f32 %v4929, %v4969
    %v4971 = vpop.f32.mrb[0].mxu0
    %v4972 = vadd.f32 %v4931, %v4971
    %v4973 = vpop.f32.mrb[0].mxu0
    %v4974 = vpop.f32.mrb[0].mxu0
    %4975 = vdwg.mxu0
    %4976 = vmatprep.subr.bf16.mxu0 %v3537
    %4977 = vmatpush1.bf16.msra.mxu0 %v3536
    %4978 = vmatprep.subr.bf16.mxu0 %v3550
    %4979 = vmatpush1.bf16.msra.mxu0 %v3549
    %4980 = vmatprep.subr.bf16.mxu0 %v3563
    %4981 = vmatpush1.bf16.msra.mxu0 %v3562
    %4982 = vmatprep.subr.bf16.mxu0 %v3576
    %4983 = vmatpush1.bf16.msra.mxu0 %v3575
    %4984 = vmatprep.subr.bf16.mxu0 %v3589
    %4985 = vmatpush1.bf16.msra.mxu0 %v3588
    %4986 = vmatprep.subr.bf16.mxu0 %v3602
    %4987 = vmatpush1.bf16.msra.mxu0 %v3601
    %4988 = vmatprep.subr.bf16.mxu0 %v3615
    %4989 = vmatpush1.bf16.msra.mxu0 %v3614
    %4990 = vmatprep.subr.bf16.mxu0 %v3628
    %4991 = vmatpush1.bf16.msra.mxu0 %v3627
    %4992 = vmatprep.subr.bf16.mxu0 %v3641
    %4993 = vmatpush1.bf16.msra.mxu0 %v3640
    %4994 = vmatprep.subr.bf16.mxu0 %v3654
    %4995 = vmatpush1.bf16.msra.mxu0 %v3653
    %4996 = vmatprep.subr.bf16.mxu0 %v3667
    %4997 = vmatpush1.bf16.msra.mxu0 %v3666
    %4998 = vmatprep.subr.bf16.mxu0 %v3680
    %4999 = vmatpush1.bf16.msra.mxu0 %v3679
    %5000 = vmatprep.subr.bf16.mxu0 %v3693
    %5001 = vmatpush1.bf16.msra.mxu0 %v3692
    %5002 = vmatprep.subr.bf16.mxu0 %v3706
    %5003 = vmatpush1.bf16.msra.mxu0 %v3705
    %5004 = vmatprep.subr.bf16.mxu0 %v3719
    %5005 = vmatpush1.bf16.msra.mxu0 %v3718
    %5006 = vmatprep.subr.bf16.mxu0 %v3732
    %5007 = vmatpush1.bf16.msra.mxu0 %v3731
    %5008 = vmatprep.mubr.bf16.mxu0 %v813
    %5009 = vmatmul.mubr.bf16.gmra.mrb[0].mxu0 %v812
    %v5010 = vpop.f32.mrb[0].mxu0
    %v5011 = vadd.f32 %v1520, %v5010
    %v5012 = vpop.f32.mrb[0].mxu0
    %v5013 = vadd.f32 %v1524, %v5012
    %v5014 = vpop.f32.mrb[0].mxu0
    %v5015 = vpop.f32.mrb[0].mxu0
    %5016 = vdwg.mxu0
    %5017 = vmatprep.subr.bf16.mxu0 %v3745
    %5018 = vmatpush1.bf16.msra.mxu0 %v3744
    %5019 = vmatprep.subr.bf16.mxu0 %v3758
    %5020 = vmatpush1.bf16.msra.mxu0 %v3757
    %5021 = vmatprep.subr.bf16.mxu0 %v3771
    %5022 = vmatpush1.bf16.msra.mxu0 %v3770
    %5023 = vmatprep.subr.bf16.mxu0 %v3784
    %5024 = vmatpush1.bf16.msra.mxu0 %v3783
    %5025 = vmatprep.subr.bf16.mxu0 %v3797
    %5026 = vmatpush1.bf16.msra.mxu0 %v3796
    %5027 = vmatprep.subr.bf16.mxu0 %v3810
    %5028 = vmatpush1.bf16.msra.mxu0 %v3809
    %5029 = vmatprep.subr.bf16.mxu0 %v3823
    %5030 = vmatpush1.bf16.msra.mxu0 %v3822
    %5031 = vmatprep.subr.bf16.mxu0 %v3836
    %5032 = vmatpush1.bf16.msra.mxu0 %v3835
    %5033 = vmatprep.subr.bf16.mxu0 %v3849
    %5034 = vmatpush1.bf16.msra.mxu0 %v3848
    %5035 = vmatprep.subr.bf16.mxu0 %v3862
    %5036 = vmatpush1.bf16.msra.mxu0 %v3861
    %5037 = vmatprep.subr.bf16.mxu0 %v3875
    %5038 = vmatpush1.bf16.msra.mxu0 %v3874
    %5039 = vmatprep.subr.bf16.mxu0 %v3888
    %5040 = vmatpush1.bf16.msra.mxu0 %v3887
    %5041 = vmatprep.subr.bf16.mxu0 %v3901
    %5042 = vmatpush1.bf16.msra.mxu0 %v3900
    %5043 = vmatprep.subr.bf16.mxu0 %v3914
    %5044 = vmatpush1.bf16.msra.mxu0 %v3913
    %5045 = vmatprep.subr.bf16.mxu0 %v3927
    %5046 = vmatpush1.bf16.msra.mxu0 %v3926
    %5047 = vmatprep.subr.bf16.mxu0 %v3940
    %5048 = vmatpush1.bf16.msra.mxu0 %v3939
    %5049 = vmatprep.mubr.bf16.mxu0 %v815
    %5050 = vmatmul.mubr.bf16.gmra.mrb[0].mxu0 %v814
    %v5051 = vpop.f32.mrb[0].mxu0
    %v5052 = vadd.f32 %v5011, %v5051
    %v5053 = vpop.f32.mrb[0].mxu0
    %v5054 = vadd.f32 %v5013, %v5053
    %v5055 = vpop.f32.mrb[0].mxu0
    %v5056 = vpop.f32.mrb[0].mxu0
    %5057 = vdwg.mxu0
    %5058 = vmatprep.subr.bf16.mxu0 %v3953
    %5059 = vmatpush1.bf16.msra.mxu0 %v3952
    %5060 = vmatprep.subr.bf16.mxu0 %v3966
    %5061 = vmatpush1.bf16.msra.mxu0 %v3965
    %5062 = vmatprep.subr.bf16.mxu0 %v3979
    %5063 = vmatpush1.bf16.msra.mxu0 %v3978
    %5064 = vmatprep.subr.bf16.mxu0 %v3992
    %5065 = vmatpush1.bf16.msra.mxu0 %v3991
    %5066 = vmatprep.subr.bf16.mxu0 %v4005
    %5067 = vmatpush1.bf16.msra.mxu0 %v4004
    %5068 = vmatprep.subr.bf16.mxu0 %v4018
    %5069 = vmatpush1.bf16.msra.mxu0 %v4017
    %5070 = vmatprep.subr.bf16.mxu0 %v4031
    %5071 = vmatpush1.bf16.msra.mxu0 %v4030
    %5072 = vmatprep.subr.bf16.mxu0 %v4044
    %5073 = vmatpush1.bf16.msra.mxu0 %v4043
    %5074 = vmatprep.subr.bf16.mxu0 %v4057
    %5075 = vmatpush1.bf16.msra.mxu0 %v4056
    %5076 = vmatprep.subr.bf16.mxu0 %v4070
    %5077 = vmatpush1.bf16.msra.mxu0 %v4069
    %5078 = vmatprep.subr.bf16.mxu0 %v4083
    %5079 = vmatpush1.bf16.msra.mxu0 %v4082
    %5080 = vmatprep.subr.bf16.mxu0 %v4096
    %5081 = vmatpush1.bf16.msra.mxu0 %v4095
    %5082 = vmatprep.subr.bf16.mxu0 %v4109
    %5083 = vmatpush1.bf16.msra.mxu0 %v4108
    %5084 = vmatprep.subr.bf16.mxu0 %v4122
    %5085 = vmatpush1.bf16.msra.mxu0 %v4121
    %5086 = vmatprep.subr.bf16.mxu0 %v4135
    %5087 = vmatpush1.bf16.msra.mxu0 %v4134
    %5088 = vmatprep.subr.bf16.mxu0 %v4148
    %5089 = vmatpush1.bf16.msra.mxu0 %v4147
    %5090 = vmatprep.mubr.bf16.mxu0 %v817
    %5091 = vmatmul.mubr.bf16.gmra.mrb[0].mxu0 %v816
    %v5092 = vpop.f32.mrb[0].mxu0
    %v5093 = vadd.f32 %v5052, %v5092
    %v5094 = vpop.f32.mrb[0].mxu0
    %v5095 = vadd.f32 %v5054, %v5094
    %v5096 = vpop.f32.mrb[0].mxu0
    %v5097 = vpop.f32.mrb[0].mxu0
    %5098 = vdwg.mxu0
    %5099 = vmatprep.subr.bf16.mxu0 %v4161
    %5100 = vmatpush1.bf16.msra.mxu0 %v4160
    %5101 = vmatprep.subr.bf16.mxu0 0
    %5102 = vmatpush1.bf16.msra.mxu0 0
    %5103 = vmatprep.subr.bf16.mxu0 0
    %5104 = vmatpush1.bf16.msra.mxu0 0
    %5105 = vmatprep.subr.bf16.mxu0 0
    %5106 = vmatpush1.bf16.msra.mxu0 0
    %5107 = vmatprep.subr.bf16.mxu0 0
    %5108 = vmatpush1.bf16.msra.mxu0 0
    %5109 = vmatprep.subr.bf16.mxu0 0
    %5110 = vmatpush1.bf16.msra.mxu0 0
    %5111 = vmatprep.subr.bf16.mxu0 0
    %5112 = vmatpush1.bf16.msra.mxu0 0
    %5113 = vmatprep.subr.bf16.mxu0 0
    %5114 = vmatpush1.bf16.msra.mxu0 0
    %5115 = vmatprep.subr.bf16.mxu0 0
    %5116 = vmatpush1.bf16.msra.mxu0 0
    %5117 = vmatprep.subr.bf16.mxu0 0
    %5118 = vmatpush1.bf16.msra.mxu0 0
    %5119 = vmatprep.subr.bf16.mxu0 0
    %5120 = vmatpush1.bf16.msra.mxu0 0
    %5121 = vmatprep.subr.bf16.mxu0 0
    %5122 = vmatpush1.bf16.msra.mxu0 0
    %5123 = vmatprep.subr.bf16.mxu0 0
    %5124 = vmatpush1.bf16.msra.mxu0 0
    %5125 = vmatprep.subr.bf16.mxu0 0
    %5126 = vmatpush1.bf16.msra.mxu0 0
    %5127 = vmatprep.subr.bf16.mxu0 0
    %5128 = vmatpush1.bf16.msra.mxu0 0
    %5129 = vmatprep.subr.bf16.mxu0 0
    %5130 = vmatpush1.bf16.msra.mxu0 0
    %5131 = vmatprep.mubr.bf16.mxu0 0
    %5132 = vmatmul.mubr.bf16.gmra.mrb[0].mxu0 %v4810
    %v5133 = vpop.f32.mrb[0].mxu0
    %v5134 = vadd.f32 %v5093, %v5133
    %v5135 = vpop.f32.mrb[0].mxu0
    %v5136 = vadd.f32 %v5095, %v5135
    %v5137 = vpop.f32.mrb[0].mxu0
    %v5138 = vpop.f32.mrb[0].mxu0
    %5139 = vdwg.mxu0
    %5140 = vmatprep.subr.bf16.mxu0 %v3539
    %5141 = vmatpush1.bf16.msra.mxu0 %v3538
    %5142 = vmatprep.subr.bf16.mxu0 %v3552
    %5143 = vmatpush1.bf16.msra.mxu0 %v3551
    %5144 = vmatprep.subr.bf16.mxu0 %v3565
    %5145 = vmatpush1.bf16.msra.mxu0 %v3564
    %5146 = vmatprep.subr.bf16.mxu0 %v3578
    %5147 = vmatpush1.bf16.msra.mxu0 %v3577
    %5148 = vmatprep.subr.bf16.mxu0 %v3591
    %5149 = vmatpush1.bf16.msra.mxu0 %v3590
    %5150 = vmatprep.subr.bf16.mxu0 %v3604
    %5151 = vmatpush1.bf16.msra.mxu0 %v3603
    %5152 = vmatprep.subr.bf16.mxu0 %v3617
    %5153 = vmatpush1.bf16.msra.mxu0 %v3616
    %5154 = vmatprep.subr.bf16.mxu0 %v3630
    %5155 = vmatpush1.bf16.msra.mxu0 %v3629
    %5156 = vmatprep.subr.bf16.mxu0 %v3643
    %5157 = vmatpush1.bf16.msra.mxu0 %v3642
    %5158 = vmatprep.subr.bf16.mxu0 %v3656
    %5159 = vmatpush1.bf16.msra.mxu0 %v3655
    %5160 = vmatprep.subr.bf16.mxu0 %v3669
    %5161 = vmatpush1.bf16.msra.mxu0 %v3668
    %5162 = vmatprep.subr.bf16.mxu0 %v3682
    %5163 = vmatpush1.bf16.msra.mxu0 %v3681
    %5164 = vmatprep.subr.bf16.mxu0 %v3695
    %5165 = vmatpush1.bf16.msra.mxu0 %v3694
    %5166 = vmatprep.subr.bf16.mxu0 %v3708
    %5167 = vmatpush1.bf16.msra.mxu0 %v3707
    %5168 = vmatprep.subr.bf16.mxu0 %v3721
    %5169 = vmatpush1.bf16.msra.mxu0 %v3720
    %5170 = vmatprep.subr.bf16.mxu0 %v3734
    %5171 = vmatpush1.bf16.msra.mxu0 %v3733
    %5172 = vmatprep.mubr.bf16.mxu0 %v813
    %5173 = vmatmul.mubr.bf16.gmra.mrb[0].mxu0 %v812
    %v5174 = vpop.f32.mrb[0].mxu0
    %v5175 = vadd.f32 %v1528, %v5174
    %v5176 = vpop.f32.mrb[0].mxu0
    %v5177 = vadd.f32 %v1532, %v5176
    %v5178 = vpop.f32.mrb[0].mxu0
    %v5179 = vpop.f32.mrb[0].mxu0
    %5180 = vdwg.mxu0
    %5181 = vmatprep.subr.bf16.mxu0 %v3747
    %5182 = vmatpush1.bf16.msra.mxu0 %v3746
    %5183 = vmatprep.subr.bf16.mxu0 %v3760
    %5184 = vmatpush1.bf16.msra.mxu0 %v3759
    %5185 = vmatprep.subr.bf16.mxu0 %v3773
    %5186 = vmatpush1.bf16.msra.mxu0 %v3772
    %5187 = vmatprep.subr.bf16.mxu0 %v3786
    %5188 = vmatpush1.bf16.msra.mxu0 %v3785
    %5189 = vmatprep.subr.bf16.mxu0 %v3799
    %5190 = vmatpush1.bf16.msra.mxu0 %v3798
    %5191 = vmatprep.subr.bf16.mxu0 %v3812
    %5192 = vmatpush1.bf16.msra.mxu0 %v3811
    %5193 = vmatprep.subr.bf16.mxu0 %v3825
    %5194 = vmatpush1.bf16.msra.mxu0 %v3824
    %5195 = vmatprep.subr.bf16.mxu0 %v3838
    %5196 = vmatpush1.bf16.msra.mxu0 %v3837
    %5197 = vmatprep.subr.bf16.mxu0 %v3851
    %5198 = vmatpush1.bf16.msra.mxu0 %v3850
    %5199 = vmatprep.subr.bf16.mxu0 %v3864
    %5200 = vmatpush1.bf16.msra.mxu0 %v3863
    %5201 = vmatprep.subr.bf16.mxu0 %v3877
    %5202 = vmatpush1.bf16.msra.mxu0 %v3876
    %5203 = vmatprep.subr.bf16.mxu0 %v3890
    %5204 = vmatpush1.bf16.msra.mxu0 %v3889
    %5205 = vmatprep.subr.bf16.mxu0 %v3903
    %5206 = vmatpush1.bf16.msra.mxu0 %v3902
    %5207 = vmatprep.subr.bf16.mxu0 %v3916
    %5208 = vmatpush1.bf16.msra.mxu0 %v3915
    %5209 = vmatprep.subr.bf16.mxu0 %v3929
    %5210 = vmatpush1.bf16.msra.mxu0 %v3928
    %5211 = vmatprep.subr.bf16.mxu0 %v3942
    %5212 = vmatpush1.bf16.msra.mxu0 %v3941
    %5213 = vmatprep.mubr.bf16.mxu0 %v815
    %5214 = vmatmul.mubr.bf16.gmra.mrb[0].mxu0 %v814
    %v5215 = vpop.f32.mrb[0].mxu0
    %v5216 = vadd.f32 %v5175, %v5215
    %v5217 = vpop.f32.mrb[0].mxu0
    %v5218 = vadd.f32 %v5177, %v5217
    %v5219 = vpop.f32.mrb[0].mxu0
    %v5220 = vpop.f32.mrb[0].mxu0
    %5221 = vdwg.mxu0
    %5222 = vmatprep.subr.bf16.mxu0 %v3955
    %5223 = vmatpush1.bf16.msra.mxu0 %v3954
    %5224 = vmatprep.subr.bf16.mxu0 %v3968
    %5225 = vmatpush1.bf16.msra.mxu0 %v3967
    %5226 = vmatprep.subr.bf16.mxu0 %v3981
    %5227 = vmatpush1.bf16.msra.mxu0 %v3980
    %5228 = vmatprep.subr.bf16.mxu0 %v3994
    %5229 = vmatpush1.bf16.msra.mxu0 %v3993
    %5230 = vmatprep.subr.bf16.mxu0 %v4007
    %5231 = vmatpush1.bf16.msra.mxu0 %v4006
    %5232 = vmatprep.subr.bf16.mxu0 %v4020
    %5233 = vmatpush1.bf16.msra.mxu0 %v4019
    %5234 = vmatprep.subr.bf16.mxu0 %v4033
    %5235 = vmatpush1.bf16.msra.mxu0 %v4032
    %5236 = vmatprep.subr.bf16.mxu0 %v4046
    %5237 = vmatpush1.bf16.msra.mxu0 %v4045
    %5238 = vmatprep.subr.bf16.mxu0 %v4059
    %5239 = vmatpush1.bf16.msra.mxu0 %v4058
    %5240 = vmatprep.subr.bf16.mxu0 %v4072
    %5241 = vmatpush1.bf16.msra.mxu0 %v4071
    %5242 = vmatprep.subr.bf16.mxu0 %v4085
    %5243 = vmatpush1.bf16.msra.mxu0 %v4084
    %5244 = vmatprep.subr.bf16.mxu0 %v4098
    %5245 = vmatpush1.bf16.msra.mxu0 %v4097
    %5246 = vmatprep.subr.bf16.mxu0 %v4111
    %5247 = vmatpush1.bf16.msra.mxu0 %v4110
    %5248 = vmatprep.subr.bf16.mxu0 %v4124
    %5249 = vmatpush1.bf16.msra.mxu0 %v4123
    %5250 = vmatprep.subr.bf16.mxu0 %v4137
    %5251 = vmatpush1.bf16.msra.mxu0 %v4136
    %5252 = vmatprep.subr.bf16.mxu0 %v4150
    %5253 = vmatpush1.bf16.msra.mxu0 %v4149
    %5254 = vmatprep.mubr.bf16.mxu0 %v817
    %5255 = vmatmul.mubr.bf16.gmra.mrb[0].mxu0 %v816
    %v5256 = vpop.f32.mrb[0].mxu0
    %v5257 = vadd.f32 %v5216, %v5256
    %v5258 = vpop.f32.mrb[0].mxu0
    %v5259 = vadd.f32 %v5218, %v5258
    %v5260 = vpop.f32.mrb[0].mxu0
    %v5261 = vpop.f32.mrb[0].mxu0
    %5262 = vdwg.mxu0
    %5263 = vmatprep.subr.bf16.mxu0 %v4163
    %5264 = vmatpush1.bf16.msra.mxu0 %v4162
    %5265 = vmatprep.subr.bf16.mxu0 0
    %5266 = vmatpush1.bf16.msra.mxu0 0
    %5267 = vmatprep.subr.bf16.mxu0 0
    %5268 = vmatpush1.bf16.msra.mxu0 0
    %5269 = vmatprep.subr.bf16.mxu0 0
    %5270 = vmatpush1.bf16.msra.mxu0 0
    %5271 = vmatprep.subr.bf16.mxu0 0
    %5272 = vmatpush1.bf16.msra.mxu0 0
    %5273 = vmatprep.subr.bf16.mxu0 0
    %5274 = vmatpush1.bf16.msra.mxu0 0
    %5275 = vmatprep.subr.bf16.mxu0 0
    %5276 = vmatpush1.bf16.msra.mxu0 0
    %5277 = vmatprep.subr.bf16.mxu0 0
    %5278 = vmatpush1.bf16.msra.mxu0 0
    %5279 = vmatprep.subr.bf16.mxu0 0
    %5280 = vmatpush1.bf16.msra.mxu0 0
    %5281 = vmatprep.subr.bf16.mxu0 0
    %5282 = vmatpush1.bf16.msra.mxu0 0
    %5283 = vmatprep.subr.bf16.mxu0 0
    %5284 = vmatpush1.bf16.msra.mxu0 0
    %5285 = vmatprep.subr.bf16.mxu0 0
    %5286 = vmatpush1.bf16.msra.mxu0 0
    %5287 = vmatprep.subr.bf16.mxu0 0
    %5288 = vmatpush1.bf16.msra.mxu0 0
    %5289 = vmatprep.subr.bf16.mxu0 0
    %5290 = vmatpush1.bf16.msra.mxu0 0
    %5291 = vmatprep.subr.bf16.mxu0 0
    %5292 = vmatpush1.bf16.msra.mxu0 0
    %5293 = vmatprep.subr.bf16.mxu0 0
    %5294 = vmatpush1.bf16.msra.mxu0 0
    %5295 = vmatprep.mubr.bf16.mxu0 0
    %5296 = vmatmul.mubr.bf16.gmra.mrb[0].mxu0 %v4810
    %v5297 = vpop.f32.mrb[0].mxu0
    %v5298 = vadd.f32 %v5257, %v5297
    %v5299 = vpop.f32.mrb[0].mxu0
    %v5300 = vadd.f32 %v5259, %v5299
    %v5301 = vpop.f32.mrb[0].mxu0
    %v5302 = vpop.f32.mrb[0].mxu0
    %5303 = vdwg.mxu0
    %5304 = vmatprep.subr.bf16.mxu0 %v3541
    %5305 = vmatpush1.bf16.msra.mxu0 %v3540
    %5306 = vmatprep.subr.bf16.mxu0 %v3554
    %5307 = vmatpush1.bf16.msra.mxu0 %v3553
    %5308 = vmatprep.subr.bf16.mxu0 %v3567
    %5309 = vmatpush1.bf16.msra.mxu0 %v3566
    %5310 = vmatprep.subr.bf16.mxu0 %v3580
    %5311 = vmatpush1.bf16.msra.mxu0 %v3579
    %5312 = vmatprep.subr.bf16.mxu0 %v3593
    %5313 = vmatpush1.bf16.msra.mxu0 %v3592
    %5314 = vmatprep.subr.bf16.mxu0 %v3606
    %5315 = vmatpush1.bf16.msra.mxu0 %v3605
    %5316 = vmatprep.subr.bf16.mxu0 %v3619
    %5317 = vmatpush1.bf16.msra.mxu0 %v3618
    %5318 = vmatprep.subr.bf16.mxu0 %v3632
    %5319 = vmatpush1.bf16.msra.mxu0 %v3631
    %5320 = vmatprep.subr.bf16.mxu0 %v3645
    %5321 = vmatpush1.bf16.msra.mxu0 %v3644
    %5322 = vmatprep.subr.bf16.mxu0 %v3658
    %5323 = vmatpush1.bf16.msra.mxu0 %v3657
    %5324 = vmatprep.subr.bf16.mxu0 %v3671
    %5325 = vmatpush1.bf16.msra.mxu0 %v3670
    %5326 = vmatprep.subr.bf16.mxu0 %v3684
    %5327 = vmatpush1.bf16.msra.mxu0 %v3683
    %5328 = vmatprep.subr.bf16.mxu0 %v3697
    %5329 = vmatpush1.bf16.msra.mxu0 %v3696
    %5330 = vmatprep.subr.bf16.mxu0 %v3710
    %5331 = vmatpush1.bf16.msra.mxu0 %v3709
    %5332 = vmatprep.subr.bf16.mxu0 %v3723
    %5333 = vmatpush1.bf16.msra.mxu0 %v3722
    %5334 = vmatprep.subr.bf16.mxu0 %v3736
    %5335 = vmatpush1.bf16.msra.mxu0 %v3735
    %5336 = vmatprep.mubr.bf16.mxu0 %v813
    %5337 = vmatmul.mubr.bf16.gmra.mrb[0].mxu0 %v812
    %v5338 = vpop.f32.mrb[0].mxu0
    %v5339 = vadd.f32 %v1536, %v5338
    %v5340 = vpop.f32.mrb[0].mxu0
    %v5341 = vadd.f32 %v1540, %v5340
    %v5342 = vpop.f32.mrb[0].mxu0
    %v5343 = vpop.f32.mrb[0].mxu0
    %5344 = vdwg.mxu0
    %5345 = vmatprep.subr.bf16.mxu0 %v3749
    %5346 = vmatpush1.bf16.msra.mxu0 %v3748
    %5347 = vmatprep.subr.bf16.mxu0 %v3762
    %5348 = vmatpush1.bf16.msra.mxu0 %v3761
    %5349 = vmatprep.subr.bf16.mxu0 %v3775
    %5350 = vmatpush1.bf16.msra.mxu0 %v3774
    %5351 = vmatprep.subr.bf16.mxu0 %v3788
    %5352 = vmatpush1.bf16.msra.mxu0 %v3787
    %5353 = vmatprep.subr.bf16.mxu0 %v3801
    %5354 = vmatpush1.bf16.msra.mxu0 %v3800
    %5355 = vmatprep.subr.bf16.mxu0 %v3814
    %5356 = vmatpush1.bf16.msra.mxu0 %v3813
    %5357 = vmatprep.subr.bf16.mxu0 %v3827
    %5358 = vmatpush1.bf16.msra.mxu0 %v3826
    %5359 = vmatprep.subr.bf16.mxu0 %v3840
    %5360 = vmatpush1.bf16.msra.mxu0 %v3839
    %5361 = vmatprep.subr.bf16.mxu0 %v3853
    %5362 = vmatpush1.bf16.msra.mxu0 %v3852
    %5363 = vmatprep.subr.bf16.mxu0 %v3866
    %5364 = vmatpush1.bf16.msra.mxu0 %v3865
    %5365 = vmatprep.subr.bf16.mxu0 %v3879
    %5366 = vmatpush1.bf16.msra.mxu0 %v3878
    %5367 = vmatprep.subr.bf16.mxu0 %v3892
    %5368 = vmatpush1.bf16.msra.mxu0 %v3891
    %5369 = vmatprep.subr.bf16.mxu0 %v3905
    %5370 = vmatpush1.bf16.msra.mxu0 %v3904
    %5371 = vmatprep.subr.bf16.mxu0 %v3918
    %5372 = vmatpush1.bf16.msra.mxu0 %v3917
    %5373 = vmatprep.subr.bf16.mxu0 %v3931
    %5374 = vmatpush1.bf16.msra.mxu0 %v3930
    %5375 = vmatprep.subr.bf16.mxu0 %v3944
    %5376 = vmatpush1.bf16.msra.mxu0 %v3943
    %5377 = vmatprep.mubr.bf16.mxu0 %v815
    %5378 = vmatmul.mubr.bf16.gmra.mrb[0].mxu0 %v814
    %v5379 = vpop.f32.mrb[0].mxu0
    %v5380 = vadd.f32 %v5339, %v5379
    %v5381 = vpop.f32.mrb[0].mxu0
    %v5382 = vadd.f32 %v5341, %v5381
    %v5383 = vpop.f32.mrb[0].mxu0
    %v5384 = vpop.f32.mrb[0].mxu0
    %5385 = vdwg.mxu0
    %5386 = vmatprep.subr.bf16.mxu0 %v3957
    %5387 = vmatpush1.bf16.msra.mxu0 %v3956
    %5388 = vmatprep.subr.bf16.mxu0 %v3970
    %5389 = vmatpush1.bf16.msra.mxu0 %v3969
    %5390 = vmatprep.subr.bf16.mxu0 %v3983
    %5391 = vmatpush1.bf16.msra.mxu0 %v3982
    %5392 = vmatprep.subr.bf16.mxu0 %v3996
    %5393 = vmatpush1.bf16.msra.mxu0 %v3995
    %5394 = vmatprep.subr.bf16.mxu0 %v4009
    %5395 = vmatpush1.bf16.msra.mxu0 %v4008
    %5396 = vmatprep.subr.bf16.mxu0 %v4022
    %5397 = vmatpush1.bf16.msra.mxu0 %v4021
    %5398 = vmatprep.subr.bf16.mxu0 %v4035
    %5399 = vmatpush1.bf16.msra.mxu0 %v4034
    %5400 = vmatprep.subr.bf16.mxu0 %v4048
    %5401 = vmatpush1.bf16.msra.mxu0 %v4047
    %5402 = vmatprep.subr.bf16.mxu0 %v4061
    %5403 = vmatpush1.bf16.msra.mxu0 %v4060
    %5404 = vmatprep.subr.bf16.mxu0 %v4074
    %5405 = vmatpush1.bf16.msra.mxu0 %v4073
    %5406 = vmatprep.subr.bf16.mxu0 %v4087
    %5407 = vmatpush1.bf16.msra.mxu0 %v4086
    %5408 = vmatprep.subr.bf16.mxu0 %v4100
    %5409 = vmatpush1.bf16.msra.mxu0 %v4099
    %5410 = vmatprep.subr.bf16.mxu0 %v4113
    %5411 = vmatpush1.bf16.msra.mxu0 %v4112
    %5412 = vmatprep.subr.bf16.mxu0 %v4126
    %5413 = vmatpush1.bf16.msra.mxu0 %v4125
    %5414 = vmatprep.subr.bf16.mxu0 %v4139
    %5415 = vmatpush1.bf16.msra.mxu0 %v4138
    %5416 = vmatprep.subr.bf16.mxu0 %v4152
    %5417 = vmatpush1.bf16.msra.mxu0 %v4151
    %5418 = vmatprep.mubr.bf16.mxu0 %v817
    %5419 = vmatmul.mubr.bf16.gmra.mrb[0].mxu0 %v816
    %v5420 = vpop.f32.mrb[0].mxu0
    %v5421 = vadd.f32 %v5380, %v5420
    %v5422 = vpop.f32.mrb[0].mxu0
    %v5423 = vadd.f32 %v5382, %v5422
    %v5424 = vpop.f32.mrb[0].mxu0
    %v5425 = vpop.f32.mrb[0].mxu0
    %5426 = vdwg.mxu0
    %5427 = vmatprep.subr.bf16.mxu0 %v4165
    %5428 = vmatpush1.bf16.msra.mxu0 %v4164
    %5429 = vmatprep.subr.bf16.mxu0 0
    %5430 = vmatpush1.bf16.msra.mxu0 0
    %5431 = vmatprep.subr.bf16.mxu0 0
    %5432 = vmatpush1.bf16.msra.mxu0 0
    %5433 = vmatprep.subr.bf16.mxu0 0
    %5434 = vmatpush1.bf16.msra.mxu0 0
    %5435 = vmatprep.subr.bf16.mxu0 0
    %5436 = vmatpush1.bf16.msra.mxu0 0
    %5437 = vmatprep.subr.bf16.mxu0 0
    %5438 = vmatpush1.bf16.msra.mxu0 0
    %5439 = vmatprep.subr.bf16.mxu0 0
    %5440 = vmatpush1.bf16.msra.mxu0 0
    %5441 = vmatprep.subr.bf16.mxu0 0
    %5442 = vmatpush1.bf16.msra.mxu0 0
    %5443 = vmatprep.subr.bf16.mxu0 0
    %5444 = vmatpush1.bf16.msra.mxu0 0
    %5445 = vmatprep.subr.bf16.mxu0 0
    %5446 = vmatpush1.bf16.msra.mxu0 0
    %5447 = vmatprep.subr.bf16.mxu0 0
    %5448 = vmatpush1.bf16.msra.mxu0 0
    %5449 = vmatprep.subr.bf16.mxu0 0
    %5450 = vmatpush1.bf16.msra.mxu0 0
    %5451 = vmatprep.subr.bf16.mxu0 0
    %5452 = vmatpush1.bf16.msra.mxu0 0
    %5453 = vmatprep.subr.bf16.mxu0 0
    %5454 = vmatpush1.bf16.msra.mxu0 0
    %5455 = vmatprep.subr.bf16.mxu0 0
    %5456 = vmatpush1.bf16.msra.mxu0 0
    %5457 = vmatprep.subr.bf16.mxu0 0
    %5458 = vmatpush1.bf16.msra.mxu0 0
    %5459 = vmatprep.mubr.bf16.mxu0 0
    %5460 = vmatmul.mubr.bf16.gmra.mrb[0].mxu0 %v4810
    %v5461 = vpop.f32.mrb[0].mxu0
    %v5462 = vadd.f32 %v5421, %v5461
    %v5463 = vpop.f32.mrb[0].mxu0
    %v5464 = vadd.f32 %v5423, %v5463
    %v5465 = vpop.f32.mrb[0].mxu0
    %v5466 = vpop.f32.mrb[0].mxu0
    %5467 = vdwg.mxu0
    %5468 = vmatprep.subr.bf16.mxu0 %v3543
    %5469 = vmatpush1.bf16.msra.mxu0 %v3542
    %5470 = vmatprep.subr.bf16.mxu0 %v3556
    %5471 = vmatpush1.bf16.msra.mxu0 %v3555
    %5472 = vmatprep.subr.bf16.mxu0 %v3569
    %5473 = vmatpush1.bf16.msra.mxu0 %v3568
    %5474 = vmatprep.subr.bf16.mxu0 %v3582
    %5475 = vmatpush1.bf16.msra.mxu0 %v3581
    %5476 = vmatprep.subr.bf16.mxu0 %v3595
    %5477 = vmatpush1.bf16.msra.mxu0 %v3594
    %5478 = vmatprep.subr.bf16.mxu0 %v3608
    %5479 = vmatpush1.bf16.msra.mxu0 %v3607
    %5480 = vmatprep.subr.bf16.mxu0 %v3621
    %5481 = vmatpush1.bf16.msra.mxu0 %v3620
    %5482 = vmatprep.subr.bf16.mxu0 %v3634
    %5483 = vmatpush1.bf16.msra.mxu0 %v3633
    %5484 = vmatprep.subr.bf16.mxu0 %v3647
    %5485 = vmatpush1.bf16.msra.mxu0 %v3646
    %5486 = vmatprep.subr.bf16.mxu0 %v3660
    %5487 = vmatpush1.bf16.msra.mxu0 %v3659
    %5488 = vmatprep.subr.bf16.mxu0 %v3673
    %5489 = vmatpush1.bf16.msra.mxu0 %v3672
    %5490 = vmatprep.subr.bf16.mxu0 %v3686
    %5491 = vmatpush1.bf16.msra.mxu0 %v3685
    %5492 = vmatprep.subr.bf16.mxu0 %v3699
    %5493 = vmatpush1.bf16.msra.mxu0 %v3698
    %5494 = vmatprep.subr.bf16.mxu0 %v3712
    %5495 = vmatpush1.bf16.msra.mxu0 %v3711
    %5496 = vmatprep.subr.bf16.mxu0 %v3725
    %5497 = vmatpush1.bf16.msra.mxu0 %v3724
    %5498 = vmatprep.subr.bf16.mxu0 %v3738
    %5499 = vmatpush1.bf16.msra.mxu0 %v3737
    %5500 = vmatprep.mubr.bf16.mxu0 %v813
    %5501 = vmatmul.mubr.bf16.gmra.mrb[0].mxu0 %v812
    %v5502 = vpop.f32.mrb[0].mxu0
    %v5503 = vadd.f32 %v1544, %v5502
    %v5504 = vpop.f32.mrb[0].mxu0
    %v5505 = vadd.f32 %v1548, %v5504
    %v5506 = vpop.f32.mrb[0].mxu0
    %v5507 = vpop.f32.mrb[0].mxu0
    %5508 = vdwg.mxu0
    %5509 = vmatprep.subr.bf16.mxu0 %v3751
    %5510 = vmatpush1.bf16.msra.mxu0 %v3750
    %5511 = vmatprep.subr.bf16.mxu0 %v3764
    %5512 = vmatpush1.bf16.msra.mxu0 %v3763
    %5513 = vmatprep.subr.bf16.mxu0 %v3777
    %5514 = vmatpush1.bf16.msra.mxu0 %v3776
    %5515 = vmatprep.subr.bf16.mxu0 %v3790
    %5516 = vmatpush1.bf16.msra.mxu0 %v3789
    %5517 = vmatprep.subr.bf16.mxu0 %v3803
    %5518 = vmatpush1.bf16.msra.mxu0 %v3802
    %5519 = vmatprep.subr.bf16.mxu0 %v3816
    %5520 = vmatpush1.bf16.msra.mxu0 %v3815
    %5521 = vmatprep.subr.bf16.mxu0 %v3829
    %5522 = vmatpush1.bf16.msra.mxu0 %v3828
    %5523 = vmatprep.subr.bf16.mxu0 %v3842
    %5524 = vmatpush1.bf16.msra.mxu0 %v3841
    %5525 = vmatprep.subr.bf16.mxu0 %v3855
    %5526 = vmatpush1.bf16.msra.mxu0 %v3854
    %5527 = vmatprep.subr.bf16.mxu0 %v3868
    %5528 = vmatpush1.bf16.msra.mxu0 %v3867
    %5529 = vmatprep.subr.bf16.mxu0 %v3881
    %5530 = vmatpush1.bf16.msra.mxu0 %v3880
    %5531 = vmatprep.subr.bf16.mxu0 %v3894
    %5532 = vmatpush1.bf16.msra.mxu0 %v3893
    %5533 = vmatprep.subr.bf16.mxu0 %v3907
    %5534 = vmatpush1.bf16.msra.mxu0 %v3906
    %5535 = vmatprep.subr.bf16.mxu0 %v3920
    %5536 = vmatpush1.bf16.msra.mxu0 %v3919
    %5537 = vmatprep.subr.bf16.mxu0 %v3933
    %5538 = vmatpush1.bf16.msra.mxu0 %v3932
    %5539 = vmatprep.subr.bf16.mxu0 %v3946
    %5540 = vmatpush1.bf16.msra.mxu0 %v3945
    %5541 = vmatprep.mubr.bf16.mxu0 %v815
    %5542 = vmatmul.mubr.bf16.gmra.mrb[0].mxu0 %v814
    %v5543 = vpop.f32.mrb[0].mxu0
    %v5544 = vadd.f32 %v5503, %v5543
    %v5545 = vpop.f32.mrb[0].mxu0
    %v5546 = vadd.f32 %v5505, %v5545
    %v5547 = vpop.f32.mrb[0].mxu0
    %v5548 = vpop.f32.mrb[0].mxu0
    %5549 = vdwg.mxu0
    %5550 = vmatprep.subr.bf16.mxu0 %v3959
    %5551 = vmatpush1.bf16.msra.mxu0 %v3958
    %5552 = vmatprep.subr.bf16.mxu0 %v3972
    %5553 = vmatpush1.bf16.msra.mxu0 %v3971
    %5554 = vmatprep.subr.bf16.mxu0 %v3985
    %5555 = vmatpush1.bf16.msra.mxu0 %v3984
    %5556 = vmatprep.subr.bf16.mxu0 %v3998
    %5557 = vmatpush1.bf16.msra.mxu0 %v3997
    %5558 = vmatprep.subr.bf16.mxu0 %v4011
    %5559 = vmatpush1.bf16.msra.mxu0 %v4010
    %5560 = vmatprep.subr.bf16.mxu0 %v4024
    %5561 = vmatpush1.bf16.msra.mxu0 %v4023
    %5562 = vmatprep.subr.bf16.mxu0 %v4037
    %5563 = vmatpush1.bf16.msra.mxu0 %v4036
    %5564 = vmatprep.subr.bf16.mxu0 %v4050
    %5565 = vmatpush1.bf16.msra.mxu0 %v4049
    %5566 = vmatprep.subr.bf16.mxu0 %v4063
    %5567 = vmatpush1.bf16.msra.mxu0 %v4062
    %5568 = vmatprep.subr.bf16.mxu0 %v4076
    %5569 = vmatpush1.bf16.msra.mxu0 %v4075
    %5570 = vmatprep.subr.bf16.mxu0 %v4089
    %5571 = vmatpush1.bf16.msra.mxu0 %v4088
    %5572 = vmatprep.subr.bf16.mxu0 %v4102
    %5573 = vmatpush1.bf16.msra.mxu0 %v4101
    %5574 = vmatprep.subr.bf16.mxu0 %v4115
    %5575 = vmatpush1.bf16.msra.mxu0 %v4114
    %5576 = vmatprep.subr.bf16.mxu0 %v4128
    %5577 = vmatpush1.bf16.msra.mxu0 %v4127
    %5578 = vmatprep.subr.bf16.mxu0 %v4141
    %5579 = vmatpush1.bf16.msra.mxu0 %v4140
    %5580 = vmatprep.subr.bf16.mxu0 %v4154
    %5581 = vmatpush1.bf16.msra.mxu0 %v4153
    %5582 = vmatprep.mubr.bf16.mxu0 %v817
    %5583 = vmatmul.mubr.bf16.gmra.mrb[0].mxu0 %v816
    %v5584 = vpop.f32.mrb[0].mxu0
    %v5585 = vadd.f32 %v5544, %v5584
    %v5586 = vpop.f32.mrb[0].mxu0
    %v5587 = vadd.f32 %v5546, %v5586
    %v5588 = vpop.f32.mrb[0].mxu0
    %v5589 = vpop.f32.mrb[0].mxu0
    %5590 = vdwg.mxu0
    %5591 = vmatprep.subr.bf16.mxu0 %v4167
    %5592 = vmatpush1.bf16.msra.mxu0 %v4166
    %5593 = vmatprep.subr.bf16.mxu0 0
    %5594 = vmatpush1.bf16.msra.mxu0 0
    %5595 = vmatprep.subr.bf16.mxu0 0
    %5596 = vmatpush1.bf16.msra.mxu0 0
    %5597 = vmatprep.subr.bf16.mxu0 0
    %5598 = vmatpush1.bf16.msra.mxu0 0
    %5599 = vmatprep.subr.bf16.mxu0 0
    %5600 = vmatpush1.bf16.msra.mxu0 0
    %5601 = vmatprep.subr.bf16.mxu0 0
    %5602 = vmatpush1.bf16.msra.mxu0 0
    %5603 = vmatprep.subr.bf16.mxu0 0
    %5604 = vmatpush1.bf16.msra.mxu0 0
    %5605 = vmatprep.subr.bf16.mxu0 0
    %5606 = vmatpush1.bf16.msra.mxu0 0
    %5607 = vmatprep.subr.bf16.mxu0 0
    %5608 = vmatpush1.bf16.msra.mxu0 0
    %5609 = vmatprep.subr.bf16.mxu0 0
    %5610 = vmatpush1.bf16.msra.mxu0 0
    %5611 = vmatprep.subr.bf16.mxu0 0
    %5612 = vmatpush1.bf16.msra.mxu0 0
    %5613 = vmatprep.subr.bf16.mxu0 0
    %5614 = vmatpush1.bf16.msra.mxu0 0
    %5615 = vmatprep.subr.bf16.mxu0 0
    %5616 = vmatpush1.bf16.msra.mxu0 0
    %5617 = vmatprep.subr.bf16.mxu0 0
    %5618 = vmatpush1.bf16.msra.mxu0 0
    %5619 = vmatprep.subr.bf16.mxu0 0
    %5620 = vmatpush1.bf16.msra.mxu0 0
    %5621 = vmatprep.subr.bf16.mxu0 0
    %5622 = vmatpush1.bf16.msra.mxu0 0
    %5623 = vmatprep.mubr.bf16.mxu0 0
    %5624 = vmatmul.mubr.bf16.gmra.mrb[0].mxu0 %v4810
    %v5625 = vpop.f32.mrb[0].mxu0
    %v5626 = vadd.f32 %v5585, %v5625
    %v5627 = vpop.f32.mrb[0].mxu0
    %v5628 = vadd.f32 %v5587, %v5627
    %v5629 = vpop.f32.mrb[0].mxu0
    %v5630 = vpop.f32.mrb[0].mxu0
    %5631 = vdwg.mxu0
    %5632 = vmatprep.subr.bf16.mxu0 %v3545
    %5633 = vmatpush1.bf16.msra.mxu0 %v3544
    %5634 = vmatprep.subr.bf16.mxu0 %v3558
    %5635 = vmatpush1.bf16.msra.mxu0 %v3557
    %5636 = vmatprep.subr.bf16.mxu0 %v3571
    %5637 = vmatpush1.bf16.msra.mxu0 %v3570
    %5638 = vmatprep.subr.bf16.mxu0 %v3584
    %5639 = vmatpush1.bf16.msra.mxu0 %v3583
    %5640 = vmatprep.subr.bf16.mxu0 %v3597
    %5641 = vmatpush1.bf16.msra.mxu0 %v3596
    %5642 = vmatprep.subr.bf16.mxu0 %v3610
    %5643 = vmatpush1.bf16.msra.mxu0 %v3609
    %5644 = vmatprep.subr.bf16.mxu0 %v3623
    %5645 = vmatpush1.bf16.msra.mxu0 %v3622
    %5646 = vmatprep.subr.bf16.mxu0 %v3636
    %5647 = vmatpush1.bf16.msra.mxu0 %v3635
    %5648 = vmatprep.subr.bf16.mxu0 %v3649
    %5649 = vmatpush1.bf16.msra.mxu0 %v3648
    %5650 = vmatprep.subr.bf16.mxu0 %v3662
    %5651 = vmatpush1.bf16.msra.mxu0 %v3661
    %5652 = vmatprep.subr.bf16.mxu0 %v3675
    %5653 = vmatpush1.bf16.msra.mxu0 %v3674
    %5654 = vmatprep.subr.bf16.mxu0 %v3688
    %5655 = vmatpush1.bf16.msra.mxu0 %v3687
    %5656 = vmatprep.subr.bf16.mxu0 %v3701
    %5657 = vmatpush1.bf16.msra.mxu0 %v3700
    %5658 = vmatprep.subr.bf16.mxu0 %v3714
    %5659 = vmatpush1.bf16.msra.mxu0 %v3713
    %5660 = vmatprep.subr.bf16.mxu0 %v3727
    %5661 = vmatpush1.bf16.msra.mxu0 %v3726
    %5662 = vmatprep.subr.bf16.mxu0 %v3740
    %5663 = vmatpush1.bf16.msra.mxu0 %v3739
    %5664 = vmatprep.mubr.bf16.mxu0 %v813
    %5665 = vmatmul.mubr.bf16.gmra.mrb[0].mxu0 %v812
    %v5666 = vpop.f32.mrb[0].mxu0
    %v5667 = vadd.f32 %v1552, %v5666
    %v5668 = vpop.f32.mrb[0].mxu0
    %v5669 = vadd.f32 %v1556, %v5668
    %v5670 = vpop.f32.mrb[0].mxu0
    %v5671 = vpop.f32.mrb[0].mxu0
    %5672 = vdwg.mxu0
    %5673 = vmatprep.subr.bf16.mxu0 %v3753
    %5674 = vmatpush1.bf16.msra.mxu0 %v3752
    %5675 = vmatprep.subr.bf16.mxu0 %v3766
    %5676 = vmatpush1.bf16.msra.mxu0 %v3765
    %5677 = vmatprep.subr.bf16.mxu0 %v3779
    %5678 = vmatpush1.bf16.msra.mxu0 %v3778
    %5679 = vmatprep.subr.bf16.mxu0 %v3792
    %5680 = vmatpush1.bf16.msra.mxu0 %v3791
    %5681 = vmatprep.subr.bf16.mxu0 %v3805
    %5682 = vmatpush1.bf16.msra.mxu0 %v3804
    %5683 = vmatprep.subr.bf16.mxu0 %v3818
    %5684 = vmatpush1.bf16.msra.mxu0 %v3817
    %5685 = vmatprep.subr.bf16.mxu0 %v3831
    %5686 = vmatpush1.bf16.msra.mxu0 %v3830
    %5687 = vmatprep.subr.bf16.mxu0 %v3844
    %5688 = vmatpush1.bf16.msra.mxu0 %v3843
    %5689 = vmatprep.subr.bf16.mxu0 %v3857
    %5690 = vmatpush1.bf16.msra.mxu0 %v3856
    %5691 = vmatprep.subr.bf16.mxu0 %v3870
    %5692 = vmatpush1.bf16.msra.mxu0 %v3869
    %5693 = vmatprep.subr.bf16.mxu0 %v3883
    %5694 = vmatpush1.bf16.msra.mxu0 %v3882
    %5695 = vmatprep.subr.bf16.mxu0 %v3896
    %5696 = vmatpush1.bf16.msra.mxu0 %v3895
    %5697 = vmatprep.subr.bf16.mxu0 %v3909
    %5698 = vmatpush1.bf16.msra.mxu0 %v3908
    %5699 = vmatprep.subr.bf16.mxu0 %v3922
    %5700 = vmatpush1.bf16.msra.mxu0 %v3921
    %5701 = vmatprep.subr.bf16.mxu0 %v3935
    %5702 = vmatpush1.bf16.msra.mxu0 %v3934
    %5703 = vmatprep.subr.bf16.mxu0 %v3948
    %5704 = vmatpush1.bf16.msra.mxu0 %v3947
    %5705 = vmatprep.mubr.bf16.mxu0 %v815
    %5706 = vmatmul.mubr.bf16.gmra.mrb[0].mxu0 %v814
    %v5707 = vpop.f32.mrb[0].mxu0
    %v5708 = vadd.f32 %v5667, %v5707
    %v5709 = vpop.f32.mrb[0].mxu0
    %v5710 = vadd.f32 %v5669, %v5709
    %v5711 = vpop.f32.mrb[0].mxu0
    %v5712 = vpop.f32.mrb[0].mxu0
    %5713 = vdwg.mxu0
    %5714 = vmatprep.subr.bf16.mxu0 %v3961
    %5715 = vmatpush1.bf16.msra.mxu0 %v3960
    %5716 = vmatprep.subr.bf16.mxu0 %v3974
    %5717 = vmatpush1.bf16.msra.mxu0 %v3973
    %5718 = vmatprep.subr.bf16.mxu0 %v3987
    %5719 = vmatpush1.bf16.msra.mxu0 %v3986
    %5720 = vmatprep.subr.bf16.mxu0 %v4000
    %5721 = vmatpush1.bf16.msra.mxu0 %v3999
    %5722 = vmatprep.subr.bf16.mxu0 %v4013
    %5723 = vmatpush1.bf16.msra.mxu0 %v4012
    %5724 = vmatprep.subr.bf16.mxu0 %v4026
    %5725 = vmatpush1.bf16.msra.mxu0 %v4025
    %5726 = vmatprep.subr.bf16.mxu0 %v4039
    %5727 = vmatpush1.bf16.msra.mxu0 %v4038
    %5728 = vmatprep.subr.bf16.mxu0 %v4052
    %5729 = vmatpush1.bf16.msra.mxu0 %v4051
    %5730 = vmatprep.subr.bf16.mxu0 %v4065
    %5731 = vmatpush1.bf16.msra.mxu0 %v4064
    %5732 = vmatprep.subr.bf16.mxu0 %v4078
    %5733 = vmatpush1.bf16.msra.mxu0 %v4077
    %5734 = vmatprep.subr.bf16.mxu0 %v4091
    %5735 = vmatpush1.bf16.msra.mxu0 %v4090
    %5736 = vmatprep.subr.bf16.mxu0 %v4104
    %5737 = vmatpush1.bf16.msra.mxu0 %v4103
    %5738 = vmatprep.subr.bf16.mxu0 %v4117
    %5739 = vmatpush1.bf16.msra.mxu0 %v4116
    %5740 = vmatprep.subr.bf16.mxu0 %v4130
    %5741 = vmatpush1.bf16.msra.mxu0 %v4129
    %5742 = vmatprep.subr.bf16.mxu0 %v4143
    %5743 = vmatpush1.bf16.msra.mxu0 %v4142
    %5744 = vmatprep.subr.bf16.mxu0 %v4156
    %5745 = vmatpush1.bf16.msra.mxu0 %v4155
    %5746 = vmatprep.mubr.bf16.mxu0 %v817
    %5747 = vmatmul.mubr.bf16.gmra.mrb[0].mxu0 %v816
    %v5748 = vpop.f32.mrb[0].mxu0
    %v5749 = vadd.f32 %v5708, %v5748
    %v5750 = vpop.f32.mrb[0].mxu0
    %v5751 = vadd.f32 %v5710, %v5750
    %v5752 = vpop.f32.mrb[0].mxu0
    %v5753 = vpop.f32.mrb[0].mxu0
    %5754 = vdwg.mxu0
    %5755 = vmatprep.subr.bf16.mxu0 %v4169
    %5756 = vmatpush1.bf16.msra.mxu0 %v4168
    %5757 = vmatprep.subr.bf16.mxu0 0
    %5758 = vmatpush1.bf16.msra.mxu0 0
    %5759 = vmatprep.subr.bf16.mxu0 0
    %5760 = vmatpush1.bf16.msra.mxu0 0
    %5761 = vmatprep.subr.bf16.mxu0 0
    %5762 = vmatpush1.bf16.msra.mxu0 0
    %5763 = vmatprep.subr.bf16.mxu0 0
    %5764 = vmatpush1.bf16.msra.mxu0 0
    %5765 = vmatprep.subr.bf16.mxu0 0
    %5766 = vmatpush1.bf16.msra.mxu0 0
    %5767 = vmatprep.subr.bf16.mxu0 0
    %5768 = vmatpush1.bf16.msra.mxu0 0
    %5769 = vmatprep.subr.bf16.mxu0 0
    %5770 = vmatpush1.bf16.msra.mxu0 0
    %5771 = vmatprep.subr.bf16.mxu0 0
    %5772 = vmatpush1.bf16.msra.mxu0 0
    %5773 = vmatprep.subr.bf16.mxu0 0
    %5774 = vmatpush1.bf16.msra.mxu0 0
    %5775 = vmatprep.subr.bf16.mxu0 0
    %5776 = vmatpush1.bf16.msra.mxu0 0
    %5777 = vmatprep.subr.bf16.mxu0 0
    %5778 = vmatpush1.bf16.msra.mxu0 0
    %5779 = vmatprep.subr.bf16.mxu0 0
    %5780 = vmatpush1.bf16.msra.mxu0 0
    %5781 = vmatprep.subr.bf16.mxu0 0
    %5782 = vmatpush1.bf16.msra.mxu0 0
    %5783 = vmatprep.subr.bf16.mxu0 0
    %5784 = vmatpush1.bf16.msra.mxu0 0
    %5785 = vmatprep.subr.bf16.mxu0 0
    %5786 = vmatpush1.bf16.msra.mxu0 0
    %5787 = vmatprep.mubr.bf16.mxu0 0
    %5788 = vmatmul.mubr.bf16.gmra.mrb[0].mxu0 %v4810
    %v5789 = vpop.f32.mrb[0].mxu0
    %v5790 = vadd.f32 %v5749, %v5789
    %v5791 = vpop.f32.mrb[0].mxu0
    %v5792 = vadd.f32 %v5751, %v5791
    %v5793 = vpop.f32.mrb[0].mxu0
    %v5794 = vpop.f32.mrb[0].mxu0
    %5795 = vdwg.mxu0
    %5796 = vmatprep.subr.bf16.mxu0 0
    %5797 = vmatpush1.bf16.msra.mxu0 %v3546
    %5798 = vmatprep.subr.bf16.mxu0 0
    %5799 = vmatpush1.bf16.msra.mxu0 %v3559
    %5800 = vmatprep.subr.bf16.mxu0 0
    %5801 = vmatpush1.bf16.msra.mxu0 %v3572
    %5802 = vmatprep.subr.bf16.mxu0 0
    %5803 = vmatpush1.bf16.msra.mxu0 %v3585
    %5804 = vmatprep.subr.bf16.mxu0 0
    %5805 = vmatpush1.bf16.msra.mxu0 %v3598
    %5806 = vmatprep.subr.bf16.mxu0 0
    %5807 = vmatpush1.bf16.msra.mxu0 %v3611
    %5808 = vmatprep.subr.bf16.mxu0 0
    %5809 = vmatpush1.bf16.msra.mxu0 %v3624
    %5810 = vmatprep.subr.bf16.mxu0 0
    %5811 = vmatpush1.bf16.msra.mxu0 %v3637
    %5812 = vmatprep.subr.bf16.mxu0 0
    %5813 = vmatpush1.bf16.msra.mxu0 %v3650
    %5814 = vmatprep.subr.bf16.mxu0 0
    %5815 = vmatpush1.bf16.msra.mxu0 %v3663
    %5816 = vmatprep.subr.bf16.mxu0 0
    %5817 = vmatpush1.bf16.msra.mxu0 %v3676
    %5818 = vmatprep.subr.bf16.mxu0 0
    %5819 = vmatpush1.bf16.msra.mxu0 %v3689
    %5820 = vmatprep.subr.bf16.mxu0 0
    %5821 = vmatpush1.bf16.msra.mxu0 %v3702
    %5822 = vmatprep.subr.bf16.mxu0 0
    %5823 = vmatpush1.bf16.msra.mxu0 %v3715
    %5824 = vmatprep.subr.bf16.mxu0 0
    %5825 = vmatpush1.bf16.msra.mxu0 %v3728
    %5826 = vmatprep.subr.bf16.mxu0 0
    %5827 = vmatpush1.bf16.msra.mxu0 %v3741
    %5828 = vmatprep.mubr.bf16.mxu0 %v813
    %5829 = vmatmul.mubr.bf16.gmra.mrb[0].mxu0 %v812
    %v5830 = vpop.f32.mrb[0].mxu0
    %v5831 = vadd.f32 %v1560, %v5830
    %v5832 = vpop.f32.mrb[0].mxu0
    %v5833 = vpop.f32.mrb[0].mxu0
    %v5834 = vpop.f32.mrb[0].mxu0
    %5835 = vdwg.mxu0
    %5836 = vmatprep.subr.bf16.mxu0 0
    %5837 = vmatpush1.bf16.msra.mxu0 %v3754
    %5838 = vmatprep.subr.bf16.mxu0 0
    %5839 = vmatpush1.bf16.msra.mxu0 %v3767
    %5840 = vmatprep.subr.bf16.mxu0 0
    %5841 = vmatpush1.bf16.msra.mxu0 %v3780
    %5842 = vmatprep.subr.bf16.mxu0 0
    %5843 = vmatpush1.bf16.msra.mxu0 %v3793
    %5844 = vmatprep.subr.bf16.mxu0 0
    %5845 = vmatpush1.bf16.msra.mxu0 %v3806
    %5846 = vmatprep.subr.bf16.mxu0 0
    %5847 = vmatpush1.bf16.msra.mxu0 %v3819
    %5848 = vmatprep.subr.bf16.mxu0 0
    %5849 = vmatpush1.bf16.msra.mxu0 %v3832
    %5850 = vmatprep.subr.bf16.mxu0 0
    %5851 = vmatpush1.bf16.msra.mxu0 %v3845
    %5852 = vmatprep.subr.bf16.mxu0 0
    %5853 = vmatpush1.bf16.msra.mxu0 %v3858
    %5854 = vmatprep.subr.bf16.mxu0 0
    %5855 = vmatpush1.bf16.msra.mxu0 %v3871
    %5856 = vmatprep.subr.bf16.mxu0 0
    %5857 = vmatpush1.bf16.msra.mxu0 %v3884
    %5858 = vmatprep.subr.bf16.mxu0 0
    %5859 = vmatpush1.bf16.msra.mxu0 %v3897
    %5860 = vmatprep.subr.bf16.mxu0 0
    %5861 = vmatpush1.bf16.msra.mxu0 %v3910
    %5862 = vmatprep.subr.bf16.mxu0 0
    %5863 = vmatpush1.bf16.msra.mxu0 %v3923
    %5864 = vmatprep.subr.bf16.mxu0 0
    %5865 = vmatpush1.bf16.msra.mxu0 %v3936
    %5866 = vmatprep.subr.bf16.mxu0 0
    %5867 = vmatpush1.bf16.msra.mxu0 %v3949
    %5868 = vmatprep.mubr.bf16.mxu0 %v815
    %5869 = vmatmul.mubr.bf16.gmra.mrb[0].mxu0 %v814
    %v5870 = vpop.f32.mrb[0].mxu0
    %v5871 = vadd.f32 %v5831, %v5870
    %v5872 = vpop.f32.mrb[0].mxu0
    %v5873 = vpop.f32.mrb[0].mxu0
    %v5874 = vpop.f32.mrb[0].mxu0
    %5875 = vdwg.mxu0
    %5876 = vmatprep.subr.bf16.mxu0 0
    %5877 = vmatpush1.bf16.msra.mxu0 %v3962
    %5878 = vmatprep.subr.bf16.mxu0 0
    %5879 = vmatpush1.bf16.msra.mxu0 %v3975
    %5880 = vmatprep.subr.bf16.mxu0 0
    %5881 = vmatpush1.bf16.msra.mxu0 %v3988
    %5882 = vmatprep.subr.bf16.mxu0 0
    %5883 = vmatpush1.bf16.msra.mxu0 %v4001
    %5884 = vmatprep.subr.bf16.mxu0 0
    %5885 = vmatpush1.bf16.msra.mxu0 %v4014
    %5886 = vmatprep.subr.bf16.mxu0 0
    %5887 = vmatpush1.bf16.msra.mxu0 %v4027
    %5888 = vmatprep.subr.bf16.mxu0 0
    %5889 = vmatpush1.bf16.msra.mxu0 %v4040
    %5890 = vmatprep.subr.bf16.mxu0 0
    %5891 = vmatpush1.bf16.msra.mxu0 %v4053
    %5892 = vmatprep.subr.bf16.mxu0 0
    %5893 = vmatpush1.bf16.msra.mxu0 %v4066
    %5894 = vmatprep.subr.bf16.mxu0 0
    %5895 = vmatpush1.bf16.msra.mxu0 %v4079
    %5896 = vmatprep.subr.bf16.mxu0 0
    %5897 = vmatpush1.bf16.msra.mxu0 %v4092
    %5898 = vmatprep.subr.bf16.mxu0 0
    %5899 = vmatpush1.bf16.msra.mxu0 %v4105
    %5900 = vmatprep.subr.bf16.mxu0 0
    %5901 = vmatpush1.bf16.msra.mxu0 %v4118
    %5902 = vmatprep.subr.bf16.mxu0 0
    %5903 = vmatpush1.bf16.msra.mxu0 %v4131
    %5904 = vmatprep.subr.bf16.mxu0 0
    %5905 = vmatpush1.bf16.msra.mxu0 %v4144
    %5906 = vmatprep.subr.bf16.mxu0 0
    %5907 = vmatpush1.bf16.msra.mxu0 %v4157
    %5908 = vmatprep.mubr.bf16.mxu0 %v817
    %5909 = vmatmul.mubr.bf16.gmra.mrb[0].mxu0 %v816
    %v5910 = vpop.f32.mrb[0].mxu0
    %v5911 = vadd.f32 %v5871, %v5910
    %v5912 = vpop.f32.mrb[0].mxu0
    %v5913 = vpop.f32.mrb[0].mxu0
    %v5914 = vpop.f32.mrb[0].mxu0
    %5915 = vdwg.mxu0
    %5916 = vmatprep.subr.bf16.mxu0 0
    %5917 = vmatpush1.bf16.msra.mxu0 %v4170
    %5918 = vmatprep.subr.bf16.mxu0 0
    %5919 = vmatpush1.bf16.msra.mxu0 0
    %5920 = vmatprep.subr.bf16.mxu0 0
    %5921 = vmatpush1.bf16.msra.mxu0 0
    %5922 = vmatprep.subr.bf16.mxu0 0
    %5923 = vmatpush1.bf16.msra.mxu0 0
    %5924 = vmatprep.subr.bf16.mxu0 0
    %5925 = vmatpush1.bf16.msra.mxu0 0
    %5926 = vmatprep.subr.bf16.mxu0 0
    %5927 = vmatpush1.bf16.msra.mxu0 0
    %5928 = vmatprep.subr.bf16.mxu0 0
    %5929 = vmatpush1.bf16.msra.mxu0 0
    %5930 = vmatprep.subr.bf16.mxu0 0
    %5931 = vmatpush1.bf16.msra.mxu0 0
    %5932 = vmatprep.subr.bf16.mxu0 0
    %5933 = vmatpush1.bf16.msra.mxu0 0
    %5934 = vmatprep.subr.bf16.mxu0 0
    %5935 = vmatpush1.bf16.msra.mxu0 0
    %5936 = vmatprep.subr.bf16.mxu0 0
    %5937 = vmatpush1.bf16.msra.mxu0 0
    %5938 = vmatprep.subr.bf16.mxu0 0
    %5939 = vmatpush1.bf16.msra.mxu0 0
    %5940 = vmatprep.subr.bf16.mxu0 0
    %5941 = vmatpush1.bf16.msra.mxu0 0
    %5942 = vmatprep.subr.bf16.mxu0 0
    %5943 = vmatpush1.bf16.msra.mxu0 0
    %5944 = vmatprep.subr.bf16.mxu0 0
    %5945 = vmatpush1.bf16.msra.mxu0 0
    %5946 = vmatprep.subr.bf16.mxu0 0
    %5947 = vmatpush1.bf16.msra.mxu0 0
    %5948 = vmatprep.mubr.bf16.mxu0 0
    %5949 = vmatmul.mubr.bf16.gmra.mrb[0].mxu0 %v4810
    %v5950 = vpop.f32.mrb[0].mxu0
    %v5951 = vadd.f32 %v5911, %v5950
    %v5952 = vpop.f32.mrb[0].mxu0
    %v5953 = vpop.f32.mrb[0].mxu0
    %v5954 = vpop.f32.mrb[0].mxu0
    %5955 = vdwg.mxu0
    %v5956 = vmax.f32 %v4970, 0.0
    %v5957 = vmax.f32 %v4972, 0.0
    %v5958 = vmax.f32 %v5134, 0.0
    %v5959 = vmax.f32 %v5136, 0.0
    %v5960 = vmax.f32 %v5298, 0.0
    %v5961 = vmax.f32 %v5300, 0.0
    %v5962 = vmax.f32 %v5462, 0.0
    %v5963 = vmax.f32 %v5464, 0.0
    %v5964 = vmax.f32 %v5626, 0.0
    %v5965 = vmax.f32 %v5628, 0.0
    %v5966 = vmax.f32 %v5790, 0.0
    %v5967 = vmax.f32 %v5792, 0.0
    %v5968 = vmax.f32 %v5951, 0.0
    %v5969 = vpack.c.bf16 %v5956, %v5956
    %v5970 = vpack.c.bf16 %v5957, %v5957
    %v5971 = vpack.c.bf16 %v5958, %v5958
    %v5972 = vpack.c.bf16 %v5959, %v5959
    %v5973 = vpack.c.bf16 %v5960, %v5960
    %v5974 = vpack.c.bf16 %v5961, %v5961
    %v5975 = vpack.c.bf16 %v5962, %v5962
    %v5976 = vpack.c.bf16 %v5963, %v5963
    %v5977 = vpack.c.bf16 %v5964, %v5964
    %v5978 = vpack.c.bf16 %v5965, %v5965
    %v5979 = vpack.c.bf16 %v5966, %v5966
    %v5980 = vpack.c.bf16 %v5967, %v5967
    %v5981 = vpack.c.bf16 %v5968, %v5968
    %v5982 = vld [vmem:[#allocation9] sm:$0xf]
    %v5983 = vld [vmem:[#allocation9 + $0x4] sm:$0xf]
    %v5984 = vld [vmem:[#allocation9 + $0x8] sm:$0xf]
    %v5985 = vld [vmem:[#allocation9 + $0xc] sm:$0xf]
    %v5986 = vld [vmem:[#allocation9 + $0x10] sm:$0xf]
    %v5987 = vld [vmem:[#allocation9 + $0x14] sm:$0xf]
    %v5988 = vld [vmem:[#allocation9 + $0x18] sm:$0xf]
    %v5989 = vld [vmem:[#allocation9 + $0x1c] sm:$0xf]
    %v5990 = vld [vmem:[#allocation9 + $0x20] sm:$0xf]
    %v5991 = vld [vmem:[#allocation9 + $0x24] sm:$0xf]
    %v5992 = vld [vmem:[#allocation9 + $0x28] sm:$0xf]
    %v5993 = vld [vmem:[#allocation9 + $0x2c] sm:$0xf]
    %v5994 = vld [vmem:[#allocation9 + $0x30] sm:$0xf]
    %v5995 = vld [vmem:[#allocation9 + $0x34] sm:$0xf]
    %v5996 = vld [vmem:[#allocation9 + $0x38] sm:$0xf]
    %v5997 = vld [vmem:[#allocation9 + $0x3c] sm:$0xf]
    %v5998 = vld [vmem:[#allocation9 + $0x40] sm:$0xf]
    %v5999 = vld [vmem:[#allocation9 + $0x44] sm:$0xf]
    %v6000 = vld [vmem:[#allocation9 + $0x48] sm:$0xf]
    %v6001 = vld [vmem:[#allocation9 + $0x4c] sm:$0xf]
    %v6002 = vld [vmem:[#allocation9 + $0x50] sm:$0xf]
    %v6003 = vld [vmem:[#allocation9 + $0x54] sm:$0xf]
    %v6004 = vld [vmem:[#allocation9 + $0x58] sm:$0xf]
    %v6005 = vld [vmem:[#allocation9 + $0x5c] sm:$0xf]
    %v6006 = vld [vmem:[#allocation9 + $0x60] sm:$0xf]
    %v6007 = vld [vmem:[#allocation9 + $0x64] sm:$0xf]
    %v6008 = vld [vmem:[#allocation9 + $0x68] sm:$0xf]
    %v6009 = vld [vmem:[#allocation9 + $0x6c] sm:$0xf]
    %v6010 = vld [vmem:[#allocation9 + $0x70] sm:$0xf]
    %v6011 = vld [vmem:[#allocation9 + $0x74] sm:$0xf]
    %v6012 = vld [vmem:[#allocation9 + $0x78] sm:$0xf]
    %v6013 = vld [vmem:[#allocation9 + $0x7c] sm:$0xf]
    %v6014 = vld [vmem:[#allocation9 + $0x80] sm:$0xf]
    %v6015 = vld [vmem:[#allocation9 + $0x84] sm:$0xf]
    %v6016 = vld [vmem:[#allocation9 + $0x88] sm:$0xf]
    %v6017 = vld [vmem:[#allocation9 + $0x8c] sm:$0xf]
    %v6018 = vld [vmem:[#allocation9 + $0x90] sm:$0xf]
    %v6019 = vld [vmem:[#allocation9 + $0x94] sm:$0xf]
    %v6020 = vld [vmem:[#allocation9 + $0x98] sm:$0xf]
    %v6021 = vld [vmem:[#allocation9 + $0x9c] sm:$0xf]
    %v6022 = vld [vmem:[#allocation9 + $0xa0] sm:$0xf]
    %v6023 = vld [vmem:[#allocation9 + $0xa4] sm:$0xf]
    %v6024 = vld [vmem:[#allocation9 + $0xa8] sm:$0xf]
    %v6025 = vld [vmem:[#allocation9 + $0xac] sm:$0xf]
    %v6026 = vld [vmem:[#allocation9 + $0xb0] sm:$0xf]
    %v6027 = vld [vmem:[#allocation9 + $0xb4] sm:$0xf]
    %v6028 = vld [vmem:[#allocation9 + $0xb8] sm:$0xf]
    %v6029 = vld [vmem:[#allocation9 + $0xbc] sm:$0xf]
    %v6030 = vld [vmem:[#allocation9 + $0xc0] sm:$0xf]
    %v6031 = vld [vmem:[#allocation9 + $0xc4] sm:$0xf]
    %v6032 = vld [vmem:[#allocation9 + $0xc8] sm:$0xf]
    %v6033 = vld [vmem:[#allocation9 + $0xcc] sm:$0xf]
    %v6034 = vld [vmem:[#allocation9 + $0xd0] sm:$0xf]
    %v6035 = vld [vmem:[#allocation9 + $0xd4] sm:$0xf]
    %v6036 = vld [vmem:[#allocation9 + $0xd8] sm:$0xf]
    %v6037 = vld [vmem:[#allocation9 + $0xdc] sm:$0xf]
    %v6038 = vld [vmem:[#allocation9 + $0xe0] sm:$0xf]
    %v6039 = vld [vmem:[#allocation9 + $0xe4] sm:$0xf]
    %v6040 = vld [vmem:[#allocation9 + $0xe8] sm:$0xf]
    %v6041 = vld [vmem:[#allocation9 + $0xec] sm:$0xf]
    %v6042 = vld [vmem:[#allocation9 + $0xf0] sm:$0xf]
    %v6043 = vld [vmem:[#allocation9 + $0xf4] sm:$0xf]
    %v6044 = vld [vmem:[#allocation9 + $0xf8] sm:$0xf]
    %v6045 = vld [vmem:[#allocation9 + $0xfc] sm:$0xf]
    %v6046 = vld [vmem:[#allocation9 + $0x100] sm:$0xf]
    %v6047 = vld [vmem:[#allocation9 + $0x104] sm:$0xf]
    %v6048 = vld [vmem:[#allocation9 + $0x108] sm:$0xf]
    %v6049 = vld [vmem:[#allocation9 + $0x10c] sm:$0xf]
    %v6050 = vld [vmem:[#allocation9 + $0x110] sm:$0xf]
    %v6051 = vld [vmem:[#allocation9 + $0x114] sm:$0xf]
    %v6052 = vld [vmem:[#allocation9 + $0x118] sm:$0xf]
    %v6053 = vld [vmem:[#allocation9 + $0x11c] sm:$0xf]
    %v6054 = vld [vmem:[#allocation9 + $0x120] sm:$0xf]
    %v6055 = vld [vmem:[#allocation9 + $0x124] sm:$0xf]
    %v6056 = vld [vmem:[#allocation9 + $0x128] sm:$0xf]
    %v6057 = vld [vmem:[#allocation9 + $0x12c] sm:$0xf]
    %v6058 = vld [vmem:[#allocation9 + $0x130] sm:$0xf]
    %v6059 = vld [vmem:[#allocation9 + $0x134] sm:$0xf]
    %v6060 = vld [vmem:[#allocation9 + $0x138] sm:$0xf]
    %v6061 = vld [vmem:[#allocation9 + $0x13c] sm:$0xf]
    %v6062 = vld [vmem:[#allocation9 + $0x140] sm:$0xf]
    %v6063 = vld [vmem:[#allocation9 + $0x144] sm:$0xf]
    %v6064 = vld [vmem:[#allocation9 + $0x148] sm:$0xf]
    %v6065 = vld [vmem:[#allocation9 + $0x14c] sm:$0xf]
    %v6066 = vld [vmem:[#allocation9 + $0x150] sm:$0xf]
    %v6067 = vld [vmem:[#allocation9 + $0x154] sm:$0xf]
    %v6068 = vld [vmem:[#allocation9 + $0x158] sm:$0xf]
    %v6069 = vld [vmem:[#allocation9 + $0x15c] sm:$0xf]
    %v6070 = vld [vmem:[#allocation9 + $0x160] sm:$0xf]
    %v6071 = vld [vmem:[#allocation9 + $0x164] sm:$0xf]
    %v6072 = vld [vmem:[#allocation9 + $0x168] sm:$0xf]
    %v6073 = vld [vmem:[#allocation9 + $0x16c] sm:$0xf]
    %v6074 = vld [vmem:[#allocation9 + $0x170] sm:$0xf]
    %v6075 = vld [vmem:[#allocation9 + $0x174] sm:$0xf]
    %v6076 = vld [vmem:[#allocation9 + $0x178] sm:$0xf]
    %v6077 = vld [vmem:[#allocation9 + $0x17c] sm:$0xf]
    %v6078 = vld [vmem:[#allocation9 + $0x180] sm:$0xf]
    %v6079 = vld [vmem:[#allocation9 + $0x184] sm:$0xf]
    %v6080 = vld [vmem:[#allocation9 + $0x188] sm:$0xf]
    %v6081 = vld [vmem:[#allocation9 + $0x18c] sm:$0xf]
    %v6082 = vld [vmem:[#allocation9 + $0x190] sm:$0xf]
    %v6083 = vld [vmem:[#allocation9 + $0x194] sm:$0xf]
    %v6084 = vld [vmem:[#allocation9 + $0x198] sm:$0xf]
    %v6085 = vld [vmem:[#allocation9 + $0x19c] sm:$0xf]
    %v6086 = vld [vmem:[#allocation9 + $0x1a0] sm:$0xf]
    %v6087 = vld [vmem:[#allocation9 + $0x1a4] sm:$0xf]
    %v6088 = vld [vmem:[#allocation9 + $0x1a8] sm:$0xf]
    %v6089 = vld [vmem:[#allocation9 + $0x1ac] sm:$0xf]
    %v6090 = vld [vmem:[#allocation9 + $0x1b0] sm:$0xf]
    %v6091 = vld [vmem:[#allocation9 + $0x1b4] sm:$0xf]
    %v6092 = vld [vmem:[#allocation9 + $0x1b8] sm:$0xf]
    %v6093 = vld [vmem:[#allocation9 + $0x1bc] sm:$0xf]
    %v6094 = vld [vmem:[#allocation9 + $0x1c0] sm:$0xf]
    %v6095 = vld [vmem:[#allocation9 + $0x1c4] sm:$0xf]
    %v6096 = vld [vmem:[#allocation9 + $0x1c8] sm:$0xf]
    %v6097 = vld [vmem:[#allocation9 + $0x1cc] sm:$0xf]
    %v6098 = vld [vmem:[#allocation9 + $0x1d0] sm:$0xf]
    %v6099 = vld [vmem:[#allocation9 + $0x1d4] sm:$0xf]
    %v6100 = vld [vmem:[#allocation9 + $0x1d8] sm:$0xf]
    %v6101 = vld [vmem:[#allocation9 + $0x1dc] sm:$0xf]
    %v6102 = vld [vmem:[#allocation9 + $0x1e0] sm:$0xf]
    %v6103 = vld [vmem:[#allocation9 + $0x1e4] sm:$0xf]
    %v6104 = vld [vmem:[#allocation9 + $0x1e8] sm:$0xf]
    %v6105 = vld [vmem:[#allocation9 + $0x1ec] sm:$0xf]
    %v6106 = vld [vmem:[#allocation9 + $0x1f0] sm:$0xf]
    %v6107 = vld [vmem:[#allocation9 + $0x1f4] sm:$0xf]
    %v6108 = vld [vmem:[#allocation9 + $0x1f8] sm:$0xf]
    %v6109 = vld [vmem:[#allocation9 + $0x1fc] sm:$0xf]
    %v6110 = vld [vmem:[#allocation9 + $0x200] sm:$0xf]
    %v6111 = vld [vmem:[#allocation9 + $0x204] sm:$0xf]
    %v6112 = vld [vmem:[#allocation9 + $0x208] sm:$0xf]
    %v6113 = vld [vmem:[#allocation9 + $0x20c] sm:$0xf]
    %v6114 = vld [vmem:[#allocation9 + $0x210] sm:$0xf]
    %v6115 = vld [vmem:[#allocation9 + $0x214] sm:$0xf]
    %v6116 = vld [vmem:[#allocation9 + $0x218] sm:$0xf]
    %v6117 = vld [vmem:[#allocation9 + $0x21c] sm:$0xf]
    %v6118 = vld [vmem:[#allocation9 + $0x220] sm:$0xf]
    %v6119 = vld [vmem:[#allocation9 + $0x224] sm:$0xf]
    %v6120 = vld [vmem:[#allocation9 + $0x228] sm:$0xf]
    %v6121 = vld [vmem:[#allocation9 + $0x22c] sm:$0xf]
    %v6122 = vld [vmem:[#allocation9 + $0x230] sm:$0xf]
    %v6123 = vld [vmem:[#allocation9 + $0x234] sm:$0xf]
    %v6124 = vld [vmem:[#allocation9 + $0x238] sm:$0xf]
    %v6125 = vld [vmem:[#allocation9 + $0x23c] sm:$0xf]
    %v6126 = vld [vmem:[#allocation9 + $0x240] sm:$0xf]
    %v6127 = vld [vmem:[#allocation9 + $0x244] sm:$0xf]
    %v6128 = vld [vmem:[#allocation9 + $0x248] sm:$0xf]
    %v6129 = vld [vmem:[#allocation9 + $0x24c] sm:$0xf]
    %v6130 = vld [vmem:[#allocation9 + $0x250] sm:$0xf]
    %v6131 = vld [vmem:[#allocation9 + $0x254] sm:$0xf]
    %v6132 = vld [vmem:[#allocation9 + $0x258] sm:$0xf]
    %v6133 = vld [vmem:[#allocation9 + $0x25c] sm:$0xf]
    %v6134 = vld [vmem:[#allocation9 + $0x260] sm:$0xf]
    %v6135 = vld [vmem:[#allocation9 + $0x264] sm:$0xf]
    %v6136 = vld [vmem:[#allocation9 + $0x268] sm:$0xf]
    %v6137 = vld [vmem:[#allocation9 + $0x26c] sm:$0xf]
    %v6138 = vld [vmem:[#allocation9 + $0x270] sm:$0xf]
    %v6139 = vld [vmem:[#allocation9 + $0x274] sm:$0xf]
    %v6140 = vld [vmem:[#allocation9 + $0x278] sm:$0xf]
    %v6141 = vld [vmem:[#allocation9 + $0x27c] sm:$0xf]
    %v6142 = vld [vmem:[#allocation9 + $0x280] sm:$0xf]
    %v6143 = vld [vmem:[#allocation9 + $0x284] sm:$0xf]
    %v6144 = vld [vmem:[#allocation9 + $0x288] sm:$0xf]
    %v6145 = vld [vmem:[#allocation9 + $0x28c] sm:$0xf]
    %v6146 = vld [vmem:[#allocation9 + $0x290] sm:$0xf]
    %v6147 = vld [vmem:[#allocation9 + $0x294] sm:$0xf]
    %v6148 = vld [vmem:[#allocation9 + $0x298] sm:$0xf]
    %v6149 = vld [vmem:[#allocation9 + $0x29c] sm:$0xf]
    %v6150 = vld [vmem:[#allocation9 + $0x2a0] sm:$0xf]
    %v6151 = vld [vmem:[#allocation9 + $0x2a4] sm:$0xf]
    %v6152 = vld [vmem:[#allocation9 + $0x2a8] sm:$0xf]
    %v6153 = vld [vmem:[#allocation9 + $0x2ac] sm:$0xf]
    %v6154 = vld [vmem:[#allocation9 + $0x2b0] sm:$0xf]
    %v6155 = vld [vmem:[#allocation9 + $0x2b4] sm:$0xf]
    %v6156 = vld [vmem:[#allocation9 + $0x2b8] sm:$0xf]
    %v6157 = vld [vmem:[#allocation9 + $0x2bc] sm:$0xf]
    %v6158 = vld [vmem:[#allocation9 + $0x2c0] sm:$0xf]
    %v6159 = vld [vmem:[#allocation9 + $0x2c4] sm:$0xf]
    %v6160 = vld [vmem:[#allocation9 + $0x2c8] sm:$0xf]
    %v6161 = vld [vmem:[#allocation9 + $0x2cc] sm:$0xf]
    %v6162 = vld [vmem:[#allocation9 + $0x2d0] sm:$0xf]
    %v6163 = vld [vmem:[#allocation9 + $0x2d4] sm:$0xf]
    %v6164 = vld [vmem:[#allocation9 + $0x2d8] sm:$0xf]
    %v6165 = vld [vmem:[#allocation9 + $0x2dc] sm:$0xf]
    %v6166 = vld [vmem:[#allocation9 + $0x2e0] sm:$0xf]
    %v6167 = vld [vmem:[#allocation9 + $0x2e4] sm:$0xf]
    %v6168 = vld [vmem:[#allocation9 + $0x2e8] sm:$0xf]
    %v6169 = vld [vmem:[#allocation9 + $0x2ec] sm:$0xf]
    %v6170 = vld [vmem:[#allocation9 + $0x2f0] sm:$0xf]
    %v6171 = vld [vmem:[#allocation9 + $0x2f4] sm:$0xf]
    %v6172 = vld [vmem:[#allocation9 + $0x2f8] sm:$0xf]
    %v6173 = vld [vmem:[#allocation9 + $0x2fc] sm:$0xf]
    %v6174 = vld [vmem:[#allocation9 + $0x300] sm:$0xf]
    %v6175 = vld [vmem:[#allocation9 + $0x304] sm:$0xf]
    %v6176 = vld [vmem:[#allocation9 + $0x308] sm:$0xf]
    %v6177 = vld [vmem:[#allocation9 + $0x30c] sm:$0xf]
    %v6178 = vld [vmem:[%s1] sm:$0xf]
    %v6179 = vld [vmem:[#allocation10] sm:$0x7]
    %vm6180 = vcmask 39936
    %v6182 = vsel %vm6180, %v6178, 0
    %vm6184 = vcmask 1042432
    %v6185 = vsel %vm618, 4294967295, 65535
    %v6186 = vsel %vm6184, %v6185, 0
    %v6188 = vand.u32 %v6179, %v6186
    %6190 = vmatprep.subr.bf16.mxu0 0
    %6191 = vmatpush1.bf16.msra.mxu0 %v6188
    %6192 = vmatprep.subr.bf16.mxu0 0
    %6193 = vmatpush1.bf16.msra.mxu0 0
    %6194 = vmatprep.subr.bf16.mxu0 0
    %6195 = vmatpush1.bf16.msra.mxu0 0
    %6196 = vmatprep.subr.bf16.mxu0 0
    %6197 = vmatpush1.bf16.msra.mxu0 0
    %6198 = vmatprep.subr.bf16.mxu0 0
    %6199 = vmatpush1.bf16.msra.mxu0 0
    %6200 = vmatprep.subr.bf16.mxu0 0
    %6201 = vmatpush1.bf16.msra.mxu0 0
    %6202 = vmatprep.subr.bf16.mxu0 0
    %6203 = vmatpush1.bf16.msra.mxu0 0
    %6204 = vmatprep.subr.bf16.mxu0 0
    %6205 = vmatpush1.bf16.msra.mxu0 0
    %6206 = vmatprep.subr.bf16.mxu0 0
    %6207 = vmatpush1.bf16.msra.mxu0 0
    %6208 = vmatprep.subr.bf16.mxu0 0
    %6209 = vmatpush1.bf16.msra.mxu0 0
    %6210 = vmatprep.subr.bf16.mxu0 0
    %6211 = vmatpush1.bf16.msra.mxu0 0
    %6212 = vmatprep.subr.bf16.mxu0 0
    %6213 = vmatpush1.bf16.msra.mxu0 0
    %6214 = vmatprep.subr.bf16.mxu0 0
    %6215 = vmatpush1.bf16.msra.mxu0 0
    %6216 = vmatprep.subr.bf16.mxu0 0
    %6217 = vmatpush1.bf16.msra.mxu0 0
    %6218 = vmatprep.subr.bf16.mxu0 0
    %6219 = vmatpush1.bf16.msra.mxu0 0
    %6220 = vmatprep.subr.bf16.mxu0 0
    %6221 = vmatpush1.bf16.msra.mxu0 0
    %6222 = vmatprep.mubr.bf16.mxu0 0
    %6223 = vmatmul.mubr.bf16.gmra.mrb[0].mxu0 %v6182
    %v6224 = vpop.f32.mrb[0].mxu0
    %v6225 = vadd.f32 0.0, %v6224
    %v6226 = vpop.f32.mrb[0].mxu0
    %v6227 = vpop.f32.mrb[0].mxu0
    %v6228 = vpop.f32.mrb[0].mxu0
    %6229 = vdwg.mxu0
    %v6426 = vunpack.c.l.b16 %v5982
    %v6427 = vunpack.c.l.b16 %v5983
    %v6428 = vunpack.c.l.b16 %v5984
    %v6429 = vunpack.c.l.b16 %v5985
    %v6430 = vunpack.c.l.b16 %v5986
    %v6431 = vunpack.c.l.b16 %v5987
    %v6432 = vunpack.c.l.b16 %v5988
    %v6433 = vunpack.c.l.b16 %v5989
    %v6434 = vunpack.c.l.b16 %v5990
    %v6435 = vunpack.c.l.b16 %v5991
    %v6436 = vunpack.c.l.b16 %v5992
    %v6437 = vunpack.c.l.b16 %v5993
    %v6438 = vunpack.c.l.b16 %v5994
    %v6439 = vunpack.c.l.b16 %v5995
    %v6440 = vunpack.c.l.b16 %v5996
    %v6441 = vunpack.c.l.b16 %v5997
    %v6442 = vunpack.c.l.b16 %v5998
    %v6443 = vunpack.c.l.b16 %v5999
    %v6444 = vunpack.c.l.b16 %v6000
    %v6445 = vunpack.c.l.b16 %v6001
    %v6446 = vunpack.c.l.b16 %v6002
    %v6447 = vunpack.c.l.b16 %v6003
    %v6448 = vunpack.c.l.b16 %v6004
    %v6449 = vunpack.c.l.b16 %v6005
    %v6450 = vunpack.c.l.b16 %v6006
    %v6451 = vunpack.c.l.b16 %v6007
    %v6452 = vunpack.c.l.b16 %v6008
    %v6453 = vunpack.c.l.b16 %v6009
    %v6454 = vunpack.c.l.b16 %v6010
    %v6455 = vunpack.c.l.b16 %v6011
    %v6456 = vunpack.c.l.b16 %v6012
    %v6457 = vunpack.c.l.b16 %v6013
    %v6458 = vunpack.c.l.b16 %v6014
    %v6459 = vunpack.c.l.b16 %v6015
    %v6460 = vunpack.c.l.b16 %v6016
    %v6461 = vunpack.c.l.b16 %v6017
    %v6462 = vunpack.c.l.b16 %v6018
    %v6463 = vunpack.c.l.b16 %v6019
    %v6464 = vunpack.c.l.b16 %v6020
    %v6465 = vunpack.c.l.b16 %v6021
    %v6466 = vunpack.c.l.b16 %v6022
    %v6467 = vunpack.c.l.b16 %v6023
    %v6468 = vunpack.c.l.b16 %v6024
    %v6469 = vunpack.c.l.b16 %v6025
    %v6470 = vunpack.c.l.b16 %v6026
    %v6471 = vunpack.c.l.b16 %v6027
    %v6472 = vunpack.c.l.b16 %v6028
    %v6473 = vunpack.c.l.b16 %v6029
    %v6474 = vunpack.c.l.b16 %v6030
    %v6475 = vunpack.c.l.b16 %v6031
    %v6476 = vunpack.c.l.b16 %v6032
    %v6477 = vunpack.c.l.b16 %v6033
    %v6478 = vunpack.c.l.b16 %v6034
    %v6479 = vunpack.c.l.b16 %v6035
    %v6480 = vunpack.c.l.b16 %v6036
    %v6481 = vunpack.c.l.b16 %v6037
    %v6482 = vunpack.c.l.b16 %v6038
    %v6483 = vunpack.c.l.b16 %v6039
    %v6484 = vunpack.c.l.b16 %v6040
    %v6485 = vunpack.c.l.b16 %v6041
    %v6486 = vunpack.c.l.b16 %v6042
    %v6487 = vunpack.c.l.b16 %v6043
    %v6488 = vunpack.c.l.b16 %v6044
    %v6489 = vunpack.c.l.b16 %v6045
    %v6490 = vunpack.c.l.b16 %v6046
    %v6491 = vunpack.c.l.b16 %v6047
    %v6492 = vunpack.c.l.b16 %v6048
    %v6493 = vunpack.c.l.b16 %v6049
    %v6494 = vunpack.c.l.b16 %v6050
    %v6495 = vunpack.c.l.b16 %v6051
    %v6496 = vunpack.c.l.b16 %v6052
    %v6497 = vunpack.c.l.b16 %v6053
    %v6498 = vunpack.c.l.b16 %v6054
    %v6499 = vunpack.c.l.b16 %v6055
    %v6500 = vunpack.c.l.b16 %v6056
    %v6501 = vunpack.c.l.b16 %v6057
    %v6502 = vunpack.c.l.b16 %v6058
    %v6503 = vunpack.c.l.b16 %v6059
    %v6504 = vunpack.c.l.b16 %v6060
    %v6505 = vunpack.c.l.b16 %v6061
    %v6506 = vunpack.c.l.b16 %v6062
    %v6507 = vunpack.c.l.b16 %v6063
    %v6508 = vunpack.c.l.b16 %v6064
    %v6509 = vunpack.c.l.b16 %v6065
    %v6510 = vunpack.c.l.b16 %v6066
    %v6511 = vunpack.c.l.b16 %v6067
    %v6512 = vunpack.c.l.b16 %v6068
    %v6513 = vunpack.c.l.b16 %v6069
    %v6514 = vunpack.c.l.b16 %v6070
    %v6515 = vunpack.c.l.b16 %v6071
    %v6516 = vunpack.c.l.b16 %v6072
    %v6517 = vunpack.c.l.b16 %v6073
    %v6518 = vunpack.c.l.b16 %v6074
    %v6519 = vunpack.c.l.b16 %v6075
    %v6520 = vunpack.c.l.b16 %v6076
    %v6521 = vunpack.c.l.b16 %v6077
    %v6522 = vunpack.c.l.b16 %v6078
    %v6523 = vunpack.c.l.b16 %v6079
    %v6524 = vunpack.c.l.b16 %v6080
    %v6525 = vunpack.c.l.b16 %v6081
    %v6526 = vunpack.c.l.b16 %v6082
    %v6527 = vunpack.c.l.b16 %v6083
    %v6528 = vunpack.c.l.b16 %v6084
    %v6529 = vunpack.c.l.b16 %v6085
    %v6530 = vunpack.c.l.b16 %v6086
    %v6531 = vunpack.c.l.b16 %v6087
    %v6532 = vunpack.c.l.b16 %v6088
    %v6533 = vunpack.c.l.b16 %v6089
    %v6534 = vunpack.c.l.b16 %v6090
    %v6535 = vunpack.c.l.b16 %v6091
    %v6536 = vunpack.c.l.b16 %v6092
    %v6537 = vunpack.c.l.b16 %v6093
    %v6538 = vunpack.c.l.b16 %v6094
    %v6539 = vunpack.c.l.b16 %v6095
    %v6540 = vunpack.c.l.b16 %v6096
    %v6541 = vunpack.c.l.b16 %v6097
    %v6542 = vunpack.c.l.b16 %v6098
    %v6543 = vunpack.c.l.b16 %v6099
    %v6544 = vunpack.c.l.b16 %v6100
    %v6545 = vunpack.c.l.b16 %v6101
    %v6546 = vunpack.c.l.b16 %v6102
    %v6547 = vunpack.c.l.b16 %v6103
    %v6548 = vunpack.c.l.b16 %v6104
    %v6549 = vunpack.c.l.b16 %v6105
    %v6550 = vunpack.c.l.b16 %v6106
    %v6551 = vunpack.c.l.b16 %v6107
    %v6552 = vunpack.c.l.b16 %v6108
    %v6553 = vunpack.c.l.b16 %v6109
    %v6554 = vunpack.c.l.b16 %v6110
    %v6555 = vunpack.c.l.b16 %v6111
    %v6556 = vunpack.c.l.b16 %v6112
    %v6557 = vunpack.c.l.b16 %v6113
    %v6558 = vunpack.c.l.b16 %v6114
    %v6559 = vunpack.c.l.b16 %v6115
    %v6560 = vunpack.c.l.b16 %v6116
    %v6561 = vunpack.c.l.b16 %v6117
    %v6562 = vunpack.c.l.b16 %v6118
    %v6563 = vunpack.c.l.b16 %v6119
    %v6564 = vunpack.c.l.b16 %v6120
    %v6565 = vunpack.c.l.b16 %v6121
    %v6566 = vunpack.c.l.b16 %v6122
    %v6567 = vunpack.c.l.b16 %v6123
    %v6568 = vunpack.c.l.b16 %v6124
    %v6569 = vunpack.c.l.b16 %v6125
    %v6570 = vunpack.c.l.b16 %v6126
    %v6571 = vunpack.c.l.b16 %v6127
    %v6572 = vunpack.c.l.b16 %v6128
    %v6573 = vunpack.c.l.b16 %v6129
    %v6574 = vunpack.c.l.b16 %v6130
    %v6575 = vunpack.c.l.b16 %v6131
    %v6576 = vunpack.c.l.b16 %v6132
    %v6577 = vunpack.c.l.b16 %v6133
    %v6578 = vunpack.c.l.b16 %v6134
    %v6579 = vunpack.c.l.b16 %v6135
    %v6580 = vunpack.c.l.b16 %v6136
    %v6581 = vunpack.c.l.b16 %v6137
    %v6582 = vunpack.c.l.b16 %v6138
    %v6583 = vunpack.c.l.b16 %v6139
    %v6584 = vunpack.c.l.b16 %v6140
    %v6585 = vunpack.c.l.b16 %v6141
    %v6586 = vunpack.c.l.b16 %v6142
    %v6587 = vunpack.c.l.b16 %v6143
    %v6588 = vunpack.c.l.b16 %v6144
    %v6589 = vunpack.c.l.b16 %v6145
    %v6590 = vunpack.c.l.b16 %v6146
    %v6591 = vunpack.c.l.b16 %v6147
    %v6592 = vunpack.c.l.b16 %v6148
    %v6593 = vunpack.c.l.b16 %v6149
    %v6594 = vunpack.c.l.b16 %v6150
    %v6595 = vunpack.c.l.b16 %v6151
    %v6596 = vunpack.c.l.b16 %v6152
    %v6597 = vunpack.c.l.b16 %v6153
    %v6598 = vunpack.c.l.b16 %v6154
    %v6599 = vunpack.c.l.b16 %v6155
    %v6600 = vunpack.c.l.b16 %v6156
    %v6601 = vunpack.c.l.b16 %v6157
    %v6602 = vunpack.c.l.b16 %v6158
    %v6603 = vunpack.c.l.b16 %v6159
    %v6604 = vunpack.c.l.b16 %v6160
    %v6605 = vunpack.c.l.b16 %v6161
    %v6606 = vunpack.c.l.b16 %v6162
    %v6607 = vunpack.c.l.b16 %v6163
    %v6608 = vunpack.c.l.b16 %v6164
    %v6609 = vunpack.c.l.b16 %v6165
    %v6610 = vunpack.c.l.b16 %v6166
    %v6611 = vunpack.c.l.b16 %v6167
    %v6612 = vunpack.c.l.b16 %v6168
    %v6613 = vunpack.c.l.b16 %v6169
    %v6614 = vunpack.c.l.b16 %v6170
    %v6615 = vunpack.c.l.b16 %v6171
    %v6616 = vunpack.c.l.b16 %v6172
    %v6617 = vunpack.c.l.b16 %v6173
    %v6618 = vunpack.c.l.b16 %v6174
    %v6619 = vunpack.c.l.b16 %v6175
    %v6620 = vunpack.c.l.b16 %v6176
    %v6621 = vunpack.c.l.b16 %v6177
    %v6622 = vpack.c.b16 %v6427, %v6426
    %v6623 = vpack.c.b16 %v6429, %v6428
    %v6624 = vpack.c.b16 %v6431, %v6430
    %v6625 = vpack.c.b16 %v6433, %v6432
    %v6626 = vpack.c.b16 %v6435, %v6434
    %v6627 = vpack.c.b16 %v6437, %v6436
    %v6628 = vpack.c.b16 %v6439, %v6438
    %v6629 = vpack.c.b16 %v6441, %v6440
    %v6630 = vpack.c.b16 %v6443, %v6442
    %v6631 = vpack.c.b16 %v6445, %v6444
    %v6632 = vpack.c.b16 %v6447, %v6446
    %v6633 = vpack.c.b16 %v6449, %v6448
    %v6634 = vpack.c.b16 %v6451, %v6450
    %v6635 = vpack.c.b16 %v6453, %v6452
    %v6636 = vpack.c.b16 %v6455, %v6454
    %v6637 = vpack.c.b16 %v6457, %v6456
    %v6638 = vpack.c.b16 %v6459, %v6458
    %v6639 = vpack.c.b16 %v6461, %v6460
    %v6640 = vpack.c.b16 %v6463, %v6462
    %v6641 = vpack.c.b16 %v6465, %v6464
    %v6642 = vpack.c.b16 %v6467, %v6466
    %v6643 = vpack.c.b16 %v6469, %v6468
    %v6644 = vpack.c.b16 %v6471, %v6470
    %v6645 = vpack.c.b16 %v6473, %v6472
    %v6646 = vpack.c.b16 %v6475, %v6474
    %v6647 = vpack.c.b16 %v6477, %v6476
    %v6648 = vpack.c.b16 %v6479, %v6478
    %v6649 = vpack.c.b16 %v6481, %v6480
    %v6650 = vpack.c.b16 %v6483, %v6482
    %v6651 = vpack.c.b16 %v6485, %v6484
    %v6652 = vpack.c.b16 %v6487, %v6486
    %v6653 = vpack.c.b16 %v6489, %v6488
    %v6654 = vpack.c.b16 %v6491, %v6490
    %v6655 = vpack.c.b16 %v6493, %v6492
    %v6656 = vpack.c.b16 %v6495, %v6494
    %v6657 = vpack.c.b16 %v6497, %v6496
    %v6658 = vpack.c.b16 %v6499, %v6498
    %v6659 = vpack.c.b16 %v6501, %v6500
    %v6660 = vpack.c.b16 %v6503, %v6502
    %v6661 = vpack.c.b16 %v6505, %v6504
    %v6662 = vpack.c.b16 %v6507, %v6506
    %v6663 = vpack.c.b16 %v6509, %v6508
    %v6664 = vpack.c.b16 %v6511, %v6510
    %v6665 = vpack.c.b16 %v6513, %v6512
    %v6666 = vpack.c.b16 %v6515, %v6514
    %v6667 = vpack.c.b16 %v6517, %v6516
    %v6668 = vpack.c.b16 %v6519, %v6518
    %v6669 = vpack.c.b16 %v6521, %v6520
    %v6670 = vpack.c.b16 %v6523, %v6522
    %v6671 = vpack.c.b16 %v6525, %v6524
    %v6672 = vpack.c.b16 %v6527, %v6526
    %v6673 = vpack.c.b16 %v6529, %v6528
    %v6674 = vpack.c.b16 %v6531, %v6530
    %v6675 = vpack.c.b16 %v6533, %v6532
    %v6676 = vpack.c.b16 %v6535, %v6534
    %v6677 = vpack.c.b16 %v6537, %v6536
    %v6678 = vpack.c.b16 %v6539, %v6538
    %v6679 = vpack.c.b16 %v6541, %v6540
    %v6680 = vpack.c.b16 %v6543, %v6542
    %v6681 = vpack.c.b16 %v6545, %v6544
    %v6682 = vpack.c.b16 %v6547, %v6546
    %v6683 = vpack.c.b16 %v6549, %v6548
    %v6684 = vpack.c.b16 %v6551, %v6550
    %v6685 = vpack.c.b16 %v6553, %v6552
    %v6686 = vpack.c.b16 %v6555, %v6554
    %v6687 = vpack.c.b16 %v6557, %v6556
    %v6688 = vpack.c.b16 %v6559, %v6558
    %v6689 = vpack.c.b16 %v6561, %v6560
    %v6690 = vpack.c.b16 %v6563, %v6562
    %v6691 = vpack.c.b16 %v6565, %v6564
    %v6692 = vpack.c.b16 %v6567, %v6566
    %v6693 = vpack.c.b16 %v6569, %v6568
    %v6694 = vpack.c.b16 %v6571, %v6570
    %v6695 = vpack.c.b16 %v6573, %v6572
    %v6696 = vpack.c.b16 %v6575, %v6574
    %v6697 = vpack.c.b16 %v6577, %v6576
    %v6698 = vpack.c.b16 %v6579, %v6578
    %v6699 = vpack.c.b16 %v6581, %v6580
    %v6700 = vpack.c.b16 %v6583, %v6582
    %v6701 = vpack.c.b16 %v6585, %v6584
    %v6702 = vpack.c.b16 %v6587, %v6586
    %v6703 = vpack.c.b16 %v6589, %v6588
    %v6704 = vpack.c.b16 %v6591, %v6590
    %v6705 = vpack.c.b16 %v6593, %v6592
    %v6706 = vpack.c.b16 %v6595, %v6594
    %v6707 = vpack.c.b16 %v6597, %v6596
    %v6708 = vpack.c.b16 %v6599, %v6598
    %v6709 = vpack.c.b16 %v6601, %v6600
    %v6710 = vpack.c.b16 %v6603, %v6602
    %v6711 = vpack.c.b16 %v6605, %v6604
    %v6712 = vpack.c.b16 %v6607, %v6606
    %v6713 = vpack.c.b16 %v6609, %v6608
    %v6714 = vpack.c.b16 %v6611, %v6610
    %v6715 = vpack.c.b16 %v6613, %v6612
    %v6716 = vpack.c.b16 %v6615, %v6614
    %v6717 = vpack.c.b16 %v6617, %v6616
    %v6718 = vpack.c.b16 %v6619, %v6618
    %v6719 = vpack.c.b16 %v6621, %v6620
    %vm6818 = vcmask 261120
    %v6820 = vsel %vm6818, %v5981, 0
    %6822 = vmatprep.subr.bf16.mxu0 0
    %6823 = vmatpush1.bf16.msra.mxu0 %v6622
    %6824 = vmatprep.subr.bf16.mxu0 0
    %6825 = vmatpush1.bf16.msra.mxu0 %v6623
    %6826 = vmatprep.subr.bf16.mxu0 0
    %6827 = vmatpush1.bf16.msra.mxu0 %v6624
    %6828 = vmatprep.subr.bf16.mxu0 0
    %6829 = vmatpush1.bf16.msra.mxu0 %v6625
    %6830 = vmatprep.subr.bf16.mxu0 0
    %6831 = vmatpush1.bf16.msra.mxu0 %v6626
    %6832 = vmatprep.subr.bf16.mxu0 0
    %6833 = vmatpush1.bf16.msra.mxu0 %v6627
    %6834 = vmatprep.subr.bf16.mxu0 0
    %6835 = vmatpush1.bf16.msra.mxu0 %v6628
    %6836 = vmatprep.subr.bf16.mxu0 0
    %6837 = vmatpush1.bf16.msra.mxu0 %v6629
    %6838 = vmatprep.subr.bf16.mxu0 0
    %6839 = vmatpush1.bf16.msra.mxu0 %v6630
    %6840 = vmatprep.subr.bf16.mxu0 0
    %6841 = vmatpush1.bf16.msra.mxu0 %v6631
    %6842 = vmatprep.subr.bf16.mxu0 0
    %6843 = vmatpush1.bf16.msra.mxu0 %v6632
    %6844 = vmatprep.subr.bf16.mxu0 0
    %6845 = vmatpush1.bf16.msra.mxu0 %v6633
    %6846 = vmatprep.subr.bf16.mxu0 0
    %6847 = vmatpush1.bf16.msra.mxu0 %v6634
    %6848 = vmatprep.subr.bf16.mxu0 0
    %6849 = vmatpush1.bf16.msra.mxu0 %v6635
    %6850 = vmatprep.subr.bf16.mxu0 0
    %6851 = vmatpush1.bf16.msra.mxu0 %v6636
    %6852 = vmatprep.subr.bf16.mxu0 0
    %6853 = vmatpush1.bf16.msra.mxu0 %v6637
    %6854 = vmatprep.mubr.bf16.mxu0 %v5970
    %6855 = vmatmul.mubr.bf16.gmra.mrb[0].mxu0 %v5969
    %v6856 = vpop.f32.mrb[0].mxu0
    %v6857 = vadd.f32 %v6225, %v6856
    %v6858 = vpop.f32.mrb[0].mxu0
    %v6859 = vpop.f32.mrb[0].mxu0
    %v6860 = vpop.f32.mrb[0].mxu0
    %6861 = vdwg.mxu0
    %6862 = vmatprep.subr.bf16.mxu0 0
    %6863 = vmatpush1.bf16.msra.mxu0 %v6638
    %6864 = vmatprep.subr.bf16.mxu0 0
    %6865 = vmatpush1.bf16.msra.mxu0 %v6639
    %6866 = vmatprep.subr.bf16.mxu0 0
    %6867 = vmatpush1.bf16.msra.mxu0 %v6640
    %6868 = vmatprep.subr.bf16.mxu0 0
    %6869 = vmatpush1.bf16.msra.mxu0 %v6641
    %6870 = vmatprep.subr.bf16.mxu0 0
    %6871 = vmatpush1.bf16.msra.mxu0 %v6642
    %6872 = vmatprep.subr.bf16.mxu0 0
    %6873 = vmatpush1.bf16.msra.mxu0 %v6643
    %6874 = vmatprep.subr.bf16.mxu0 0
    %6875 = vmatpush1.bf16.msra.mxu0 %v6644
    %6876 = vmatprep.subr.bf16.mxu0 0
    %6877 = vmatpush1.bf16.msra.mxu0 %v6645
    %6878 = vmatprep.subr.bf16.mxu0 0
    %6879 = vmatpush1.bf16.msra.mxu0 %v6646
    %6880 = vmatprep.subr.bf16.mxu0 0
    %6881 = vmatpush1.bf16.msra.mxu0 %v6647
    %6882 = vmatprep.subr.bf16.mxu0 0
    %6883 = vmatpush1.bf16.msra.mxu0 %v6648
    %6884 = vmatprep.subr.bf16.mxu0 0
    %6885 = vmatpush1.bf16.msra.mxu0 %v6649
    %6886 = vmatprep.subr.bf16.mxu0 0
    %6887 = vmatpush1.bf16.msra.mxu0 %v6650
    %6888 = vmatprep.subr.bf16.mxu0 0
    %6889 = vmatpush1.bf16.msra.mxu0 %v6651
    %6890 = vmatprep.subr.bf16.mxu0 0
    %6891 = vmatpush1.bf16.msra.mxu0 %v6652
    %6892 = vmatprep.subr.bf16.mxu0 0
    %6893 = vmatpush1.bf16.msra.mxu0 %v6653
    %6894 = vmatprep.mubr.bf16.mxu0 %v5972
    %6895 = vmatmul.mubr.bf16.gmra.mrb[0].mxu0 %v5971
    %v6896 = vpop.f32.mrb[0].mxu0
    %v6897 = vadd.f32 %v6857, %v6896
    %v6898 = vpop.f32.mrb[0].mxu0
    %v6899 = vpop.f32.mrb[0].mxu0
    %v6900 = vpop.f32.mrb[0].mxu0
    %6901 = vdwg.mxu0
    %6902 = vmatprep.subr.bf16.mxu0 0
    %6903 = vmatpush1.bf16.msra.mxu0 %v6654
    %6904 = vmatprep.subr.bf16.mxu0 0
    %6905 = vmatpush1.bf16.msra.mxu0 %v6655
    %6906 = vmatprep.subr.bf16.mxu0 0
    %6907 = vmatpush1.bf16.msra.mxu0 %v6656
    %6908 = vmatprep.subr.bf16.mxu0 0
    %6909 = vmatpush1.bf16.msra.mxu0 %v6657
    %6910 = vmatprep.subr.bf16.mxu0 0
    %6911 = vmatpush1.bf16.msra.mxu0 %v6658
    %6912 = vmatprep.subr.bf16.mxu0 0
    %6913 = vmatpush1.bf16.msra.mxu0 %v6659
    %6914 = vmatprep.subr.bf16.mxu0 0
    %6915 = vmatpush1.bf16.msra.mxu0 %v6660
    %6916 = vmatprep.subr.bf16.mxu0 0
    %6917 = vmatpush1.bf16.msra.mxu0 %v6661
    %6918 = vmatprep.subr.bf16.mxu0 0
    %6919 = vmatpush1.bf16.msra.mxu0 %v6662
    %6920 = vmatprep.subr.bf16.mxu0 0
    %6921 = vmatpush1.bf16.msra.mxu0 %v6663
    %6922 = vmatprep.subr.bf16.mxu0 0
    %6923 = vmatpush1.bf16.msra.mxu0 %v6664
    %6924 = vmatprep.subr.bf16.mxu0 0
    %6925 = vmatpush1.bf16.msra.mxu0 %v6665
    %6926 = vmatprep.subr.bf16.mxu0 0
    %6927 = vmatpush1.bf16.msra.mxu0 %v6666
    %6928 = vmatprep.subr.bf16.mxu0 0
    %6929 = vmatpush1.bf16.msra.mxu0 %v6667
    %6930 = vmatprep.subr.bf16.mxu0 0
    %6931 = vmatpush1.bf16.msra.mxu0 %v6668
    %6932 = vmatprep.subr.bf16.mxu0 0
    %6933 = vmatpush1.bf16.msra.mxu0 %v6669
    %6934 = vmatprep.mubr.bf16.mxu0 %v5974
    %6935 = vmatmul.mubr.bf16.gmra.mrb[0].mxu0 %v5973
    %v6936 = vpop.f32.mrb[0].mxu0
    %v6937 = vadd.f32 %v6897, %v6936
    %v6938 = vpop.f32.mrb[0].mxu0
    %v6939 = vpop.f32.mrb[0].mxu0
    %v6940 = vpop.f32.mrb[0].mxu0
    %6941 = vdwg.mxu0
    %6942 = vmatprep.subr.bf16.mxu0 0
    %6943 = vmatpush1.bf16.msra.mxu0 %v6670
    %6944 = vmatprep.subr.bf16.mxu0 0
    %6945 = vmatpush1.bf16.msra.mxu0 %v6671
    %6946 = vmatprep.subr.bf16.mxu0 0
    %6947 = vmatpush1.bf16.msra.mxu0 %v6672
    %6948 = vmatprep.subr.bf16.mxu0 0
    %6949 = vmatpush1.bf16.msra.mxu0 %v6673
    %6950 = vmatprep.subr.bf16.mxu0 0
    %6951 = vmatpush1.bf16.msra.mxu0 %v6674
    %6952 = vmatprep.subr.bf16.mxu0 0
    %6953 = vmatpush1.bf16.msra.mxu0 %v6675
    %6954 = vmatprep.subr.bf16.mxu0 0
    %6955 = vmatpush1.bf16.msra.mxu0 %v6676
    %6956 = vmatprep.subr.bf16.mxu0 0
    %6957 = vmatpush1.bf16.msra.mxu0 %v6677
    %6958 = vmatprep.subr.bf16.mxu0 0
    %6959 = vmatpush1.bf16.msra.mxu0 %v6678
    %6960 = vmatprep.subr.bf16.mxu0 0
    %6961 = vmatpush1.bf16.msra.mxu0 %v6679
    %6962 = vmatprep.subr.bf16.mxu0 0
    %6963 = vmatpush1.bf16.msra.mxu0 %v6680
    %6964 = vmatprep.subr.bf16.mxu0 0
    %6965 = vmatpush1.bf16.msra.mxu0 %v6681
    %6966 = vmatprep.subr.bf16.mxu0 0
    %6967 = vmatpush1.bf16.msra.mxu0 %v6682
    %6968 = vmatprep.subr.bf16.mxu0 0
    %6969 = vmatpush1.bf16.msra.mxu0 %v6683
    %6970 = vmatprep.subr.bf16.mxu0 0
    %6971 = vmatpush1.bf16.msra.mxu0 %v6684
    %6972 = vmatprep.subr.bf16.mxu0 0
    %6973 = vmatpush1.bf16.msra.mxu0 %v6685
    %6974 = vmatprep.mubr.bf16.mxu0 %v5976
    %6975 = vmatmul.mubr.bf16.gmra.mrb[0].mxu0 %v5975
    %v6976 = vpop.f32.mrb[0].mxu0
    %v6977 = vadd.f32 %v6937, %v6976
    %v6978 = vpop.f32.mrb[0].mxu0
    %v6979 = vpop.f32.mrb[0].mxu0
    %v6980 = vpop.f32.mrb[0].mxu0
    %6981 = vdwg.mxu0
    %6982 = vmatprep.subr.bf16.mxu0 0
    %6983 = vmatpush1.bf16.msra.mxu0 %v6686
    %6984 = vmatprep.subr.bf16.mxu0 0
    %6985 = vmatpush1.bf16.msra.mxu0 %v6687
    %6986 = vmatprep.subr.bf16.mxu0 0
    %6987 = vmatpush1.bf16.msra.mxu0 %v6688
    %6988 = vmatprep.subr.bf16.mxu0 0
    %6989 = vmatpush1.bf16.msra.mxu0 %v6689
    %6990 = vmatprep.subr.bf16.mxu0 0
    %6991 = vmatpush1.bf16.msra.mxu0 %v6690
    %6992 = vmatprep.subr.bf16.mxu0 0
    %6993 = vmatpush1.bf16.msra.mxu0 %v6691
    %6994 = vmatprep.subr.bf16.mxu0 0
    %6995 = vmatpush1.bf16.msra.mxu0 %v6692
    %6996 = vmatprep.subr.bf16.mxu0 0
    %6997 = vmatpush1.bf16.msra.mxu0 %v6693
    %6998 = vmatprep.subr.bf16.mxu0 0
    %6999 = vmatpush1.bf16.msra.mxu0 %v6694
    %7000 = vmatprep.subr.bf16.mxu0 0
    %7001 = vmatpush1.bf16.msra.mxu0 %v6695
    %7002 = vmatprep.subr.bf16.mxu0 0
    %7003 = vmatpush1.bf16.msra.mxu0 %v6696
    %7004 = vmatprep.subr.bf16.mxu0 0
    %7005 = vmatpush1.bf16.msra.mxu0 %v6697
    %7006 = vmatprep.subr.bf16.mxu0 0
    %7007 = vmatpush1.bf16.msra.mxu0 %v6698
    %7008 = vmatprep.subr.bf16.mxu0 0
    %7009 = vmatpush1.bf16.msra.mxu0 %v6699
    %7010 = vmatprep.subr.bf16.mxu0 0
    %7011 = vmatpush1.bf16.msra.mxu0 %v6700
    %7012 = vmatprep.subr.bf16.mxu0 0
    %7013 = vmatpush1.bf16.msra.mxu0 %v6701
    %7014 = vmatprep.mubr.bf16.mxu0 %v5978
    %7015 = vmatmul.mubr.bf16.gmra.mrb[0].mxu0 %v5977
    %v7016 = vpop.f32.mrb[0].mxu0
    %v7017 = vadd.f32 %v6977, %v7016
    %v7018 = vpop.f32.mrb[0].mxu0
    %v7019 = vpop.f32.mrb[0].mxu0
    %v7020 = vpop.f32.mrb[0].mxu0
    %7021 = vdwg.mxu0
    %7022 = vmatprep.subr.bf16.mxu0 0
    %7023 = vmatpush1.bf16.msra.mxu0 %v6702
    %7024 = vmatprep.subr.bf16.mxu0 0
    %7025 = vmatpush1.bf16.msra.mxu0 %v6703
    %7026 = vmatprep.subr.bf16.mxu0 0
    %7027 = vmatpush1.bf16.msra.mxu0 %v6704
    %7028 = vmatprep.subr.bf16.mxu0 0
    %7029 = vmatpush1.bf16.msra.mxu0 %v6705
    %7030 = vmatprep.subr.bf16.mxu0 0
    %7031 = vmatpush1.bf16.msra.mxu0 %v6706
    %7032 = vmatprep.subr.bf16.mxu0 0
    %7033 = vmatpush1.bf16.msra.mxu0 %v6707
    %7034 = vmatprep.subr.bf16.mxu0 0
    %7035 = vmatpush1.bf16.msra.mxu0 %v6708
    %7036 = vmatprep.subr.bf16.mxu0 0
    %7037 = vmatpush1.bf16.msra.mxu0 %v6709
    %7038 = vmatprep.subr.bf16.mxu0 0
    %7039 = vmatpush1.bf16.msra.mxu0 %v6710
    %7040 = vmatprep.subr.bf16.mxu0 0
    %7041 = vmatpush1.bf16.msra.mxu0 %v6711
    %7042 = vmatprep.subr.bf16.mxu0 0
    %7043 = vmatpush1.bf16.msra.mxu0 %v6712
    %7044 = vmatprep.subr.bf16.mxu0 0
    %7045 = vmatpush1.bf16.msra.mxu0 %v6713
    %7046 = vmatprep.subr.bf16.mxu0 0
    %7047 = vmatpush1.bf16.msra.mxu0 %v6714
    %7048 = vmatprep.subr.bf16.mxu0 0
    %7049 = vmatpush1.bf16.msra.mxu0 %v6715
    %7050 = vmatprep.subr.bf16.mxu0 0
    %7051 = vmatpush1.bf16.msra.mxu0 %v6716
    %7052 = vmatprep.subr.bf16.mxu0 0
    %7053 = vmatpush1.bf16.msra.mxu0 %v6717
    %7054 = vmatprep.mubr.bf16.mxu0 %v5980
    %7055 = vmatmul.mubr.bf16.gmra.mrb[0].mxu0 %v5979
    %v7056 = vpop.f32.mrb[0].mxu0
    %v7057 = vadd.f32 %v7017, %v7056
    %v7058 = vpop.f32.mrb[0].mxu0
    %v7059 = vpop.f32.mrb[0].mxu0
    %v7060 = vpop.f32.mrb[0].mxu0
    %7061 = vdwg.mxu0
    %7062 = vmatprep.subr.bf16.mxu0 0
    %7063 = vmatpush1.bf16.msra.mxu0 %v6718
    %7064 = vmatprep.subr.bf16.mxu0 0
    %7065 = vmatpush1.bf16.msra.mxu0 %v6719
    %7066 = vmatprep.subr.bf16.mxu0 0
    %7067 = vmatpush1.bf16.msra.mxu0 0
    %7068 = vmatprep.subr.bf16.mxu0 0
    %7069 = vmatpush1.bf16.msra.mxu0 0
    %7070 = vmatprep.subr.bf16.mxu0 0
    %7071 = vmatpush1.bf16.msra.mxu0 0
    %7072 = vmatprep.subr.bf16.mxu0 0
    %7073 = vmatpush1.bf16.msra.mxu0 0
    %7074 = vmatprep.subr.bf16.mxu0 0
    %7075 = vmatpush1.bf16.msra.mxu0 0
    %7076 = vmatprep.subr.bf16.mxu0 0
    %7077 = vmatpush1.bf16.msra.mxu0 0
    %7078 = vmatprep.subr.bf16.mxu0 0
    %7079 = vmatpush1.bf16.msra.mxu0 0
    %7080 = vmatprep.subr.bf16.mxu0 0
    %7081 = vmatpush1.bf16.msra.mxu0 0
    %7082 = vmatprep.subr.bf16.mxu0 0
    %7083 = vmatpush1.bf16.msra.mxu0 0
    %7084 = vmatprep.subr.bf16.mxu0 0
    %7085 = vmatpush1.bf16.msra.mxu0 0
    %7086 = vmatprep.subr.bf16.mxu0 0
    %7087 = vmatpush1.bf16.msra.mxu0 0
    %7088 = vmatprep.subr.bf16.mxu0 0
    %7089 = vmatpush1.bf16.msra.mxu0 0
    %7090 = vmatprep.subr.bf16.mxu0 0
    %7091 = vmatpush1.bf16.msra.mxu0 0
    %7092 = vmatprep.subr.bf16.mxu0 0
    %7093 = vmatpush1.bf16.msra.mxu0 0
    %7094 = vmatprep.mubr.bf16.mxu0 0
    %7095 = vmatmul.mubr.bf16.gmra.mrb[0].mxu0 %v6820
    %v7096 = vpop.f32.mrb[0].mxu0
    %v7097 = vadd.f32 %v7057, %v7096
    %v7098 = vpop.f32.mrb[0].mxu0
    %v7099 = vpop.f32.mrb[0].mxu0
    %v7100 = vpop.f32.mrb[0].mxu0
    %7101 = vdwg.mxu0
    %v7102 = vld [vmem:[#allocation12] sm:$0x1]
    %v7104 = vlaneseq
    %v7105 = vshrl.u32 %v7104, 7
    %v7106 = vsub.s32 0, %v7105
    %v7107 = vrot.slane %v7102, %v7106
    %v7109 = vadd.f32 %v7097, %v7107
    %v7110 = vmax.f32 %v7109, 0.0
    %v7111 = vpack.c.bf16 %v7110, %v7110
    %v7112 = vld [vmem:[#allocation13] sm:$0xf]
    %v7113 = vld [vmem:[#allocation13 + $0x4] sm:$0xf]
    %v7114 = vld [vmem:[#allocation13 + $0x8] sm:$0xf]
    %v7115 = vld [vmem:[#allocation13 + $0xc] sm:$0xf]
    %v7116 = vld [vmem:[#allocation13 + $0x10] sm:$0xf]
    %v7117 = vld [vmem:[#allocation13 + $0x14] sm:$0xf]
    %v7118 = vld [vmem:[#allocation13 + $0x18] sm:$0xf]
    %v7119 = vld [vmem:[#allocation13 + $0x1c] sm:$0xf]
    %v7120 = vld [vmem:[#allocation13 + $0x20] sm:$0xf]
    %v7121 = vld [vmem:[#allocation13 + $0x24] sm:$0xf]
    %v7122 = vld [vmem:[#allocation13 + $0x28] sm:$0xf]
    %v7123 = vld [vmem:[#allocation13 + $0x2c] sm:$0xf]
    %v7124 = vld [vmem:[#allocation13 + $0x30] sm:$0xf]
    %v7125 = vld [vmem:[#allocation13 + $0x34] sm:$0xf]
    %v7126 = vld [vmem:[#allocation13 + $0x38] sm:$0xf]
    %v7127 = vld [vmem:[#allocation13 + $0x3c] sm:$0xf]
    %v7128 = vld [vmem:[#allocation15] sm:$0x1]
    %v7130 = vlaneseq
    %v7131 = vshrl.u32 %v7130, 7
    %v7132 = vsub.s32 0, %v7131
    %v7133 = vrot.slane %v7128, %v7132
    %v7151 = vunpack.c.l.b16 %v7112
    %v7152 = vunpack.c.l.b16 %v7113
    %v7153 = vunpack.c.l.b16 %v7114
    %v7154 = vunpack.c.l.b16 %v7115
    %v7155 = vunpack.c.l.b16 %v7116
    %v7156 = vunpack.c.l.b16 %v7117
    %v7157 = vunpack.c.l.b16 %v7118
    %v7158 = vunpack.c.l.b16 %v7119
    %v7159 = vunpack.c.l.b16 %v7120
    %v7160 = vunpack.c.l.b16 %v7121
    %v7161 = vunpack.c.l.b16 %v7122
    %v7162 = vunpack.c.l.b16 %v7123
    %v7163 = vunpack.c.l.b16 %v7124
    %v7164 = vunpack.c.l.b16 %v7125
    %v7165 = vunpack.c.l.b16 %v7126
    %v7166 = vunpack.c.l.b16 %v7127
    %v7167 = vpack.c.b16 %v7152, %v7151
    %v7168 = vpack.c.b16 %v7154, %v7153
    %v7169 = vpack.c.b16 %v7156, %v7155
    %v7170 = vpack.c.b16 %v7158, %v7157
    %v7171 = vpack.c.b16 %v7160, %v7159
    %v7172 = vpack.c.b16 %v7162, %v7161
    %v7173 = vpack.c.b16 %v7164, %v7163
    %v7174 = vpack.c.b16 %v7166, %v7165
    %7183 = vmatprep.subr.bf16.mxu0 0
    %7184 = vmatpush1.bf16.msra.mxu0 %v7167
    %7185 = vmatprep.subr.bf16.mxu0 0
    %7186 = vmatpush1.bf16.msra.mxu0 %v7168
    %7187 = vmatprep.subr.bf16.mxu0 0
    %7188 = vmatpush1.bf16.msra.mxu0 %v7169
    %7189 = vmatprep.subr.bf16.mxu0 0
    %7190 = vmatpush1.bf16.msra.mxu0 %v7170
    %7191 = vmatprep.subr.bf16.mxu0 0
    %7192 = vmatpush1.bf16.msra.mxu0 %v7171
    %7193 = vmatprep.subr.bf16.mxu0 0
    %7194 = vmatpush1.bf16.msra.mxu0 %v7172
    %7195 = vmatprep.subr.bf16.mxu0 0
    %7196 = vmatpush1.bf16.msra.mxu0 %v7173
    %7197 = vmatprep.subr.bf16.mxu0 0
    %7198 = vmatpush1.bf16.msra.mxu0 %v7174
    %7199 = vmatprep.subr.bf16.mxu0 0
    %7200 = vmatpush1.bf16.msra.mxu0 0
    %7201 = vmatprep.subr.bf16.mxu0 0
    %7202 = vmatpush1.bf16.msra.mxu0 0
    %7203 = vmatprep.subr.bf16.mxu0 0
    %7204 = vmatpush1.bf16.msra.mxu0 0
    %7205 = vmatprep.subr.bf16.mxu0 0
    %7206 = vmatpush1.bf16.msra.mxu0 0
    %7207 = vmatprep.subr.bf16.mxu0 0
    %7208 = vmatpush1.bf16.msra.mxu0 0
    %7209 = vmatprep.subr.bf16.mxu0 0
    %7210 = vmatpush1.bf16.msra.mxu0 0
    %7211 = vmatprep.subr.bf16.mxu0 0
    %7212 = vmatpush1.bf16.msra.mxu0 0
    %7213 = vmatprep.subr.bf16.mxu0 0
    %7214 = vmatpush1.bf16.msra.mxu0 0
    %7215 = vmatprep.mubr.bf16.mxu0 0
    %7216 = vmatmul.mubr.bf16.gmra.mrb[0].mxu0 %v7111
    %v7217 = vpop.f32.mrb[0].mxu0
    %v7218 = vadd.f32 %v7133, %v7217
    %v7219 = vpop.f32.mrb[0].mxu0
    %v7220 = vpop.f32.mrb[0].mxu0
    %v7221 = vpop.f32.mrb[0].mxu0
    %7222 = vdwg.mxu0
    %7223 = vst [vmem:[%s11] sm:$0xff] %v7218
    // Predicated region
    $region82: #{_forward_jit.1} parent=1 // pred_check
      _
    $region83: #{_forward_jit.1} parent=1 // pred_check_branch
      %7225 = sbr.rel (0) target = $region85
    $region84: #{_forward_jit.1} parent=1 // pred_region
      _
    $region85: #{_forward_jit.1} parent=1 // pred_fallthru
      _
    // Predicated region
    $region86: #{_forward_jit.1} parent=1 // pred_check
      _
    $region87: #{_forward_jit.1} parent=1 // pred_check_branch
      %7227 = sbr.rel (0) target = $region89
    $region88: #{_forward_jit.1} parent=1 // pred_region
      _
    $region89: #{_forward_jit.1} parent=1 // pred_fallthru
      _
    %7228 = vsyncpa [#allocation3], 1
    %7229 = vsyncpa [#allocation5], 1
    %7230 = vsyncpa [#allocation8], 1
    %7231 = vsyncpa [#allocation11], 1
    %7232 = vsyncpa [#allocation14], 1

// kernel: _forward_jit.1
$region0: #{_forward_jit.1}
  #allocation0 [shape = 'u32[]', space=smem, size = 0x4, offset = 0x4, fixed_abs, tag = 'smem constant byte address 0x4 - core index']
  #allocation1 [shape = 'u32[144,128]{1,0:T(1,128)}', space=vmem, size = 0x12000, scoped, tag = 'internal scratch']
  %s0 = inlined_call_operand.vmem [shape: bf16[8,147], index: 0, kind: input, shape index: {}]
  %s1 = inlined_call_operand.vmem [shape: bf16[8,5], index: 1, kind: input, shape index: {}]
  %s2 = inlined_call_operand.hbm [shape: bf16[147,784], index: 2, kind: input, shape index: {}]
  %s3 = inlined_call_operand.hbm [shape: f32[1,784], index: 3, kind: input, shape index: {}]
  %s4 = inlined_call_operand.hbm [shape: bf16[784,1568], index: 4, kind: input, shape index: {}]
  %s5 = inlined_call_operand.hbm [shape: f32[1,1568], index: 5, kind: input, shape index: {}]
  %s6 = inlined_call_operand.hbm [shape: bf16[1568,128], index: 6, kind: input, shape index: {}]
  %s7 = inlined_call_operand.hbm [shape: bf16[5,128], index: 7, kind: input, shape index: {}]
  %s8 = inlined_call_operand.hbm [shape: f32[1,128], index: 8, kind: input, shape index: {}]
  %s9 = inlined_call_operand.hbm [shape: bf16[128,128], index: 9, kind: input, shape index: {}]
  %s10 = inlined_call_operand.hbm [shape: f32[1,128], index: 10, kind: input, shape index: {}]
  %s11 = inlined_call_operand.vmem [shape: f32[8,128], index: 11, kind: output, shape index: {}]
  %s12 = sld [smem:[#allocation0]]
  $region90: #{_forward_jit.1} parent=0
    _
  %s14 = ssub.s32 1, %s12
  %s15 = scalar_select 0, %s14, %s12
  $region1: #{_forward_jit.1} parent=0
    #allocation2 [shape = 'u8[272384]{0}', space=vmem, size = 0x42800, scoped, tag = 'input window, operand 2, single buffered']
    #allocation3 [shape = 's32[1]{0}', space=sflag, size = 0x4, scoped, tag = 'scoped memory for _forward_jit.1']
    #allocation4 [shape = 'u8[3584]{0}', space=vmem, size = 0x1000, scoped, tag = 'input window, operand 3, single buffered']
    #allocation5 [shape = 's32[1]{0}', space=sflag, size = 0x4, scoped, tag = 'scoped memory for _forward_jit.1']
    #allocation6 [shape = 'u8[2609152]{0}', space=vmem, size = 0x27d000, scoped, tag = 'input window, operand 4, single buffered']
    #allocation7 [shape = 'u8[6656]{0}', space=vmem, size = 0x1c00, scoped, tag = 'input window, operand 5, single buffered']
    #allocation8 [shape = 's32[1]{0}', space=sflag, size = 0x4, scoped, tag = 'scoped memory for _forward_jit.1']
    #allocation9 [shape = 'u8[401408]{0}', space=vmem, size = 0x62000, scoped, tag = 'input window, operand 6, single buffered']
    #allocation10 [shape = 'u8[2048]{0}', space=vmem, size = 0x800, scoped, tag = 'input window, operand 7, single buffered']
    #allocation11 [shape = 's32[1]{0}', space=sflag, size = 0x4, scoped, tag = 'scoped memory for _forward_jit.1']
    #allocation12 [shape = 'u8[512]{0}', space=vmem, size = 0x400, scoped, tag = 'input window, operand 8, single buffered']
    #allocation13 [shape = 'u8[32768]{0}', space=vmem, size = 0x8000, scoped, tag = 'input window, operand 9, single buffered']
    #allocation14 [shape = 's32[1]{0}', space=sflag, size = 0x4, scoped, tag = 'scoped memory for _forward_jit.1']
    #allocation15 [shape = 'u8[512]{0}', space=vmem, size = 0x400, scoped, tag = 'input window, operand 10, single buffered']
    %16 = vsyncpa [#allocation3], 0
    %17 = vsyncpa [#allocation5], 0
    %18 = vsyncpa [#allocation8], 0
    %19 = vsyncpa [#allocation11], 0
    %20 = vsyncpa [#allocation14], 0
    // Predicated region
    $region2: #{_forward_jit.1} parent=1 // pred_check
      _
    $region3: #{_forward_jit.1} parent=1 // pred_check_branch
      %22 = sbr.rel (0) target = $region5
    $region4: #{_forward_jit.1} parent=1 // pred_region
      _
    $region5: #{_forward_jit.1} parent=1 // pred_fallthru
      _
    // Predicated region
    $region6: #{_forward_jit.1} parent=1 // pred_check
      _
    $region7: #{_forward_jit.1} parent=1 // pred_check_branch
      %24 = sbr.rel (0) target = $region9
    $region8: #{_forward_jit.1} parent=1 // pred_region
      _
    $region9: #{_forward_jit.1} parent=1 // pred_fallthru
      _
    // Predicated region
    $region10: #{_forward_jit.1} parent=1 // pred_check
      _
    $region11: #{_forward_jit.1} parent=1 // pred_check_branch
      %26 = sbr.rel (0) target = $region13
    $region12: #{_forward_jit.1} parent=1 // pred_region
      %s28 = ssub.s32 8512, 8512
      %29 = vsyncadd [#allocation3], %s28
      %s30 = sshll.u32 [#allocation2], 4
      %s31 = int_to_ptr.vmem [resolvable:$true] %s30
      %36 = dma.hbm_to_vmem [thread:$0]  %s2, 8512, %s31, [#allocation3], 448, 448, 28
    $region13: #{_forward_jit.1} parent=1 // pred_fallthru
      _
    // Predicated region
    $region14: #{_forward_jit.1} parent=1 // pred_check
      _
    $region15: #{_forward_jit.1} parent=1 // pred_check_branch
      %38 = sbr.rel (0) target = $region17
    $region16: #{_forward_jit.1} parent=1 // pred_region
      %s40 = ssub.s32 112, 112
      %41 = vsyncadd [#allocation5], %s40
      %s43 = sshll.u32 [#allocation4], 4
      %s44 = int_to_ptr.vmem [resolvable:$true] %s43
      %46 = dma.hbm_to_vmem [thread:$0]  %s3, 112, %s44, [#allocation5]
    $region17: #{_forward_jit.1} parent=1 // pred_fallthru
      _
    // Predicated region
    $region18: #{_forward_jit.1} parent=1 // pred_check
      _
    $region19: #{_forward_jit.1} parent=1 // pred_check_branch
      %48 = sbr.rel (0) target = $region21
    $region20: #{_forward_jit.1} parent=1 // pred_region
      %s50 = ssub.s32 81536, 81536
      %51 = vsyncadd [#allocation5], %s50
      %s52 = sshll.u32 [#allocation6], 4
      %s53 = int_to_ptr.vmem [resolvable:$true] %s52
      %58 = dma.hbm_to_vmem [thread:$0]  %s4, 81536, %s53, [#allocation5], 832, 832, 52
    $region21: #{_forward_jit.1} parent=1 // pred_fallthru
      _
    // Predicated region
    $region22: #{_forward_jit.1} parent=1 // pred_check
      _
    $region23: #{_forward_jit.1} parent=1 // pred_check_branch
      %60 = sbr.rel (0) target = $region25
    $region24: #{_forward_jit.1} parent=1 // pred_region
      %s62 = ssub.s32 208, 208
      %63 = vsyncadd [#allocation8], %s62
      %s65 = sshll.u32 [#allocation7], 4
      %s66 = int_to_ptr.vmem [resolvable:$true] %s65
      %68 = dma.hbm_to_vmem [thread:$0]  %s5, 208, %s66, [#allocation8]
    $region25: #{_forward_jit.1} parent=1 // pred_fallthru
      _
    // Predicated region
    $region26: #{_forward_jit.1} parent=1 // pred_check
      _
    $region27: #{_forward_jit.1} parent=1 // pred_check_branch
      %70 = sbr.rel (0) target = $region29
    $region28: #{_forward_jit.1} parent=1 // pred_region
      %s72 = ssub.s32 12544, 12544
      %73 = vsyncadd [#allocation8], %s72
      %s74 = sshll.u32 [#allocation9], 4
      %s75 = int_to_ptr.vmem [resolvable:$true] %s74
      %80 = dma.hbm_to_vmem [thread:$0]  %s6, 12544, %s75, [#allocation8], 64, 64, 4
    $region29: #{_forward_jit.1} parent=1 // pred_fallthru
      _
    // Predicated region
    $region30: #{_forward_jit.1} parent=1 // pred_check
      _
    $region31: #{_forward_jit.1} parent=1 // pred_check_branch
      %82 = sbr.rel (0) target = $region33
    $region32: #{_forward_jit.1} parent=1 // pred_region
      %s84 = ssub.s32 64, 64
      %85 = vsyncadd [#allocation11], %s84
      %s87 = sshll.u32 [#allocation10], 4
      %s88 = int_to_ptr.vmem [resolvable:$true] %s87
      %90 = dma.hbm_to_vmem [thread:$0]  %s7, 64, %s88, [#allocation11]
    $region33: #{_forward_jit.1} parent=1 // pred_fallthru
      _
    // Predicated region
    $region34: #{_forward_jit.1} parent=1 // pred_check
      _
    $region35: #{_forward_jit.1} parent=1 // pred_check_branch
      %92 = sbr.rel (0) target = $region37
    $region36: #{_forward_jit.1} parent=1 // pred_region
      %s94 = ssub.s32 16, 16
      %95 = vsyncadd [#allocation11], %s94
      %s97 = sshll.u32 [#allocation12], 4
      %s98 = int_to_ptr.vmem [resolvable:$true] %s97
      %100 = dma.hbm_to_vmem [thread:$0]  %s8, 16, %s98, [#allocation11]
    $region37: #{_forward_jit.1} parent=1 // pred_fallthru
      _
    // Predicated region
    $region38: #{_forward_jit.1} parent=1 // pred_check
      _
    $region39: #{_forward_jit.1} parent=1 // pred_check_branch
      %102 = sbr.rel (0) target = $region41
    $region40: #{_forward_jit.1} parent=1 // pred_region
      %s104 = ssub.s32 1024, 1024
      %105 = vsyncadd [#allocation14], %s104
      %s106 = sshll.u32 [#allocation13], 4
      %s107 = int_to_ptr.vmem [resolvable:$true] %s106
      %112 = dma.hbm_to_vmem [thread:$0]  %s9, 1024, %s107, [#allocation14], 64, 64, 4
    $region41: #{_forward_jit.1} parent=1 // pred_fallthru
      _
    // Predicated region
    $region42: #{_forward_jit.1} parent=1 // pred_check
      _
    $region43: #{_forward_jit.1} parent=1 // pred_check_branch
      %114 = sbr.rel (0) target = $region45
    $region44: #{_forward_jit.1} parent=1 // pred_region
      %s116 = ssub.s32 16, 16
      %117 = vsyncadd [#allocation14], %s116
      %s119 = sshll.u32 [#allocation15], 4
      %s120 = int_to_ptr.vmem [resolvable:$true] %s119
      %122 = dma.hbm_to_vmem [thread:$0]  %s10, 16, %s120, [#allocation14]
    $region45: #{_forward_jit.1} parent=1 // pred_fallthru
      _
    // Predicated region
    $region46: #{_forward_jit.1} parent=1 // pred_check
      _
    $region47: #{_forward_jit.1} parent=1 // pred_check_branch
      %124 = sbr.rel (0) target = $region49
    $region48: #{_forward_jit.1} parent=1 // pred_region
      %125 = dma.done [#allocation3], 8512
    $region49: #{_forward_jit.1} parent=1 // pred_fallthru
      _
    // Predicated region
    $region50: #{_forward_jit.1} parent=1 // pred_check
      _
    $region51: #{_forward_jit.1} parent=1 // pred_check_branch
      %127 = sbr.rel (0) target = $region53
    $region52: #{_forward_jit.1} parent=1 // pred_region
      %128 = dma.done [#allocation5], 112
    $region53: #{_forward_jit.1} parent=1 // pred_fallthru
      _
    // Predicated region
    $region54: #{_forward_jit.1} parent=1 // pred_check
      _
    $region55: #{_forward_jit.1} parent=1 // pred_check_branch
      %130 = sbr.rel (0) target = $region57
    $region56: #{_forward_jit.1} parent=1 // pred_region
      %131 = dma.done [#allocation5], 81536
    $region57: #{_forward_jit.1} parent=1 // pred_fallthru
      _
    // Predicated region
    $region58: #{_forward_jit.1} parent=1 // pred_check
      _
    $region59: #{_forward_jit.1} parent=1 // pred_check_branch
      %133 = sbr.rel (0) target = $region61
    $region60: #{_forward_jit.1} parent=1 // pred_region
      %134 = dma.done [#allocation8], 208
    $region61: #{_forward_jit.1} parent=1 // pred_fallthru
      _
    // Predicated region
    $region62: #{_forward_jit.1} parent=1 // pred_check
      _
    $region63: #{_forward_jit.1} parent=1 // pred_check_branch
      %136 = sbr.rel (0) target = $region65
    $region64: #{_forward_jit.1} parent=1 // pred_region
      %137 = dma.done [#allocation8], 12544
    $region65: #{_forward_jit.1} parent=1 // pred_fallthru
      _
    // Predicated region
    $region66: #{_forward_jit.1} parent=1 // pred_check
      _
    $region67: #{_forward_jit.1} parent=1 // pred_check_branch
      %139 = sbr.rel (0) target = $region69
    $region68: #{_forward_jit.1} parent=1 // pred_region
      %140 = dma.done [#allocation11], 64
    $region69: #{_forward_jit.1} parent=1 // pred_fallthru
      _
    // Predicated region
    $region70: #{_forward_jit.1} parent=1 // pred_check
      _
    $region71: #{_forward_jit.1} parent=1 // pred_check_branch
      %142 = sbr.rel (0) target = $region73
    $region72: #{_forward_jit.1} parent=1 // pred_region
      %143 = dma.done [#allocation11], 16
    $region73: #{_forward_jit.1} parent=1 // pred_fallthru
      _
    // Predicated region
    $region74: #{_forward_jit.1} parent=1 // pred_check
      _
    $region75: #{_forward_jit.1} parent=1 // pred_check_branch
      %145 = sbr.rel (0) target = $region77
    $region76: #{_forward_jit.1} parent=1 // pred_region
      %146 = dma.done [#allocation14], 1024
    $region77: #{_forward_jit.1} parent=1 // pred_fallthru
      _
    // Predicated region
    $region78: #{_forward_jit.1} parent=1 // pred_check
      _
    $region79: #{_forward_jit.1} parent=1 // pred_check_branch
      %148 = sbr.rel (0) target = $region81
    $region80: #{_forward_jit.1} parent=1 // pred_region
      %149 = dma.done [#allocation14], 16
    $region81: #{_forward_jit.1} parent=1 // pred_fallthru
      _
    %v151 = vld [vmem:[%s0] sm:$0xff]
    %v152 = vld [vmem:[#allocation2] sm:$0xff]
    %v153 = vld [vmem:[#allocation2 + $0x8] sm:$0xff]
    %v154 = vld [vmem:[#allocation2 + $0x10] sm:$0xff]
    %v155 = vld [vmem:[#allocation2 + $0x18] sm:$0xf]
    %v156 = vld [vmem:[#allocation2 + $0x1c] sm:$0xff]
    %v157 = vld [vmem:[#allocation2 + $0x24] sm:$0xff]
    %v158 = vld [vmem:[#allocation2 + $0x2c] sm:$0xff]
    %v159 = vld [vmem:[#allocation2 + $0x34] sm:$0xf]
    %v160 = vld [vmem:[#allocation2 + $0x38] sm:$0xff]
    %v161 = vld [vmem:[#allocation2 + $0x40] sm:$0xff]
    %v162 = vld [vmem:[#allocation2 + $0x48] sm:$0xff]
    %v163 = vld [vmem:[#allocation2 + $0x50] sm:$0xf]
    %v164 = vld [vmem:[#allocation2 + $0x54] sm:$0xff]
    %v165 = vld [vmem:[#allocation2 + $0x5c] sm:$0xff]
    %v166 = vld [vmem:[#allocation2 + $0x64] sm:$0xff]
    %v167 = vld [vmem:[#allocation2 + $0x6c] sm:$0xf]
    %v168 = vld [vmem:[#allocation2 + $0x70] sm:$0xff]
    %v169 = vld [vmem:[#allocation2 + $0x78] sm:$0xff]
    %v170 = vld [vmem:[#allocation2 + $0x80] sm:$0xff]
    %v171 = vld [vmem:[#allocation2 + $0x88] sm:$0xf]
    %v172 = vld [vmem:[#allocation2 + $0x8c] sm:$0xff]
    %v173 = vld [vmem:[#allocation2 + $0x94] sm:$0xff]
    %v174 = vld [vmem:[#allocation2 + $0x9c] sm:$0xff]
    %v175 = vld [vmem:[#allocation2 + $0xa4] sm:$0xf]
    %v176 = vld [vmem:[#allocation2 + $0xa8] sm:$0xff]
    %v177 = vld [vmem:[#allocation2 + $0xb0] sm:$0xff]
    %v178 = vld [vmem:[#allocation2 + $0xb8] sm:$0xff]
    %v179 = vld [vmem:[#allocation2 + $0xc0] sm:$0xf]
    %v180 = vld [vmem:[#allocation2 + $0xc4] sm:$0xff]
    %v181 = vld [vmem:[#allocation2 + $0xcc] sm:$0xff]
    %v182 = vld [vmem:[#allocation2 + $0xd4] sm:$0xff]
    %v183 = vld [vmem:[#allocation2 + $0xdc] sm:$0xf]
    %v184 = vld [vmem:[#allocation2 + $0xe0] sm:$0xff]
    %v185 = vld [vmem:[#allocation2 + $0xe8] sm:$0xff]
    %v186 = vld [vmem:[#allocation2 + $0xf0] sm:$0xff]
    %v187 = vld [vmem:[#allocation2 + $0xf8] sm:$0xf]
    %v188 = vld [vmem:[#allocation2 + $0xfc] sm:$0xff]
    %v189 = vld [vmem:[#allocation2 + $0x104] sm:$0xff]
    %v190 = vld [vmem:[#allocation2 + $0x10c] sm:$0xff]
    %v191 = vld [vmem:[#allocation2 + $0x114] sm:$0xf]
    %v192 = vld [vmem:[#allocation2 + $0x118] sm:$0xff]
    %v193 = vld [vmem:[#allocation2 + $0x120] sm:$0xff]
    %v194 = vld [vmem:[#allocation2 + $0x128] sm:$0xff]
    %v195 = vld [vmem:[#allocation2 + $0x130] sm:$0xf]
    %v196 = vld [vmem:[#allocation2 + $0x134] sm:$0xff]
    %v197 = vld [vmem:[#allocation2 + $0x13c] sm:$0xff]
    %v198 = vld [vmem:[#allocation2 + $0x144] sm:$0xff]
    %v199 = vld [vmem:[#allocation2 + $0x14c] sm:$0xf]
    %v200 = vld [vmem:[#allocation2 + $0x150] sm:$0xff]
    %v201 = vld [vmem:[#allocation2 + $0x158] sm:$0xff]
    %v202 = vld [vmem:[#allocation2 + $0x160] sm:$0xff]
    %v203 = vld [vmem:[#allocation2 + $0x168] sm:$0xf]
    %v204 = vld [vmem:[#allocation2 + $0x16c] sm:$0xff]
    %v205 = vld [vmem:[#allocation2 + $0x174] sm:$0xff]
    %v206 = vld [vmem:[#allocation2 + $0x17c] sm:$0xff]
    %v207 = vld [vmem:[#allocation2 + $0x184] sm:$0xf]
    %v208 = vld [vmem:[#allocation2 + $0x188] sm:$0xff]
    %v209 = vld [vmem:[#allocation2 + $0x190] sm:$0xff]
    %v210 = vld [vmem:[#allocation2 + $0x198] sm:$0xff]
    %v211 = vld [vmem:[#allocation2 + $0x1a0] sm:$0xf]
    %v212 = vld [vmem:[#allocation2 + $0x1a4] sm:$0xff]
    %v213 = vld [vmem:[#allocation2 + $0x1ac] sm:$0xff]
    %v214 = vld [vmem:[#allocation2 + $0x1b4] sm:$0xff]
    %v215 = vld [vmem:[#allocation2 + $0x1bc] sm:$0xf]
    %v216 = vld [vmem:[#allocation2 + $0x1c0] sm:$0xff]
    %v217 = vld [vmem:[#allocation2 + $0x1c8] sm:$0xff]
    %v218 = vld [vmem:[#allocation2 + $0x1d0] sm:$0xff]
    %v219 = vld [vmem:[#allocation2 + $0x1d8] sm:$0xf]
    %v220 = vld [vmem:[#allocation2 + $0x1dc] sm:$0xff]
    %v221 = vld [vmem:[#allocation2 + $0x1e4] sm:$0xff]
    %v222 = vld [vmem:[#allocation2 + $0x1ec] sm:$0xff]
    %v223 = vld [vmem:[#allocation2 + $0x1f4] sm:$0xf]
    %v224 = vld [vmem:[#allocation2 + $0x1f8] sm:$0x33]
    %v225 = vld [vmem:[#allocation2 + $0x200] sm:$0x33]
    %v226 = vld [vmem:[#allocation2 + $0x208] sm:$0x33]
    %v227 = vld [vmem:[#allocation2 + $0x210] sm:$0x3]
    %v228 = vld [vmem:[#allocation4] sm:$0x7f]
    %v230 = vlaneseq
    %v231 = vshrl.u32 %v230, 7
    %v232 = vsub.s32 0, %v231
    %v233 = vrot.slane %v228, %v232
    %v234 = vlaneseq
    %v235 = vshrl.u32 %v234, 7
    %v236 = vsub.s32 1, %v235
    %v237 = vrot.slane %v228, %v236
    %v238 = vlaneseq
    %v239 = vshrl.u32 %v238, 7
    %v240 = vsub.s32 2, %v239
    %v241 = vrot.slane %v228, %v240
    %v242 = vlaneseq
    %v243 = vshrl.u32 %v242, 7
    %v244 = vsub.s32 3, %v243
    %v245 = vrot.slane %v228, %v244
    %v246 = vlaneseq
    %v247 = vshrl.u32 %v246, 7
    %v248 = vsub.s32 4, %v247
    %v249 = vrot.slane %v228, %v248
    %v250 = vlaneseq
    %v251 = vshrl.u32 %v250, 7
    %v252 = vsub.s32 5, %v251
    %v253 = vrot.slane %v228, %v252
    %v254 = vlaneseq
    %v255 = vshrl.u32 %v254, 7
    %v256 = vsub.s32 6, %v255
    %v257 = vrot.slane %v228, %v256
    %v266 = vunpack.c.l.b16 %v151
    %v267 = vunpack.c.h.b16 %v151
    %v268 = vpack.c.b16 %v266, %v266
    %v269 = vpack.c.b16 %v267, %v267
    %v347 = vunpack.c.l.b16 %v152
    %v348 = vunpack.c.h.b16 %v152
    %v349 = vunpack.c.l.b16 %v153
    %v350 = vunpack.c.h.b16 %v153
    %v351 = vunpack.c.l.b16 %v154
    %v352 = vunpack.c.h.b16 %v154
    %v353 = vunpack.c.l.b16 %v155
    %v354 = vunpack.c.l.b16 %v156
    %v355 = vunpack.c.h.b16 %v156
    %v356 = vunpack.c.l.b16 %v157
    %v357 = vunpack.c.h.b16 %v157
    %v358 = vunpack.c.l.b16 %v158
    %v359 = vunpack.c.h.b16 %v158
    %v360 = vunpack.c.l.b16 %v159
    %v361 = vunpack.c.l.b16 %v160
    %v362 = vunpack.c.h.b16 %v160
    %v363 = vunpack.c.l.b16 %v161
    %v364 = vunpack.c.h.b16 %v161
    %v365 = vunpack.c.l.b16 %v162
    %v366 = vunpack.c.h.b16 %v162
    %v367 = vunpack.c.l.b16 %v163
    %v368 = vunpack.c.l.b16 %v164
    %v369 = vunpack.c.h.b16 %v164
    %v370 = vunpack.c.l.b16 %v165
    %v371 = vunpack.c.h.b16 %v165
    %v372 = vunpack.c.l.b16 %v166
    %v373 = vunpack.c.h.b16 %v166
    %v374 = vunpack.c.l.b16 %v167
    %v375 = vunpack.c.l.b16 %v168
    %v376 = vunpack.c.h.b16 %v168
    %v377 = vunpack.c.l.b16 %v169
    %v378 = vunpack.c.h.b16 %v169
    %v379 = vunpack.c.l.b16 %v170
    %v380 = vunpack.c.h.b16 %v170
    %v381 = vunpack.c.l.b16 %v171
    %v382 = vunpack.c.l.b16 %v172
    %v383 = vunpack.c.h.b16 %v172
    %v384 = vunpack.c.l.b16 %v173
    %v385 = vunpack.c.h.b16 %v173
    %v386 = vunpack.c.l.b16 %v174
    %v387 = vunpack.c.h.b16 %v174
    %v388 = vunpack.c.l.b16 %v175
    %v389 = vunpack.c.l.b16 %v176
    %v390 = vunpack.c.h.b16 %v176
    %v391 = vunpack.c.l.b16 %v177
    %v392 = vunpack.c.h.b16 %v177
    %v393 = vunpack.c.l.b16 %v178
    %v394 = vunpack.c.h.b16 %v178
    %v395 = vunpack.c.l.b16 %v179
    %v396 = vunpack.c.l.b16 %v180
    %v397 = vunpack.c.h.b16 %v180
    %v398 = vunpack.c.l.b16 %v181
    %v399 = vunpack.c.h.b16 %v181
    %v400 = vunpack.c.l.b16 %v182
    %v401 = vunpack.c.h.b16 %v182
    %v402 = vunpack.c.l.b16 %v183
    %v403 = vunpack.c.l.b16 %v184
    %v404 = vunpack.c.h.b16 %v184
    %v405 = vunpack.c.l.b16 %v185
    %v406 = vunpack.c.h.b16 %v185
    %v407 = vunpack.c.l.b16 %v186
    %v408 = vunpack.c.h.b16 %v186
    %v409 = vunpack.c.l.b16 %v187
    %v410 = vunpack.c.l.b16 %v188
    %v411 = vunpack.c.h.b16 %v188
    %v412 = vunpack.c.l.b16 %v189
    %v413 = vunpack.c.h.b16 %v189
    %v414 = vunpack.c.l.b16 %v190
    %v415 = vunpack.c.h.b16 %v190
    %v416 = vunpack.c.l.b16 %v191
    %v417 = vunpack.c.l.b16 %v192
    %v418 = vunpack.c.h.b16 %v192
    %v419 = vunpack.c.l.b16 %v193
    %v420 = vunpack.c.h.b16 %v193
    %v421 = vunpack.c.l.b16 %v194
    %v422 = vunpack.c.h.b16 %v194
    %v423 = vunpack.c.l.b16 %v195
    %v424 = vunpack.c.l.b16 %v196
    %v425 = vunpack.c.h.b16 %v196
    %v426 = vunpack.c.l.b16 %v197
    %v427 = vunpack.c.h.b16 %v197
    %v428 = vunpack.c.l.b16 %v198
    %v429 = vunpack.c.h.b16 %v198
    %v430 = vunpack.c.l.b16 %v199
    %v431 = vunpack.c.l.b16 %v200
    %v432 = vunpack.c.h.b16 %v200
    %v433 = vunpack.c.l.b16 %v201
    %v434 = vunpack.c.h.b16 %v201
    %v435 = vunpack.c.l.b16 %v202
    %v436 = vunpack.c.h.b16 %v202
    %v437 = vunpack.c.l.b16 %v203
    %v438 = vunpack.c.l.b16 %v204
    %v439 = vunpack.c.h.b16 %v204
    %v440 = vunpack.c.l.b16 %v205
    %v441 = vunpack.c.h.b16 %v205
    %v442 = vunpack.c.l.b16 %v206
    %v443 = vunpack.c.h.b16 %v206
    %v444 = vunpack.c.l.b16 %v207
    %v445 = vunpack.c.l.b16 %v208
    %v446 = vunpack.c.h.b16 %v208
    %v447 = vunpack.c.l.b16 %v209
    %v448 = vunpack.c.h.b16 %v209
    %v449 = vunpack.c.l.b16 %v210
    %v450 = vunpack.c.h.b16 %v210
    %v451 = vunpack.c.l.b16 %v211
    %v452 = vunpack.c.l.b16 %v212
    %v453 = vunpack.c.h.b16 %v212
    %v454 = vunpack.c.l.b16 %v213
    %v455 = vunpack.c.h.b16 %v213
    %v456 = vunpack.c.l.b16 %v214
    %v457 = vunpack.c.h.b16 %v214
    %v458 = vunpack.c.l.b16 %v215
    %v459 = vunpack.c.l.b16 %v216
    %v460 = vunpack.c.h.b16 %v216
    %v461 = vunpack.c.l.b16 %v217
    %v462 = vunpack.c.h.b16 %v217
    %v463 = vunpack.c.l.b16 %v218
    %v464 = vunpack.c.h.b16 %v218
    %v465 = vunpack.c.l.b16 %v219
    %v466 = vunpack.c.l.b16 %v220
    %v467 = vunpack.c.h.b16 %v220
    %v468 = vunpack.c.l.b16 %v221
    %v469 = vunpack.c.h.b16 %v221
    %v470 = vunpack.c.l.b16 %v222
    %v471 = vunpack.c.h.b16 %v222
    %v472 = vunpack.c.l.b16 %v223
    %v473 = vunpack.c.l.b16 %v224
    %v474 = vunpack.c.h.b16 %v224
    %v475 = vunpack.c.l.b16 %v225
    %v476 = vunpack.c.h.b16 %v225
    %v477 = vunpack.c.l.b16 %v226
    %v478 = vunpack.c.h.b16 %v226
    %v479 = vunpack.c.l.b16 %v227
    %v480 = vpack.c.b16 %v354, %v347
    %v481 = vpack.c.b16 %v355, %v348
    %v482 = vpack.c.b16 %v356, %v349
    %v483 = vpack.c.b16 %v357, %v350
    %v484 = vpack.c.b16 %v358, %v351
    %v485 = vpack.c.b16 %v359, %v352
    %v486 = vpack.c.b16 %v360, %v353
    %v487 = vpack.c.b16 %v368, %v361
    %v488 = vpack.c.b16 %v369, %v362
    %v489 = vpack.c.b16 %v370, %v363
    %v490 = vpack.c.b16 %v371, %v364
    %v491 = vpack.c.b16 %v372, %v365
    %v492 = vpack.c.b16 %v373, %v366
    %v493 = vpack.c.b16 %v374, %v367
    %v494 = vpack.c.b16 %v382, %v375
    %v495 = vpack.c.b16 %v383, %v376
    %v496 = vpack.c.b16 %v384, %v377
    %v497 = vpack.c.b16 %v385, %v378
    %v498 = vpack.c.b16 %v386, %v379
    %v499 = vpack.c.b16 %v387, %v380
    %v500 = vpack.c.b16 %v388, %v381
    %v501 = vpack.c.b16 %v396, %v389
    %v502 = vpack.c.b16 %v397, %v390
    %v503 = vpack.c.b16 %v398, %v391
    %v504 = vpack.c.b16 %v399, %v392
    %v505 = vpack.c.b16 %v400, %v393
    %v506 = vpack.c.b16 %v401, %v394
    %v507 = vpack.c.b16 %v402, %v395
    %v508 = vpack.c.b16 %v410, %v403
    %v509 = vpack.c.b16 %v411, %v404
    %v510 = vpack.c.b16 %v412, %v405
    %v511 = vpack.c.b16 %v413, %v406
    %v512 = vpack.c.b16 %v414, %v407
    %v513 = vpack.c.b16 %v415, %v408
    %v514 = vpack.c.b16 %v416, %v409
    %v515 = vpack.c.b16 %v424, %v417
    %v516 = vpack.c.b16 %v425, %v418
    %v517 = vpack.c.b16 %v426, %v419
    %v518 = vpack.c.b16 %v427, %v420
    %v519 = vpack.c.b16 %v428, %v421
    %v520 = vpack.c.b16 %v429, %v422
    %v521 = vpack.c.b16 %v430, %v423
    %v522 = vpack.c.b16 %v438, %v431
    %v523 = vpack.c.b16 %v439, %v432
    %v524 = vpack.c.b16 %v440, %v433
    %v525 = vpack.c.b16 %v441, %v434
    %v526 = vpack.c.b16 %v442, %v435
    %v527 = vpack.c.b16 %v443, %v436
    %v528 = vpack.c.b16 %v444, %v437
    %v529 = vpack.c.b16 %v452, %v445
    %v530 = vpack.c.b16 %v453, %v446
    %v531 = vpack.c.b16 %v454, %v447
    %v532 = vpack.c.b16 %v455, %v448
    %v533 = vpack.c.b16 %v456, %v449
    %v534 = vpack.c.b16 %v457, %v450
    %v535 = vpack.c.b16 %v458, %v451
    %v536 = vpack.c.b16 %v466, %v459
    %v537 = vpack.c.b16 %v467, %v460
    %v538 = vpack.c.b16 %v468, %v461
    %v539 = vpack.c.b16 %v469, %v462
    %v540 = vpack.c.b16 %v470, %v463
    %v541 = vpack.c.b16 %v471, %v464
    %v542 = vpack.c.b16 %v472, %v465
    %v543 = vpack.c.b16 %v473, %v473
    %v544 = vpack.c.b16 %v474, %v474
    %v545 = vpack.c.b16 %v475, %v475
    %v546 = vpack.c.b16 %v476, %v476
    %v547 = vpack.c.b16 %v477, %v477
    %v548 = vpack.c.b16 %v478, %v478
    %v549 = vpack.c.b16 %v479, %v479
    %vm613 = vcmask 154624
    %v615 = vsel %vm613, %v269, 0
    %vm617 = vcmask 1040384
    %vm618 = vcmask 1041408
    %v619 = vsel %vm617, 4294967295, 65535
    %v620 = vsel %vm618, %v619, 0
    %v622 = vand.u32 %v543, %v620
    %v625 = vand.u32 %v544, %v620
    %v628 = vand.u32 %v545, %v620
    %v631 = vand.u32 %v546, %v620
    %v634 = vand.u32 %v547, %v620
    %v637 = vand.u32 %v548, %v620
    %v640 = vand.u32 %v549, %v620
    %642 = vmatprep.subr.bf16.mxu0 %v481
    %643 = vmatpush1.bf16.msra.mxu0 %v480
    %644 = vmatprep.subr.bf16.mxu0 %v488
    %645 = vmatpush1.bf16.msra.mxu0 %v487
    %646 = vmatprep.subr.bf16.mxu0 %v495
    %647 = vmatpush1.bf16.msra.mxu0 %v494
    %648 = vmatprep.subr.bf16.mxu0 %v502
    %649 = vmatpush1.bf16.msra.mxu0 %v501
    %650 = vmatprep.subr.bf16.mxu0 %v509
    %651 = vmatpush1.bf16.msra.mxu0 %v508
    %652 = vmatprep.subr.bf16.mxu0 %v516
    %653 = vmatpush1.bf16.msra.mxu0 %v515
    %654 = vmatprep.subr.bf16.mxu0 %v523
    %655 = vmatpush1.bf16.msra.mxu0 %v522
    %656 = vmatprep.subr.bf16.mxu0 %v530
    %657 = vmatpush1.bf16.msra.mxu0 %v529
    %658 = vmatprep.subr.bf16.mxu0 %v537
    %659 = vmatpush1.bf16.msra.mxu0 %v536
    %660 = vmatprep.subr.bf16.mxu0 %v625
    %661 = vmatpush1.bf16.msra.mxu0 %v622
    %662 = vmatprep.subr.bf16.mxu0 0
    %663 = vmatpush1.bf16.msra.mxu0 0
    %664 = vmatprep.subr.bf16.mxu0 0
    %665 = vmatpush1.bf16.msra.mxu0 0
    %666 = vmatprep.subr.bf16.mxu0 0
    %667 = vmatpush1.bf16.msra.mxu0 0
    %668 = vmatprep.subr.bf16.mxu0 0
    %669 = vmatpush1.bf16.msra.mxu0 0
    %670 = vmatprep.subr.bf16.mxu0 0
    %671 = vmatpush1.bf16.msra.mxu0 0
    %672 = vmatprep.subr.bf16.mxu0 0
    %673 = vmatpush1.bf16.msra.mxu0 0
    %674 = vmatprep.mubr.bf16.mxu0 %v615
    %675 = vmatmul.mubr.bf16.gmra.mrb[0].mxu0 %v268
    %v676 = vpop.f32.mrb[0].mxu0
    %v677 = vadd.f32 %v233, %v676
    %v678 = vpop.f32.mrb[0].mxu0
    %v679 = vadd.f32 %v237, %v678
    %v680 = vpop.f32.mrb[0].mxu0
    %v681 = vpop.f32.mrb[0].mxu0
    %682 = vdwg.mxu0
    %683 = vmatprep.subr.bf16.mxu0 %v483
    %684 = vmatpush1.bf16.msra.mxu0 %v482
    %685 = vmatprep.subr.bf16.mxu0 %v490
    %686 = vmatpush1.bf16.msra.mxu0 %v489
    %687 = vmatprep.subr.bf16.mxu0 %v497
    %688 = vmatpush1.bf16.msra.mxu0 %v496
    %689 = vmatprep.subr.bf16.mxu0 %v504
    %690 = vmatpush1.bf16.msra.mxu0 %v503
    %691 = vmatprep.subr.bf16.mxu0 %v511
    %692 = vmatpush1.bf16.msra.mxu0 %v510
    %693 = vmatprep.subr.bf16.mxu0 %v518
    %694 = vmatpush1.bf16.msra.mxu0 %v517
    %695 = vmatprep.subr.bf16.mxu0 %v525
    %696 = vmatpush1.bf16.msra.mxu0 %v524
    %697 = vmatprep.subr.bf16.mxu0 %v532
    %698 = vmatpush1.bf16.msra.mxu0 %v531
    %699 = vmatprep.subr.bf16.mxu0 %v539
    %700 = vmatpush1.bf16.msra.mxu0 %v538
    %701 = vmatprep.subr.bf16.mxu0 %v631
    %702 = vmatpush1.bf16.msra.mxu0 %v628
    %703 = vmatprep.subr.bf16.mxu0 0
    %704 = vmatpush1.bf16.msra.mxu0 0
    %705 = vmatprep.subr.bf16.mxu0 0
    %706 = vmatpush1.bf16.msra.mxu0 0
    %707 = vmatprep.subr.bf16.mxu0 0
    %708 = vmatpush1.bf16.msra.mxu0 0
    %709 = vmatprep.subr.bf16.mxu0 0
    %710 = vmatpush1.bf16.msra.mxu0 0
    %711 = vmatprep.subr.bf16.mxu0 0
    %712 = vmatpush1.bf16.msra.mxu0 0
    %713 = vmatprep.subr.bf16.mxu0 0
    %714 = vmatpush1.bf16.msra.mxu0 0
    %715 = vmatprep.mubr.bf16.mxu0 %v615
    %716 = vmatmul.mubr.bf16.gmra.mrb[0].mxu0 %v268
    %v717 = vpop.f32.mrb[0].mxu0
    %v718 = vadd.f32 %v241, %v717
    %v719 = vpop.f32.mrb[0].mxu0
    %v720 = vadd.f32 %v245, %v719
    %v721 = vpop.f32.mrb[0].mxu0
    %v722 = vpop.f32.mrb[0].mxu0
    %723 = vdwg.mxu0
    %724 = vmatprep.subr.bf16.mxu0 %v485
    %725 = vmatpush1.bf16.msra.mxu0 %v484
    %726 = vmatprep.subr.bf16.mxu0 %v492
    %727 = vmatpush1.bf16.msra.mxu0 %v491
    %728 = vmatprep.subr.bf16.mxu0 %v499
    %729 = vmatpush1.bf16.msra.mxu0 %v498
    %730 = vmatprep.subr.bf16.mxu0 %v506
    %731 = vmatpush1.bf16.msra.mxu0 %v505
    %732 = vmatprep.subr.bf16.mxu0 %v513
    %733 = vmatpush1.bf16.msra.mxu0 %v512
    %734 = vmatprep.subr.bf16.mxu0 %v520
    %735 = vmatpush1.bf16.msra.mxu0 %v519
    %736 = vmatprep.subr.bf16.mxu0 %v527
    %737 = vmatpush1.bf16.msra.mxu0 %v526
    %738 = vmatprep.subr.bf16.mxu0 %v534
    %739 = vmatpush1.bf16.msra.mxu0 %v533
    %740 = vmatprep.subr.bf16.mxu0 %v541
    %741 = vmatpush1.bf16.msra.mxu0 %v540
    %742 = vmatprep.subr.bf16.mxu0 %v637
    %743 = vmatpush1.bf16.msra.mxu0 %v634
    %744 = vmatprep.subr.bf16.mxu0 0
    %745 = vmatpush1.bf16.msra.mxu0 0
    %746 = vmatprep.subr.bf16.mxu0 0
    %747 = vmatpush1.bf16.msra.mxu0 0
    %748 = vmatprep.subr.bf16.mxu0 0
    %749 = vmatpush1.bf16.msra.mxu0 0
    %750 = vmatprep.subr.bf16.mxu0 0
    %751 = vmatpush1.bf16.msra.mxu0 0
    %752 = vmatprep.subr.bf16.mxu0 0
    %753 = vmatpush1.bf16.msra.mxu0 0
    %754 = vmatprep.subr.bf16.mxu0 0
    %755 = vmatpush1.bf16.msra.mxu0 0
    %756 = vmatprep.mubr.bf16.mxu0 %v615
    %757 = vmatmul.mubr.bf16.gmra.mrb[0].mxu0 %v268
    %v758 = vpop.f32.mrb[0].mxu0
    %v759 = vadd.f32 %v249, %v758
    %v760 = vpop.f32.mrb[0].mxu0
    %v761 = vadd.f32 %v253, %v760
    %v762 = vpop.f32.mrb[0].mxu0
    %v763 = vpop.f32.mrb[0].mxu0
    %764 = vdwg.mxu0
    %765 = vmatprep.subr.bf16.mxu0 0
    %766 = vmatpush1.bf16.msra.mxu0 %v486
    %767 = vmatprep.subr.bf16.mxu0 0
    %768 = vmatpush1.bf16.msra.mxu0 %v493
    %769 = vmatprep.subr.bf16.mxu0 0
    %770 = vmatpush1.bf16.msra.mxu0 %v500
    %771 = vmatprep.subr.bf16.mxu0 0
    %772 = vmatpush1.bf16.msra.mxu0 %v507
    %773 = vmatprep.subr.bf16.mxu0 0
    %774 = vmatpush1.bf16.msra.mxu0 %v514
    %775 = vmatprep.subr.bf16.mxu0 0
    %776 = vmatpush1.bf16.msra.mxu0 %v521
    %777 = vmatprep.subr.bf16.mxu0 0
    %778 = vmatpush1.bf16.msra.mxu0 %v528
    %779 = vmatprep.subr.bf16.mxu0 0
    %780 = vmatpush1.bf16.msra.mxu0 %v535
    %781 = vmatprep.subr.bf16.mxu0 0
    %782 = vmatpush1.bf16.msra.mxu0 %v542
    %783 = vmatprep.subr.bf16.mxu0 0
    %784 = vmatpush1.bf16.msra.mxu0 %v640
    %785 = vmatprep.subr.bf16.mxu0 0
    %786 = vmatpush1.bf16.msra.mxu0 0
    %787 = vmatprep.subr.bf16.mxu0 0
    %788 = vmatpush1.bf16.msra.mxu0 0
    %789 = vmatprep.subr.bf16.mxu0 0
    %790 = vmatpush1.bf16.msra.mxu0 0
    %791 = vmatprep.subr.bf16.mxu0 0
    %792 = vmatpush1.bf16.msra.mxu0 0
    %793 = vmatprep.subr.bf16.mxu0 0
    %794 = vmatpush1.bf16.msra.mxu0 0
    %795 = vmatprep.subr.bf16.mxu0 0
    %796 = vmatpush1.bf16.msra.mxu0 0
    %797 = vmatprep.mubr.bf16.mxu0 %v615
    %798 = vmatmul.mubr.bf16.gmra.mrb[0].mxu0 %v268
    %v799 = vpop.f32.mrb[0].mxu0
    %v800 = vadd.f32 %v257, %v799
    %v801 = vpop.f32.mrb[0].mxu0
    %v802 = vpop.f32.mrb[0].mxu0
    %v803 = vpop.f32.mrb[0].mxu0
    %804 = vdwg.mxu0
    %v805 = vmax.f32 %v677, 0.0
    %v806 = vmax.f32 %v679, 0.0
    %v807 = vmax.f32 %v718, 0.0
    %v808 = vmax.f32 %v720, 0.0
    %v809 = vmax.f32 %v759, 0.0
    %v810 = vmax.f32 %v761, 0.0
    %v811 = vmax.f32 %v800, 0.0
    %v812 = vpack.c.bf16 %v805, %v805
    %v813 = vpack.c.bf16 %v806, %v806
    %v814 = vpack.c.bf16 %v807, %v807
    %v815 = vpack.c.bf16 %v808, %v808
    %v816 = vpack.c.bf16 %v809, %v809
    %v817 = vpack.c.bf16 %v810, %v810
    %v818 = vpack.c.bf16 %v811, %v811
    %v819 = vld [vmem:[#allocation6] sm:$0xff]
    %v820 = vld [vmem:[#allocation6 + $0x8] sm:$0xff]
    %v821 = vld [vmem:[#allocation6 + $0x10] sm:$0xff]
    %v822 = vld [vmem:[#allocation6 + $0x18] sm:$0xff]
    %v823 = vld [vmem:[#allocation6 + $0x20] sm:$0xff]
    %v824 = vld [vmem:[#allocation6 + $0x28] sm:$0xff]
    %v825 = vld [vmem:[#allocation6 + $0x30] sm:$0xf]
    %v826 = vld [vmem:[#allocation6 + $0x34] sm:$0xff]
    %v827 = vld [vmem:[#allocation6 + $0x3c] sm:$0xff]
    %v828 = vld [vmem:[#allocation6 + $0x44] sm:$0xff]
    %v829 = vld [vmem:[#allocation6 + $0x4c] sm:$0xff]
    %v830 = vld [vmem:[#allocation6 + $0x54] sm:$0xff]
    %v831 = vld [vmem:[#allocation6 + $0x5c] sm:$0xff]
    %v832 = vld [vmem:[#allocation6 + $0x64] sm:$0xf]
    %v833 = vld [vmem:[#allocation6 + $0x68] sm:$0xff]
    %v834 = vld [vmem:[#allocation6 + $0x70] sm:$0xff]
    %v835 = vld [vmem:[#allocation6 + $0x78] sm:$0xff]
    %v836 = vld [vmem:[#allocation6 + $0x80] sm:$0xff]
    %v837 = vld [vmem:[#allocation6 + $0x88] sm:$0xff]
    %v838 = vld [vmem:[#allocation6 + $0x90] sm:$0xff]
    %v839 = vld [vmem:[#allocation6 + $0x98] sm:$0xf]
    %v840 = vld [vmem:[#allocation6 + $0x9c] sm:$0xff]
    %v841 = vld [vmem:[#allocation6 + $0xa4] sm:$0xff]
    %v842 = vld [vmem:[#allocation6 + $0xac] sm:$0xff]
    %v843 = vld [vmem:[#allocation6 + $0xb4] sm:$0xff]
    %v844 = vld [vmem:[#allocation6 + $0xbc] sm:$0xff]
    %v845 = vld [vmem:[#allocation6 + $0xc4] sm:$0xff]
    %v846 = vld [vmem:[#allocation6 + $0xcc] sm:$0xf]
    %v847 = vld [vmem:[#allocation6 + $0xd0] sm:$0xff]
    %v848 = vld [vmem:[#allocation6 + $0xd8] sm:$0xff]
    %v849 = vld [vmem:[#allocation6 + $0xe0] sm:$0xff]
    %v850 = vld [vmem:[#allocation6 + $0xe8] sm:$0xff]
    %v851 = vld [vmem:[#allocation6 + $0xf0] sm:$0xff]
    %v852 = vld [vmem:[#allocation6 + $0xf8] sm:$0xff]
    %v853 = vld [vmem:[#allocation6 + $0x100] sm:$0xf]
    %v854 = vld [vmem:[#allocation6 + $0x104] sm:$0xff]
    %v855 = vld [vmem:[#allocation6 + $0x10c] sm:$0xff]
    %v856 = vld [vmem:[#allocation6 + $0x114] sm:$0xff]
    %v857 = vld [vmem:[#allocation6 + $0x11c] sm:$0xff]
    %v858 = vld [vmem:[#allocation6 + $0x124] sm:$0xff]
    %v859 = vld [vmem:[#allocation6 + $0x12c] sm:$0xff]
    %v860 = vld [vmem:[#allocation6 + $0x134] sm:$0xf]
    %v861 = vld [vmem:[#allocation6 + $0x138] sm:$0xff]
    %v862 = vld [vmem:[#allocation6 + $0x140] sm:$0xff]
    %v863 = vld [vmem:[#allocation6 + $0x148] sm:$0xff]
    %v864 = vld [vmem:[#allocation6 + $0x150] sm:$0xff]
    %v865 = vld [vmem:[#allocation6 + $0x158] sm:$0xff]
    %v866 = vld [vmem:[#allocation6 + $0x160] sm:$0xff]
    %v867 = vld [vmem:[#allocation6 + $0x168] sm:$0xf]
    %v868 = vld [vmem:[#allocation6 + $0x16c] sm:$0xff]
    %v869 = vld [vmem:[#allocation6 + $0x174] sm:$0xff]
    %v870 = vld [vmem:[#allocation6 + $0x17c] sm:$0xff]
    %v871 = vld [vmem:[#allocation6 + $0x184] sm:$0xff]
    %v872 = vld [vmem:[#allocation6 + $0x18c] sm:$0xff]
    %v873 = vld [vmem:[#allocation6 + $0x194] sm:$0xff]
    %v874 = vld [vmem:[#allocation6 + $0x19c] sm:$0xf]
    %v875 = vld [vmem:[#allocation6 + $0x1a0] sm:$0xff]
    %v876 = vld [vmem:[#allocation6 + $0x1a8] sm:$0xff]
    %v877 = vld [vmem:[#allocation6 + $0x1b0] sm:$0xff]
    %v878 = vld [vmem:[#allocation6 + $0x1b8] sm:$0xff]
    %v879 = vld [vmem:[#allocation6 + $0x1c0] sm:$0xff]
    %v880 = vld [vmem:[#allocation6 + $0x1c8] sm:$0xff]
    %v881 = vld [vmem:[#allocation6 + $0x1d0] sm:$0xf]
    %v882 = vld [vmem:[#allocation6 + $0x1d4] sm:$0xff]
    %v883 = vld [vmem:[#allocation6 + $0x1dc] sm:$0xff]
    %v884 = vld [vmem:[#allocation6 + $0x1e4] sm:$0xff]
    %v885 = vld [vmem:[#allocation6 + $0x1ec] sm:$0xff]
    %v886 = vld [vmem:[#allocation6 + $0x1f4] sm:$0xff]
    %v887 = vld [vmem:[#allocation6 + $0x1fc] sm:$0xff]
    %v888 = vld [vmem:[#allocation6 + $0x204] sm:$0xf]
    %v889 = vld [vmem:[#allocation6 + $0x208] sm:$0xff]
    %v890 = vld [vmem:[#allocation6 + $0x210] sm:$0xff]
    %v891 = vld [vmem:[#allocation6 + $0x218] sm:$0xff]
    %v892 = vld [vmem:[#allocation6 + $0x220] sm:$0xff]
    %v893 = vld [vmem:[#allocation6 + $0x228] sm:$0xff]
    %v894 = vld [vmem:[#allocation6 + $0x230] sm:$0xff]
    %v895 = vld [vmem:[#allocation6 + $0x238] sm:$0xf]
    %v896 = vld [vmem:[#allocation6 + $0x23c] sm:$0xff]
    %v897 = vld [vmem:[#allocation6 + $0x244] sm:$0xff]
    %v898 = vld [vmem:[#allocation6 + $0x24c] sm:$0xff]
    %v899 = vld [vmem:[#allocation6 + $0x254] sm:$0xff]
    %v900 = vld [vmem:[#allocation6 + $0x25c] sm:$0xff]
    %v901 = vld [vmem:[#allocation6 + $0x264] sm:$0xff]
    %v902 = vld [vmem:[#allocation6 + $0x26c] sm:$0xf]
    %v903 = vld [vmem:[#allocation6 + $0x270] sm:$0xff]
    %v904 = vld [vmem:[#allocation6 + $0x278] sm:$0xff]
    %v905 = vld [vmem:[#allocation6 + $0x280] sm:$0xff]
    %v906 = vld [vmem:[#allocation6 + $0x288] sm:$0xff]
    %v907 = vld [vmem:[#allocation6 + $0x290] sm:$0xff]
    %v908 = vld [vmem:[#allocation6 + $0x298] sm:$0xff]
    %v909 = vld [vmem:[#allocation6 + $0x2a0] sm:$0xf]
    %v910 = vld [vmem:[#allocation6 + $0x2a4] sm:$0xff]
    %v911 = vld [vmem:[#allocation6 + $0x2ac] sm:$0xff]
    %v912 = vld [vmem:[#allocation6 + $0x2b4] sm:$0xff]
    %v913 = vld [vmem:[#allocation6 + $0x2bc] sm:$0xff]
    %v914 = vld [vmem:[#allocation6 + $0x2c4] sm:$0xff]
    %v915 = vld [vmem:[#allocation6 + $0x2cc] sm:$0xff]
    %v916 = vld [vmem:[#allocation6 + $0x2d4] sm:$0xf]
    %v917 = vld [vmem:[#allocation6 + $0x2d8] sm:$0xff]
    %v918 = vld [vmem:[#allocation6 + $0x2e0] sm:$0xff]
    %v919 = vld [vmem:[#allocation6 + $0x2e8] sm:$0xff]
    %v920 = vld [vmem:[#allocation6 + $0x2f0] sm:$0xff]
    %v921 = vld [vmem:[#allocation6 + $0x2f8] sm:$0xff]
    %v922 = vld [vmem:[#allocation6 + $0x300] sm:$0xff]
    %v923 = vld [vmem:[#allocation6 + $0x308] sm:$0xf]
    %v924 = vld [vmem:[#allocation6 + $0x30c] sm:$0xff]
    %v925 = vld [vmem:[#allocation6 + $0x314] sm:$0xff]
    %v926 = vld [vmem:[#allocation6 + $0x31c] sm:$0xff]
    %v927 = vld [vmem:[#allocation6 + $0x324] sm:$0xff]
    %v928 = vld [vmem:[#allocation6 + $0x32c] sm:$0xff]
    %v929 = vld [vmem:[#allocation6 + $0x334] sm:$0xff]
    %v930 = vld [vmem:[#allocation6 + $0x33c] sm:$0xf]
    %v931 = vld [vmem:[#allocation6 + $0x340] sm:$0xff]
    %v932 = vld [vmem:[#allocation6 + $0x348] sm:$0xff]
    %v933 = vld [vmem:[#allocation6 + $0x350] sm:$0xff]
    %v934 = vld [vmem:[#allocation6 + $0x358] sm:$0xff]
    %v935 = vld [vmem:[#allocation6 + $0x360] sm:$0xff]
    %v936 = vld [vmem:[#allocation6 + $0x368] sm:$0xff]
    %v937 = vld [vmem:[#allocation6 + $0x370] sm:$0xf]
    %v938 = vld [vmem:[#allocation6 + $0x374] sm:$0xff]
    %v939 = vld [vmem:[#allocation6 + $0x37c] sm:$0xff]
    %v940 = vld [vmem:[#allocation6 + $0x384] sm:$0xff]
    %v941 = vld [vmem:[#allocation6 + $0x38c] sm:$0xff]
    %v942 = vld [vmem:[#allocation6 + $0x394] sm:$0xff]
    %v943 = vld [vmem:[#allocation6 + $0x39c] sm:$0xff]
    %v944 = vld [vmem:[#allocation6 + $0x3a4] sm:$0xf]
    %v945 = vld [vmem:[#allocation6 + $0x3a8] sm:$0xff]
    %v946 = vld [vmem:[#allocation6 + $0x3b0] sm:$0xff]
    %v947 = vld [vmem:[#allocation6 + $0x3b8] sm:$0xff]
    %v948 = vld [vmem:[#allocation6 + $0x3c0] sm:$0xff]
    %v949 = vld [vmem:[#allocation6 + $0x3c8] sm:$0xff]
    %v950 = vld [vmem:[#allocation6 + $0x3d0] sm:$0xff]
    %v951 = vld [vmem:[#allocation6 + $0x3d8] sm:$0xf]
    %v952 = vld [vmem:[#allocation6 + $0x3dc] sm:$0xff]
    %v953 = vld [vmem:[#allocation6 + $0x3e4] sm:$0xff]
    %v954 = vld [vmem:[#allocation6 + $0x3ec] sm:$0xff]
    %v955 = vld [vmem:[#allocation6 + $0x3f4] sm:$0xff]
    %v956 = vld [vmem:[#allocation6 + $0x3fc] sm:$0xff]
    %v957 = vld [vmem:[#allocation6 + $0x404] sm:$0xff]
    %v958 = vld [vmem:[#allocation6 + $0x40c] sm:$0xf]
    %v959 = vld [vmem:[#allocation6 + $0x410] sm:$0xff]
    %v960 = vld [vmem:[#allocation6 + $0x418] sm:$0xff]
    %v961 = vld [vmem:[#allocation6 + $0x420] sm:$0xff]
    %v962 = vld [vmem:[#allocation6 + $0x428] sm:$0xff]
    %v963 = vld [vmem:[#allocation6 + $0x430] sm:$0xff]
    %v964 = vld [vmem:[#allocation6 + $0x438] sm:$0xff]
    %v965 = vld [vmem:[#allocation6 + $0x440] sm:$0xf]
    %v966 = vld [vmem:[#allocation6 + $0x444] sm:$0xff]
    %v967 = vld [vmem:[#allocation6 + $0x44c] sm:$0xff]
    %v968 = vld [vmem:[#allocation6 + $0x454] sm:$0xff]
    %v969 = vld [vmem:[#allocation6 + $0x45c] sm:$0xff]
    %v970 = vld [vmem:[#allocation6 + $0x464] sm:$0xff]
    %v971 = vld [vmem:[#allocation6 + $0x46c] sm:$0xff]
    %v972 = vld [vmem:[#allocation6 + $0x474] sm:$0xf]
    %v973 = vld [vmem:[#allocation6 + $0x478] sm:$0xff]
    %v974 = vld [vmem:[#allocation6 + $0x480] sm:$0xff]
    %v975 = vld [vmem:[#allocation6 + $0x488] sm:$0xff]
    %v976 = vld [vmem:[#allocation6 + $0x490] sm:$0xff]
    %v977 = vld [vmem:[#allocation6 + $0x498] sm:$0xff]
    %v978 = vld [vmem:[#allocation6 + $0x4a0] sm:$0xff]
    %v979 = vld [vmem:[#allocation6 + $0x4a8] sm:$0xf]
    %v980 = vld [vmem:[#allocation6 + $0x4ac] sm:$0xff]
    %v981 = vld [vmem:[#allocation6 + $0x4b4] sm:$0xff]
    %v982 = vld [vmem:[#allocation6 + $0x4bc] sm:$0xff]
    %v983 = vld [vmem:[#allocation6 + $0x4c4] sm:$0xff]
    %v984 = vld [vmem:[#allocation6 + $0x4cc] sm:$0xff]
    %v985 = vld [vmem:[#allocation6 + $0x4d4] sm:$0xff]
    %v986 = vld [vmem:[#allocation6 + $0x4dc] sm:$0xf]
    %v987 = vld [vmem:[#allocation6 + $0x4e0] sm:$0xff]
    %v988 = vld [vmem:[#allocation6 + $0x4e8] sm:$0xff]
    %v989 = vld [vmem:[#allocation6 + $0x4f0] sm:$0xff]
    %v990 = vld [vmem:[#allocation6 + $0x4f8] sm:$0xff]
    %v991 = vld [vmem:[#allocation6 + $0x500] sm:$0xff]
    %v992 = vld [vmem:[#allocation6 + $0x508] sm:$0xff]
    %v993 = vld [vmem:[#allocation6 + $0x510] sm:$0xf]
    %v994 = vld [vmem:[#allocation6 + $0x514] sm:$0xff]
    %v995 = vld [vmem:[#allocation6 + $0x51c] sm:$0xff]
    %v996 = vld [vmem:[#allocation6 + $0x524] sm:$0xff]
    %v997 = vld [vmem:[#allocation6 + $0x52c] sm:$0xff]
    %v998 = vld [vmem:[#allocation6 + $0x534] sm:$0xff]
    %v999 = vld [vmem:[#allocation6 + $0x53c] sm:$0xff]
    %v1000 = vld [vmem:[#allocation6 + $0x544] sm:$0xf]
    %v1001 = vld [vmem:[#allocation6 + $0x548] sm:$0xff]
    %v1002 = vld [vmem:[#allocation6 + $0x550] sm:$0xff]
    %v1003 = vld [vmem:[#allocation6 + $0x558] sm:$0xff]
    %v1004 = vld [vmem:[#allocation6 + $0x560] sm:$0xff]
    %v1005 = vld [vmem:[#allocation6 + $0x568] sm:$0xff]
    %v1006 = vld [vmem:[#allocation6 + $0x570] sm:$0xff]
    %v1007 = vld [vmem:[#allocation6 + $0x578] sm:$0xf]
    %v1008 = vld [vmem:[#allocation6 + $0x57c] sm:$0xff]
    %v1009 = vld [vmem:[#allocation6 + $0x584] sm:$0xff]
    %v1010 = vld [vmem:[#allocation6 + $0x58c] sm:$0xff]
    %v1011 = vld [vmem:[#allocation6 + $0x594] sm:$0xff]
    %v1012 = vld [vmem:[#allocation6 + $0x59c] sm:$0xff]
    %v1013 = vld [vmem:[#allocation6 + $0x5a4] sm:$0xff]
    %v1014 = vld [vmem:[#allocation6 + $0x5ac] sm:$0xf]
    %v1015 = vld [vmem:[#allocation6 + $0x5b0] sm:$0xff]
    %v1016 = vld [vmem:[#allocation6 + $0x5b8] sm:$0xff]
    %v1017 = vld [vmem:[#allocation6 + $0x5c0] sm:$0xff]
    %v1018 = vld [vmem:[#allocation6 + $0x5c8] sm:$0xff]
    %v1019 = vld [vmem:[#allocation6 + $0x5d0] sm:$0xff]
    %v1020 = vld [vmem:[#allocation6 + $0x5d8] sm:$0xff]
    %v1021 = vld [vmem:[#allocation6 + $0x5e0] sm:$0xf]
    %v1022 = vld [vmem:[#allocation6 + $0x5e4] sm:$0xff]
    %v1023 = vld [vmem:[#allocation6 + $0x5ec] sm:$0xff]
    %v1024 = vld [vmem:[#allocation6 + $0x5f4] sm:$0xff]
    %v1025 = vld [vmem:[#allocation6 + $0x5fc] sm:$0xff]
    %v1026 = vld [vmem:[#allocation6 + $0x604] sm:$0xff]
    %v1027 = vld [vmem:[#allocation6 + $0x60c] sm:$0xff]
    %v1028 = vld [vmem:[#allocation6 + $0x614] sm:$0xf]
    %v1029 = vld [vmem:[#allocation6 + $0x618] sm:$0xff]
    %v1030 = vld [vmem:[#allocation6 + $0x620] sm:$0xff]
    %v1031 = vld [vmem:[#allocation6 + $0x628] sm:$0xff]
    %v1032 = vld [vmem:[#allocation6 + $0x630] sm:$0xff]
    %v1033 = vld [vmem:[#allocation6 + $0x638] sm:$0xff]
    %v1034 = vld [vmem:[#allocation6 + $0x640] sm:$0xff]
    %v1035 = vld [vmem:[#allocation6 + $0x648] sm:$0xf]
    %v1036 = vld [vmem:[#allocation6 + $0x64c] sm:$0xff]
    %v1037 = vld [vmem:[#allocation6 + $0x654] sm:$0xff]
    %v1038 = vld [vmem:[#allocation6 + $0x65c] sm:$0xff]
    %v1039 = vld [vmem:[#allocation6 + $0x664] sm:$0xff]
    %v1040 = vld [vmem:[#allocation6 + $0x66c] sm:$0xff]
    %v1041 = vld [vmem:[#allocation6 + $0x674] sm:$0xff]
    %v1042 = vld [vmem:[#allocation6 + $0x67c] sm:$0xf]
    %v1043 = vld [vmem:[#allocation6 + $0x680] sm:$0xff]
    %v1044 = vld [vmem:[#allocation6 + $0x688] sm:$0xff]
    %v1045 = vld [vmem:[#allocation6 + $0x690] sm:$0xff]
    %v1046 = vld [vmem:[#allocation6 + $0x698] sm:$0xff]
    %v1047 = vld [vmem:[#allocation6 + $0x6a0] sm:$0xff]
    %v1048 = vld [vmem:[#allocation6 + $0x6a8] sm:$0xff]
    %v1049 = vld [vmem:[#allocation6 + $0x6b0] sm:$0xf]
    %v1050 = vld [vmem:[#allocation6 + $0x6b4] sm:$0xff]
    %v1051 = vld [vmem:[#allocation6 + $0x6bc] sm:$0xff]
    %v1052 = vld [vmem:[#allocation6 + $0x6c4] sm:$0xff]
    %v1053 = vld [vmem:[#allocation6 + $0x6cc] sm:$0xff]
    %v1054 = vld [vmem:[#allocation6 + $0x6d4] sm:$0xff]
    %v1055 = vld [vmem:[#allocation6 + $0x6dc] sm:$0xff]
    %v1056 = vld [vmem:[#allocation6 + $0x6e4] sm:$0xf]
    %v1057 = vld [vmem:[#allocation6 + $0x6e8] sm:$0xff]
    %v1058 = vld [vmem:[#allocation6 + $0x6f0] sm:$0xff]
    %v1059 = vld [vmem:[#allocation6 + $0x6f8] sm:$0xff]
    %v1060 = vld [vmem:[#allocation6 + $0x700] sm:$0xff]
    %v1061 = vld [vmem:[#allocation6 + $0x708] sm:$0xff]
    %v1062 = vld [vmem:[#allocation6 + $0x710] sm:$0xff]
    %v1063 = vld [vmem:[#allocation6 + $0x718] sm:$0xf]
    %v1064 = vld [vmem:[#allocation6 + $0x71c] sm:$0xff]
    %v1065 = vld [vmem:[#allocation6 + $0x724] sm:$0xff]
    %v1066 = vld [vmem:[#allocation6 + $0x72c] sm:$0xff]
    %v1067 = vld [vmem:[#allocation6 + $0x734] sm:$0xff]
    %v1068 = vld [vmem:[#allocation6 + $0x73c] sm:$0xff]
    %v1069 = vld [vmem:[#allocation6 + $0x744] sm:$0xff]
    %v1070 = vld [vmem:[#allocation6 + $0x74c] sm:$0xf]
    %v1071 = vld [vmem:[#allocation6 + $0x750] sm:$0xff]
    %v1072 = vld [vmem:[#allocation6 + $0x758] sm:$0xff]
    %v1073 = vld [vmem:[#allocation6 + $0x760] sm:$0xff]
    %v1074 = vld [vmem:[#allocation6 + $0x768] sm:$0xff]
    %v1075 = vld [vmem:[#allocation6 + $0x770] sm:$0xff]
    %v1076 = vld [vmem:[#allocation6 + $0x778] sm:$0xff]
    %v1077 = vld [vmem:[#allocation6 + $0x780] sm:$0xf]
    %v1078 = vld [vmem:[#allocation6 + $0x784] sm:$0xff]
    %v1079 = vld [vmem:[#allocation6 + $0x78c] sm:$0xff]
    %v1080 = vld [vmem:[#allocation6 + $0x794] sm:$0xff]
    %v1081 = vld [vmem:[#allocation6 + $0x79c] sm:$0xff]
    %v1082 = vld [vmem:[#allocation6 + $0x7a4] sm:$0xff]
    %v1083 = vld [vmem:[#allocation6 + $0x7ac] sm:$0xff]
    %v1084 = vld [vmem:[#allocation6 + $0x7b4] sm:$0xf]
    %v1085 = vld [vmem:[#allocation6 + $0x7b8] sm:$0xff]
    %v1086 = vld [vmem:[#allocation6 + $0x7c0] sm:$0xff]
    %v1087 = vld [vmem:[#allocation6 + $0x7c8] sm:$0xff]
    %v1088 = vld [vmem:[#allocation6 + $0x7d0] sm:$0xff]
    %v1089 = vld [vmem:[#allocation6 + $0x7d8] sm:$0xff]
    %v1090 = vld [vmem:[#allocation6 + $0x7e0] sm:$0xff]
    %v1091 = vld [vmem:[#allocation6 + $0x7e8] sm:$0xf]
    %v1092 = vld [vmem:[#allocation6 + $0x7ec] sm:$0xff]
    %v1093 = vld [vmem:[#allocation6 + $0x7f4] sm:$0xff]
    %v1094 = vld [vmem:[#allocation6 + $0x7fc] sm:$0xff]
    %v1095 = vld [vmem:[#allocation6 + $0x804] sm:$0xff]
    %v1096 = vld [vmem:[#allocation6 + $0x80c] sm:$0xff]
    %v1097 = vld [vmem:[#allocation6 + $0x814] sm:$0xff]
    %v1098 = vld [vmem:[#allocation6 + $0x81c] sm:$0xf]
    %v1099 = vld [vmem:[#allocation6 + $0x820] sm:$0xff]
    %v1100 = vld [vmem:[#allocation6 + $0x828] sm:$0xff]
    %v1101 = vld [vmem:[#allocation6 + $0x830] sm:$0xff]
    %v1102 = vld [vmem:[#allocation6 + $0x838] sm:$0xff]
    %v1103 = vld [vmem:[#allocation6 + $0x840] sm:$0xff]
    %v1104 = vld [vmem:[#allocation6 + $0x848] sm:$0xff]
    %v1105 = vld [vmem:[#allocation6 + $0x850] sm:$0xf]
    %v1106 = vld [vmem:[#allocation6 + $0x854] sm:$0xff]
    %v1107 = vld [vmem:[#allocation6 + $0x85c] sm:$0xff]
    %v1108 = vld [vmem:[#allocation6 + $0x864] sm:$0xff]
    %v1109 = vld [vmem:[#allocation6 + $0x86c] sm:$0xff]
    %v1110 = vld [vmem:[#allocation6 + $0x874] sm:$0xff]
    %v1111 = vld [vmem:[#allocation6 + $0x87c] sm:$0xff]
    %v1112 = vld [vmem:[#allocation6 + $0x884] sm:$0xf]
    %v1113 = vld [vmem:[#allocation6 + $0x888] sm:$0xff]
    %v1114 = vld [vmem:[#allocation6 + $0x890] sm:$0xff]
    %v1115 = vld [vmem:[#allocation6 + $0x898] sm:$0xff]
    %v1116 = vld [vmem:[#allocation6 + $0x8a0] sm:$0xff]
    %v1117 = vld [vmem:[#allocation6 + $0x8a8] sm:$0xff]
    %v1118 = vld [vmem:[#allocation6 + $0x8b0] sm:$0xff]
    %v1119 = vld [vmem:[#allocation6 + $0x8b8] sm:$0xf]
    %v1120 = vld [vmem:[#allocation6 + $0x8bc] sm:$0xff]
    %v1121 = vld [vmem:[#allocation6 + $0x8c4] sm:$0xff]
    %v1122 = vld [vmem:[#allocation6 + $0x8cc] sm:$0xff]
    %v1123 = vld [vmem:[#allocation6 + $0x8d4] sm:$0xff]
    %v1124 = vld [vmem:[#allocation6 + $0x8dc] sm:$0xff]
    %v1125 = vld [vmem:[#allocation6 + $0x8e4] sm:$0xff]
    %v1126 = vld [vmem:[#allocation6 + $0x8ec] sm:$0xf]
    %v1127 = vld [vmem:[#allocation6 + $0x8f0] sm:$0xff]
    %v1128 = vld [vmem:[#allocation6 + $0x8f8] sm:$0xff]
    %v1129 = vld [vmem:[#allocation6 + $0x900] sm:$0xff]
    %v1130 = vld [vmem:[#allocation6 + $0x908] sm:$0xff]
    %v1131 = vld [vmem:[#allocation6 + $0x910] sm:$0xff]
    %v1132 = vld [vmem:[#allocation6 + $0x918] sm:$0xff]
    %v1133 = vld [vmem:[#allocation6 + $0x920] sm:$0xf]
    %v1134 = vld [vmem:[#allocation6 + $0x924] sm:$0xff]
    %v1135 = vld [vmem:[#allocation6 + $0x92c] sm:$0xff]
    %v1136 = vld [vmem:[#allocation6 + $0x934] sm:$0xff]
    %v1137 = vld [vmem:[#allocation6 + $0x93c] sm:$0xff]
    %v1138 = vld [vmem:[#allocation6 + $0x944] sm:$0xff]
    %v1139 = vld [vmem:[#allocation6 + $0x94c] sm:$0xff]
    %v1140 = vld [vmem:[#allocation6 + $0x954] sm:$0xf]
    %v1141 = vld [vmem:[#allocation6 + $0x958] sm:$0xff]
    %v1142 = vld [vmem:[#allocation6 + $0x960] sm:$0xff]
    %v1143 = vld [vmem:[#allocation6 + $0x968] sm:$0xff]
    %v1144 = vld [vmem:[#allocation6 + $0x970] sm:$0xff]
    %v1145 = vld [vmem:[#allocation6 + $0x978] sm:$0xff]
    %v1146 = vld [vmem:[#allocation6 + $0x980] sm:$0xff]
    %v1147 = vld [vmem:[#allocation6 + $0x988] sm:$0xf]
    %v1148 = vld [vmem:[#allocation6 + $0x98c] sm:$0xff]
    %v1149 = vld [vmem:[#allocation6 + $0x994] sm:$0xff]
    %v1150 = vld [vmem:[#allocation6 + $0x99c] sm:$0xff]
    %v1151 = vld [vmem:[#allocation6 + $0x9a4] sm:$0xff]
    %v1152 = vld [vmem:[#allocation6 + $0x9ac] sm:$0xff]
    %v1153 = vld [vmem:[#allocation6 + $0x9b4] sm:$0xff]
    %v1154 = vld [vmem:[#allocation6 + $0x9bc] sm:$0xf]
    %v1155 = vld [vmem:[#allocation6 + $0x9c0] sm:$0xff]
    %v1156 = vld [vmem:[#allocation6 + $0x9c8] sm:$0xff]
    %v1157 = vld [vmem:[#allocation6 + $0x9d0] sm:$0xff]
    %v1158 = vld [vmem:[#allocation6 + $0x9d8] sm:$0xff]
    %v1159 = vld [vmem:[#allocation6 + $0x9e0] sm:$0xff]
    %v1160 = vld [vmem:[#allocation6 + $0x9e8] sm:$0xff]
    %v1161 = vld [vmem:[#allocation6 + $0x9f0] sm:$0xf]
    %v1162 = vld [vmem:[#allocation6 + $0x9f4] sm:$0xff]
    %v1163 = vld [vmem:[#allocation6 + $0x9fc] sm:$0xff]
    %v1164 = vld [vmem:[#allocation6 + $0xa04] sm:$0xff]
    %v1165 = vld [vmem:[#allocation6 + $0xa0c] sm:$0xff]
    %v1166 = vld [vmem:[#allocation6 + $0xa14] sm:$0xff]
    %v1167 = vld [vmem:[#allocation6 + $0xa1c] sm:$0xff]
    %v1168 = vld [vmem:[#allocation6 + $0xa24] sm:$0xf]
    %v1169 = vld [vmem:[#allocation6 + $0xa28] sm:$0xff]
    %v1170 = vld [vmem:[#allocation6 + $0xa30] sm:$0xff]
    %v1171 = vld [vmem:[#allocation6 + $0xa38] sm:$0xff]
    %v1172 = vld [vmem:[#allocation6 + $0xa40] sm:$0xff]
    %v1173 = vld [vmem:[#allocation6 + $0xa48] sm:$0xff]
    %v1174 = vld [vmem:[#allocation6 + $0xa50] sm:$0xff]
    %v1175 = vld [vmem:[#allocation6 + $0xa58] sm:$0xf]
    %v1176 = vld [vmem:[#allocation6 + $0xa5c] sm:$0xff]
    %v1177 = vld [vmem:[#allocation6 + $0xa64] sm:$0xff]
    %v1178 = vld [vmem:[#allocation6 + $0xa6c] sm:$0xff]
    %v1179 = vld [vmem:[#allocation6 + $0xa74] sm:$0xff]
    %v1180 = vld [vmem:[#allocation6 + $0xa7c] sm:$0xff]
    %v1181 = vld [vmem:[#allocation6 + $0xa84] sm:$0xff]
    %v1182 = vld [vmem:[#allocation6 + $0xa8c] sm:$0xf]
    %v1183 = vld [vmem:[#allocation6 + $0xa90] sm:$0xff]
    %v1184 = vld [vmem:[#allocation6 + $0xa98] sm:$0xff]
    %v1185 = vld [vmem:[#allocation6 + $0xaa0] sm:$0xff]
    %v1186 = vld [vmem:[#allocation6 + $0xaa8] sm:$0xff]
    %v1187 = vld [vmem:[#allocation6 + $0xab0] sm:$0xff]
    %v1188 = vld [vmem:[#allocation6 + $0xab8] sm:$0xff]
    %v1189 = vld [vmem:[#allocation6 + $0xac0] sm:$0xf]
    %v1190 = vld [vmem:[#allocation6 + $0xac4] sm:$0xff]
    %v1191 = vld [vmem:[#allocation6 + $0xacc] sm:$0xff]
    %v1192 = vld [vmem:[#allocation6 + $0xad4] sm:$0xff]
    %v1193 = vld [vmem:[#allocation6 + $0xadc] sm:$0xff]
    %v1194 = vld [vmem:[#allocation6 + $0xae4] sm:$0xff]
    %v1195 = vld [vmem:[#allocation6 + $0xaec] sm:$0xff]
    %v1196 = vld [vmem:[#allocation6 + $0xaf4] sm:$0xf]
    %v1197 = vld [vmem:[#allocation6 + $0xaf8] sm:$0xff]
    %v1198 = vld [vmem:[#allocation6 + $0xb00] sm:$0xff]
    %v1199 = vld [vmem:[#allocation6 + $0xb08] sm:$0xff]
    %v1200 = vld [vmem:[#allocation6 + $0xb10] sm:$0xff]
    %v1201 = vld [vmem:[#allocation6 + $0xb18] sm:$0xff]
    %v1202 = vld [vmem:[#allocation6 + $0xb20] sm:$0xff]
    %v1203 = vld [vmem:[#allocation6 + $0xb28] sm:$0xf]
    %v1204 = vld [vmem:[#allocation6 + $0xb2c] sm:$0xff]
    %v1205 = vld [vmem:[#allocation6 + $0xb34] sm:$0xff]
    %v1206 = vld [vmem:[#allocation6 + $0xb3c] sm:$0xff]
    %v1207 = vld [vmem:[#allocation6 + $0xb44] sm:$0xff]
    %v1208 = vld [vmem:[#allocation6 + $0xb4c] sm:$0xff]
    %v1209 = vld [vmem:[#allocation6 + $0xb54] sm:$0xff]
    %v1210 = vld [vmem:[#allocation6 + $0xb5c] sm:$0xf]
    %v1211 = vld [vmem:[#allocation6 + $0xb60] sm:$0xff]
    %v1212 = vld [vmem:[#allocation6 + $0xb68] sm:$0xff]
    %v1213 = vld [vmem:[#allocation6 + $0xb70] sm:$0xff]
    %v1214 = vld [vmem:[#allocation6 + $0xb78] sm:$0xff]
    %v1215 = vld [vmem:[#allocation6 + $0xb80] sm:$0xff]
    %v1216 = vld [vmem:[#allocation6 + $0xb88] sm:$0xff]
    %v1217 = vld [vmem:[#allocation6 + $0xb90] sm:$0xf]
    %v1218 = vld [vmem:[#allocation6 + $0xb94] sm:$0xff]
    %v1219 = vld [vmem:[#allocation6 + $0xb9c] sm:$0xff]
    %v1220 = vld [vmem:[#allocation6 + $0xba4] sm:$0xff]
    %v1221 = vld [vmem:[#allocation6 + $0xbac] sm:$0xff]
    %v1222 = vld [vmem:[#allocation6 + $0xbb4] sm:$0xff]
    %v1223 = vld [vmem:[#allocation6 + $0xbbc] sm:$0xff]
    %v1224 = vld [vmem:[#allocation6 + $0xbc4] sm:$0xf]
    %v1225 = vld [vmem:[#allocation6 + $0xbc8] sm:$0xff]
    %v1226 = vld [vmem:[#allocation6 + $0xbd0] sm:$0xff]
    %v1227 = vld [vmem:[#allocation6 + $0xbd8] sm:$0xff]
    %v1228 = vld [vmem:[#allocation6 + $0xbe0] sm:$0xff]
    %v1229 = vld [vmem:[#allocation6 + $0xbe8] sm:$0xff]
    %v1230 = vld [vmem:[#allocation6 + $0xbf0] sm:$0xff]
    %v1231 = vld [vmem:[#allocation6 + $0xbf8] sm:$0xf]
    %v1232 = vld [vmem:[#allocation6 + $0xbfc] sm:$0xff]
    %v1233 = vld [vmem:[#allocation6 + $0xc04] sm:$0xff]
    %v1234 = vld [vmem:[#allocation6 + $0xc0c] sm:$0xff]
    %v1235 = vld [vmem:[#allocation6 + $0xc14] sm:$0xff]
    %v1236 = vld [vmem:[#allocation6 + $0xc1c] sm:$0xff]
    %v1237 = vld [vmem:[#allocation6 + $0xc24] sm:$0xff]
    %v1238 = vld [vmem:[#allocation6 + $0xc2c] sm:$0xf]
    %v1239 = vld [vmem:[#allocation6 + $0xc30] sm:$0xff]
    %v1240 = vld [vmem:[#allocation6 + $0xc38] sm:$0xff]
    %v1241 = vld [vmem:[#allocation6 + $0xc40] sm:$0xff]
    %v1242 = vld [vmem:[#allocation6 + $0xc48] sm:$0xff]
    %v1243 = vld [vmem:[#allocation6 + $0xc50] sm:$0xff]
    %v1244 = vld [vmem:[#allocation6 + $0xc58] sm:$0xff]
    %v1245 = vld [vmem:[#allocation6 + $0xc60] sm:$0xf]
    %v1246 = vld [vmem:[#allocation6 + $0xc64] sm:$0xff]
    %v1247 = vld [vmem:[#allocation6 + $0xc6c] sm:$0xff]
    %v1248 = vld [vmem:[#allocation6 + $0xc74] sm:$0xff]
    %v1249 = vld [vmem:[#allocation6 + $0xc7c] sm:$0xff]
    %v1250 = vld [vmem:[#allocation6 + $0xc84] sm:$0xff]
    %v1251 = vld [vmem:[#allocation6 + $0xc8c] sm:$0xff]
    %v1252 = vld [vmem:[#allocation6 + $0xc94] sm:$0xf]
    %v1253 = vld [vmem:[#allocation6 + $0xc98] sm:$0xff]
    %v1254 = vld [vmem:[#allocation6 + $0xca0] sm:$0xff]
    %v1255 = vld [vmem:[#allocation6 + $0xca8] sm:$0xff]
    %v1256 = vld [vmem:[#allocation6 + $0xcb0] sm:$0xff]
    %v1257 = vld [vmem:[#allocation6 + $0xcb8] sm:$0xff]
    %v1258 = vld [vmem:[#allocation6 + $0xcc0] sm:$0xff]
    %v1259 = vld [vmem:[#allocation6 + $0xcc8] sm:$0xf]
    %v1260 = vld [vmem:[#allocation6 + $0xccc] sm:$0xff]
    %v1261 = vld [vmem:[#allocation6 + $0xcd4] sm:$0xff]
    %v1262 = vld [vmem:[#allocation6 + $0xcdc] sm:$0xff]
    %v1263 = vld [vmem:[#allocation6 + $0xce4] sm:$0xff]
    %v1264 = vld [vmem:[#allocation6 + $0xcec] sm:$0xff]
    %v1265 = vld [vmem:[#allocation6 + $0xcf4] sm:$0xff]
    %v1266 = vld [vmem:[#allocation6 + $0xcfc] sm:$0xf]
    %v1267 = vld [vmem:[#allocation6 + $0xd00] sm:$0xff]
    %v1268 = vld [vmem:[#allocation6 + $0xd08] sm:$0xff]
    %v1269 = vld [vmem:[#allocation6 + $0xd10] sm:$0xff]
    %v1270 = vld [vmem:[#allocation6 + $0xd18] sm:$0xff]
    %v1271 = vld [vmem:[#allocation6 + $0xd20] sm:$0xff]
    %v1272 = vld [vmem:[#allocation6 + $0xd28] sm:$0xff]
    %v1273 = vld [vmem:[#allocation6 + $0xd30] sm:$0xf]
    %v1274 = vld [vmem:[#allocation6 + $0xd34] sm:$0xff]
    %v1275 = vld [vmem:[#allocation6 + $0xd3c] sm:$0xff]
    %v1276 = vld [vmem:[#allocation6 + $0xd44] sm:$0xff]
    %v1277 = vld [vmem:[#allocation6 + $0xd4c] sm:$0xff]
    %v1278 = vld [vmem:[#allocation6 + $0xd54] sm:$0xff]
    %v1279 = vld [vmem:[#allocation6 + $0xd5c] sm:$0xff]
    %v1280 = vld [vmem:[#allocation6 + $0xd64] sm:$0xf]
    %v1281 = vld [vmem:[#allocation6 + $0xd68] sm:$0xff]
    %v1282 = vld [vmem:[#allocation6 + $0xd70] sm:$0xff]
    %v1283 = vld [vmem:[#allocation6 + $0xd78] sm:$0xff]
    %v1284 = vld [vmem:[#allocation6 + $0xd80] sm:$0xff]
    %v1285 = vld [vmem:[#allocation6 + $0xd88] sm:$0xff]
    %v1286 = vld [vmem:[#allocation6 + $0xd90] sm:$0xff]
    %v1287 = vld [vmem:[#allocation6 + $0xd98] sm:$0xf]
    %v1288 = vld [vmem:[#allocation6 + $0xd9c] sm:$0xff]
    %v1289 = vld [vmem:[#allocation6 + $0xda4] sm:$0xff]
    %v1290 = vld [vmem:[#allocation6 + $0xdac] sm:$0xff]
    %v1291 = vld [vmem:[#allocation6 + $0xdb4] sm:$0xff]
    %v1292 = vld [vmem:[#allocation6 + $0xdbc] sm:$0xff]
    %v1293 = vld [vmem:[#allocation6 + $0xdc4] sm:$0xff]
    %v1294 = vld [vmem:[#allocation6 + $0xdcc] sm:$0xf]
    %v1295 = vld [vmem:[#allocation6 + $0xdd0] sm:$0xff]
    %v1296 = vld [vmem:[#allocation6 + $0xdd8] sm:$0xff]
    %v1297 = vld [vmem:[#allocation6 + $0xde0] sm:$0xff]
    %v1298 = vld [vmem:[#allocation6 + $0xde8] sm:$0xff]
    %v1299 = vld [vmem:[#allocation6 + $0xdf0] sm:$0xff]
    %v1300 = vld [vmem:[#allocation6 + $0xdf8] sm:$0xff]
    %v1301 = vld [vmem:[#allocation6 + $0xe00] sm:$0xf]
    %v1302 = vld [vmem:[#allocation6 + $0xe04] sm:$0xff]
    %v1303 = vld [vmem:[#allocation6 + $0xe0c] sm:$0xff]
    %v1304 = vld [vmem:[#allocation6 + $0xe14] sm:$0xff]
    %v1305 = vld [vmem:[#allocation6 + $0xe1c] sm:$0xff]
    %v1306 = vld [vmem:[#allocation6 + $0xe24] sm:$0xff]
    %v1307 = vld [vmem:[#allocation6 + $0xe2c] sm:$0xff]
    %v1308 = vld [vmem:[#allocation6 + $0xe34] sm:$0xf]
    %v1309 = vld [vmem:[#allocation6 + $0xe38] sm:$0xff]
    %v1310 = vld [vmem:[#allocation6 + $0xe40] sm:$0xff]
    %v1311 = vld [vmem:[#allocation6 + $0xe48] sm:$0xff]
    %v1312 = vld [vmem:[#allocation6 + $0xe50] sm:$0xff]
    %v1313 = vld [vmem:[#allocation6 + $0xe58] sm:$0xff]
    %v1314 = vld [vmem:[#allocation6 + $0xe60] sm:$0xff]
    %v1315 = vld [vmem:[#allocation6 + $0xe68] sm:$0xf]
    %v1316 = vld [vmem:[#allocation6 + $0xe6c] sm:$0xff]
    %v1317 = vld [vmem:[#allocation6 + $0xe74] sm:$0xff]
    %v1318 = vld [vmem:[#allocation6 + $0xe7c] sm:$0xff]
    %v1319 = vld [vmem:[#allocation6 + $0xe84] sm:$0xff]
    %v1320 = vld [vmem:[#allocation6 + $0xe8c] sm:$0xff]
    %v1321 = vld [vmem:[#allocation6 + $0xe94] sm:$0xff]
    %v1322 = vld [vmem:[#allocation6 + $0xe9c] sm:$0xf]
    %v1323 = vld [vmem:[#allocation6 + $0xea0] sm:$0xff]
    %v1324 = vld [vmem:[#allocation6 + $0xea8] sm:$0xff]
    %v1325 = vld [vmem:[#allocation6 + $0xeb0] sm:$0xff]
    %v1326 = vld [vmem:[#allocation6 + $0xeb8] sm:$0xff]
    %v1327 = vld [vmem:[#allocation6 + $0xec0] sm:$0xff]
    %v1328 = vld [vmem:[#allocation6 + $0xec8] sm:$0xff]
    %v1329 = vld [vmem:[#allocation6 + $0xed0] sm:$0xf]
    %v1330 = vld [vmem:[#allocation6 + $0xed4] sm:$0xff]
    %v1331 = vld [vmem:[#allocation6 + $0xedc] sm:$0xff]
    %v1332 = vld [vmem:[#allocation6 + $0xee4] sm:$0xff]
    %v1333 = vld [vmem:[#allocation6 + $0xeec] sm:$0xff]
    %v1334 = vld [vmem:[#allocation6 + $0xef4] sm:$0xff]
    %v1335 = vld [vmem:[#allocation6 + $0xefc] sm:$0xff]
    %v1336 = vld [vmem:[#allocation6 + $0xf04] sm:$0xf]
    %v1337 = vld [vmem:[#allocation6 + $0xf08] sm:$0xff]
    %v1338 = vld [vmem:[#allocation6 + $0xf10] sm:$0xff]
    %v1339 = vld [vmem:[#allocation6 + $0xf18] sm:$0xff]
    %v1340 = vld [vmem:[#allocation6 + $0xf20] sm:$0xff]
    %v1341 = vld [vmem:[#allocation6 + $0xf28] sm:$0xff]
    %v1342 = vld [vmem:[#allocation6 + $0xf30] sm:$0xff]
    %v1343 = vld [vmem:[#allocation6 + $0xf38] sm:$0xf]
    %v1344 = vld [vmem:[#allocation6 + $0xf3c] sm:$0xff]
    %v1345 = vld [vmem:[#allocation6 + $0xf44] sm:$0xff]
    %v1346 = vld [vmem:[#allocation6 + $0xf4c] sm:$0xff]
    %v1347 = vld [vmem:[#allocation6 + $0xf54] sm:$0xff]
    %v1348 = vld [vmem:[#allocation6 + $0xf5c] sm:$0xff]
    %v1349 = vld [vmem:[#allocation6 + $0xf64] sm:$0xff]
    %v1350 = vld [vmem:[#allocation6 + $0xf6c] sm:$0xf]
    %v1351 = vld [vmem:[#allocation6 + $0xf70] sm:$0xff]
    %v1352 = vld [vmem:[#allocation6 + $0xf78] sm:$0xff]
    %v1353 = vld [vmem:[#allocation6 + $0xf80] sm:$0xff]
    %v1354 = vld [vmem:[#allocation6 + $0xf88] sm:$0xff]
    %v1355 = vld [vmem:[#allocation6 + $0xf90] sm:$0xff]
    %v1356 = vld [vmem:[#allocation6 + $0xf98] sm:$0xff]
    %v1357 = vld [vmem:[#allocation6 + $0xfa0] sm:$0xf]
    %v1358 = vld [vmem:[#allocation6 + $0xfa4] sm:$0xff]
    %v1359 = vld [vmem:[#allocation6 + $0xfac] sm:$0xff]
    %v1360 = vld [vmem:[#allocation6 + $0xfb4] sm:$0xff]
    %v1361 = vld [vmem:[#allocation6 + $0xfbc] sm:$0xff]
    %v1362 = vld [vmem:[#allocation6 + $0xfc4] sm:$0xff]
    %v1363 = vld [vmem:[#allocation6 + $0xfcc] sm:$0xff]
    %v1364 = vld [vmem:[#allocation6 + $0xfd4] sm:$0xf]
    %v1365 = vld [vmem:[#allocation6 + $0xfd8] sm:$0xff]
    %v1366 = vld [vmem:[#allocation6 + $0xfe0] sm:$0xff]
    %v1367 = vld [vmem:[#allocation6 + $0xfe8] sm:$0xff]
    %v1368 = vld [vmem:[#allocation6 + $0xff0] sm:$0xff]
    %v1369 = vld [vmem:[#allocation6 + $0xff8] sm:$0xff]
    %v1370 = vld [vmem:[#allocation6 + $0x1000] sm:$0xff]
    %v1371 = vld [vmem:[#allocation6 + $0x1008] sm:$0xf]
    %v1372 = vld [vmem:[#allocation6 + $0x100c] sm:$0xff]
    %v1373 = vld [vmem:[#allocation6 + $0x1014] sm:$0xff]
    %v1374 = vld [vmem:[#allocation6 + $0x101c] sm:$0xff]
    %v1375 = vld [vmem:[#allocation6 + $0x1024] sm:$0xff]
    %v1376 = vld [vmem:[#allocation6 + $0x102c] sm:$0xff]
    %v1377 = vld [vmem:[#allocation6 + $0x1034] sm:$0xff]
    %v1378 = vld [vmem:[#allocation6 + $0x103c] sm:$0xf]
    %v1379 = vld [vmem:[#allocation6 + $0x1040] sm:$0xff]
    %v1380 = vld [vmem:[#allocation6 + $0x1048] sm:$0xff]
    %v1381 = vld [vmem:[#allocation6 + $0x1050] sm:$0xff]
    %v1382 = vld [vmem:[#allocation6 + $0x1058] sm:$0xff]
    %v1383 = vld [vmem:[#allocation6 + $0x1060] sm:$0xff]
    %v1384 = vld [vmem:[#allocation6 + $0x1068] sm:$0xff]
    %v1385 = vld [vmem:[#allocation6 + $0x1070] sm:$0xf]
    %v1386 = vld [vmem:[#allocation6 + $0x1074] sm:$0xff]
    %v1387 = vld [vmem:[#allocation6 + $0x107c] sm:$0xff]
    %v1388 = vld [vmem:[#allocation6 + $0x1084] sm:$0xff]
    %v1389 = vld [vmem:[#allocation6 + $0x108c] sm:$0xff]
    %v1390 = vld [vmem:[#allocation6 + $0x1094] sm:$0xff]
    %v1391 = vld [vmem:[#allocation6 + $0x109c] sm:$0xff]
    %v1392 = vld [vmem:[#allocation6 + $0x10a4] sm:$0xf]
    %v1393 = vld [vmem:[#allocation6 + $0x10a8] sm:$0xff]
    %v1394 = vld [vmem:[#allocation6 + $0x10b0] sm:$0xff]
    %v1395 = vld [vmem:[#allocation6 + $0x10b8] sm:$0xff]
    %v1396 = vld [vmem:[#allocation6 + $0x10c0] sm:$0xff]
    %v1397 = vld [vmem:[#allocation6 + $0x10c8] sm:$0xff]
    %v1398 = vld [vmem:[#allocation6 + $0x10d0] sm:$0xff]
    %v1399 = vld [vmem:[#allocation6 + $0x10d8] sm:$0xf]
    %v1400 = vld [vmem:[#allocation6 + $0x10dc] sm:$0xff]
    %v1401 = vld [vmem:[#allocation6 + $0x10e4] sm:$0xff]
    %v1402 = vld [vmem:[#allocation6 + $0x10ec] sm:$0xff]
    %v1403 = vld [vmem:[#allocation6 + $0x10f4] sm:$0xff]
    %v1404 = vld [vmem:[#allocation6 + $0x10fc] sm:$0xff]
    %v1405 = vld [vmem:[#allocation6 + $0x1104] sm:$0xff]
    %v1406 = vld [vmem:[#allocation6 + $0x110c] sm:$0xf]
    %v1407 = vld [vmem:[#allocation6 + $0x1110] sm:$0xff]
    %v1408 = vld [vmem:[#allocation6 + $0x1118] sm:$0xff]
    %v1409 = vld [vmem:[#allocation6 + $0x1120] sm:$0xff]
    %v1410 = vld [vmem:[#allocation6 + $0x1128] sm:$0xff]
    %v1411 = vld [vmem:[#allocation6 + $0x1130] sm:$0xff]
    %v1412 = vld [vmem:[#allocation6 + $0x1138] sm:$0xff]
    %v1413 = vld [vmem:[#allocation6 + $0x1140] sm:$0xf]
    %v1414 = vld [vmem:[#allocation6 + $0x1144] sm:$0xff]
    %v1415 = vld [vmem:[#allocation6 + $0x114c] sm:$0xff]
    %v1416 = vld [vmem:[#allocation6 + $0x1154] sm:$0xff]
    %v1417 = vld [vmem:[#allocation6 + $0x115c] sm:$0xff]
    %v1418 = vld [vmem:[#allocation6 + $0x1164] sm:$0xff]
    %v1419 = vld [vmem:[#allocation6 + $0x116c] sm:$0xff]
    %v1420 = vld [vmem:[#allocation6 + $0x1174] sm:$0xf]
    %v1421 = vld [vmem:[#allocation6 + $0x1178] sm:$0xff]
    %v1422 = vld [vmem:[#allocation6 + $0x1180] sm:$0xff]
    %v1423 = vld [vmem:[#allocation6 + $0x1188] sm:$0xff]
    %v1424 = vld [vmem:[#allocation6 + $0x1190] sm:$0xff]
    %v1425 = vld [vmem:[#allocation6 + $0x1198] sm:$0xff]
    %v1426 = vld [vmem:[#allocation6 + $0x11a0] sm:$0xff]
    %v1427 = vld [vmem:[#allocation6 + $0x11a8] sm:$0xf]
    %v1428 = vld [vmem:[#allocation6 + $0x11ac] sm:$0xff]
    %v1429 = vld [vmem:[#allocation6 + $0x11b4] sm:$0xff]
    %v1430 = vld [vmem:[#allocation6 + $0x11bc] sm:$0xff]
    %v1431 = vld [vmem:[#allocation6 + $0x11c4] sm:$0xff]
    %v1432 = vld [vmem:[#allocation6 + $0x11cc] sm:$0xff]
    %v1433 = vld [vmem:[#allocation6 + $0x11d4] sm:$0xff]
    %v1434 = vld [vmem:[#allocation6 + $0x11dc] sm:$0xf]
    %v1435 = vld [vmem:[#allocation6 + $0x11e0] sm:$0xff]
    %v1436 = vld [vmem:[#allocation6 + $0x11e8] sm:$0xff]
    %v1437 = vld [vmem:[#allocation6 + $0x11f0] sm:$0xff]
    %v1438 = vld [vmem:[#allocation6 + $0x11f8] sm:$0xff]
    %v1439 = vld [vmem:[#allocation6 + $0x1200] sm:$0xff]
    %v1440 = vld [vmem:[#allocation6 + $0x1208] sm:$0xff]
    %v1441 = vld [vmem:[#allocation6 + $0x1210] sm:$0xf]
    %v1442 = vld [vmem:[#allocation6 + $0x1214] sm:$0xff]
    %v1443 = vld [vmem:[#allocation6 + $0x121c] sm:$0xff]
    %v1444 = vld [vmem:[#allocation6 + $0x1224] sm:$0xff]
    %v1445 = vld [vmem:[#allocation6 + $0x122c] sm:$0xff]
    %v1446 = vld [vmem:[#allocation6 + $0x1234] sm:$0xff]
    %v1447 = vld [vmem:[#allocation6 + $0x123c] sm:$0xff]
    %v1448 = vld [vmem:[#allocation6 + $0x1244] sm:$0xf]
    %v1449 = vld [vmem:[#allocation6 + $0x1248] sm:$0xff]
    %v1450 = vld [vmem:[#allocation6 + $0x1250] sm:$0xff]
    %v1451 = vld [vmem:[#allocation6 + $0x1258] sm:$0xff]
    %v1452 = vld [vmem:[#allocation6 + $0x1260] sm:$0xff]
    %v1453 = vld [vmem:[#allocation6 + $0x1268] sm:$0xff]
    %v1454 = vld [vmem:[#allocation6 + $0x1270] sm:$0xff]
    %v1455 = vld [vmem:[#allocation6 + $0x1278] sm:$0xf]
    %v1456 = vld [vmem:[#allocation6 + $0x127c] sm:$0xff]
    %v1457 = vld [vmem:[#allocation6 + $0x1284] sm:$0xff]
    %v1458 = vld [vmem:[#allocation6 + $0x128c] sm:$0xff]
    %v1459 = vld [vmem:[#allocation6 + $0x1294] sm:$0xff]
    %v1460 = vld [vmem:[#allocation6 + $0x129c] sm:$0xff]
    %v1461 = vld [vmem:[#allocation6 + $0x12a4] sm:$0xff]
    %v1462 = vld [vmem:[#allocation6 + $0x12ac] sm:$0xf]
    %v1463 = vld [vmem:[#allocation6 + $0x12b0] sm:$0xff]
    %v1464 = vld [vmem:[#allocation6 + $0x12b8] sm:$0xff]
    %v1465 = vld [vmem:[#allocation6 + $0x12c0] sm:$0xff]
    %v1466 = vld [vmem:[#allocation6 + $0x12c8] sm:$0xff]
    %v1467 = vld [vmem:[#allocation6 + $0x12d0] sm:$0xff]
    %v1468 = vld [vmem:[#allocation6 + $0x12d8] sm:$0xff]
    %v1469 = vld [vmem:[#allocation6 + $0x12e0] sm:$0xf]
    %v1470 = vld [vmem:[#allocation6 + $0x12e4] sm:$0xff]
    %v1471 = vld [vmem:[#allocation6 + $0x12ec] sm:$0xff]
    %v1472 = vld [vmem:[#allocation6 + $0x12f4] sm:$0xff]
    %v1473 = vld [vmem:[#allocation6 + $0x12fc] sm:$0xff]
    %v1474 = vld [vmem:[#allocation6 + $0x1304] sm:$0xff]
    %v1475 = vld [vmem:[#allocation6 + $0x130c] sm:$0xff]
    %v1476 = vld [vmem:[#allocation6 + $0x1314] sm:$0xf]
    %v1477 = vld [vmem:[#allocation6 + $0x1318] sm:$0xff]
    %v1478 = vld [vmem:[#allocation6 + $0x1320] sm:$0xff]
    %v1479 = vld [vmem:[#allocation6 + $0x1328] sm:$0xff]
    %v1480 = vld [vmem:[#allocation6 + $0x1330] sm:$0xff]
    %v1481 = vld [vmem:[#allocation6 + $0x1338] sm:$0xff]
    %v1482 = vld [vmem:[#allocation6 + $0x1340] sm:$0xff]
    %v1483 = vld [vmem:[#allocation6 + $0x1348] sm:$0xf]
    %v1484 = vld [vmem:[#allocation6 + $0x134c] sm:$0xff]
    %v1485 = vld [vmem:[#allocation6 + $0x1354] sm:$0xff]
    %v1486 = vld [vmem:[#allocation6 + $0x135c] sm:$0xff]
    %v1487 = vld [vmem:[#allocation6 + $0x1364] sm:$0xff]
    %v1488 = vld [vmem:[#allocation6 + $0x136c] sm:$0xff]
    %v1489 = vld [vmem:[#allocation6 + $0x1374] sm:$0xff]
    %v1490 = vld [vmem:[#allocation6 + $0x137c] sm:$0xf]
    %v1491 = vld [vmem:[#allocation6 + $0x1380] sm:$0xff]
    %v1492 = vld [vmem:[#allocation6 + $0x1388] sm:$0xff]
    %v1493 = vld [vmem:[#allocation6 + $0x1390] sm:$0xff]
    %v1494 = vld [vmem:[#allocation6 + $0x1398] sm:$0xff]
    %v1495 = vld [vmem:[#allocation6 + $0x13a0] sm:$0xff]
    %v1496 = vld [vmem:[#allocation6 + $0x13a8] sm:$0xff]
    %v1497 = vld [vmem:[#allocation6 + $0x13b0] sm:$0xf]
    %v1498 = vld [vmem:[#allocation6 + $0x13b4] sm:$0xff]
    %v1499 = vld [vmem:[#allocation6 + $0x13bc] sm:$0xff]
    %v1500 = vld [vmem:[#allocation6 + $0x13c4] sm:$0xff]
    %v1501 = vld [vmem:[#allocation6 + $0x13cc] sm:$0xff]
    %v1502 = vld [vmem:[#allocation6 + $0x13d4] sm:$0xff]
    %v1503 = vld [vmem:[#allocation6 + $0x13dc] sm:$0xff]
    %v1504 = vld [vmem:[#allocation6 + $0x13e4] sm:$0xf]
    %v1505 = vld [vmem:[#allocation7] sm:$0xff]
    %v1506 = vld [vmem:[#allocation7 + $0x8] sm:$0x1f]
    %v1509 = vlaneseq
    %v1510 = vshrl.u32 %v1509, 7
    %v1511 = vsub.s32 0, %v1510
    %v1512 = vrot.slane %v1505, %v1511
    %v1513 = vlaneseq
    %v1514 = vshrl.u32 %v1513, 7
    %v1515 = vsub.s32 1, %v1514
    %v1516 = vrot.slane %v1505, %v1515
    %v1517 = vlaneseq
    %v1518 = vshrl.u32 %v1517, 7
    %v1519 = vsub.s32 2, %v1518
    %v1520 = vrot.slane %v1505, %v1519
    %v1521 = vlaneseq
    %v1522 = vshrl.u32 %v1521, 7
    %v1523 = vsub.s32 3, %v1522
    %v1524 = vrot.slane %v1505, %v1523
    %v1525 = vlaneseq
    %v1526 = vshrl.u32 %v1525, 7
    %v1527 = vsub.s32 4, %v1526
    %v1528 = vrot.slane %v1505, %v1527
    %v1529 = vlaneseq
    %v1530 = vshrl.u32 %v1529, 7
    %v1531 = vsub.s32 5, %v1530
    %v1532 = vrot.slane %v1505, %v1531
    %v1533 = vlaneseq
    %v1534 = vshrl.u32 %v1533, 7
    %v1535 = vsub.s32 6, %v1534
    %v1536 = vrot.slane %v1505, %v1535
    %v1537 = vlaneseq
    %v1538 = vshrl.u32 %v1537, 7
    %v1539 = vsub.s32 7, %v1538
    %v1540 = vrot.slane %v1505, %v1539
    %v1541 = vlaneseq
    %v1542 = vshrl.u32 %v1541, 7
    %v1543 = vsub.s32 0, %v1542
    %v1544 = vrot.slane %v1506, %v1543
    %v1545 = vlaneseq
    %v1546 = vshrl.u32 %v1545, 7
    %v1547 = vsub.s32 1, %v1546
    %v1548 = vrot.slane %v1506, %v1547
    %v1549 = vlaneseq
    %v1550 = vshrl.u32 %v1549, 7
    %v1551 = vsub.s32 2, %v1550
    %v1552 = vrot.slane %v1506, %v1551
    %v1553 = vlaneseq
    %v1554 = vshrl.u32 %v1553, 7
    %v1555 = vsub.s32 3, %v1554
    %v1556 = vrot.slane %v1506, %v1555
    %v1557 = vlaneseq
    %v1558 = vshrl.u32 %v1557, 7
    %v1559 = vsub.s32 4, %v1558
    %v1560 = vrot.slane %v1506, %v1559
    %v2260 = vunpack.c.l.b16 %v819
    %v2261 = vunpack.c.h.b16 %v819
    %v2262 = vunpack.c.l.b16 %v820
    %v2263 = vunpack.c.h.b16 %v820
    %v2264 = vunpack.c.l.b16 %v821
    %v2265 = vunpack.c.h.b16 %v821
    %v2266 = vunpack.c.l.b16 %v822
    %v2267 = vunpack.c.h.b16 %v822
    %v2268 = vunpack.c.l.b16 %v823
    %v2269 = vunpack.c.h.b16 %v823
    %v2270 = vunpack.c.l.b16 %v824
    %v2271 = vunpack.c.h.b16 %v824
    %v2272 = vunpack.c.l.b16 %v825
    %v2273 = vunpack.c.l.b16 %v826
    %v2274 = vunpack.c.h.b16 %v826
    %v2275 = vunpack.c.l.b16 %v827
    %v2276 = vunpack.c.h.b16 %v827
    %v2277 = vunpack.c.l.b16 %v828
    %v2278 = vunpack.c.h.b16 %v828
    %v2279 = vunpack.c.l.b16 %v829
    %v2280 = vunpack.c.h.b16 %v829
    %v2281 = vunpack.c.l.b16 %v830
    %v2282 = vunpack.c.h.b16 %v830
    %v2283 = vunpack.c.l.b16 %v831
    %v2284 = vunpack.c.h.b16 %v831
    %v2285 = vunpack.c.l.b16 %v832
    %v2286 = vunpack.c.l.b16 %v833
    %v2287 = vunpack.c.h.b16 %v833
    %v2288 = vunpack.c.l.b16 %v834
    %v2289 = vunpack.c.h.b16 %v834
    %v2290 = vunpack.c.l.b16 %v835
    %v2291 = vunpack.c.h.b16 %v835
    %v2292 = vunpack.c.l.b16 %v836
    %v2293 = vunpack.c.h.b16 %v836
    %v2294 = vunpack.c.l.b16 %v837
    %v2295 = vunpack.c.h.b16 %v837
    %v2296 = vunpack.c.l.b16 %v838
    %v2297 = vunpack.c.h.b16 %v838
    %v2298 = vunpack.c.l.b16 %v839
    %v2299 = vunpack.c.l.b16 %v840
    %v2300 = vunpack.c.h.b16 %v840
    %v2301 = vunpack.c.l.b16 %v841
    %v2302 = vunpack.c.h.b16 %v841
    %v2303 = vunpack.c.l.b16 %v842
    %v2304 = vunpack.c.h.b16 %v842
    %v2305 = vunpack.c.l.b16 %v843
    %v2306 = vunpack.c.h.b16 %v843
    %v2307 = vunpack.c.l.b16 %v844
    %v2308 = vunpack.c.h.b16 %v844
    %v2309 = vunpack.c.l.b16 %v845
    %v2310 = vunpack.c.h.b16 %v845
    %v2311 = vunpack.c.l.b16 %v846
    %v2312 = vunpack.c.l.b16 %v847
    %v2313 = vunpack.c.h.b16 %v847
    %v2314 = vunpack.c.l.b16 %v848
    %v2315 = vunpack.c.h.b16 %v848
    %v2316 = vunpack.c.l.b16 %v849
    %v2317 = vunpack.c.h.b16 %v849
    %v2318 = vunpack.c.l.b16 %v850
    %v2319 = vunpack.c.h.b16 %v850
    %v2320 = vunpack.c.l.b16 %v851
    %v2321 = vunpack.c.h.b16 %v851
    %v2322 = vunpack.c.l.b16 %v852
    %v2323 = vunpack.c.h.b16 %v852
    %v2324 = vunpack.c.l.b16 %v853
    %v2325 = vunpack.c.l.b16 %v854
    %v2326 = vunpack.c.h.b16 %v854
    %v2327 = vunpack.c.l.b16 %v855
    %v2328 = vunpack.c.h.b16 %v855
    %v2329 = vunpack.c.l.b16 %v856
    %v2330 = vunpack.c.h.b16 %v856
    %v2331 = vunpack.c.l.b16 %v857
    %v2332 = vunpack.c.h.b16 %v857
    %v2333 = vunpack.c.l.b16 %v858
    %v2334 = vunpack.c.h.b16 %v858
    %v2335 = vunpack.c.l.b16 %v859
    %v2336 = vunpack.c.h.b16 %v859
    %v2337 = vunpack.c.l.b16 %v860
    %v2338 = vunpack.c.l.b16 %v861
    %v2339 = vunpack.c.h.b16 %v861
    %v2340 = vunpack.c.l.b16 %v862
    %v2341 = vunpack.c.h.b16 %v862
    %v2342 = vunpack.c.l.b16 %v863
    %v2343 = vunpack.c.h.b16 %v863
    %v2344 = vunpack.c.l.b16 %v864
    %v2345 = vunpack.c.h.b16 %v864
    %v2346 = vunpack.c.l.b16 %v865
    %v2347 = vunpack.c.h.b16 %v865
    %v2348 = vunpack.c.l.b16 %v866
    %v2349 = vunpack.c.h.b16 %v866
    %v2350 = vunpack.c.l.b16 %v867
    %v2351 = vunpack.c.l.b16 %v868
    %v2352 = vunpack.c.h.b16 %v868
    %v2353 = vunpack.c.l.b16 %v869
    %v2354 = vunpack.c.h.b16 %v869
    %v2355 = vunpack.c.l.b16 %v870
    %v2356 = vunpack.c.h.b16 %v870
    %v2357 = vunpack.c.l.b16 %v871
    %v2358 = vunpack.c.h.b16 %v871
    %v2359 = vunpack.c.l.b16 %v872
    %v2360 = vunpack.c.h.b16 %v872
    %v2361 = vunpack.c.l.b16 %v873
    %v2362 = vunpack.c.h.b16 %v873
    %v2363 = vunpack.c.l.b16 %v874
    %v2364 = vunpack.c.l.b16 %v875
    %v2365 = vunpack.c.h.b16 %v875
    %v2366 = vunpack.c.l.b16 %v876
    %v2367 = vunpack.c.h.b16 %v876
    %v2368 = vunpack.c.l.b16 %v877
    %v2369 = vunpack.c.h.b16 %v877
    %v2370 = vunpack.c.l.b16 %v878
    %v2371 = vunpack.c.h.b16 %v878
    %v2372 = vunpack.c.l.b16 %v879
    %v2373 = vunpack.c.h.b16 %v879
    %v2374 = vunpack.c.l.b16 %v880
    %v2375 = vunpack.c.h.b16 %v880
    %v2376 = vunpack.c.l.b16 %v881
    %v2377 = vunpack.c.l.b16 %v882
    %v2378 = vunpack.c.h.b16 %v882
    %v2379 = vunpack.c.l.b16 %v883
    %v2380 = vunpack.c.h.b16 %v883
    %v2381 = vunpack.c.l.b16 %v884
    %v2382 = vunpack.c.h.b16 %v884
    %v2383 = vunpack.c.l.b16 %v885
    %v2384 = vunpack.c.h.b16 %v885
    %v2385 = vunpack.c.l.b16 %v886
    %v2386 = vunpack.c.h.b16 %v886
    %v2387 = vunpack.c.l.b16 %v887
    %v2388 = vunpack.c.h.b16 %v887
    %v2389 = vunpack.c.l.b16 %v888
    %v2390 = vunpack.c.l.b16 %v889
    %v2391 = vunpack.c.h.b16 %v889
    %v2392 = vunpack.c.l.b16 %v890
    %v2393 = vunpack.c.h.b16 %v890
    %v2394 = vunpack.c.l.b16 %v891
    %v2395 = vunpack.c.h.b16 %v891
    %v2396 = vunpack.c.l.b16 %v892
    %v2397 = vunpack.c.h.b16 %v892
    %v2398 = vunpack.c.l.b16 %v893
    %v2399 = vunpack.c.h.b16 %v893
    %v2400 = vunpack.c.l.b16 %v894
    %v2401 = vunpack.c.h.b16 %v894
    %v2402 = vunpack.c.l.b16 %v895
    %v2403 = vunpack.c.l.b16 %v896
    %v2404 = vunpack.c.h.b16 %v896
    %v2405 = vunpack.c.l.b16 %v897
    %v2406 = vunpack.c.h.b16 %v897
    %v2407 = vunpack.c.l.b16 %v898
    %v2408 = vunpack.c.h.b16 %v898
    %v2409 = vunpack.c.l.b16 %v899
    %v2410 = vunpack.c.h.b16 %v899
    %v2411 = vunpack.c.l.b16 %v900
    %v2412 = vunpack.c.h.b16 %v900
    %v2413 = vunpack.c.l.b16 %v901
    %v2414 = vunpack.c.h.b16 %v901
    %v2415 = vunpack.c.l.b16 %v902
    %v2416 = vunpack.c.l.b16 %v903
    %v2417 = vunpack.c.h.b16 %v903
    %v2418 = vunpack.c.l.b16 %v904
    %v2419 = vunpack.c.h.b16 %v904
    %v2420 = vunpack.c.l.b16 %v905
    %v2421 = vunpack.c.h.b16 %v905
    %v2422 = vunpack.c.l.b16 %v906
    %v2423 = vunpack.c.h.b16 %v906
    %v2424 = vunpack.c.l.b16 %v907
    %v2425 = vunpack.c.h.b16 %v907
    %v2426 = vunpack.c.l.b16 %v908
    %v2427 = vunpack.c.h.b16 %v908
    %v2428 = vunpack.c.l.b16 %v909
    %v2429 = vunpack.c.l.b16 %v910
    %v2430 = vunpack.c.h.b16 %v910
    %v2431 = vunpack.c.l.b16 %v911
    %v2432 = vunpack.c.h.b16 %v911
    %v2433 = vunpack.c.l.b16 %v912
    %v2434 = vunpack.c.h.b16 %v912
    %v2435 = vunpack.c.l.b16 %v913
    %v2436 = vunpack.c.h.b16 %v913
    %v2437 = vunpack.c.l.b16 %v914
    %v2438 = vunpack.c.h.b16 %v914
    %v2439 = vunpack.c.l.b16 %v915
    %v2440 = vunpack.c.h.b16 %v915
    %v2441 = vunpack.c.l.b16 %v916
    %v2442 = vunpack.c.l.b16 %v917
    %v2443 = vunpack.c.h.b16 %v917
    %v2444 = vunpack.c.l.b16 %v918
    %v2445 = vunpack.c.h.b16 %v918
    %v2446 = vunpack.c.l.b16 %v919
    %v2447 = vunpack.c.h.b16 %v919
    %v2448 = vunpack.c.l.b16 %v920
    %v2449 = vunpack.c.h.b16 %v920
    %v2450 = vunpack.c.l.b16 %v921
    %v2451 = vunpack.c.h.b16 %v921
    %v2452 = vunpack.c.l.b16 %v922
    %v2453 = vunpack.c.h.b16 %v922
    %v2454 = vunpack.c.l.b16 %v923
    %v2455 = vunpack.c.l.b16 %v924
    %v2456 = vunpack.c.h.b16 %v924
    %v2457 = vunpack.c.l.b16 %v925
    %v2458 = vunpack.c.h.b16 %v925
    %v2459 = vunpack.c.l.b16 %v926
    %v2460 = vunpack.c.h.b16 %v926
    %v2461 = vunpack.c.l.b16 %v927
    %v2462 = vunpack.c.h.b16 %v927
    %v2463 = vunpack.c.l.b16 %v928
    %v2464 = vunpack.c.h.b16 %v928
    %v2465 = vunpack.c.l.b16 %v929
    %v2466 = vunpack.c.h.b16 %v929
    %v2467 = vunpack.c.l.b16 %v930
    %v2468 = vunpack.c.l.b16 %v931
    %v2469 = vunpack.c.h.b16 %v931
    %v2470 = vunpack.c.l.b16 %v932
    %v2471 = vunpack.c.h.b16 %v932
    %v2472 = vunpack.c.l.b16 %v933
    %v2473 = vunpack.c.h.b16 %v933
    %v2474 = vunpack.c.l.b16 %v934
    %v2475 = vunpack.c.h.b16 %v934
    %v2476 = vunpack.c.l.b16 %v935
    %v2477 = vunpack.c.h.b16 %v935
    %v2478 = vunpack.c.l.b16 %v936
    %v2479 = vunpack.c.h.b16 %v936
    %v2480 = vunpack.c.l.b16 %v937
    %v2481 = vunpack.c.l.b16 %v938
    %v2482 = vunpack.c.h.b16 %v938
    %v2483 = vunpack.c.l.b16 %v939
    %v2484 = vunpack.c.h.b16 %v939
    %v2485 = vunpack.c.l.b16 %v940
    %v2486 = vunpack.c.h.b16 %v940
    %v2487 = vunpack.c.l.b16 %v941
    %v2488 = vunpack.c.h.b16 %v941
    %v2489 = vunpack.c.l.b16 %v942
    %v2490 = vunpack.c.h.b16 %v942
    %v2491 = vunpack.c.l.b16 %v943
    %v2492 = vunpack.c.h.b16 %v943
    %v2493 = vunpack.c.l.b16 %v944
    %v2494 = vunpack.c.l.b16 %v945
    %v2495 = vunpack.c.h.b16 %v945
    %v2496 = vunpack.c.l.b16 %v946
    %v2497 = vunpack.c.h.b16 %v946
    %v2498 = vunpack.c.l.b16 %v947
    %v2499 = vunpack.c.h.b16 %v947
    %v2500 = vunpack.c.l.b16 %v948
    %v2501 = vunpack.c.h.b16 %v948
    %v2502 = vunpack.c.l.b16 %v949
    %v2503 = vunpack.c.h.b16 %v949
    %v2504 = vunpack.c.l.b16 %v950
    %v2505 = vunpack.c.h.b16 %v950
    %v2506 = vunpack.c.l.b16 %v951
    %v2507 = vunpack.c.l.b16 %v952
    %v2508 = vunpack.c.h.b16 %v952
    %v2509 = vunpack.c.l.b16 %v953
    %v2510 = vunpack.c.h.b16 %v953
    %v2511 = vunpack.c.l.b16 %v954
    %v2512 = vunpack.c.h.b16 %v954
    %v2513 = vunpack.c.l.b16 %v955
    %v2514 = vunpack.c.h.b16 %v955
    %v2515 = vunpack.c.l.b16 %v956
    %v2516 = vunpack.c.h.b16 %v956
    %v2517 = vunpack.c.l.b16 %v957
    %v2518 = vunpack.c.h.b16 %v957
    %v2519 = vunpack.c.l.b16 %v958
    %v2520 = vunpack.c.l.b16 %v959
    %v2521 = vunpack.c.h.b16 %v959
    %v2522 = vunpack.c.l.b16 %v960
    %v2523 = vunpack.c.h.b16 %v960
    %v2524 = vunpack.c.l.b16 %v961
    %v2525 = vunpack.c.h.b16 %v961
    %v2526 = vunpack.c.l.b16 %v962
    %v2527 = vunpack.c.h.b16 %v962
    %v2528 = vunpack.c.l.b16 %v963
    %v2529 = vunpack.c.h.b16 %v963
    %v2530 = vunpack.c.l.b16 %v964
    %v2531 = vunpack.c.h.b16 %v964
    %v2532 = vunpack.c.l.b16 %v965
    %v2533 = vunpack.c.l.b16 %v966
    %v2534 = vunpack.c.h.b16 %v966
    %v2535 = vunpack.c.l.b16 %v967
    %v2536 = vunpack.c.h.b16 %v967
    %v2537 = vunpack.c.l.b16 %v968
    %v2538 = vunpack.c.h.b16 %v968
    %v2539 = vunpack.c.l.b16 %v969
    %v2540 = vunpack.c.h.b16 %v969
    %v2541 = vunpack.c.l.b16 %v970
    %v2542 = vunpack.c.h.b16 %v970
    %v2543 = vunpack.c.l.b16 %v971
    %v2544 = vunpack.c.h.b16 %v971
    %v2545 = vunpack.c.l.b16 %v972
    %v2546 = vunpack.c.l.b16 %v973
    %v2547 = vunpack.c.h.b16 %v973
    %v2548 = vunpack.c.l.b16 %v974
    %v2549 = vunpack.c.h.b16 %v974
    %v2550 = vunpack.c.l.b16 %v975
    %v2551 = vunpack.c.h.b16 %v975
    %v2552 = vunpack.c.l.b16 %v976
    %v2553 = vunpack.c.h.b16 %v976
    %v2554 = vunpack.c.l.b16 %v977
    %v2555 = vunpack.c.h.b16 %v977
    %v2556 = vunpack.c.l.b16 %v978
    %v2557 = vunpack.c.h.b16 %v978
    %v2558 = vunpack.c.l.b16 %v979
    %v2559 = vunpack.c.l.b16 %v980
    %v2560 = vunpack.c.h.b16 %v980
    %v2561 = vunpack.c.l.b16 %v981
    %v2562 = vunpack.c.h.b16 %v981
    %v2563 = vunpack.c.l.b16 %v982
    %v2564 = vunpack.c.h.b16 %v982
    %v2565 = vunpack.c.l.b16 %v983
    %v2566 = vunpack.c.h.b16 %v983
    %v2567 = vunpack.c.l.b16 %v984
    %v2568 = vunpack.c.h.b16 %v984
    %v2569 = vunpack.c.l.b16 %v985
    %v2570 = vunpack.c.h.b16 %v985
    %v2571 = vunpack.c.l.b16 %v986
    %v2572 = vunpack.c.l.b16 %v987
    %v2573 = vunpack.c.h.b16 %v987
    %v2574 = vunpack.c.l.b16 %v988
    %v2575 = vunpack.c.h.b16 %v988
    %v2576 = vunpack.c.l.b16 %v989
    %v2577 = vunpack.c.h.b16 %v989
    %v2578 = vunpack.c.l.b16 %v990
    %v2579 = vunpack.c.h.b16 %v990
    %v2580 = vunpack.c.l.b16 %v991
    %v2581 = vunpack.c.h.b16 %v991
    %v2582 = vunpack.c.l.b16 %v992
    %v2583 = vunpack.c.h.b16 %v992
    %v2584 = vunpack.c.l.b16 %v993
    %v2585 = vunpack.c.l.b16 %v994
    %v2586 = vunpack.c.h.b16 %v994
    %v2587 = vunpack.c.l.b16 %v995
    %v2588 = vunpack.c.h.b16 %v995
    %v2589 = vunpack.c.l.b16 %v996
    %v2590 = vunpack.c.h.b16 %v996
    %v2591 = vunpack.c.l.b16 %v997
    %v2592 = vunpack.c.h.b16 %v997
    %v2593 = vunpack.c.l.b16 %v998
    %v2594 = vunpack.c.h.b16 %v998
    %v2595 = vunpack.c.l.b16 %v999
    %v2596 = vunpack.c.h.b16 %v999
    %v2597 = vunpack.c.l.b16 %v1000
    %v2598 = vunpack.c.l.b16 %v1001
    %v2599 = vunpack.c.h.b16 %v1001
    %v2600 = vunpack.c.l.b16 %v1002
    %v2601 = vunpack.c.h.b16 %v1002
    %v2602 = vunpack.c.l.b16 %v1003
    %v2603 = vunpack.c.h.b16 %v1003
    %v2604 = vunpack.c.l.b16 %v1004
    %v2605 = vunpack.c.h.b16 %v1004
    %v2606 = vunpack.c.l.b16 %v1005
    %v2607 = vunpack.c.h.b16 %v1005
    %v2608 = vunpack.c.l.b16 %v1006
    %v2609 = vunpack.c.h.b16 %v1006
    %v2610 = vunpack.c.l.b16 %v1007
    %v2611 = vunpack.c.l.b16 %v1008
    %v2612 = vunpack.c.h.b16 %v1008
    %v2613 = vunpack.c.l.b16 %v1009
    %v2614 = vunpack.c.h.b16 %v1009
    %v2615 = vunpack.c.l.b16 %v1010
    %v2616 = vunpack.c.h.b16 %v1010
    %v2617 = vunpack.c.l.b16 %v1011
    %v2618 = vunpack.c.h.b16 %v1011
    %v2619 = vunpack.c.l.b16 %v1012
    %v2620 = vunpack.c.h.b16 %v1012
    %v2621 = vunpack.c.l.b16 %v1013
    %v2622 = vunpack.c.h.b16 %v1013
    %v2623 = vunpack.c.l.b16 %v1014
    %v2624 = vunpack.c.l.b16 %v1015
    %v2625 = vunpack.c.h.b16 %v1015
    %v2626 = vunpack.c.l.b16 %v1016
    %v2627 = vunpack.c.h.b16 %v1016
    %v2628 = vunpack.c.l.b16 %v1017
    %v2629 = vunpack.c.h.b16 %v1017
    %v2630 = vunpack.c.l.b16 %v1018
    %v2631 = vunpack.c.h.b16 %v1018
    %v2632 = vunpack.c.l.b16 %v1019
    %v2633 = vunpack.c.h.b16 %v1019
    %v2634 = vunpack.c.l.b16 %v1020
    %v2635 = vunpack.c.h.b16 %v1020
    %v2636 = vunpack.c.l.b16 %v1021
    %v2637 = vunpack.c.l.b16 %v1022
    %v2638 = vunpack.c.h.b16 %v1022
    %v2639 = vunpack.c.l.b16 %v1023
    %v2640 = vunpack.c.h.b16 %v1023
    %v2641 = vunpack.c.l.b16 %v1024
    %v2642 = vunpack.c.h.b16 %v1024
    %v2643 = vunpack.c.l.b16 %v1025
    %v2644 = vunpack.c.h.b16 %v1025
    %v2645 = vunpack.c.l.b16 %v1026
    %v2646 = vunpack.c.h.b16 %v1026
    %v2647 = vunpack.c.l.b16 %v1027
    %v2648 = vunpack.c.h.b16 %v1027
    %v2649 = vunpack.c.l.b16 %v1028
    %v2650 = vunpack.c.l.b16 %v1029
    %v2651 = vunpack.c.h.b16 %v1029
    %v2652 = vunpack.c.l.b16 %v1030
    %v2653 = vunpack.c.h.b16 %v1030
    %v2654 = vunpack.c.l.b16 %v1031
    %v2655 = vunpack.c.h.b16 %v1031
    %v2656 = vunpack.c.l.b16 %v1032
    %v2657 = vunpack.c.h.b16 %v1032
    %v2658 = vunpack.c.l.b16 %v1033
    %v2659 = vunpack.c.h.b16 %v1033
    %v2660 = vunpack.c.l.b16 %v1034
    %v2661 = vunpack.c.h.b16 %v1034
    %v2662 = vunpack.c.l.b16 %v1035
    %v2663 = vunpack.c.l.b16 %v1036
    %v2664 = vunpack.c.h.b16 %v1036
    %v2665 = vunpack.c.l.b16 %v1037
    %v2666 = vunpack.c.h.b16 %v1037
    %v2667 = vunpack.c.l.b16 %v1038
    %v2668 = vunpack.c.h.b16 %v1038
    %v2669 = vunpack.c.l.b16 %v1039
    %v2670 = vunpack.c.h.b16 %v1039
    %v2671 = vunpack.c.l.b16 %v1040
    %v2672 = vunpack.c.h.b16 %v1040
    %v2673 = vunpack.c.l.b16 %v1041
    %v2674 = vunpack.c.h.b16 %v1041
    %v2675 = vunpack.c.l.b16 %v1042
    %v2676 = vunpack.c.l.b16 %v1043
    %v2677 = vunpack.c.h.b16 %v1043
    %v2678 = vunpack.c.l.b16 %v1044
    %v2679 = vunpack.c.h.b16 %v1044
    %v2680 = vunpack.c.l.b16 %v1045
    %v2681 = vunpack.c.h.b16 %v1045
    %v2682 = vunpack.c.l.b16 %v1046
    %v2683 = vunpack.c.h.b16 %v1046
    %v2684 = vunpack.c.l.b16 %v1047
    %v2685 = vunpack.c.h.b16 %v1047
    %v2686 = vunpack.c.l.b16 %v1048
    %v2687 = vunpack.c.h.b16 %v1048
    %v2688 = vunpack.c.l.b16 %v1049
    %v2689 = vunpack.c.l.b16 %v1050
    %v2690 = vunpack.c.h.b16 %v1050
    %v2691 = vunpack.c.l.b16 %v1051
    %v2692 = vunpack.c.h.b16 %v1051
    %v2693 = vunpack.c.l.b16 %v1052
    %v2694 = vunpack.c.h.b16 %v1052
    %v2695 = vunpack.c.l.b16 %v1053
    %v2696 = vunpack.c.h.b16 %v1053
    %v2697 = vunpack.c.l.b16 %v1054
    %v2698 = vunpack.c.h.b16 %v1054
    %v2699 = vunpack.c.l.b16 %v1055
    %v2700 = vunpack.c.h.b16 %v1055
    %v2701 = vunpack.c.l.b16 %v1056
    %v2702 = vunpack.c.l.b16 %v1057
    %v2703 = vunpack.c.h.b16 %v1057
    %v2704 = vunpack.c.l.b16 %v1058
    %v2705 = vunpack.c.h.b16 %v1058
    %v2706 = vunpack.c.l.b16 %v1059
    %v2707 = vunpack.c.h.b16 %v1059
    %v2708 = vunpack.c.l.b16 %v1060
    %v2709 = vunpack.c.h.b16 %v1060
    %v2710 = vunpack.c.l.b16 %v1061
    %v2711 = vunpack.c.h.b16 %v1061
    %v2712 = vunpack.c.l.b16 %v1062
    %v2713 = vunpack.c.h.b16 %v1062
    %v2714 = vunpack.c.l.b16 %v1063
    %v2715 = vunpack.c.l.b16 %v1064
    %v2716 = vunpack.c.h.b16 %v1064
    %v2717 = vunpack.c.l.b16 %v1065
    %v2718 = vunpack.c.h.b16 %v1065
    %v2719 = vunpack.c.l.b16 %v1066
    %v2720 = vunpack.c.h.b16 %v1066
    %v2721 = vunpack.c.l.b16 %v1067
    %v2722 = vunpack.c.h.b16 %v1067
    %v2723 = vunpack.c.l.b16 %v1068
    %v2724 = vunpack.c.h.b16 %v1068
    %v2725 = vunpack.c.l.b16 %v1069
    %v2726 = vunpack.c.h.b16 %v1069
    %v2727 = vunpack.c.l.b16 %v1070
    %v2728 = vunpack.c.l.b16 %v1071
    %v2729 = vunpack.c.h.b16 %v1071
    %v2730 = vunpack.c.l.b16 %v1072
    %v2731 = vunpack.c.h.b16 %v1072
    %v2732 = vunpack.c.l.b16 %v1073
    %v2733 = vunpack.c.h.b16 %v1073
    %v2734 = vunpack.c.l.b16 %v1074
    %v2735 = vunpack.c.h.b16 %v1074
    %v2736 = vunpack.c.l.b16 %v1075
    %v2737 = vunpack.c.h.b16 %v1075
    %v2738 = vunpack.c.l.b16 %v1076
    %v2739 = vunpack.c.h.b16 %v1076
    %v2740 = vunpack.c.l.b16 %v1077
    %v2741 = vunpack.c.l.b16 %v1078
    %v2742 = vunpack.c.h.b16 %v1078
    %v2743 = vunpack.c.l.b16 %v1079
    %v2744 = vunpack.c.h.b16 %v1079
    %v2745 = vunpack.c.l.b16 %v1080
    %v2746 = vunpack.c.h.b16 %v1080
    %v2747 = vunpack.c.l.b16 %v1081
    %v2748 = vunpack.c.h.b16 %v1081
    %v2749 = vunpack.c.l.b16 %v1082
    %v2750 = vunpack.c.h.b16 %v1082
    %v2751 = vunpack.c.l.b16 %v1083
    %v2752 = vunpack.c.h.b16 %v1083
    %v2753 = vunpack.c.l.b16 %v1084
    %v2754 = vunpack.c.l.b16 %v1085
    %v2755 = vunpack.c.h.b16 %v1085
    %v2756 = vunpack.c.l.b16 %v1086
    %v2757 = vunpack.c.h.b16 %v1086
    %v2758 = vunpack.c.l.b16 %v1087
    %v2759 = vunpack.c.h.b16 %v1087
    %v2760 = vunpack.c.l.b16 %v1088
    %v2761 = vunpack.c.h.b16 %v1088
    %v2762 = vunpack.c.l.b16 %v1089
    %v2763 = vunpack.c.h.b16 %v1089
    %v2764 = vunpack.c.l.b16 %v1090
    %v2765 = vunpack.c.h.b16 %v1090
    %v2766 = vunpack.c.l.b16 %v1091
    %v2767 = vunpack.c.l.b16 %v1092
    %v2768 = vunpack.c.h.b16 %v1092
    %v2769 = vunpack.c.l.b16 %v1093
    %v2770 = vunpack.c.h.b16 %v1093
    %v2771 = vunpack.c.l.b16 %v1094
    %v2772 = vunpack.c.h.b16 %v1094
    %v2773 = vunpack.c.l.b16 %v1095
    %v2774 = vunpack.c.h.b16 %v1095
    %v2775 = vunpack.c.l.b16 %v1096
    %v2776 = vunpack.c.h.b16 %v1096
    %v2777 = vunpack.c.l.b16 %v1097
    %v2778 = vunpack.c.h.b16 %v1097
    %v2779 = vunpack.c.l.b16 %v1098
    %v2780 = vunpack.c.l.b16 %v1099
    %v2781 = vunpack.c.h.b16 %v1099
    %v2782 = vunpack.c.l.b16 %v1100
    %v2783 = vunpack.c.h.b16 %v1100
    %v2784 = vunpack.c.l.b16 %v1101
    %v2785 = vunpack.c.h.b16 %v1101
    %v2786 = vunpack.c.l.b16 %v1102
    %v2787 = vunpack.c.h.b16 %v1102
    %v2788 = vunpack.c.l.b16 %v1103
    %v2789 = vunpack.c.h.b16 %v1103
    %v2790 = vunpack.c.l.b16 %v1104
    %v2791 = vunpack.c.h.b16 %v1104
    %v2792 = vunpack.c.l.b16 %v1105
    %v2793 = vunpack.c.l.b16 %v1106
    %v2794 = vunpack.c.h.b16 %v1106
    %v2795 = vunpack.c.l.b16 %v1107
    %v2796 = vunpack.c.h.b16 %v1107
    %v2797 = vunpack.c.l.b16 %v1108
    %v2798 = vunpack.c.h.b16 %v1108
    %v2799 = vunpack.c.l.b16 %v1109
    %v2800 = vunpack.c.h.b16 %v1109
    %v2801 = vunpack.c.l.b16 %v1110
    %v2802 = vunpack.c.h.b16 %v1110
    %v2803 = vunpack.c.l.b16 %v1111
    %v2804 = vunpack.c.h.b16 %v1111
    %v2805 = vunpack.c.l.b16 %v1112
    %v2806 = vunpack.c.l.b16 %v1113
    %v2807 = vunpack.c.h.b16 %v1113
    %v2808 = vunpack.c.l.b16 %v1114
    %v2809 = vunpack.c.h.b16 %v1114
    %v2810 = vunpack.c.l.b16 %v1115
    %v2811 = vunpack.c.h.b16 %v1115
    %v2812 = vunpack.c.l.b16 %v1116
    %v2813 = vunpack.c.h.b16 %v1116
    %v2814 = vunpack.c.l.b16 %v1117
    %v2815 = vunpack.c.h.b16 %v1117
    %v2816 = vunpack.c.l.b16 %v1118
    %v2817 = vunpack.c.h.b16 %v1118
    %v2818 = vunpack.c.l.b16 %v1119
    %v2819 = vunpack.c.l.b16 %v1120
    %v2820 = vunpack.c.h.b16 %v1120
    %v2821 = vunpack.c.l.b16 %v1121
    %v2822 = vunpack.c.h.b16 %v1121
    %v2823 = vunpack.c.l.b16 %v1122
    %v2824 = vunpack.c.h.b16 %v1122
    %v2825 = vunpack.c.l.b16 %v1123
    %v2826 = vunpack.c.h.b16 %v1123
    %v2827 = vunpack.c.l.b16 %v1124
    %v2828 = vunpack.c.h.b16 %v1124
    %v2829 = vunpack.c.l.b16 %v1125
    %v2830 = vunpack.c.h.b16 %v1125
    %v2831 = vunpack.c.l.b16 %v1126
    %v2832 = vunpack.c.l.b16 %v1127
    %v2833 = vunpack.c.h.b16 %v1127
    %v2834 = vunpack.c.l.b16 %v1128
    %v2835 = vunpack.c.h.b16 %v1128
    %v2836 = vunpack.c.l.b16 %v1129
    %v2837 = vunpack.c.h.b16 %v1129
    %v2838 = vunpack.c.l.b16 %v1130
    %v2839 = vunpack.c.h.b16 %v1130
    %v2840 = vunpack.c.l.b16 %v1131
    %v2841 = vunpack.c.h.b16 %v1131
    %v2842 = vunpack.c.l.b16 %v1132
    %v2843 = vunpack.c.h.b16 %v1132
    %v2844 = vunpack.c.l.b16 %v1133
    %v2845 = vunpack.c.l.b16 %v1134
    %v2846 = vunpack.c.h.b16 %v1134
    %v2847 = vunpack.c.l.b16 %v1135
    %v2848 = vunpack.c.h.b16 %v1135
    %v2849 = vunpack.c.l.b16 %v1136
    %v2850 = vunpack.c.h.b16 %v1136
    %v2851 = vunpack.c.l.b16 %v1137
    %v2852 = vunpack.c.h.b16 %v1137
    %v2853 = vunpack.c.l.b16 %v1138
    %v2854 = vunpack.c.h.b16 %v1138
    %v2855 = vunpack.c.l.b16 %v1139
    %v2856 = vunpack.c.h.b16 %v1139
    %v2857 = vunpack.c.l.b16 %v1140
    %v2858 = vunpack.c.l.b16 %v1141
    %v2859 = vunpack.c.h.b16 %v1141
    %v2860 = vunpack.c.l.b16 %v1142
    %v2861 = vunpack.c.h.b16 %v1142
    %v2862 = vunpack.c.l.b16 %v1143
    %v2863 = vunpack.c.h.b16 %v1143
    %v2864 = vunpack.c.l.b16 %v1144
    %v2865 = vunpack.c.h.b16 %v1144
    %v2866 = vunpack.c.l.b16 %v1145
    %v2867 = vunpack.c.h.b16 %v1145
    %v2868 = vunpack.c.l.b16 %v1146
    %v2869 = vunpack.c.h.b16 %v1146
    %v2870 = vunpack.c.l.b16 %v1147
    %v2871 = vunpack.c.l.b16 %v1148
    %v2872 = vunpack.c.h.b16 %v1148
    %v2873 = vunpack.c.l.b16 %v1149
    %v2874 = vunpack.c.h.b16 %v1149
    %v2875 = vunpack.c.l.b16 %v1150
    %v2876 = vunpack.c.h.b16 %v1150
    %v2877 = vunpack.c.l.b16 %v1151
    %v2878 = vunpack.c.h.b16 %v1151
    %v2879 = vunpack.c.l.b16 %v1152
    %v2880 = vunpack.c.h.b16 %v1152
    %v2881 = vunpack.c.l.b16 %v1153
    %v2882 = vunpack.c.h.b16 %v1153
    %v2883 = vunpack.c.l.b16 %v1154
    %v2884 = vunpack.c.l.b16 %v1155
    %v2885 = vunpack.c.h.b16 %v1155
    %v2886 = vunpack.c.l.b16 %v1156
    %v2887 = vunpack.c.h.b16 %v1156
    %v2888 = vunpack.c.l.b16 %v1157
    %v2889 = vunpack.c.h.b16 %v1157
    %v2890 = vunpack.c.l.b16 %v1158
    %v2891 = vunpack.c.h.b16 %v1158
    %v2892 = vunpack.c.l.b16 %v1159
    %v2893 = vunpack.c.h.b16 %v1159
    %v2894 = vunpack.c.l.b16 %v1160
    %v2895 = vunpack.c.h.b16 %v1160
    %v2896 = vunpack.c.l.b16 %v1161
    %v2897 = vunpack.c.l.b16 %v1162
    %v2898 = vunpack.c.h.b16 %v1162
    %v2899 = vunpack.c.l.b16 %v1163
    %v2900 = vunpack.c.h.b16 %v1163
    %v2901 = vunpack.c.l.b16 %v1164
    %v2902 = vunpack.c.h.b16 %v1164
    %v2903 = vunpack.c.l.b16 %v1165
    %v2904 = vunpack.c.h.b16 %v1165
    %v2905 = vunpack.c.l.b16 %v1166
    %v2906 = vunpack.c.h.b16 %v1166
    %v2907 = vunpack.c.l.b16 %v1167
    %v2908 = vunpack.c.h.b16 %v1167
    %v2909 = vunpack.c.l.b16 %v1168
    %v2910 = vunpack.c.l.b16 %v1169
    %v2911 = vunpack.c.h.b16 %v1169
    %v2912 = vunpack.c.l.b16 %v1170
    %v2913 = vunpack.c.h.b16 %v1170
    %v2914 = vunpack.c.l.b16 %v1171
    %v2915 = vunpack.c.h.b16 %v1171
    %v2916 = vunpack.c.l.b16 %v1172
    %v2917 = vunpack.c.h.b16 %v1172
    %v2918 = vunpack.c.l.b16 %v1173
    %v2919 = vunpack.c.h.b16 %v1173
    %v2920 = vunpack.c.l.b16 %v1174
    %v2921 = vunpack.c.h.b16 %v1174
    %v2922 = vunpack.c.l.b16 %v1175
    %v2923 = vunpack.c.l.b16 %v1176
    %v2924 = vunpack.c.h.b16 %v1176
    %v2925 = vunpack.c.l.b16 %v1177
    %v2926 = vunpack.c.h.b16 %v1177
    %v2927 = vunpack.c.l.b16 %v1178
    %v2928 = vunpack.c.h.b16 %v1178
    %v2929 = vunpack.c.l.b16 %v1179
    %v2930 = vunpack.c.h.b16 %v1179
    %v2931 = vunpack.c.l.b16 %v1180
    %v2932 = vunpack.c.h.b16 %v1180
    %v2933 = vunpack.c.l.b16 %v1181
    %v2934 = vunpack.c.h.b16 %v1181
    %v2935 = vunpack.c.l.b16 %v1182
    %v2936 = vunpack.c.l.b16 %v1183
    %v2937 = vunpack.c.h.b16 %v1183
    %v2938 = vunpack.c.l.b16 %v1184
    %v2939 = vunpack.c.h.b16 %v1184
    %v2940 = vunpack.c.l.b16 %v1185
    %v2941 = vunpack.c.h.b16 %v1185
    %v2942 = vunpack.c.l.b16 %v1186
    %v2943 = vunpack.c.h.b16 %v1186
    %v2944 = vunpack.c.l.b16 %v1187
    %v2945 = vunpack.c.h.b16 %v1187
    %v2946 = vunpack.c.l.b16 %v1188
    %v2947 = vunpack.c.h.b16 %v1188
    %v2948 = vunpack.c.l.b16 %v1189
    %v2949 = vunpack.c.l.b16 %v1190
    %v2950 = vunpack.c.h.b16 %v1190
    %v2951 = vunpack.c.l.b16 %v1191
    %v2952 = vunpack.c.h.b16 %v1191
    %v2953 = vunpack.c.l.b16 %v1192
    %v2954 = vunpack.c.h.b16 %v1192
    %v2955 = vunpack.c.l.b16 %v1193
    %v2956 = vunpack.c.h.b16 %v1193
    %v2957 = vunpack.c.l.b16 %v1194
    %v2958 = vunpack.c.h.b16 %v1194
    %v2959 = vunpack.c.l.b16 %v1195
    %v2960 = vunpack.c.h.b16 %v1195
    %v2961 = vunpack.c.l.b16 %v1196
    %v2962 = vunpack.c.l.b16 %v1197
    %v2963 = vunpack.c.h.b16 %v1197
    %v2964 = vunpack.c.l.b16 %v1198
    %v2965 = vunpack.c.h.b16 %v1198
    %v2966 = vunpack.c.l.b16 %v1199
    %v2967 = vunpack.c.h.b16 %v1199
    %v2968 = vunpack.c.l.b16 %v1200
    %v2969 = vunpack.c.h.b16 %v1200
    %v2970 = vunpack.c.l.b16 %v1201
    %v2971 = vunpack.c.h.b16 %v1201
    %v2972 = vunpack.c.l.b16 %v1202
    %v2973 = vunpack.c.h.b16 %v1202
    %v2974 = vunpack.c.l.b16 %v1203
    %v2975 = vunpack.c.l.b16 %v1204
    %v2976 = vunpack.c.h.b16 %v1204
    %v2977 = vunpack.c.l.b16 %v1205
    %v2978 = vunpack.c.h.b16 %v1205
    %v2979 = vunpack.c.l.b16 %v1206
    %v2980 = vunpack.c.h.b16 %v1206
    %v2981 = vunpack.c.l.b16 %v1207
    %v2982 = vunpack.c.h.b16 %v1207
    %v2983 = vunpack.c.l.b16 %v1208
    %v2984 = vunpack.c.h.b16 %v1208
    %v2985 = vunpack.c.l.b16 %v1209
    %v2986 = vunpack.c.h.b16 %v1209
    %v2987 = vunpack.c.l.b16 %v1210
    %v2988 = vunpack.c.l.b16 %v1211
    %v2989 = vunpack.c.h.b16 %v1211
    %v2990 = vunpack.c.l.b16 %v1212
    %v2991 = vunpack.c.h.b16 %v1212
    %v2992 = vunpack.c.l.b16 %v1213
    %v2993 = vunpack.c.h.b16 %v1213
    %v2994 = vunpack.c.l.b16 %v1214
    %v2995 = vunpack.c.h.b16 %v1214
    %v2996 = vunpack.c.l.b16 %v1215
    %v2997 = vunpack.c.h.b16 %v1215
    %v2998 = vunpack.c.l.b16 %v1216
    %v2999 = vunpack.c.h.b16 %v1216
    %v3000 = vunpack.c.l.b16 %v1217
    %v3001 = vunpack.c.l.b16 %v1218
    %v3002 = vunpack.c.h.b16 %v1218
    %v3003 = vunpack.c.l.b16 %v1219
    %v3004 = vunpack.c.h.b16 %v1219
    %v3005 = vunpack.c.l.b16 %v1220
    %v3006 = vunpack.c.h.b16 %v1220
    %v3007 = vunpack.c.l.b16 %v1221
    %v3008 = vunpack.c.h.b16 %v1221
    %v3009 = vunpack.c.l.b16 %v1222
    %v3010 = vunpack.c.h.b16 %v1222
    %v3011 = vunpack.c.l.b16 %v1223
    %v3012 = vunpack.c.h.b16 %v1223
    %v3013 = vunpack.c.l.b16 %v1224
    %v3014 = vunpack.c.l.b16 %v1225
    %v3015 = vunpack.c.h.b16 %v1225
    %v3016 = vunpack.c.l.b16 %v1226
    %v3017 = vunpack.c.h.b16 %v1226
    %v3018 = vunpack.c.l.b16 %v1227
    %v3019 = vunpack.c.h.b16 %v1227
    %v3020 = vunpack.c.l.b16 %v1228
    %v3021 = vunpack.c.h.b16 %v1228
    %v3022 = vunpack.c.l.b16 %v1229
    %v3023 = vunpack.c.h.b16 %v1229
    %v3024 = vunpack.c.l.b16 %v1230
    %v3025 = vunpack.c.h.b16 %v1230
    %v3026 = vunpack.c.l.b16 %v1231
    %v3027 = vunpack.c.l.b16 %v1232
    %v3028 = vunpack.c.h.b16 %v1232
    %v3029 = vunpack.c.l.b16 %v1233
    %v3030 = vunpack.c.h.b16 %v1233
    %v3031 = vunpack.c.l.b16 %v1234
    %v3032 = vunpack.c.h.b16 %v1234
    %v3033 = vunpack.c.l.b16 %v1235
    %v3034 = vunpack.c.h.b16 %v1235
    %v3035 = vunpack.c.l.b16 %v1236
    %v3036 = vunpack.c.h.b16 %v1236
    %v3037 = vunpack.c.l.b16 %v1237
    %v3038 = vunpack.c.h.b16 %v1237
    %v3039 = vunpack.c.l.b16 %v1238
    %v3040 = vunpack.c.l.b16 %v1239
    %v3041 = vunpack.c.h.b16 %v1239
    %v3042 = vunpack.c.l.b16 %v1240
    %v3043 = vunpack.c.h.b16 %v1240
    %v3044 = vunpack.c.l.b16 %v1241
    %v3045 = vunpack.c.h.b16 %v1241
    %v3046 = vunpack.c.l.b16 %v1242
    %v3047 = vunpack.c.h.b16 %v1242
    %v3048 = vunpack.c.l.b16 %v1243
    %v3049 = vunpack.c.h.b16 %v1243
    %v3050 = vunpack.c.l.b16 %v1244
    %v3051 = vunpack.c.h.b16 %v1244
    %v3052 = vunpack.c.l.b16 %v1245
    %v3053 = vunpack.c.l.b16 %v1246
    %v3054 = vunpack.c.h.b16 %v1246
    %v3055 = vunpack.c.l.b16 %v1247
    %v3056 = vunpack.c.h.b16 %v1247
    %v3057 = vunpack.c.l.b16 %v1248
    %v3058 = vunpack.c.h.b16 %v1248
    %v3059 = vunpack.c.l.b16 %v1249
    %v3060 = vunpack.c.h.b16 %v1249
    %v3061 = vunpack.c.l.b16 %v1250
    %v3062 = vunpack.c.h.b16 %v1250
    %v3063 = vunpack.c.l.b16 %v1251
    %v3064 = vunpack.c.h.b16 %v1251
    %v3065 = vunpack.c.l.b16 %v1252
    %v3066 = vunpack.c.l.b16 %v1253
    %v3067 = vunpack.c.h.b16 %v1253
    %v3068 = vunpack.c.l.b16 %v1254
    %v3069 = vunpack.c.h.b16 %v1254
    %v3070 = vunpack.c.l.b16 %v1255
    %v3071 = vunpack.c.h.b16 %v1255
    %v3072 = vunpack.c.l.b16 %v1256
    %v3073 = vunpack.c.h.b16 %v1256
    %v3074 = vunpack.c.l.b16 %v1257
    %v3075 = vunpack.c.h.b16 %v1257
    %v3076 = vunpack.c.l.b16 %v1258
    %v3077 = vunpack.c.h.b16 %v1258
    %v3078 = vunpack.c.l.b16 %v1259
    %v3079 = vunpack.c.l.b16 %v1260
    %v3080 = vunpack.c.h.b16 %v1260
    %v3081 = vunpack.c.l.b16 %v1261
    %v3082 = vunpack.c.h.b16 %v1261
    %v3083 = vunpack.c.l.b16 %v1262
    %v3084 = vunpack.c.h.b16 %v1262
    %v3085 = vunpack.c.l.b16 %v1263
    %v3086 = vunpack.c.h.b16 %v1263
    %v3087 = vunpack.c.l.b16 %v1264
    %v3088 = vunpack.c.h.b16 %v1264
    %v3089 = vunpack.c.l.b16 %v1265
    %v3090 = vunpack.c.h.b16 %v1265
    %v3091 = vunpack.c.l.b16 %v1266
    %v3092 = vunpack.c.l.b16 %v1267
    %v3093 = vunpack.c.h.b16 %v1267
    %v3094 = vunpack.c.l.b16 %v1268
    %v3095 = vunpack.c.h.b16 %v1268
    %v3096 = vunpack.c.l.b16 %v1269
    %v3097 = vunpack.c.h.b16 %v1269
    %v3098 = vunpack.c.l.b16 %v1270
    %v3099 = vunpack.c.h.b16 %v1270
    %v3100 = vunpack.c.l.b16 %v1271
    %v3101 = vunpack.c.h.b16 %v1271
    %v3102 = vunpack.c.l.b16 %v1272
    %v3103 = vunpack.c.h.b16 %v1272
    %v3104 = vunpack.c.l.b16 %v1273
    %v3105 = vunpack.c.l.b16 %v1274
    %v3106 = vunpack.c.h.b16 %v1274
    %v3107 = vunpack.c.l.b16 %v1275
    %v3108 = vunpack.c.h.b16 %v1275
    %v3109 = vunpack.c.l.b16 %v1276
    %v3110 = vunpack.c.h.b16 %v1276
    %v3111 = vunpack.c.l.b16 %v1277
    %v3112 = vunpack.c.h.b16 %v1277
    %v3113 = vunpack.c.l.b16 %v1278
    %v3114 = vunpack.c.h.b16 %v1278
    %v3115 = vunpack.c.l.b16 %v1279
    %v3116 = vunpack.c.h.b16 %v1279
    %v3117 = vunpack.c.l.b16 %v1280
    %v3118 = vunpack.c.l.b16 %v1281
    %v3119 = vunpack.c.h.b16 %v1281
    %v3120 = vunpack.c.l.b16 %v1282
    %v3121 = vunpack.c.h.b16 %v1282
    %v3122 = vunpack.c.l.b16 %v1283
    %v3123 = vunpack.c.h.b16 %v1283
    %v3124 = vunpack.c.l.b16 %v1284
    %v3125 = vunpack.c.h.b16 %v1284
    %v3126 = vunpack.c.l.b16 %v1285
    %v3127 = vunpack.c.h.b16 %v1285
    %v3128 = vunpack.c.l.b16 %v1286
    %v3129 = vunpack.c.h.b16 %v1286
    %v3130 = vunpack.c.l.b16 %v1287
    %v3131 = vunpack.c.l.b16 %v1288
    %v3132 = vunpack.c.h.b16 %v1288
    %v3133 = vunpack.c.l.b16 %v1289
    %v3134 = vunpack.c.h.b16 %v1289
    %v3135 = vunpack.c.l.b16 %v1290
    %v3136 = vunpack.c.h.b16 %v1290
    %v3137 = vunpack.c.l.b16 %v1291
    %v3138 = vunpack.c.h.b16 %v1291
    %v3139 = vunpack.c.l.b16 %v1292
    %v3140 = vunpack.c.h.b16 %v1292
    %v3141 = vunpack.c.l.b16 %v1293
    %v3142 = vunpack.c.h.b16 %v1293
    %v3143 = vunpack.c.l.b16 %v1294
    %v3144 = vunpack.c.l.b16 %v1295
    %v3145 = vunpack.c.h.b16 %v1295
    %v3146 = vunpack.c.l.b16 %v1296
    %v3147 = vunpack.c.h.b16 %v1296
    %v3148 = vunpack.c.l.b16 %v1297
    %v3149 = vunpack.c.h.b16 %v1297
    %v3150 = vunpack.c.l.b16 %v1298
    %v3151 = vunpack.c.h.b16 %v1298
    %v3152 = vunpack.c.l.b16 %v1299
    %v3153 = vunpack.c.h.b16 %v1299
    %v3154 = vunpack.c.l.b16 %v1300
    %v3155 = vunpack.c.h.b16 %v1300
    %v3156 = vunpack.c.l.b16 %v1301
    %v3157 = vunpack.c.l.b16 %v1302
    %v3158 = vunpack.c.h.b16 %v1302
    %v3159 = vunpack.c.l.b16 %v1303
    %v3160 = vunpack.c.h.b16 %v1303
    %v3161 = vunpack.c.l.b16 %v1304
    %v3162 = vunpack.c.h.b16 %v1304
    %v3163 = vunpack.c.l.b16 %v1305
    %v3164 = vunpack.c.h.b16 %v1305
    %v3165 = vunpack.c.l.b16 %v1306
    %v3166 = vunpack.c.h.b16 %v1306
    %v3167 = vunpack.c.l.b16 %v1307
    %v3168 = vunpack.c.h.b16 %v1307
    %v3169 = vunpack.c.l.b16 %v1308
    %v3170 = vunpack.c.l.b16 %v1309
    %v3171 = vunpack.c.h.b16 %v1309
    %v3172 = vunpack.c.l.b16 %v1310
    %v3173 = vunpack.c.h.b16 %v1310
    %v3174 = vunpack.c.l.b16 %v1311
    %v3175 = vunpack.c.h.b16 %v1311
    %v3176 = vunpack.c.l.b16 %v1312
    %v3177 = vunpack.c.h.b16 %v1312
    %v3178 = vunpack.c.l.b16 %v1313
    %v3179 = vunpack.c.h.b16 %v1313
    %v3180 = vunpack.c.l.b16 %v1314
    %v3181 = vunpack.c.h.b16 %v1314
    %v3182 = vunpack.c.l.b16 %v1315
    %v3183 = vunpack.c.l.b16 %v1316
    %v3184 = vunpack.c.h.b16 %v1316
    %v3185 = vunpack.c.l.b16 %v1317
    %v3186 = vunpack.c.h.b16 %v1317
    %v3187 = vunpack.c.l.b16 %v1318
    %v3188 = vunpack.c.h.b16 %v1318
    %v3189 = vunpack.c.l.b16 %v1319
    %v3190 = vunpack.c.h.b16 %v1319
    %v3191 = vunpack.c.l.b16 %v1320
    %v3192 = vunpack.c.h.b16 %v1320
    %v3193 = vunpack.c.l.b16 %v1321
    %v3194 = vunpack.c.h.b16 %v1321
    %v3195 = vunpack.c.l.b16 %v1322
    %v3196 = vunpack.c.l.b16 %v1323
    %v3197 = vunpack.c.h.b16 %v1323
    %v3198 = vunpack.c.l.b16 %v1324
    %v3199 = vunpack.c.h.b16 %v1324
    %v3200 = vunpack.c.l.b16 %v1325
    %v3201 = vunpack.c.h.b16 %v1325
    %v3202 = vunpack.c.l.b16 %v1326
    %v3203 = vunpack.c.h.b16 %v1326
    %v3204 = vunpack.c.l.b16 %v1327
    %v3205 = vunpack.c.h.b16 %v1327
    %v3206 = vunpack.c.l.b16 %v1328
    %v3207 = vunpack.c.h.b16 %v1328
    %v3208 = vunpack.c.l.b16 %v1329
    %v3209 = vunpack.c.l.b16 %v1330
    %v3210 = vunpack.c.h.b16 %v1330
    %v3211 = vunpack.c.l.b16 %v1331
    %v3212 = vunpack.c.h.b16 %v1331
    %v3213 = vunpack.c.l.b16 %v1332
    %v3214 = vunpack.c.h.b16 %v1332
    %v3215 = vunpack.c.l.b16 %v1333
    %v3216 = vunpack.c.h.b16 %v1333
    %v3217 = vunpack.c.l.b16 %v1334
    %v3218 = vunpack.c.h.b16 %v1334
    %v3219 = vunpack.c.l.b16 %v1335
    %v3220 = vunpack.c.h.b16 %v1335
    %v3221 = vunpack.c.l.b16 %v1336
    %v3222 = vunpack.c.l.b16 %v1337
    %v3223 = vunpack.c.h.b16 %v1337
    %v3224 = vunpack.c.l.b16 %v1338
    %v3225 = vunpack.c.h.b16 %v1338
    %v3226 = vunpack.c.l.b16 %v1339
    %v3227 = vunpack.c.h.b16 %v1339
    %v3228 = vunpack.c.l.b16 %v1340
    %v3229 = vunpack.c.h.b16 %v1340
    %v3230 = vunpack.c.l.b16 %v1341
    %v3231 = vunpack.c.h.b16 %v1341
    %v3232 = vunpack.c.l.b16 %v1342
    %v3233 = vunpack.c.h.b16 %v1342
    %v3234 = vunpack.c.l.b16 %v1343
    %v3235 = vunpack.c.l.b16 %v1344
    %v3236 = vunpack.c.h.b16 %v1344
    %v3237 = vunpack.c.l.b16 %v1345
    %v3238 = vunpack.c.h.b16 %v1345
    %v3239 = vunpack.c.l.b16 %v1346
    %v3240 = vunpack.c.h.b16 %v1346
    %v3241 = vunpack.c.l.b16 %v1347
    %v3242 = vunpack.c.h.b16 %v1347
    %v3243 = vunpack.c.l.b16 %v1348
    %v3244 = vunpack.c.h.b16 %v1348
    %v3245 = vunpack.c.l.b16 %v1349
    %v3246 = vunpack.c.h.b16 %v1349
    %v3247 = vunpack.c.l.b16 %v1350
    %v3248 = vunpack.c.l.b16 %v1351
    %v3249 = vunpack.c.h.b16 %v1351
    %v3250 = vunpack.c.l.b16 %v1352
    %v3251 = vunpack.c.h.b16 %v1352
    %v3252 = vunpack.c.l.b16 %v1353
    %v3253 = vunpack.c.h.b16 %v1353
    %v3254 = vunpack.c.l.b16 %v1354
    %v3255 = vunpack.c.h.b16 %v1354
    %v3256 = vunpack.c.l.b16 %v1355
    %v3257 = vunpack.c.h.b16 %v1355
    %v3258 = vunpack.c.l.b16 %v1356
    %v3259 = vunpack.c.h.b16 %v1356
    %v3260 = vunpack.c.l.b16 %v1357
    %v3261 = vunpack.c.l.b16 %v1358
    %v3262 = vunpack.c.h.b16 %v1358
    %v3263 = vunpack.c.l.b16 %v1359
    %v3264 = vunpack.c.h.b16 %v1359
    %v3265 = vunpack.c.l.b16 %v1360
    %v3266 = vunpack.c.h.b16 %v1360
    %v3267 = vunpack.c.l.b16 %v1361
    %v3268 = vunpack.c.h.b16 %v1361
    %v3269 = vunpack.c.l.b16 %v1362
    %v3270 = vunpack.c.h.b16 %v1362
    %v3271 = vunpack.c.l.b16 %v1363
    %v3272 = vunpack.c.h.b16 %v1363
    %v3273 = vunpack.c.l.b16 %v1364
    %v3274 = vunpack.c.l.b16 %v1365
    %v3275 = vunpack.c.h.b16 %v1365
    %v3276 = vunpack.c.l.b16 %v1366
    %v3277 = vunpack.c.h.b16 %v1366
    %v3278 = vunpack.c.l.b16 %v1367
    %v3279 = vunpack.c.h.b16 %v1367
    %v3280 = vunpack.c.l.b16 %v1368
    %v3281 = vunpack.c.h.b16 %v1368
    %v3282 = vunpack.c.l.b16 %v1369
    %v3283 = vunpack.c.h.b16 %v1369
    %v3284 = vunpack.c.l.b16 %v1370
    %v3285 = vunpack.c.h.b16 %v1370
    %v3286 = vunpack.c.l.b16 %v1371
    %v3287 = vunpack.c.l.b16 %v1372
    %v3288 = vunpack.c.h.b16 %v1372
    %v3289 = vunpack.c.l.b16 %v1373
    %v3290 = vunpack.c.h.b16 %v1373
    %v3291 = vunpack.c.l.b16 %v1374
    %v3292 = vunpack.c.h.b16 %v1374
    %v3293 = vunpack.c.l.b16 %v1375
    %v3294 = vunpack.c.h.b16 %v1375
    %v3295 = vunpack.c.l.b16 %v1376
    %v3296 = vunpack.c.h.b16 %v1376
    %v3297 = vunpack.c.l.b16 %v1377
    %v3298 = vunpack.c.h.b16 %v1377
    %v3299 = vunpack.c.l.b16 %v1378
    %v3300 = vunpack.c.l.b16 %v1379
    %v3301 = vunpack.c.h.b16 %v1379
    %v3302 = vunpack.c.l.b16 %v1380
    %v3303 = vunpack.c.h.b16 %v1380
    %v3304 = vunpack.c.l.b16 %v1381
    %v3305 = vunpack.c.h.b16 %v1381
    %v3306 = vunpack.c.l.b16 %v1382
    %v3307 = vunpack.c.h.b16 %v1382
    %v3308 = vunpack.c.l.b16 %v1383
    %v3309 = vunpack.c.h.b16 %v1383
    %v3310 = vunpack.c.l.b16 %v1384
    %v3311 = vunpack.c.h.b16 %v1384
    %v3312 = vunpack.c.l.b16 %v1385
    %v3313 = vunpack.c.l.b16 %v1386
    %v3314 = vunpack.c.h.b16 %v1386
    %v3315 = vunpack.c.l.b16 %v1387
    %v3316 = vunpack.c.h.b16 %v1387
    %v3317 = vunpack.c.l.b16 %v1388
    %v3318 = vunpack.c.h.b16 %v1388
    %v3319 = vunpack.c.l.b16 %v1389
    %v3320 = vunpack.c.h.b16 %v1389
    %v3321 = vunpack.c.l.b16 %v1390
    %v3322 = vunpack.c.h.b16 %v1390
    %v3323 = vunpack.c.l.b16 %v1391
    %v3324 = vunpack.c.h.b16 %v1391
    %v3325 = vunpack.c.l.b16 %v1392
    %v3326 = vunpack.c.l.b16 %v1393
    %v3327 = vunpack.c.h.b16 %v1393
    %v3328 = vunpack.c.l.b16 %v1394
    %v3329 = vunpack.c.h.b16 %v1394
    %v3330 = vunpack.c.l.b16 %v1395
    %v3331 = vunpack.c.h.b16 %v1395
    %v3332 = vunpack.c.l.b16 %v1396
    %v3333 = vunpack.c.h.b16 %v1396
    %v3334 = vunpack.c.l.b16 %v1397
    %v3335 = vunpack.c.h.b16 %v1397
    %v3336 = vunpack.c.l.b16 %v1398
    %v3337 = vunpack.c.h.b16 %v1398
    %v3338 = vunpack.c.l.b16 %v1399
    %v3339 = vunpack.c.l.b16 %v1400
    %v3340 = vunpack.c.h.b16 %v1400
    %v3341 = vunpack.c.l.b16 %v1401
    %v3342 = vunpack.c.h.b16 %v1401
    %v3343 = vunpack.c.l.b16 %v1402
    %v3344 = vunpack.c.h.b16 %v1402
    %v3345 = vunpack.c.l.b16 %v1403
    %v3346 = vunpack.c.h.b16 %v1403
    %v3347 = vunpack.c.l.b16 %v1404
    %v3348 = vunpack.c.h.b16 %v1404
    %v3349 = vunpack.c.l.b16 %v1405
    %v3350 = vunpack.c.h.b16 %v1405
    %v3351 = vunpack.c.l.b16 %v1406
    %v3352 = vunpack.c.l.b16 %v1407
    %v3353 = vunpack.c.h.b16 %v1407
    %v3354 = vunpack.c.l.b16 %v1408
    %v3355 = vunpack.c.h.b16 %v1408
    %v3356 = vunpack.c.l.b16 %v1409
    %v3357 = vunpack.c.h.b16 %v1409
    %v3358 = vunpack.c.l.b16 %v1410
    %v3359 = vunpack.c.h.b16 %v1410
    %v3360 = vunpack.c.l.b16 %v1411
    %v3361 = vunpack.c.h.b16 %v1411
    %v3362 = vunpack.c.l.b16 %v1412
    %v3363 = vunpack.c.h.b16 %v1412
    %v3364 = vunpack.c.l.b16 %v1413
    %v3365 = vunpack.c.l.b16 %v1414
    %v3366 = vunpack.c.h.b16 %v1414
    %v3367 = vunpack.c.l.b16 %v1415
    %v3368 = vunpack.c.h.b16 %v1415
    %v3369 = vunpack.c.l.b16 %v1416
    %v3370 = vunpack.c.h.b16 %v1416
    %v3371 = vunpack.c.l.b16 %v1417
    %v3372 = vunpack.c.h.b16 %v1417
    %v3373 = vunpack.c.l.b16 %v1418
    %v3374 = vunpack.c.h.b16 %v1418
    %v3375 = vunpack.c.l.b16 %v1419
    %v3376 = vunpack.c.h.b16 %v1419
    %v3377 = vunpack.c.l.b16 %v1420
    %v3378 = vunpack.c.l.b16 %v1421
    %v3379 = vunpack.c.h.b16 %v1421
    %v3380 = vunpack.c.l.b16 %v1422
    %v3381 = vunpack.c.h.b16 %v1422
    %v3382 = vunpack.c.l.b16 %v1423
    %v3383 = vunpack.c.h.b16 %v1423
    %v3384 = vunpack.c.l.b16 %v1424
    %v3385 = vunpack.c.h.b16 %v1424
    %v3386 = vunpack.c.l.b16 %v1425
    %v3387 = vunpack.c.h.b16 %v1425
    %v3388 = vunpack.c.l.b16 %v1426
    %v3389 = vunpack.c.h.b16 %v1426
    %v3390 = vunpack.c.l.b16 %v1427
    %v3391 = vunpack.c.l.b16 %v1428
    %v3392 = vunpack.c.h.b16 %v1428
    %v3393 = vunpack.c.l.b16 %v1429
    %v3394 = vunpack.c.h.b16 %v1429
    %v3395 = vunpack.c.l.b16 %v1430
    %v3396 = vunpack.c.h.b16 %v1430
    %v3397 = vunpack.c.l.b16 %v1431
    %v3398 = vunpack.c.h.b16 %v1431
    %v3399 = vunpack.c.l.b16 %v1432
    %v3400 = vunpack.c.h.b16 %v1432
    %v3401 = vunpack.c.l.b16 %v1433
    %v3402 = vunpack.c.h.b16 %v1433
    %v3403 = vunpack.c.l.b16 %v1434
    %v3404 = vunpack.c.l.b16 %v1435
    %v3405 = vunpack.c.h.b16 %v1435
    %v3406 = vunpack.c.l.b16 %v1436
    %v3407 = vunpack.c.h.b16 %v1436
    %v3408 = vunpack.c.l.b16 %v1437
    %v3409 = vunpack.c.h.b16 %v1437
    %v3410 = vunpack.c.l.b16 %v1438
    %v3411 = vunpack.c.h.b16 %v1438
    %v3412 = vunpack.c.l.b16 %v1439
    %v3413 = vunpack.c.h.b16 %v1439
    %v3414 = vunpack.c.l.b16 %v1440
    %v3415 = vunpack.c.h.b16 %v1440
    %v3416 = vunpack.c.l.b16 %v1441
    %v3417 = vunpack.c.l.b16 %v1442
    %v3418 = vunpack.c.h.b16 %v1442
    %v3419 = vunpack.c.l.b16 %v1443
    %v3420 = vunpack.c.h.b16 %v1443
    %v3421 = vunpack.c.l.b16 %v1444
    %v3422 = vunpack.c.h.b16 %v1444
    %v3423 = vunpack.c.l.b16 %v1445
    %v3424 = vunpack.c.h.b16 %v1445
    %v3425 = vunpack.c.l.b16 %v1446
    %v3426 = vunpack.c.h.b16 %v1446
    %v3427 = vunpack.c.l.b16 %v1447
    %v3428 = vunpack.c.h.b16 %v1447
    %v3429 = vunpack.c.l.b16 %v1448
    %v3430 = vunpack.c.l.b16 %v1449
    %v3431 = vunpack.c.h.b16 %v1449
    %v3432 = vunpack.c.l.b16 %v1450
    %v3433 = vunpack.c.h.b16 %v1450
    %v3434 = vunpack.c.l.b16 %v1451
    %v3435 = vunpack.c.h.b16 %v1451
    %v3436 = vunpack.c.l.b16 %v1452
    %v3437 = vunpack.c.h.b16 %v1452
    %v3438 = vunpack.c.l.b16 %v1453
    %v3439 = vunpack.c.h.b16 %v1453
    %v3440 = vunpack.c.l.b16 %v1454
    %v3441 = vunpack.c.h.b16 %v1454
    %v3442 = vunpack.c.l.b16 %v1455
    %v3443 = vunpack.c.l.b16 %v1456
    %v3444 = vunpack.c.h.b16 %v1456
    %v3445 = vunpack.c.l.b16 %v1457
    %v3446 = vunpack.c.h.b16 %v1457
    %v3447 = vunpack.c.l.b16 %v1458
    %v3448 = vunpack.c.h.b16 %v1458
    %v3449 = vunpack.c.l.b16 %v1459
    %v3450 = vunpack.c.h.b16 %v1459
    %v3451 = vunpack.c.l.b16 %v1460
    %v3452 = vunpack.c.h.b16 %v1460
    %v3453 = vunpack.c.l.b16 %v1461
    %v3454 = vunpack.c.h.b16 %v1461
    %v3455 = vunpack.c.l.b16 %v1462
    %v3456 = vunpack.c.l.b16 %v1463
    %v3457 = vunpack.c.h.b16 %v1463
    %v3458 = vunpack.c.l.b16 %v1464
    %v3459 = vunpack.c.h.b16 %v1464
    %v3460 = vunpack.c.l.b16 %v1465
    %v3461 = vunpack.c.h.b16 %v1465
    %v3462 = vunpack.c.l.b16 %v1466
    %v3463 = vunpack.c.h.b16 %v1466
    %v3464 = vunpack.c.l.b16 %v1467
    %v3465 = vunpack.c.h.b16 %v1467
    %v3466 = vunpack.c.l.b16 %v1468
    %v3467 = vunpack.c.h.b16 %v1468
    %v3468 = vunpack.c.l.b16 %v1469
    %v3469 = vunpack.c.l.b16 %v1470
    %v3470 = vunpack.c.h.b16 %v1470
    %v3471 = vunpack.c.l.b16 %v1471
    %v3472 = vunpack.c.h.b16 %v1471
    %v3473 = vunpack.c.l.b16 %v1472
    %v3474 = vunpack.c.h.b16 %v1472
    %v3475 = vunpack.c.l.b16 %v1473
    %v3476 = vunpack.c.h.b16 %v1473
    %v3477 = vunpack.c.l.b16 %v1474
    %v3478 = vunpack.c.h.b16 %v1474
    %v3479 = vunpack.c.l.b16 %v1475
    %v3480 = vunpack.c.h.b16 %v1475
    %v3481 = vunpack.c.l.b16 %v1476
    %v3482 = vunpack.c.l.b16 %v1477
    %v3483 = vunpack.c.h.b16 %v1477
    %v3484 = vunpack.c.l.b16 %v1478
    %v3485 = vunpack.c.h.b16 %v1478
    %v3486 = vunpack.c.l.b16 %v1479
    %v3487 = vunpack.c.h.b16 %v1479
    %v3488 = vunpack.c.l.b16 %v1480
    %v3489 = vunpack.c.h.b16 %v1480
    %v3490 = vunpack.c.l.b16 %v1481
    %v3491 = vunpack.c.h.b16 %v1481
    %v3492 = vunpack.c.l.b16 %v1482
    %v3493 = vunpack.c.h.b16 %v1482
    %v3494 = vunpack.c.l.b16 %v1483
    %v3495 = vunpack.c.l.b16 %v1484
    %v3496 = vunpack.c.h.b16 %v1484
    %v3497 = vunpack.c.l.b16 %v1485
    %v3498 = vunpack.c.h.b16 %v1485
    %v3499 = vunpack.c.l.b16 %v1486
    %v3500 = vunpack.c.h.b16 %v1486
    %v3501 = vunpack.c.l.b16 %v1487
    %v3502 = vunpack.c.h.b16 %v1487
    %v3503 = vunpack.c.l.b16 %v1488
    %v3504 = vunpack.c.h.b16 %v1488
    %v3505 = vunpack.c.l.b16 %v1489
    %v3506 = vunpack.c.h.b16 %v1489
    %v3507 = vunpack.c.l.b16 %v1490
    %v3508 = vunpack.c.l.b16 %v1491
    %v3509 = vunpack.c.h.b16 %v1491
    %v3510 = vunpack.c.l.b16 %v1492
    %v3511 = vunpack.c.h.b16 %v1492
    %v3512 = vunpack.c.l.b16 %v1493
    %v3513 = vunpack.c.h.b16 %v1493
    %v3514 = vunpack.c.l.b16 %v1494
    %v3515 = vunpack.c.h.b16 %v1494
    %v3516 = vunpack.c.l.b16 %v1495
    %v3517 = vunpack.c.h.b16 %v1495
    %v3518 = vunpack.c.l.b16 %v1496
    %v3519 = vunpack.c.h.b16 %v1496
    %v3520 = vunpack.c.l.b16 %v1497
    %v3521 = vunpack.c.l.b16 %v1498
    %v3522 = vunpack.c.h.b16 %v1498
    %v3523 = vunpack.c.l.b16 %v1499
    %v3524 = vunpack.c.h.b16 %v1499
    %v3525 = vunpack.c.l.b16 %v1500
    %v3526 = vunpack.c.h.b16 %v1500
    %v3527 = vunpack.c.l.b16 %v1501
    %v3528 = vunpack.c.h.b16 %v1501
    %v3529 = vunpack.c.l.b16 %v1502
    %v3530 = vunpack.c.h.b16 %v1502
    %v3531 = vunpack.c.l.b16 %v1503
    %v3532 = vunpack.c.h.b16 %v1503
    %v3533 = vunpack.c.l.b16 %v1504
    %v3534 = vpack.c.b16 %v2273, %v2260
    %v3535 = vpack.c.b16 %v2274, %v2261
    %v3536 = vpack.c.b16 %v2275, %v2262
    %v3537 = vpack.c.b16 %v2276, %v2263
    %v3538 = vpack.c.b16 %v2277, %v2264
    %v3539 = vpack.c.b16 %v2278, %v2265
    %v3540 = vpack.c.b16 %v2279, %v2266
    %v3541 = vpack.c.b16 %v2280, %v2267
    %v3542 = vpack.c.b16 %v2281, %v2268
    %v3543 = vpack.c.b16 %v2282, %v2269
    %v3544 = vpack.c.b16 %v2283, %v2270
    %v3545 = vpack.c.b16 %v2284, %v2271
    %v3546 = vpack.c.b16 %v2285, %v2272
    %v3547 = vpack.c.b16 %v2299, %v2286
    %v3548 = vpack.c.b16 %v2300, %v2287
    %v3549 = vpack.c.b16 %v2301, %v2288
    %v3550 = vpack.c.b16 %v2302, %v2289
    %v3551 = vpack.c.b16 %v2303, %v2290
    %v3552 = vpack.c.b16 %v2304, %v2291
    %v3553 = vpack.c.b16 %v2305, %v2292
    %v3554 = vpack.c.b16 %v2306, %v2293
    %v3555 = vpack.c.b16 %v2307, %v2294
    %v3556 = vpack.c.b16 %v2308, %v2295
    %v3557 = vpack.c.b16 %v2309, %v2296
    %v3558 = vpack.c.b16 %v2310, %v2297
    %v3559 = vpack.c.b16 %v2311, %v2298
    %v3560 = vpack.c.b16 %v2325, %v2312
    %v3561 = vpack.c.b16 %v2326, %v2313
    %v3562 = vpack.c.b16 %v2327, %v2314
    %v3563 = vpack.c.b16 %v2328, %v2315
    %v3564 = vpack.c.b16 %v2329, %v2316
    %v3565 = vpack.c.b16 %v2330, %v2317
    %v3566 = vpack.c.b16 %v2331, %v2318
    %v3567 = vpack.c.b16 %v2332, %v2319
    %v3568 = vpack.c.b16 %v2333, %v2320
    %v3569 = vpack.c.b16 %v2334, %v2321
    %v3570 = vpack.c.b16 %v2335, %v2322
    %v3571 = vpack.c.b16 %v2336, %v2323
    %v3572 = vpack.c.b16 %v2337, %v2324
    %v3573 = vpack.c.b16 %v2351, %v2338
    %v3574 = vpack.c.b16 %v2352, %v2339
    %v3575 = vpack.c.b16 %v2353, %v2340
    %v3576 = vpack.c.b16 %v2354, %v2341
    %v3577 = vpack.c.b16 %v2355, %v2342
    %v3578 = vpack.c.b16 %v2356, %v2343
    %v3579 = vpack.c.b16 %v2357, %v2344
    %v3580 = vpack.c.b16 %v2358, %v2345
    %v3581 = vpack.c.b16 %v2359, %v2346
    %v3582 = vpack.c.b16 %v2360, %v2347
    %v3583 = vpack.c.b16 %v2361, %v2348
    %v3584 = vpack.c.b16 %v2362, %v2349
    %v3585 = vpack.c.b16 %v2363, %v2350
    %v3586 = vpack.c.b16 %v2377, %v2364
    %v3587 = vpack.c.b16 %v2378, %v2365
    %v3588 = vpack.c.b16 %v2379, %v2366
    %v3589 = vpack.c.b16 %v2380, %v2367
    %v3590 = vpack.c.b16 %v2381, %v2368
    %v3591 = vpack.c.b16 %v2382, %v2369
    %v3592 = vpack.c.b16 %v2383, %v2370
    %v3593 = vpack.c.b16 %v2384, %v2371
    %v3594 = vpack.c.b16 %v2385, %v2372
    %v3595 = vpack.c.b16 %v2386, %v2373
    %v3596 = vpack.c.b16 %v2387, %v2374
    %v3597 = vpack.c.b16 %v2388, %v2375
    %v3598 = vpack.c.b16 %v2389, %v2376
    %v3599 = vpack.c.b16 %v2403, %v2390
    %v3600 = vpack.c.b16 %v2404, %v2391
    %v3601 = vpack.c.b16 %v2405, %v2392
    %v3602 = vpack.c.b16 %v2406, %v2393
    %v3603 = vpack.c.b16 %v2407, %v2394
    %v3604 = vpack.c.b16 %v2408, %v2395
    %v3605 = vpack.c.b16 %v2409, %v2396
    %v3606 = vpack.c.b16 %v2410, %v2397
    %v3607 = vpack.c.b16 %v2411, %v2398
    %v3608 = vpack.c.b16 %v2412, %v2399
    %v3609 = vpack.c.b16 %v2413, %v2400
    %v3610 = vpack.c.b16 %v2414, %v2401
    %v3611 = vpack.c.b16 %v2415, %v2402
    %v3612 = vpack.c.b16 %v2429, %v2416
    %v3613 = vpack.c.b16 %v2430, %v2417
    %v3614 = vpack.c.b16 %v2431, %v2418
    %v3615 = vpack.c.b16 %v2432, %v2419
    %v3616 = vpack.c.b16 %v2433, %v2420
    %v3617 = vpack.c.b16 %v2434, %v2421
    %v3618 = vpack.c.b16 %v2435, %v2422
    %v3619 = vpack.c.b16 %v2436, %v2423
    %v3620 = vpack.c.b16 %v2437, %v2424
    %v3621 = vpack.c.b16 %v2438, %v2425
    %v3622 = vpack.c.b16 %v2439, %v2426
    %v3623 = vpack.c.b16 %v2440, %v2427
    %v3624 = vpack.c.b16 %v2441, %v2428
    %v3625 = vpack.c.b16 %v2455, %v2442
    %v3626 = vpack.c.b16 %v2456, %v2443
    %v3627 = vpack.c.b16 %v2457, %v2444
    %v3628 = vpack.c.b16 %v2458, %v2445
    %v3629 = vpack.c.b16 %v2459, %v2446
    %v3630 = vpack.c.b16 %v2460, %v2447
    %v3631 = vpack.c.b16 %v2461, %v2448
    %v3632 = vpack.c.b16 %v2462, %v2449
    %v3633 = vpack.c.b16 %v2463, %v2450
    %v3634 = vpack.c.b16 %v2464, %v2451
    %v3635 = vpack.c.b16 %v2465, %v2452
    %v3636 = vpack.c.b16 %v2466, %v2453
    %v3637 = vpack.c.b16 %v2467, %v2454
    %v3638 = vpack.c.b16 %v2481, %v2468
    %v3639 = vpack.c.b16 %v2482, %v2469
    %v3640 = vpack.c.b16 %v2483, %v2470
    %v3641 = vpack.c.b16 %v2484, %v2471
    %v3642 = vpack.c.b16 %v2485, %v2472
    %v3643 = vpack.c.b16 %v2486, %v2473
    %v3644 = vpack.c.b16 %v2487, %v2474
    %v3645 = vpack.c.b16 %v2488, %v2475
    %v3646 = vpack.c.b16 %v2489, %v2476
    %v3647 = vpack.c.b16 %v2490, %v2477
    %v3648 = vpack.c.b16 %v2491, %v2478
    %v3649 = vpack.c.b16 %v2492, %v2479
    %v3650 = vpack.c.b16 %v2493, %v2480
    %v3651 = vpack.c.b16 %v2507, %v2494
    %v3652 = vpack.c.b16 %v2508, %v2495
    %v3653 = vpack.c.b16 %v2509, %v2496
    %v3654 = vpack.c.b16 %v2510, %v2497
    %v3655 = vpack.c.b16 %v2511, %v2498
    %v3656 = vpack.c.b16 %v2512, %v2499
    %v3657 = vpack.c.b16 %v2513, %v2500
    %v3658 = vpack.c.b16 %v2514, %v2501
    %v3659 = vpack.c.b16 %v2515, %v2502
    %v3660 = vpack.c.b16 %v2516, %v2503
    %v3661 = vpack.c.b16 %v2517, %v2504
    %v3662 = vpack.c.b16 %v2518, %v2505
    %v3663 = vpack.c.b16 %v2519, %v2506
    %v3664 = vpack.c.b16 %v2533, %v2520
    %v3665 = vpack.c.b16 %v2534, %v2521
    %v3666 = vpack.c.b16 %v2535, %v2522
    %v3667 = vpack.c.b16 %v2536, %v2523
    %v3668 = vpack.c.b16 %v2537, %v2524
    %v3669 = vpack.c.b16 %v2538, %v2525
    %v3670 = vpack.c.b16 %v2539, %v2526
    %v3671 = vpack.c.b16 %v2540, %v2527
    %v3672 = vpack.c.b16 %v2541, %v2528
    %v3673 = vpack.c.b16 %v2542, %v2529
    %v3674 = vpack.c.b16 %v2543, %v2530
    %v3675 = vpack.c.b16 %v2544, %v2531
    %v3676 = vpack.c.b16 %v2545, %v2532
    %v3677 = vpack.c.b16 %v2559, %v2546
    %v3678 = vpack.c.b16 %v2560, %v2547
    %v3679 = vpack.c.b16 %v2561, %v2548
    %v3680 = vpack.c.b16 %v2562, %v2549
    %v3681 = vpack.c.b16 %v2563, %v2550
    %v3682 = vpack.c.b16 %v2564, %v2551
    %v3683 = vpack.c.b16 %v2565, %v2552
    %v3684 = vpack.c.b16 %v2566, %v2553
    %v3685 = vpack.c.b16 %v2567, %v2554
    %v3686 = vpack.c.b16 %v2568, %v2555
    %v3687 = vpack.c.b16 %v2569, %v2556
    %v3688 = vpack.c.b16 %v2570, %v2557
    %v3689 = vpack.c.b16 %v2571, %v2558
    %v3690 = vpack.c.b16 %v2585, %v2572
    %v3691 = vpack.c.b16 %v2586, %v2573
    %v3692 = vpack.c.b16 %v2587, %v2574
    %v3693 = vpack.c.b16 %v2588, %v2575
    %v3694 = vpack.c.b16 %v2589, %v2576
    %v3695 = vpack.c.b16 %v2590, %v2577
    %v3696 = vpack.c.b16 %v2591, %v2578
    %v3697 = vpack.c.b16 %v2592, %v2579
    %v3698 = vpack.c.b16 %v2593, %v2580
    %v3699 = vpack.c.b16 %v2594, %v2581
    %v3700 = vpack.c.b16 %v2595, %v2582
    %v3701 = vpack.c.b16 %v2596, %v2583
    %v3702 = vpack.c.b16 %v2597, %v2584
    %v3703 = vpack.c.b16 %v2611, %v2598
    %v3704 = vpack.c.b16 %v2612, %v2599
    %v3705 = vpack.c.b16 %v2613, %v2600
    %v3706 = vpack.c.b16 %v2614, %v2601
    %v3707 = vpack.c.b16 %v2615, %v2602
    %v3708 = vpack.c.b16 %v2616, %v2603
    %v3709 = vpack.c.b16 %v2617, %v2604
    %v3710 = vpack.c.b16 %v2618, %v2605
    %v3711 = vpack.c.b16 %v2619, %v2606
    %v3712 = vpack.c.b16 %v2620, %v2607
    %v3713 = vpack.c.b16 %v2621, %v2608
    %v3714 = vpack.c.b16 %v2622, %v2609
    %v3715 = vpack.c.b16 %v2623, %v2610
    %v3716 = vpack.c.b16 %v2637, %v2624
    %v3717 = vpack.c.b16 %v2638, %v2625
    %v3718 = vpack.c.b16 %v2639, %v2626
    %v3719 = vpack.c.b16 %v2640, %v2627
    %v3720 = vpack.c.b16 %v2641, %v2628
    %v3721 = vpack.c.b16 %v2642, %v2629
    %v3722 = vpack.c.b16 %v2643, %v2630
    %v3723 = vpack.c.b16 %v2644, %v2631
    %v3724 = vpack.c.b16 %v2645, %v2632
    %v3725 = vpack.c.b16 %v2646, %v2633
    %v3726 = vpack.c.b16 %v2647, %v2634
    %v3727 = vpack.c.b16 %v2648, %v2635
    %v3728 = vpack.c.b16 %v2649, %v2636
    %v3729 = vpack.c.b16 %v2663, %v2650
    %v3730 = vpack.c.b16 %v2664, %v2651
    %v3731 = vpack.c.b16 %v2665, %v2652
    %v3732 = vpack.c.b16 %v2666, %v2653
    %v3733 = vpack.c.b16 %v2667, %v2654
    %v3734 = vpack.c.b16 %v2668, %v2655
    %v3735 = vpack.c.b16 %v2669, %v2656
    %v3736 = vpack.c.b16 %v2670, %v2657
    %v3737 = vpack.c.b16 %v2671, %v2658
    %v3738 = vpack.c.b16 %v2672, %v2659
    %v3739 = vpack.c.b16 %v2673, %v2660
    %v3740 = vpack.c.b16 %v2674, %v2661
    %v3741 = vpack.c.b16 %v2675, %v2662
    %v3742 = vpack.c.b16 %v2689, %v2676
    %v3743 = vpack.c.b16 %v2690, %v2677
    %v3744 = vpack.c.b16 %v2691, %v2678
    %v3745 = vpack.c.b16 %v2692, %v2679
    %v3746 = vpack.c.b16 %v2693, %v2680
    %v3747 = vpack.c.b16 %v2694, %v2681
    %v3748 = vpack.c.b16 %v2695, %v2682
    %v3749 = vpack.c.b16 %v2696, %v2683
    %v3750 = vpack.c.b16 %v2697, %v2684
    %v3751 = vpack.c.b16 %v2698, %v2685
    %v3752 = vpack.c.b16 %v2699, %v2686
    %v3753 = vpack.c.b16 %v2700, %v2687
    %v3754 = vpack.c.b16 %v2701, %v2688
    %v3755 = vpack.c.b16 %v2715, %v2702
    %v3756 = vpack.c.b16 %v2716, %v2703
    %v3757 = vpack.c.b16 %v2717, %v2704
    %v3758 = vpack.c.b16 %v2718, %v2705
    %v3759 = vpack.c.b16 %v2719, %v2706
    %v3760 = vpack.c.b16 %v2720, %v2707
    %v3761 = vpack.c.b16 %v2721, %v2708
    %v3762 = vpack.c.b16 %v2722, %v2709
    %v3763 = vpack.c.b16 %v2723, %v2710
    %v3764 = vpack.c.b16 %v2724, %v2711
    %v3765 = vpack.c.b16 %v2725, %v2712
    %v3766 = vpack.c.b16 %v2726, %v2713
    %v3767 = vpack.c.b16 %v2727, %v2714
    %v3768 = vpack.c.b16 %v2741, %v2728
    %v3769 = vpack.c.b16 %v2742, %v2729
    %v3770 = vpack.c.b16 %v2743, %v2730
    %v3771 = vpack.c.b16 %v2744, %v2731
    %v3772 = vpack.c.b16 %v2745, %v2732
    %v3773 = vpack.c.b16 %v2746, %v2733
    %v3774 = vpack.c.b16 %v2747, %v2734
    %v3775 = vpack.c.b16 %v2748, %v2735
    %v3776 = vpack.c.b16 %v2749, %v2736
    %v3777 = vpack.c.b16 %v2750, %v2737
    %v3778 = vpack.c.b16 %v2751, %v2738
    %v3779 = vpack.c.b16 %v2752, %v2739
    %v3780 = vpack.c.b16 %v2753, %v2740
    %v3781 = vpack.c.b16 %v2767, %v2754
    %v3782 = vpack.c.b16 %v2768, %v2755
    %v3783 = vpack.c.b16 %v2769, %v2756
    %v3784 = vpack.c.b16 %v2770, %v2757
    %v3785 = vpack.c.b16 %v2771, %v2758
    %v3786 = vpack.c.b16 %v2772, %v2759
    %v3787 = vpack.c.b16 %v2773, %v2760
    %v3788 = vpack.c.b16 %v2774, %v2761
    %v3789 = vpack.c.b16 %v2775, %v2762
    %v3790 = vpack.c.b16 %v2776, %v2763
    %v3791 = vpack.c.b16 %v2777, %v2764
    %v3792 = vpack.c.b16 %v2778, %v2765
    %v3793 = vpack.c.b16 %v2779, %v2766
    %v3794 = vpack.c.b16 %v2793, %v2780
    %v3795 = vpack.c.b16 %v2794, %v2781
    %v3796 = vpack.c.b16 %v2795, %v2782
    %v3797 = vpack.c.b16 %v2796, %v2783
    %v3798 = vpack.c.b16 %v2797, %v2784
    %v3799 = vpack.c.b16 %v2798, %v2785
    %v3800 = vpack.c.b16 %v2799, %v2786
    %v3801 = vpack.c.b16 %v2800, %v2787
    %v3802 = vpack.c.b16 %v2801, %v2788
    %v3803 = vpack.c.b16 %v2802, %v2789
    %v3804 = vpack.c.b16 %v2803, %v2790
    %v3805 = vpack.c.b16 %v2804, %v2791
    %v3806 = vpack.c.b16 %v2805, %v2792
    %v3807 = vpack.c.b16 %v2819, %v2806
    %v3808 = vpack.c.b16 %v2820, %v2807
    %v3809 = vpack.c.b16 %v2821, %v2808
    %v3810 = vpack.c.b16 %v2822, %v2809
    %v3811 = vpack.c.b16 %v2823, %v2810
    %v3812 = vpack.c.b16 %v2824, %v2811
    %v3813 = vpack.c.b16 %v2825, %v2812
    %v3814 = vpack.c.b16 %v2826, %v2813
    %v3815 = vpack.c.b16 %v2827, %v2814
    %v3816 = vpack.c.b16 %v2828, %v2815
    %v3817 = vpack.c.b16 %v2829, %v2816
    %v3818 = vpack.c.b16 %v2830, %v2817
    %v3819 = vpack.c.b16 %v2831, %v2818
    %v3820 = vpack.c.b16 %v2845, %v2832
    %v3821 = vpack.c.b16 %v2846, %v2833
    %v3822 = vpack.c.b16 %v2847, %v2834
    %v3823 = vpack.c.b16 %v2848, %v2835
    %v3824 = vpack.c.b16 %v2849, %v2836
    %v3825 = vpack.c.b16 %v2850, %v2837
    %v3826 = vpack.c.b16 %v2851, %v2838
    %v3827 = vpack.c.b16 %v2852, %v2839
    %v3828 = vpack.c.b16 %v2853, %v2840
    %v3829 = vpack.c.b16 %v2854, %v2841
    %v3830 = vpack.c.b16 %v2855, %v2842
    %v3831 = vpack.c.b16 %v2856, %v2843
    %v3832 = vpack.c.b16 %v2857, %v2844
    %v3833 = vpack.c.b16 %v2871, %v2858
    %v3834 = vpack.c.b16 %v2872, %v2859
    %v3835 = vpack.c.b16 %v2873, %v2860
    %v3836 = vpack.c.b16 %v2874, %v2861
    %v3837 = vpack.c.b16 %v2875, %v2862
    %v3838 = vpack.c.b16 %v2876, %v2863
    %v3839 = vpack.c.b16 %v2877, %v2864
    %v3840 = vpack.c.b16 %v2878, %v2865
    %v3841 = vpack.c.b16 %v2879, %v2866
    %v3842 = vpack.c.b16 %v2880, %v2867
    %v3843 = vpack.c.b16 %v2881, %v2868
    %v3844 = vpack.c.b16 %v2882, %v2869
    %v3845 = vpack.c.b16 %v2883, %v2870
    %v3846 = vpack.c.b16 %v2897, %v2884
    %v3847 = vpack.c.b16 %v2898, %v2885
    %v3848 = vpack.c.b16 %v2899, %v2886
    %v3849 = vpack.c.b16 %v2900, %v2887
    %v3850 = vpack.c.b16 %v2901, %v2888
    %v3851 = vpack.c.b16 %v2902, %v2889
    %v3852 = vpack.c.b16 %v2903, %v2890
    %v3853 = vpack.c.b16 %v2904, %v2891
    %v3854 = vpack.c.b16 %v2905, %v2892
    %v3855 = vpack.c.b16 %v2906, %v2893
    %v3856 = vpack.c.b16 %v2907, %v2894
    %v3857 = vpack.c.b16 %v2908, %v2895
    %v3858 = vpack.c.b16 %v2909, %v2896
    %v3859 = vpack.c.b16 %v2923, %v2910
    %v3860 = vpack.c.b16 %v2924, %v2911
    %v3861 = vpack.c.b16 %v2925, %v2912
    %v3862 = vpack.c.b16 %v2926, %v2913
    %v3863 = vpack.c.b16 %v2927, %v2914
    %v3864 = vpack.c.b16 %v2928, %v2915
    %v3865 = vpack.c.b16 %v2929, %v2916
    %v3866 = vpack.c.b16 %v2930, %v2917
    %v3867 = vpack.c.b16 %v2931, %v2918
    %v3868 = vpack.c.b16 %v2932, %v2919
    %v3869 = vpack.c.b16 %v2933, %v2920
    %v3870 = vpack.c.b16 %v2934, %v2921
    %v3871 = vpack.c.b16 %v2935, %v2922
    %v3872 = vpack.c.b16 %v2949, %v2936
    %v3873 = vpack.c.b16 %v2950, %v2937
    %v3874 = vpack.c.b16 %v2951, %v2938
    %v3875 = vpack.c.b16 %v2952, %v2939
    %v3876 = vpack.c.b16 %v2953, %v2940
    %v3877 = vpack.c.b16 %v2954, %v2941
    %v3878 = vpack.c.b16 %v2955, %v2942
    %v3879 = vpack.c.b16 %v2956, %v2943
    %v3880 = vpack.c.b16 %v2957, %v2944
    %v3881 = vpack.c.b16 %v2958, %v2945
    %v3882 = vpack.c.b16 %v2959, %v2946
    %v3883 = vpack.c.b16 %v2960, %v2947
    %v3884 = vpack.c.b16 %v2961, %v2948
    %v3885 = vpack.c.b16 %v2975, %v2962
    %v3886 = vpack.c.b16 %v2976, %v2963
    %v3887 = vpack.c.b16 %v2977, %v2964
    %v3888 = vpack.c.b16 %v2978, %v2965
    %v3889 = vpack.c.b16 %v2979, %v2966
    %v3890 = vpack.c.b16 %v2980, %v2967
    %v3891 = vpack.c.b16 %v2981, %v2968
    %v3892 = vpack.c.b16 %v2982, %v2969
    %v3893 = vpack.c.b16 %v2983, %v2970
    %v3894 = vpack.c.b16 %v2984, %v2971
    %v3895 = vpack.c.b16 %v2985, %v2972
    %v3896 = vpack.c.b16 %v2986, %v2973
    %v3897 = vpack.c.b16 %v2987, %v2974
    %v3898 = vpack.c.b16 %v3001, %v2988
    %v3899 = vpack.c.b16 %v3002, %v2989
    %v3900 = vpack.c.b16 %v3003, %v2990
    %v3901 = vpack.c.b16 %v3004, %v2991
    %v3902 = vpack.c.b16 %v3005, %v2992
    %v3903 = vpack.c.b16 %v3006, %v2993
    %v3904 = vpack.c.b16 %v3007, %v2994
    %v3905 = vpack.c.b16 %v3008, %v2995
    %v3906 = vpack.c.b16 %v3009, %v2996
    %v3907 = vpack.c.b16 %v3010, %v2997
    %v3908 = vpack.c.b16 %v3011, %v2998
    %v3909 = vpack.c.b16 %v3012, %v2999
    %v3910 = vpack.c.b16 %v3013, %v3000
    %v3911 = vpack.c.b16 %v3027, %v3014
    %v3912 = vpack.c.b16 %v3028, %v3015
    %v3913 = vpack.c.b16 %v3029, %v3016
    %v3914 = vpack.c.b16 %v3030, %v3017
    %v3915 = vpack.c.b16 %v3031, %v3018
    %v3916 = vpack.c.b16 %v3032, %v3019
    %v3917 = vpack.c.b16 %v3033, %v3020
    %v3918 = vpack.c.b16 %v3034, %v3021
    %v3919 = vpack.c.b16 %v3035, %v3022
    %v3920 = vpack.c.b16 %v3036, %v3023
    %v3921 = vpack.c.b16 %v3037, %v3024
    %v3922 = vpack.c.b16 %v3038, %v3025
    %v3923 = vpack.c.b16 %v3039, %v3026
    %v3924 = vpack.c.b16 %v3053, %v3040
    %v3925 = vpack.c.b16 %v3054, %v3041
    %v3926 = vpack.c.b16 %v3055, %v3042
    %v3927 = vpack.c.b16 %v3056, %v3043
    %v3928 = vpack.c.b16 %v3057, %v3044
    %v3929 = vpack.c.b16 %v3058, %v3045
    %v3930 = vpack.c.b16 %v3059, %v3046
    %v3931 = vpack.c.b16 %v3060, %v3047
    %v3932 = vpack.c.b16 %v3061, %v3048
    %v3933 = vpack.c.b16 %v3062, %v3049
    %v3934 = vpack.c.b16 %v3063, %v3050
    %v3935 = vpack.c.b16 %v3064, %v3051
    %v3936 = vpack.c.b16 %v3065, %v3052
    %v3937 = vpack.c.b16 %v3079, %v3066
    %v3938 = vpack.c.b16 %v3080, %v3067
    %v3939 = vpack.c.b16 %v3081, %v3068
    %v3940 = vpack.c.b16 %v3082, %v3069
    %v3941 = vpack.c.b16 %v3083, %v3070
    %v3942 = vpack.c.b16 %v3084, %v3071
    %v3943 = vpack.c.b16 %v3085, %v3072
    %v3944 = vpack.c.b16 %v3086, %v3073
    %v3945 = vpack.c.b16 %v3087, %v3074
    %v3946 = vpack.c.b16 %v3088, %v3075
    %v3947 = vpack.c.b16 %v3089, %v3076
    %v3948 = vpack.c.b16 %v3090, %v3077
    %v3949 = vpack.c.b16 %v3091, %v3078
    %v3950 = vpack.c.b16 %v3105, %v3092
    %v3951 = vpack.c.b16 %v3106, %v3093
    %v3952 = vpack.c.b16 %v3107, %v3094
    %v3953 = vpack.c.b16 %v3108, %v3095
    %v3954 = vpack.c.b16 %v3109, %v3096
    %v3955 = vpack.c.b16 %v3110, %v3097
    %v3956 = vpack.c.b16 %v3111, %v3098
    %v3957 = vpack.c.b16 %v3112, %v3099
    %v3958 = vpack.c.b16 %v3113, %v3100
    %v3959 = vpack.c.b16 %v3114, %v3101
    %v3960 = vpack.c.b16 %v3115, %v3102
    %v3961 = vpack.c.b16 %v3116, %v3103
    %v3962 = vpack.c.b16 %v3117, %v3104
    %v3963 = vpack.c.b16 %v3131, %v3118
    %v3964 = vpack.c.b16 %v3132, %v3119
    %v3965 = vpack.c.b16 %v3133, %v3120
    %v3966 = vpack.c.b16 %v3134, %v3121
    %v3967 = vpack.c.b16 %v3135, %v3122
    %v3968 = vpack.c.b16 %v3136, %v3123
    %v3969 = vpack.c.b16 %v3137, %v3124
    %v3970 = vpack.c.b16 %v3138, %v3125
    %v3971 = vpack.c.b16 %v3139, %v3126
    %v3972 = vpack.c.b16 %v3140, %v3127
    %v3973 = vpack.c.b16 %v3141, %v3128
    %v3974 = vpack.c.b16 %v3142, %v3129
    %v3975 = vpack.c.b16 %v3143, %v3130
    %v3976 = vpack.c.b16 %v3157, %v3144
    %v3977 = vpack.c.b16 %v3158, %v3145
    %v3978 = vpack.c.b16 %v3159, %v3146
    %v3979 = vpack.c.b16 %v3160, %v3147
    %v3980 = vpack.c.b16 %v3161, %v3148
    %v3981 = vpack.c.b16 %v3162, %v3149
    %v3982 = vpack.c.b16 %v3163, %v3150
    %v3983 = vpack.c.b16 %v3164, %v3151
    %v3984 = vpack.c.b16 %v3165, %v3152
    %v3985 = vpack.c.b16 %v3166, %v3153
    %v3986 = vpack.c.b16 %v3167, %v3154
    %v3987 = vpack.c.b16 %v3168, %v3155
    %v3988 = vpack.c.b16 %v3169, %v3156
    %v3989 = vpack.c.b16 %v3183, %v3170
    %v3990 = vpack.c.b16 %v3184, %v3171
    %v3991 = vpack.c.b16 %v3185, %v3172
    %v3992 = vpack.c.b16 %v3186, %v3173
    %v3993 = vpack.c.b16 %v3187, %v3174
    %v3994 = vpack.c.b16 %v3188, %v3175
    %v3995 = vpack.c.b16 %v3189, %v3176
    %v3996 = vpack.c.b16 %v3190, %v3177
    %v3997 = vpack.c.b16 %v3191, %v3178
    %v3998 = vpack.c.b16 %v3192, %v3179
    %v3999 = vpack.c.b16 %v3193, %v3180
    %v4000 = vpack.c.b16 %v3194, %v3181
    %v4001 = vpack.c.b16 %v3195, %v3182
    %v4002 = vpack.c.b16 %v3209, %v3196
    %v4003 = vpack.c.b16 %v3210, %v3197
    %v4004 = vpack.c.b16 %v3211, %v3198
    %v4005 = vpack.c.b16 %v3212, %v3199
    %v4006 = vpack.c.b16 %v3213, %v3200
    %v4007 = vpack.c.b16 %v3214, %v3201
    %v4008 = vpack.c.b16 %v3215, %v3202
    %v4009 = vpack.c.b16 %v3216, %v3203
    %v4010 = vpack.c.b16 %v3217, %v3204
    %v4011 = vpack.c.b16 %v3218, %v3205
    %v4012 = vpack.c.b16 %v3219, %v3206
    %v4013 = vpack.c.b16 %v3220, %v3207
    %v4014 = vpack.c.b16 %v3221, %v3208
    %v4015 = vpack.c.b16 %v3235, %v3222
    %v4016 = vpack.c.b16 %v3236, %v3223
    %v4017 = vpack.c.b16 %v3237, %v3224
    %v4018 = vpack.c.b16 %v3238, %v3225
    %v4019 = vpack.c.b16 %v3239, %v3226
    %v4020 = vpack.c.b16 %v3240, %v3227
    %v4021 = vpack.c.b16 %v3241, %v3228
    %v4022 = vpack.c.b16 %v3242, %v3229
    %v4023 = vpack.c.b16 %v3243, %v3230
    %v4024 = vpack.c.b16 %v3244, %v3231
    %v4025 = vpack.c.b16 %v3245, %v3232
    %v4026 = vpack.c.b16 %v3246, %v3233
    %v4027 = vpack.c.b16 %v3247, %v3234
    %v4028 = vpack.c.b16 %v3261, %v3248
    %v4029 = vpack.c.b16 %v3262, %v3249
    %v4030 = vpack.c.b16 %v3263, %v3250
    %v4031 = vpack.c.b16 %v3264, %v3251
    %v4032 = vpack.c.b16 %v3265, %v3252
    %v4033 = vpack.c.b16 %v3266, %v3253
    %v4034 = vpack.c.b16 %v3267, %v3254
    %v4035 = vpack.c.b16 %v3268, %v3255
    %v4036 = vpack.c.b16 %v3269, %v3256
    %v4037 = vpack.c.b16 %v3270, %v3257
    %v4038 = vpack.c.b16 %v3271, %v3258
    %v4039 = vpack.c.b16 %v3272, %v3259
    %v4040 = vpack.c.b16 %v3273, %v3260
    %v4041 = vpack.c.b16 %v3287, %v3274
    %v4042 = vpack.c.b16 %v3288, %v3275
    %v4043 = vpack.c.b16 %v3289, %v3276
    %v4044 = vpack.c.b16 %v3290, %v3277
    %v4045 = vpack.c.b16 %v3291, %v3278
    %v4046 = vpack.c.b16 %v3292, %v3279
    %v4047 = vpack.c.b16 %v3293, %v3280
    %v4048 = vpack.c.b16 %v3294, %v3281
    %v4049 = vpack.c.b16 %v3295, %v3282
    %v4050 = vpack.c.b16 %v3296, %v3283
    %v4051 = vpack.c.b16 %v3297, %v3284
    %v4052 = vpack.c.b16 %v3298, %v3285
    %v4053 = vpack.c.b16 %v3299, %v3286
    %v4054 = vpack.c.b16 %v3313, %v3300
    %v4055 = vpack.c.b16 %v3314, %v3301
    %v4056 = vpack.c.b16 %v3315, %v3302
    %v4057 = vpack.c.b16 %v3316, %v3303
    %v4058 = vpack.c.b16 %v3317, %v3304
    %v4059 = vpack.c.b16 %v3318, %v3305
    %v4060 = vpack.c.b16 %v3319, %v3306
    %v4061 = vpack.c.b16 %v3320, %v3307
    %v4062 = vpack.c.b16 %v3321, %v3308
    %v4063 = vpack.c.b16 %v3322, %v3309
    %v4064 = vpack.c.b16 %v3323, %v3310
    %v4065 = vpack.c.b16 %v3324, %v3311
    %v4066 = vpack.c.b16 %v3325, %v3312
    %v4067 = vpack.c.b16 %v3339, %v3326
    %v4068 = vpack.c.b16 %v3340, %v3327
    %v4069 = vpack.c.b16 %v3341, %v3328
    %v4070 = vpack.c.b16 %v3342, %v3329
    %v4071 = vpack.c.b16 %v3343, %v3330
    %v4072 = vpack.c.b16 %v3344, %v3331
    %v4073 = vpack.c.b16 %v3345, %v3332
    %v4074 = vpack.c.b16 %v3346, %v3333
    %v4075 = vpack.c.b16 %v3347, %v3334
    %v4076 = vpack.c.b16 %v3348, %v3335
    %v4077 = vpack.c.b16 %v3349, %v3336
    %v4078 = vpack.c.b16 %v3350, %v3337
    %v4079 = vpack.c.b16 %v3351, %v3338
    %v4080 = vpack.c.b16 %v3365, %v3352
    %v4081 = vpack.c.b16 %v3366, %v3353
    %v4082 = vpack.c.b16 %v3367, %v3354
    %v4083 = vpack.c.b16 %v3368, %v3355
    %v4084 = vpack.c.b16 %v3369, %v3356
    %v4085 = vpack.c.b16 %v3370, %v3357
    %v4086 = vpack.c.b16 %v3371, %v3358
    %v4087 = vpack.c.b16 %v3372, %v3359
    %v4088 = vpack.c.b16 %v3373, %v3360
    %v4089 = vpack.c.b16 %v3374, %v3361
    %v4090 = vpack.c.b16 %v3375, %v3362
    %v4091 = vpack.c.b16 %v3376, %v3363
    %v4092 = vpack.c.b16 %v3377, %v3364
    %v4093 = vpack.c.b16 %v3391, %v3378
    %v4094 = vpack.c.b16 %v3392, %v3379
    %v4095 = vpack.c.b16 %v3393, %v3380
    %v4096 = vpack.c.b16 %v3394, %v3381
    %v4097 = vpack.c.b16 %v3395, %v3382
    %v4098 = vpack.c.b16 %v3396, %v3383
    %v4099 = vpack.c.b16 %v3397, %v3384
    %v4100 = vpack.c.b16 %v3398, %v3385
    %v4101 = vpack.c.b16 %v3399, %v3386
    %v4102 = vpack.c.b16 %v3400, %v3387
    %v4103 = vpack.c.b16 %v3401, %v3388
    %v4104 = vpack.c.b16 %v3402, %v3389
    %v4105 = vpack.c.b16 %v3403, %v3390
    %v4106 = vpack.c.b16 %v3417, %v3404
    %v4107 = vpack.c.b16 %v3418, %v3405
    %v4108 = vpack.c.b16 %v3419, %v3406
    %v4109 = vpack.c.b16 %v3420, %v3407
    %v4110 = vpack.c.b16 %v3421, %v3408
    %v4111 = vpack.c.b16 %v3422, %v3409
    %v4112 = vpack.c.b16 %v3423, %v3410
    %v4113 = vpack.c.b16 %v3424, %v3411
    %v4114 = vpack.c.b16 %v3425, %v3412
    %v4115 = vpack.c.b16 %v3426, %v3413
    %v4116 = vpack.c.b16 %v3427, %v3414
    %v4117 = vpack.c.b16 %v3428, %v3415
    %v4118 = vpack.c.b16 %v3429, %v3416
    %v4119 = vpack.c.b16 %v3443, %v3430
    %v4120 = vpack.c.b16 %v3444, %v3431
    %v4121 = vpack.c.b16 %v3445, %v3432
    %v4122 = vpack.c.b16 %v3446, %v3433
    %v4123 = vpack.c.b16 %v3447, %v3434
    %v4124 = vpack.c.b16 %v3448, %v3435
    %v4125 = vpack.c.b16 %v3449, %v3436
    %v4126 = vpack.c.b16 %v3450, %v3437
    %v4127 = vpack.c.b16 %v3451, %v3438
    %v4128 = vpack.c.b16 %v3452, %v3439
    %v4129 = vpack.c.b16 %v3453, %v3440
    %v4130 = vpack.c.b16 %v3454, %v3441
    %v4131 = vpack.c.b16 %v3455, %v3442
    %v4132 = vpack.c.b16 %v3469, %v3456
    %v4133 = vpack.c.b16 %v3470, %v3457
    %v4134 = vpack.c.b16 %v3471, %v3458
    %v4135 = vpack.c.b16 %v3472, %v3459
    %v4136 = vpack.c.b16 %v3473, %v3460
    %v4137 = vpack.c.b16 %v3474, %v3461
    %v4138 = vpack.c.b16 %v3475, %v3462
    %v4139 = vpack.c.b16 %v3476, %v3463
    %v4140 = vpack.c.b16 %v3477, %v3464
    %v4141 = vpack.c.b16 %v3478, %v3465
    %v4142 = vpack.c.b16 %v3479, %v3466
    %v4143 = vpack.c.b16 %v3480, %v3467
    %v4144 = vpack.c.b16 %v3481, %v3468
    %v4145 = vpack.c.b16 %v3495, %v3482
    %v4146 = vpack.c.b16 %v3496, %v3483
    %v4147 = vpack.c.b16 %v3497, %v3484
    %v4148 = vpack.c.b16 %v3498, %v3485
    %v4149 = vpack.c.b16 %v3499, %v3486
    %v4150 = vpack.c.b16 %v3500, %v3487
    %v4151 = vpack.c.b16 %v3501, %v3488
    %v4152 = vpack.c.b16 %v3502, %v3489
    %v4153 = vpack.c.b16 %v3503, %v3490
    %v4154 = vpack.c.b16 %v3504, %v3491
    %v4155 = vpack.c.b16 %v3505, %v3492
    %v4156 = vpack.c.b16 %v3506, %v3493
    %v4157 = vpack.c.b16 %v3507, %v3494
    %v4158 = vpack.c.b16 %v3521, %v3508
    %v4159 = vpack.c.b16 %v3522, %v3509
    %v4160 = vpack.c.b16 %v3523, %v3510
    %v4161 = vpack.c.b16 %v3524, %v3511
    %v4162 = vpack.c.b16 %v3525, %v3512
    %v4163 = vpack.c.b16 %v3526, %v3513
    %v4164 = vpack.c.b16 %v3527, %v3514
    %v4165 = vpack.c.b16 %v3528, %v3515
    %v4166 = vpack.c.b16 %v3529, %v3516
    %v4167 = vpack.c.b16 %v3530, %v3517
    %v4168 = vpack.c.b16 %v3531, %v3518
    %v4169 = vpack.c.b16 %v3532, %v3519
    %v4170 = vpack.c.b16 %v3533, %v3520
    %vm4808 = vcmask 130048
    %v4810 = vsel %vm4808, %v818, 0
    %4812 = vmatprep.subr.bf16.mxu0 %v3535
    %4813 = vmatpush1.bf16.msra.mxu0 %v3534
    %4814 = vmatprep.subr.bf16.mxu0 %v3548
    %4815 = vmatpush1.bf16.msra.mxu0 %v3547
    %4816 = vmatprep.subr.bf16.mxu0 %v3561
    %4817 = vmatpush1.bf16.msra.mxu0 %v3560
    %4818 = vmatprep.subr.bf16.mxu0 %v3574
    %4819 = vmatpush1.bf16.msra.mxu0 %v3573
    %4820 = vmatprep.subr.bf16.mxu0 %v3587
    %4821 = vmatpush1.bf16.msra.mxu0 %v3586
    %4822 = vmatprep.subr.bf16.mxu0 %v3600
    %4823 = vmatpush1.bf16.msra.mxu0 %v3599
    %4824 = vmatprep.subr.bf16.mxu0 %v3613
    %4825 = vmatpush1.bf16.msra.mxu0 %v3612
    %4826 = vmatprep.subr.bf16.mxu0 %v3626
    %4827 = vmatpush1.bf16.msra.mxu0 %v3625
    %4828 = vmatprep.subr.bf16.mxu0 %v3639
    %4829 = vmatpush1.bf16.msra.mxu0 %v3638
    %4830 = vmatprep.subr.bf16.mxu0 %v3652
    %4831 = vmatpush1.bf16.msra.mxu0 %v3651
    %4832 = vmatprep.subr.bf16.mxu0 %v3665
    %4833 = vmatpush1.bf16.msra.mxu0 %v3664
    %4834 = vmatprep.subr.bf16.mxu0 %v3678
    %4835 = vmatpush1.bf16.msra.mxu0 %v3677
    %4836 = vmatprep.subr.bf16.mxu0 %v3691
    %4837 = vmatpush1.bf16.msra.mxu0 %v3690
    %4838 = vmatprep.subr.bf16.mxu0 %v3704
    %4839 = vmatpush1.bf16.msra.mxu0 %v3703
    %4840 = vmatprep.subr.bf16.mxu0 %v3717
    %4841 = vmatpush1.bf16.msra.mxu0 %v3716
    %4842 = vmatprep.subr.bf16.mxu0 %v3730
    %4843 = vmatpush1.bf16.msra.mxu0 %v3729
    %4844 = vmatprep.mubr.bf16.mxu0 %v813
    %4845 = vmatmul.mubr.bf16.gmra.mrb[0].mxu0 %v812
    %v4846 = vpop.f32.mrb[0].mxu0
    %v4847 = vadd.f32 %v1512, %v4846
    %v4848 = vpop.f32.mrb[0].mxu0
    %v4849 = vadd.f32 %v1516, %v4848
    %v4850 = vpop.f32.mrb[0].mxu0
    %v4851 = vpop.f32.mrb[0].mxu0
    %4852 = vdwg.mxu0
    %4853 = vmatprep.subr.bf16.mxu0 %v3743
    %4854 = vmatpush1.bf16.msra.mxu0 %v3742
    %4855 = vmatprep.subr.bf16.mxu0 %v3756
    %4856 = vmatpush1.bf16.msra.mxu0 %v3755
    %4857 = vmatprep.subr.bf16.mxu0 %v3769
    %4858 = vmatpush1.bf16.msra.mxu0 %v3768
    %4859 = vmatprep.subr.bf16.mxu0 %v3782
    %4860 = vmatpush1.bf16.msra.mxu0 %v3781
    %4861 = vmatprep.subr.bf16.mxu0 %v3795
    %4862 = vmatpush1.bf16.msra.mxu0 %v3794
    %4863 = vmatprep.subr.bf16.mxu0 %v3808
    %4864 = vmatpush1.bf16.msra.mxu0 %v3807
    %4865 = vmatprep.subr.bf16.mxu0 %v3821
    %4866 = vmatpush1.bf16.msra.mxu0 %v3820
    %4867 = vmatprep.subr.bf16.mxu0 %v3834
    %4868 = vmatpush1.bf16.msra.mxu0 %v3833
    %4869 = vmatprep.subr.bf16.mxu0 %v3847
    %4870 = vmatpush1.bf16.msra.mxu0 %v3846
    %4871 = vmatprep.subr.bf16.mxu0 %v3860
    %4872 = vmatpush1.bf16.msra.mxu0 %v3859
    %4873 = vmatprep.subr.bf16.mxu0 %v3873
    %4874 = vmatpush1.bf16.msra.mxu0 %v3872
    %4875 = vmatprep.subr.bf16.mxu0 %v3886
    %4876 = vmatpush1.bf16.msra.mxu0 %v3885
    %4877 = vmatprep.subr.bf16.mxu0 %v3899
    %4878 = vmatpush1.bf16.msra.mxu0 %v3898
    %4879 = vmatprep.subr.bf16.mxu0 %v3912
    %4880 = vmatpush1.bf16.msra.mxu0 %v3911
    %4881 = vmatprep.subr.bf16.mxu0 %v3925
    %4882 = vmatpush1.bf16.msra.mxu0 %v3924
    %4883 = vmatprep.subr.bf16.mxu0 %v3938
    %4884 = vmatpush1.bf16.msra.mxu0 %v3937
    %4885 = vmatprep.mubr.bf16.mxu0 %v815
    %4886 = vmatmul.mubr.bf16.gmra.mrb[0].mxu0 %v814
    %v4887 = vpop.f32.mrb[0].mxu0
    %v4888 = vadd.f32 %v4847, %v4887
    %v4889 = vpop.f32.mrb[0].mxu0
    %v4890 = vadd.f32 %v4849, %v4889
    %v4891 = vpop.f32.mrb[0].mxu0
    %v4892 = vpop.f32.mrb[0].mxu0
    %4893 = vdwg.mxu0
    %4894 = vmatprep.subr.bf16.mxu0 %v3951
    %4895 = vmatpush1.bf16.msra.mxu0 %v3950
    %4896 = vmatprep.subr.bf16.mxu0 %v3964
    %4897 = vmatpush1.bf16.msra.mxu0 %v3963
    %4898 = vmatprep.subr.bf16.mxu0 %v3977
    %4899 = vmatpush1.bf16.msra.mxu0 %v3976
    %4900 = vmatprep.subr.bf16.mxu0 %v3990
    %4901 = vmatpush1.bf16.msra.mxu0 %v3989
    %4902 = vmatprep.subr.bf16.mxu0 %v4003
    %4903 = vmatpush1.bf16.msra.mxu0 %v4002
    %4904 = vmatprep.subr.bf16.mxu0 %v4016
    %4905 = vmatpush1.bf16.msra.mxu0 %v4015
    %4906 = vmatprep.subr.bf16.mxu0 %v4029
    %4907 = vmatpush1.bf16.msra.mxu0 %v4028
    %4908 = vmatprep.subr.bf16.mxu0 %v4042
    %4909 = vmatpush1.bf16.msra.mxu0 %v4041
    %4910 = vmatprep.subr.bf16.mxu0 %v4055
    %4911 = vmatpush1.bf16.msra.mxu0 %v4054
    %4912 = vmatprep.subr.bf16.mxu0 %v4068
    %4913 = vmatpush1.bf16.msra.mxu0 %v4067
    %4914 = vmatprep.subr.bf16.mxu0 %v4081
    %4915 = vmatpush1.bf16.msra.mxu0 %v4080
    %4916 = vmatprep.subr.bf16.mxu0 %v4094
    %4917 = vmatpush1.bf16.msra.mxu0 %v4093
    %4918 = vmatprep.subr.bf16.mxu0 %v4107
    %4919 = vmatpush1.bf16.msra.mxu0 %v4106
    %4920 = vmatprep.subr.bf16.mxu0 %v4120
    %4921 = vmatpush1.bf16.msra.mxu0 %v4119
    %4922 = vmatprep.subr.bf16.mxu0 %v4133
    %4923 = vmatpush1.bf16.msra.mxu0 %v4132
    %4924 = vmatprep.subr.bf16.mxu0 %v4146
    %4925 = vmatpush1.bf16.msra.mxu0 %v4145
    %4926 = vmatprep.mubr.bf16.mxu0 %v817
    %4927 = vmatmul.mubr.bf16.gmra.mrb[0].mxu0 %v816
    %v4928 = vpop.f32.mrb[0].mxu0
    %v4929 = vadd.f32 %v4888, %v4928
    %v4930 = vpop.f32.mrb[0].mxu0
    %v4931 = vadd.f32 %v4890, %v4930
    %v4932 = vpop.f32.mrb[0].mxu0
    %v4933 = vpop.f32.mrb[0].mxu0
    %4934 = vdwg.mxu0
    %4935 = vmatprep.subr.bf16.mxu0 %v4159
    %4936 = vmatpush1.bf16.msra.mxu0 %v4158
    %4937 = vmatprep.subr.bf16.mxu0 0
    %4938 = vmatpush1.bf16.msra.mxu0 0
    %4939 = vmatprep.subr.bf16.mxu0 0
    %4940 = vmatpush1.bf16.msra.mxu0 0
    %4941 = vmatprep.subr.bf16.mxu0 0
    %4942 = vmatpush1.bf16.msra.mxu0 0
    %4943 = vmatprep.subr.bf16.mxu0 0
    %4944 = vmatpush1.bf16.msra.mxu0 0
    %4945 = vmatprep.subr.bf16.mxu0 0
    %4946 = vmatpush1.bf16.msra.mxu0 0
    %4947 = vmatprep.subr.bf16.mxu0 0
    %4948 = vmatpush1.bf16.msra.mxu0 0
    %4949 = vmatprep.subr.bf16.mxu0 0
    %4950 = vmatpush1.bf16.msra.mxu0 0
    %4951 = vmatprep.subr.bf16.mxu0 0
    %4952 = vmatpush1.bf16.msra.mxu0 0
    %4953 = vmatprep.subr.bf16.mxu0 0
    %4954 = vmatpush1.bf16.msra.mxu0 0
    %4955 = vmatprep.subr.bf16.mxu0 0
    %4956 = vmatpush1.bf16.msra.mxu0 0
    %4957 = vmatprep.subr.bf16.mxu0 0
    %4958 = vmatpush1.bf16.msra.mxu0 0
    %4959 = vmatprep.subr.bf16.mxu0 0
    %4960 = vmatpush1.bf16.msra.mxu0 0
    %4961 = vmatprep.subr.bf16.mxu0 0
    %4962 = vmatpush1.bf16.msra.mxu0 0
    %4963 = vmatprep.subr.bf16.mxu0 0
    %4964 = vmatpush1.bf16.msra.mxu0 0
    %4965 = vmatprep.subr.bf16.mxu0 0
    %4966 = vmatpush1.bf16.msra.mxu0 0
    %4967 = vmatprep.mubr.bf16.mxu0 0
    %4968 = vmatmul.mubr.bf16.gmra.mrb[0].mxu0 %v4810
    %v4969 = vpop.f32.mrb[0].mxu0
    %v4970 = vadd.f32 %v4929, %v4969
    %v4971 = vpop.f32.mrb[0].mxu0
    %v4972 = vadd.f32 %v4931, %v4971
    %v4973 = vpop.f32.mrb[0].mxu0
    %v4974 = vpop.f32.mrb[0].mxu0
    %4975 = vdwg.mxu0
    %4976 = vmatprep.subr.bf16.mxu0 %v3537
    %4977 = vmatpush1.bf16.msra.mxu0 %v3536
    %4978 = vmatprep.subr.bf16.mxu0 %v3550
    %4979 = vmatpush1.bf16.msra.mxu0 %v3549
    %4980 = vmatprep.subr.bf16.mxu0 %v3563
    %4981 = vmatpush1.bf16.msra.mxu0 %v3562
    %4982 = vmatprep.subr.bf16.mxu0 %v3576
    %4983 = vmatpush1.bf16.msra.mxu0 %v3575
    %4984 = vmatprep.subr.bf16.mxu0 %v3589
    %4985 = vmatpush1.bf16.msra.mxu0 %v3588
    %4986 = vmatprep.subr.bf16.mxu0 %v3602
    %4987 = vmatpush1.bf16.msra.mxu0 %v3601
    %4988 = vmatprep.subr.bf16.mxu0 %v3615
    %4989 = vmatpush1.bf16.msra.mxu0 %v3614
    %4990 = vmatprep.subr.bf16.mxu0 %v3628
    %4991 = vmatpush1.bf16.msra.mxu0 %v3627
    %4992 = vmatprep.subr.bf16.mxu0 %v3641
    %4993 = vmatpush1.bf16.msra.mxu0 %v3640
    %4994 = vmatprep.subr.bf16.mxu0 %v3654
    %4995 = vmatpush1.bf16.msra.mxu0 %v3653
    %4996 = vmatprep.subr.bf16.mxu0 %v3667
    %4997 = vmatpush1.bf16.msra.mxu0 %v3666
    %4998 = vmatprep.subr.bf16.mxu0 %v3680
    %4999 = vmatpush1.bf16.msra.mxu0 %v3679
    %5000 = vmatprep.subr.bf16.mxu0 %v3693
    %5001 = vmatpush1.bf16.msra.mxu0 %v3692
    %5002 = vmatprep.subr.bf16.mxu0 %v3706
    %5003 = vmatpush1.bf16.msra.mxu0 %v3705
    %5004 = vmatprep.subr.bf16.mxu0 %v3719
    %5005 = vmatpush1.bf16.msra.mxu0 %v3718
    %5006 = vmatprep.subr.bf16.mxu0 %v3732
    %5007 = vmatpush1.bf16.msra.mxu0 %v3731
    %5008 = vmatprep.mubr.bf16.mxu0 %v813
    %5009 = vmatmul.mubr.bf16.gmra.mrb[0].mxu0 %v812
    %v5010 = vpop.f32.mrb[0].mxu0
    %v5011 = vadd.f32 %v1520, %v5010
    %v5012 = vpop.f32.mrb[0].mxu0
    %v5013 = vadd.f32 %v1524, %v5012
    %v5014 = vpop.f32.mrb[0].mxu0
    %v5015 = vpop.f32.mrb[0].mxu0
    %5016 = vdwg.mxu0
    %5017 = vmatprep.subr.bf16.mxu0 %v3745
    %5018 = vmatpush1.bf16.msra.mxu0 %v3744
    %5019 = vmatprep.subr.bf16.mxu0 %v3758
    %5020 = vmatpush1.bf16.msra.mxu0 %v3757
    %5021 = vmatprep.subr.bf16.mxu0 %v3771
    %5022 = vmatpush1.bf16.msra.mxu0 %v3770
    %5023 = vmatprep.subr.bf16.mxu0 %v3784
    %5024 = vmatpush1.bf16.msra.mxu0 %v3783
    %5025 = vmatprep.subr.bf16.mxu0 %v3797
    %5026 = vmatpush1.bf16.msra.mxu0 %v3796
    %5027 = vmatprep.subr.bf16.mxu0 %v3810
    %5028 = vmatpush1.bf16.msra.mxu0 %v3809
    %5029 = vmatprep.subr.bf16.mxu0 %v3823
    %5030 = vmatpush1.bf16.msra.mxu0 %v3822
    %5031 = vmatprep.subr.bf16.mxu0 %v3836
    %5032 = vmatpush1.bf16.msra.mxu0 %v3835
    %5033 = vmatprep.subr.bf16.mxu0 %v3849
    %5034 = vmatpush1.bf16.msra.mxu0 %v3848
    %5035 = vmatprep.subr.bf16.mxu0 %v3862
    %5036 = vmatpush1.bf16.msra.mxu0 %v3861
    %5037 = vmatprep.subr.bf16.mxu0 %v3875
    %5038 = vmatpush1.bf16.msra.mxu0 %v3874
    %5039 = vmatprep.subr.bf16.mxu0 %v3888
    %5040 = vmatpush1.bf16.msra.mxu0 %v3887
    %5041 = vmatprep.subr.bf16.mxu0 %v3901
    %5042 = vmatpush1.bf16.msra.mxu0 %v3900
    %5043 = vmatprep.subr.bf16.mxu0 %v3914
    %5044 = vmatpush1.bf16.msra.mxu0 %v3913
    %5045 = vmatprep.subr.bf16.mxu0 %v3927
    %5046 = vmatpush1.bf16.msra.mxu0 %v3926
    %5047 = vmatprep.subr.bf16.mxu0 %v3940
    %5048 = vmatpush1.bf16.msra.mxu0 %v3939
    %5049 = vmatprep.mubr.bf16.mxu0 %v815
    %5050 = vmatmul.mubr.bf16.gmra.mrb[0].mxu0 %v814
    %v5051 = vpop.f32.mrb[0].mxu0
    %v5052 = vadd.f32 %v5011, %v5051
    %v5053 = vpop.f32.mrb[0].mxu0
    %v5054 = vadd.f32 %v5013, %v5053
    %v5055 = vpop.f32.mrb[0].mxu0
    %v5056 = vpop.f32.mrb[0].mxu0
    %5057 = vdwg.mxu0
    %5058 = vmatprep.subr.bf16.mxu0 %v3953
    %5059 = vmatpush1.bf16.msra.mxu0 %v3952
    %5060 = vmatprep.subr.bf16.mxu0 %v3966
    %5061 = vmatpush1.bf16.msra.mxu0 %v3965
    %5062 = vmatprep.subr.bf16.mxu0 %v3979
    %5063 = vmatpush1.bf16.msra.mxu0 %v3978
    %5064 = vmatprep.subr.bf16.mxu0 %v3992
    %5065 = vmatpush1.bf16.msra.mxu0 %v3991
    %5066 = vmatprep.subr.bf16.mxu0 %v4005
    %5067 = vmatpush1.bf16.msra.mxu0 %v4004
    %5068 = vmatprep.subr.bf16.mxu0 %v4018
    %5069 = vmatpush1.bf16.msra.mxu0 %v4017
    %5070 = vmatprep.subr.bf16.mxu0 %v4031
    %5071 = vmatpush1.bf16.msra.mxu0 %v4030
    %5072 = vmatprep.subr.bf16.mxu0 %v4044
    %5073 = vmatpush1.bf16.msra.mxu0 %v4043
    %5074 = vmatprep.subr.bf16.mxu0 %v4057
    %5075 = vmatpush1.bf16.msra.mxu0 %v4056
    %5076 = vmatprep.subr.bf16.mxu0 %v4070
    %5077 = vmatpush1.bf16.msra.mxu0 %v4069
    %5078 = vmatprep.subr.bf16.mxu0 %v4083
    %5079 = vmatpush1.bf16.msra.mxu0 %v4082
    %5080 = vmatprep.subr.bf16.mxu0 %v4096
    %5081 = vmatpush1.bf16.msra.mxu0 %v4095
    %5082 = vmatprep.subr.bf16.mxu0 %v4109
    %5083 = vmatpush1.bf16.msra.mxu0 %v4108
    %5084 = vmatprep.subr.bf16.mxu0 %v4122
    %5085 = vmatpush1.bf16.msra.mxu0 %v4121
    %5086 = vmatprep.subr.bf16.mxu0 %v4135
    %5087 = vmatpush1.bf16.msra.mxu0 %v4134
    %5088 = vmatprep.subr.bf16.mxu0 %v4148
    %5089 = vmatpush1.bf16.msra.mxu0 %v4147
    %5090 = vmatprep.mubr.bf16.mxu0 %v817
    %5091 = vmatmul.mubr.bf16.gmra.mrb[0].mxu0 %v816
    %v5092 = vpop.f32.mrb[0].mxu0
    %v5093 = vadd.f32 %v5052, %v5092
    %v5094 = vpop.f32.mrb[0].mxu0
    %v5095 = vadd.f32 %v5054, %v5094
    %v5096 = vpop.f32.mrb[0].mxu0
    %v5097 = vpop.f32.mrb[0].mxu0
    %5098 = vdwg.mxu0
    %5099 = vmatprep.subr.bf16.mxu0 %v4161
    %5100 = vmatpush1.bf16.msra.mxu0 %v4160
    %5101 = vmatprep.subr.bf16.mxu0 0
    %5102 = vmatpush1.bf16.msra.mxu0 0
    %5103 = vmatprep.subr.bf16.mxu0 0
    %5104 = vmatpush1.bf16.msra.mxu0 0
    %5105 = vmatprep.subr.bf16.mxu0 0
    %5106 = vmatpush1.bf16.msra.mxu0 0
    %5107 = vmatprep.subr.bf16.mxu0 0
    %5108 = vmatpush1.bf16.msra.mxu0 0
    %5109 = vmatprep.subr.bf16.mxu0 0
    %5110 = vmatpush1.bf16.msra.mxu0 0
    %5111 = vmatprep.subr.bf16.mxu0 0
    %5112 = vmatpush1.bf16.msra.mxu0 0
    %5113 = vmatprep.subr.bf16.mxu0 0
    %5114 = vmatpush1.bf16.msra.mxu0 0
    %5115 = vmatprep.subr.bf16.mxu0 0
    %5116 = vmatpush1.bf16.msra.mxu0 0
    %5117 = vmatprep.subr.bf16.mxu0 0
    %5118 = vmatpush1.bf16.msra.mxu0 0
    %5119 = vmatprep.subr.bf16.mxu0 0
    %5120 = vmatpush1.bf16.msra.mxu0 0
    %5121 = vmatprep.subr.bf16.mxu0 0
    %5122 = vmatpush1.bf16.msra.mxu0 0
    %5123 = vmatprep.subr.bf16.mxu0 0
    %5124 = vmatpush1.bf16.msra.mxu0 0
    %5125 = vmatprep.subr.bf16.mxu0 0
    %5126 = vmatpush1.bf16.msra.mxu0 0
    %5127 = vmatprep.subr.bf16.mxu0 0
    %5128 = vmatpush1.bf16.msra.mxu0 0
    %5129 = vmatprep.subr.bf16.mxu0 0
    %5130 = vmatpush1.bf16.msra.mxu0 0
    %5131 = vmatprep.mubr.bf16.mxu0 0
    %5132 = vmatmul.mubr.bf16.gmra.mrb[0].mxu0 %v4810
    %v5133 = vpop.f32.mrb[0].mxu0
    %v5134 = vadd.f32 %v5093, %v5133
    %v5135 = vpop.f32.mrb[0].mxu0
    %v5136 = vadd.f32 %v5095, %v5135
    %v5137 = vpop.f32.mrb[0].mxu0
    %v5138 = vpop.f32.mrb[0].mxu0
    %5139 = vdwg.mxu0
    %5140 = vmatprep.subr.bf16.mxu0 %v3539
    %5141 = vmatpush1.bf16.msra.mxu0 %v3538
    %5142 = vmatprep.subr.bf16.mxu0 %v3552
    %5143 = vmatpush1.bf16.msra.mxu0 %v3551
    %5144 = vmatprep.subr.bf16.mxu0 %v3565
    %5145 = vmatpush1.bf16.msra.mxu0 %v3564
    %5146 = vmatprep.subr.bf16.mxu0 %v3578
    %5147 = vmatpush1.bf16.msra.mxu0 %v3577
    %5148 = vmatprep.subr.bf16.mxu0 %v3591
    %5149 = vmatpush1.bf16.msra.mxu0 %v3590
    %5150 = vmatprep.subr.bf16.mxu0 %v3604
    %5151 = vmatpush1.bf16.msra.mxu0 %v3603
    %5152 = vmatprep.subr.bf16.mxu0 %v3617
    %5153 = vmatpush1.bf16.msra.mxu0 %v3616
    %5154 = vmatprep.subr.bf16.mxu0 %v3630
    %5155 = vmatpush1.bf16.msra.mxu0 %v3629
    %5156 = vmatprep.subr.bf16.mxu0 %v3643
    %5157 = vmatpush1.bf16.msra.mxu0 %v3642
    %5158 = vmatprep.subr.bf16.mxu0 %v3656
    %5159 = vmatpush1.bf16.msra.mxu0 %v3655
    %5160 = vmatprep.subr.bf16.mxu0 %v3669
    %5161 = vmatpush1.bf16.msra.mxu0 %v3668
    %5162 = vmatprep.subr.bf16.mxu0 %v3682
    %5163 = vmatpush1.bf16.msra.mxu0 %v3681
    %5164 = vmatprep.subr.bf16.mxu0 %v3695
    %5165 = vmatpush1.bf16.msra.mxu0 %v3694
    %5166 = vmatprep.subr.bf16.mxu0 %v3708
    %5167 = vmatpush1.bf16.msra.mxu0 %v3707
    %5168 = vmatprep.subr.bf16.mxu0 %v3721
    %5169 = vmatpush1.bf16.msra.mxu0 %v3720
    %5170 = vmatprep.subr.bf16.mxu0 %v3734
    %5171 = vmatpush1.bf16.msra.mxu0 %v3733
    %5172 = vmatprep.mubr.bf16.mxu0 %v813
    %5173 = vmatmul.mubr.bf16.gmra.mrb[0].mxu0 %v812
    %v5174 = vpop.f32.mrb[0].mxu0
    %v5175 = vadd.f32 %v1528, %v5174
    %v5176 = vpop.f32.mrb[0].mxu0
    %v5177 = vadd.f32 %v1532, %v5176
    %v5178 = vpop.f32.mrb[0].mxu0
    %v5179 = vpop.f32.mrb[0].mxu0
    %5180 = vdwg.mxu0
    %5181 = vmatprep.subr.bf16.mxu0 %v3747
    %5182 = vmatpush1.bf16.msra.mxu0 %v3746
    %5183 = vmatprep.subr.bf16.mxu0 %v3760
    %5184 = vmatpush1.bf16.msra.mxu0 %v3759
    %5185 = vmatprep.subr.bf16.mxu0 %v3773
    %5186 = vmatpush1.bf16.msra.mxu0 %v3772
    %5187 = vmatprep.subr.bf16.mxu0 %v3786
    %5188 = vmatpush1.bf16.msra.mxu0 %v3785
    %5189 = vmatprep.subr.bf16.mxu0 %v3799
    %5190 = vmatpush1.bf16.msra.mxu0 %v3798
    %5191 = vmatprep.subr.bf16.mxu0 %v3812
    %5192 = vmatpush1.bf16.msra.mxu0 %v3811
    %5193 = vmatprep.subr.bf16.mxu0 %v3825
    %5194 = vmatpush1.bf16.msra.mxu0 %v3824
    %5195 = vmatprep.subr.bf16.mxu0 %v3838
    %5196 = vmatpush1.bf16.msra.mxu0 %v3837
    %5197 = vmatprep.subr.bf16.mxu0 %v3851
    %5198 = vmatpush1.bf16.msra.mxu0 %v3850
    %5199 = vmatprep.subr.bf16.mxu0 %v3864
    %5200 = vmatpush1.bf16.msra.mxu0 %v3863
    %5201 = vmatprep.subr.bf16.mxu0 %v3877
    %5202 = vmatpush1.bf16.msra.mxu0 %v3876
    %5203 = vmatprep.subr.bf16.mxu0 %v3890
    %5204 = vmatpush1.bf16.msra.mxu0 %v3889
    %5205 = vmatprep.subr.bf16.mxu0 %v3903
    %5206 = vmatpush1.bf16.msra.mxu0 %v3902
    %5207 = vmatprep.subr.bf16.mxu0 %v3916
    %5208 = vmatpush1.bf16.msra.mxu0 %v3915
    %5209 = vmatprep.subr.bf16.mxu0 %v3929
    %5210 = vmatpush1.bf16.msra.mxu0 %v3928
    %5211 = vmatprep.subr.bf16.mxu0 %v3942
    %5212 = vmatpush1.bf16.msra.mxu0 %v3941
    %5213 = vmatprep.mubr.bf16.mxu0 %v815
    %5214 = vmatmul.mubr.bf16.gmra.mrb[0].mxu0 %v814
    %v5215 = vpop.f32.mrb[0].mxu0
    %v5216 = vadd.f32 %v5175, %v5215
    %v5217 = vpop.f32.mrb[0].mxu0
    %v5218 = vadd.f32 %v5177, %v5217
    %v5219 = vpop.f32.mrb[0].mxu0
    %v5220 = vpop.f32.mrb[0].mxu0
    %5221 = vdwg.mxu0
    %5222 = vmatprep.subr.bf16.mxu0 %v3955
    %5223 = vmatpush1.bf16.msra.mxu0 %v3954
    %5224 = vmatprep.subr.bf16.mxu0 %v3968
    %5225 = vmatpush1.bf16.msra.mxu0 %v3967
    %5226 = vmatprep.subr.bf16.mxu0 %v3981
    %5227 = vmatpush1.bf16.msra.mxu0 %v3980
    %5228 = vmatprep.subr.bf16.mxu0 %v3994
    %5229 = vmatpush1.bf16.msra.mxu0 %v3993
    %5230 = vmatprep.subr.bf16.mxu0 %v4007
    %5231 = vmatpush1.bf16.msra.mxu0 %v4006
    %5232 = vmatprep.subr.bf16.mxu0 %v4020
    %5233 = vmatpush1.bf16.msra.mxu0 %v4019
    %5234 = vmatprep.subr.bf16.mxu0 %v4033
    %5235 = vmatpush1.bf16.msra.mxu0 %v4032
    %5236 = vmatprep.subr.bf16.mxu0 %v4046
    %5237 = vmatpush1.bf16.msra.mxu0 %v4045
    %5238 = vmatprep.subr.bf16.mxu0 %v4059
    %5239 = vmatpush1.bf16.msra.mxu0 %v4058
    %5240 = vmatprep.subr.bf16.mxu0 %v4072
    %5241 = vmatpush1.bf16.msra.mxu0 %v4071
    %5242 = vmatprep.subr.bf16.mxu0 %v4085
    %5243 = vmatpush1.bf16.msra.mxu0 %v4084
    %5244 = vmatprep.subr.bf16.mxu0 %v4098
    %5245 = vmatpush1.bf16.msra.mxu0 %v4097
    %5246 = vmatprep.subr.bf16.mxu0 %v4111
    %5247 = vmatpush1.bf16.msra.mxu0 %v4110
    %5248 = vmatprep.subr.bf16.mxu0 %v4124
    %5249 = vmatpush1.bf16.msra.mxu0 %v4123
    %5250 = vmatprep.subr.bf16.mxu0 %v4137
    %5251 = vmatpush1.bf16.msra.mxu0 %v4136
    %5252 = vmatprep.subr.bf16.mxu0 %v4150
    %5253 = vmatpush1.bf16.msra.mxu0 %v4149
    %5254 = vmatprep.mubr.bf16.mxu0 %v817
    %5255 = vmatmul.mubr.bf16.gmra.mrb[0].mxu0 %v816
    %v5256 = vpop.f32.mrb[0].mxu0
    %v5257 = vadd.f32 %v5216, %v5256
    %v5258 = vpop.f32.mrb[0].mxu0
    %v5259 = vadd.f32 %v5218, %v5258
    %v5260 = vpop.f32.mrb[0].mxu0
    %v5261 = vpop.f32.mrb[0].mxu0
    %5262 = vdwg.mxu0
    %5263 = vmatprep.subr.bf16.mxu0 %v4163
    %5264 = vmatpush1.bf16.msra.mxu0 %v4162
    %5265 = vmatprep.subr.bf16.mxu0 0
    %5266 = vmatpush1.bf16.msra.mxu0 0
    %5267 = vmatprep.subr.bf16.mxu0 0
    %5268 = vmatpush1.bf16.msra.mxu0 0
    %5269 = vmatprep.subr.bf16.mxu0 0
    %5270 = vmatpush1.bf16.msra.mxu0 0
    %5271 = vmatprep.subr.bf16.mxu0 0
    %5272 = vmatpush1.bf16.msra.mxu0 0
    %5273 = vmatprep.subr.bf16.mxu0 0
    %5274 = vmatpush1.bf16.msra.mxu0 0
    %5275 = vmatprep.subr.bf16.mxu0 0
    %5276 = vmatpush1.bf16.msra.mxu0 0
    %5277 = vmatprep.subr.bf16.mxu0 0
    %5278 = vmatpush1.bf16.msra.mxu0 0
    %5279 = vmatprep.subr.bf16.mxu0 0
    %5280 = vmatpush1.bf16.msra.mxu0 0
    %5281 = vmatprep.subr.bf16.mxu0 0
    %5282 = vmatpush1.bf16.msra.mxu0 0
    %5283 = vmatprep.subr.bf16.mxu0 0
    %5284 = vmatpush1.bf16.msra.mxu0 0
    %5285 = vmatprep.subr.bf16.mxu0 0
    %5286 = vmatpush1.bf16.msra.mxu0 0
    %5287 = vmatprep.subr.bf16.mxu0 0
    %5288 = vmatpush1.bf16.msra.mxu0 0
    %5289 = vmatprep.subr.bf16.mxu0 0
    %5290 = vmatpush1.bf16.msra.mxu0 0
    %5291 = vmatprep.subr.bf16.mxu0 0
    %5292 = vmatpush1.bf16.msra.mxu0 0
    %5293 = vmatprep.subr.bf16.mxu0 0
    %5294 = vmatpush1.bf16.msra.mxu0 0
    %5295 = vmatprep.mubr.bf16.mxu0 0
    %5296 = vmatmul.mubr.bf16.gmra.mrb[0].mxu0 %v4810
    %v5297 = vpop.f32.mrb[0].mxu0
    %v5298 = vadd.f32 %v5257, %v5297
    %v5299 = vpop.f32.mrb[0].mxu0
    %v5300 = vadd.f32 %v5259, %v5299
    %v5301 = vpop.f32.mrb[0].mxu0
    %v5302 = vpop.f32.mrb[0].mxu0
    %5303 = vdwg.mxu0
    %5304 = vmatprep.subr.bf16.mxu0 %v3541
    %5305 = vmatpush1.bf16.msra.mxu0 %v3540
    %5306 = vmatprep.subr.bf16.mxu0 %v3554
    %5307 = vmatpush1.bf16.msra.mxu0 %v3553
    %5308 = vmatprep.subr.bf16.mxu0 %v3567
    %5309 = vmatpush1.bf16.msra.mxu0 %v3566
    %5310 = vmatprep.subr.bf16.mxu0 %v3580
    %5311 = vmatpush1.bf16.msra.mxu0 %v3579
    %5312 = vmatprep.subr.bf16.mxu0 %v3593
    %5313 = vmatpush1.bf16.msra.mxu0 %v3592
    %5314 = vmatprep.subr.bf16.mxu0 %v3606
    %5315 = vmatpush1.bf16.msra.mxu0 %v3605
    %5316 = vmatprep.subr.bf16.mxu0 %v3619
    %5317 = vmatpush1.bf16.msra.mxu0 %v3618
    %5318 = vmatprep.subr.bf16.mxu0 %v3632
    %5319 = vmatpush1.bf16.msra.mxu0 %v3631
    %5320 = vmatprep.subr.bf16.mxu0 %v3645
    %5321 = vmatpush1.bf16.msra.mxu0 %v3644
    %5322 = vmatprep.subr.bf16.mxu0 %v3658
    %5323 = vmatpush1.bf16.msra.mxu0 %v3657
    %5324 = vmatprep.subr.bf16.mxu0 %v3671
    %5325 = vmatpush1.bf16.msra.mxu0 %v3670
    %5326 = vmatprep.subr.bf16.mxu0 %v3684
    %5327 = vmatpush1.bf16.msra.mxu0 %v3683
    %5328 = vmatprep.subr.bf16.mxu0 %v3697
    %5329 = vmatpush1.bf16.msra.mxu0 %v3696
    %5330 = vmatprep.subr.bf16.mxu0 %v3710
    %5331 = vmatpush1.bf16.msra.mxu0 %v3709
    %5332 = vmatprep.subr.bf16.mxu0 %v3723
    %5333 = vmatpush1.bf16.msra.mxu0 %v3722
    %5334 = vmatprep.subr.bf16.mxu0 %v3736
    %5335 = vmatpush1.bf16.msra.mxu0 %v3735
    %5336 = vmatprep.mubr.bf16.mxu0 %v813
    %5337 = vmatmul.mubr.bf16.gmra.mrb[0].mxu0 %v812
    %v5338 = vpop.f32.mrb[0].mxu0
    %v5339 = vadd.f32 %v1536, %v5338
    %v5340 = vpop.f32.mrb[0].mxu0
    %v5341 = vadd.f32 %v1540, %v5340
    %v5342 = vpop.f32.mrb[0].mxu0
    %v5343 = vpop.f32.mrb[0].mxu0
    %5344 = vdwg.mxu0
    %5345 = vmatprep.subr.bf16.mxu0 %v3749
    %5346 = vmatpush1.bf16.msra.mxu0 %v3748
    %5347 = vmatprep.subr.bf16.mxu0 %v3762
    %5348 = vmatpush1.bf16.msra.mxu0 %v3761
    %5349 = vmatprep.subr.bf16.mxu0 %v3775
    %5350 = vmatpush1.bf16.msra.mxu0 %v3774
    %5351 = vmatprep.subr.bf16.mxu0 %v3788
    %5352 = vmatpush1.bf16.msra.mxu0 %v3787
    %5353 = vmatprep.subr.bf16.mxu0 %v3801
    %5354 = vmatpush1.bf16.msra.mxu0 %v3800
    %5355 = vmatprep.subr.bf16.mxu0 %v3814
    %5356 = vmatpush1.bf16.msra.mxu0 %v3813
    %5357 = vmatprep.subr.bf16.mxu0 %v3827
    %5358 = vmatpush1.bf16.msra.mxu0 %v3826
    %5359 = vmatprep.subr.bf16.mxu0 %v3840
    %5360 = vmatpush1.bf16.msra.mxu0 %v3839
    %5361 = vmatprep.subr.bf16.mxu0 %v3853
    %5362 = vmatpush1.bf16.msra.mxu0 %v3852
    %5363 = vmatprep.subr.bf16.mxu0 %v3866
    %5364 = vmatpush1.bf16.msra.mxu0 %v3865
    %5365 = vmatprep.subr.bf16.mxu0 %v3879
    %5366 = vmatpush1.bf16.msra.mxu0 %v3878
    %5367 = vmatprep.subr.bf16.mxu0 %v3892
    %5368 = vmatpush1.bf16.msra.mxu0 %v3891
    %5369 = vmatprep.subr.bf16.mxu0 %v3905
    %5370 = vmatpush1.bf16.msra.mxu0 %v3904
    %5371 = vmatprep.subr.bf16.mxu0 %v3918
    %5372 = vmatpush1.bf16.msra.mxu0 %v3917
    %5373 = vmatprep.subr.bf16.mxu0 %v3931
    %5374 = vmatpush1.bf16.msra.mxu0 %v3930
    %5375 = vmatprep.subr.bf16.mxu0 %v3944
    %5376 = vmatpush1.bf16.msra.mxu0 %v3943
    %5377 = vmatprep.mubr.bf16.mxu0 %v815
    %5378 = vmatmul.mubr.bf16.gmra.mrb[0].mxu0 %v814
    %v5379 = vpop.f32.mrb[0].mxu0
    %v5380 = vadd.f32 %v5339, %v5379
    %v5381 = vpop.f32.mrb[0].mxu0
    %v5382 = vadd.f32 %v5341, %v5381
    %v5383 = vpop.f32.mrb[0].mxu0
    %v5384 = vpop.f32.mrb[0].mxu0
    %5385 = vdwg.mxu0
    %5386 = vmatprep.subr.bf16.mxu0 %v3957
    %5387 = vmatpush1.bf16.msra.mxu0 %v3956
    %5388 = vmatprep.subr.bf16.mxu0 %v3970
    %5389 = vmatpush1.bf16.msra.mxu0 %v3969
    %5390 = vmatprep.subr.bf16.mxu0 %v3983
    %5391 = vmatpush1.bf16.msra.mxu0 %v3982
    %5392 = vmatprep.subr.bf16.mxu0 %v3996
    %5393 = vmatpush1.bf16.msra.mxu0 %v3995
    %5394 = vmatprep.subr.bf16.mxu0 %v4009
    %5395 = vmatpush1.bf16.msra.mxu0 %v4008
    %5396 = vmatprep.subr.bf16.mxu0 %v4022
    %5397 = vmatpush1.bf16.msra.mxu0 %v4021
    %5398 = vmatprep.subr.bf16.mxu0 %v4035
    %5399 = vmatpush1.bf16.msra.mxu0 %v4034
    %5400 = vmatprep.subr.bf16.mxu0 %v4048
    %5401 = vmatpush1.bf16.msra.mxu0 %v4047
    %5402 = vmatprep.subr.bf16.mxu0 %v4061
    %5403 = vmatpush1.bf16.msra.mxu0 %v4060
    %5404 = vmatprep.subr.bf16.mxu0 %v4074
    %5405 = vmatpush1.bf16.msra.mxu0 %v4073
    %5406 = vmatprep.subr.bf16.mxu0 %v4087
    %5407 = vmatpush1.bf16.msra.mxu0 %v4086
    %5408 = vmatprep.subr.bf16.mxu0 %v4100
    %5409 = vmatpush1.bf16.msra.mxu0 %v4099
    %5410 = vmatprep.subr.bf16.mxu0 %v4113
    %5411 = vmatpush1.bf16.msra.mxu0 %v4112
    %5412 = vmatprep.subr.bf16.mxu0 %v4126
    %5413 = vmatpush1.bf16.msra.mxu0 %v4125
    %5414 = vmatprep.subr.bf16.mxu0 %v4139
    %5415 = vmatpush1.bf16.msra.mxu0 %v4138
    %5416 = vmatprep.subr.bf16.mxu0 %v4152
    %5417 = vmatpush1.bf16.msra.mxu0 %v4151
    %5418 = vmatprep.mubr.bf16.mxu0 %v817
    %5419 = vmatmul.mubr.bf16.gmra.mrb[0].mxu0 %v816
    %v5420 = vpop.f32.mrb[0].mxu0
    %v5421 = vadd.f32 %v5380, %v5420
    %v5422 = vpop.f32.mrb[0].mxu0
    %v5423 = vadd.f32 %v5382, %v5422
    %v5424 = vpop.f32.mrb[0].mxu0
    %v5425 = vpop.f32.mrb[0].mxu0
    %5426 = vdwg.mxu0
    %5427 = vmatprep.subr.bf16.mxu0 %v4165
    %5428 = vmatpush1.bf16.msra.mxu0 %v4164
    %5429 = vmatprep.subr.bf16.mxu0 0
    %5430 = vmatpush1.bf16.msra.mxu0 0
    %5431 = vmatprep.subr.bf16.mxu0 0
    %5432 = vmatpush1.bf16.msra.mxu0 0
    %5433 = vmatprep.subr.bf16.mxu0 0
    %5434 = vmatpush1.bf16.msra.mxu0 0
    %5435 = vmatprep.subr.bf16.mxu0 0
    %5436 = vmatpush1.bf16.msra.mxu0 0
    %5437 = vmatprep.subr.bf16.mxu0 0
    %5438 = vmatpush1.bf16.msra.mxu0 0
    %5439 = vmatprep.subr.bf16.mxu0 0
    %5440 = vmatpush1.bf16.msra.mxu0 0
    %5441 = vmatprep.subr.bf16.mxu0 0
    %5442 = vmatpush1.bf16.msra.mxu0 0
    %5443 = vmatprep.subr.bf16.mxu0 0
    %5444 = vmatpush1.bf16.msra.mxu0 0
    %5445 = vmatprep.subr.bf16.mxu0 0
    %5446 = vmatpush1.bf16.msra.mxu0 0
    %5447 = vmatprep.subr.bf16.mxu0 0
    %5448 = vmatpush1.bf16.msra.mxu0 0
    %5449 = vmatprep.subr.bf16.mxu0 0
    %5450 = vmatpush1.bf16.msra.mxu0 0
    %5451 = vmatprep.subr.bf16.mxu0 0
    %5452 = vmatpush1.bf16.msra.mxu0 0
    %5453 = vmatprep.subr.bf16.mxu0 0
    %5454 = vmatpush1.bf16.msra.mxu0 0
    %5455 = vmatprep.subr.bf16.mxu0 0
    %5456 = vmatpush1.bf16.msra.mxu0 0
    %5457 = vmatprep.subr.bf16.mxu0 0
    %5458 = vmatpush1.bf16.msra.mxu0 0
    %5459 = vmatprep.mubr.bf16.mxu0 0
    %5460 = vmatmul.mubr.bf16.gmra.mrb[0].mxu0 %v4810
    %v5461 = vpop.f32.mrb[0].mxu0
    %v5462 = vadd.f32 %v5421, %v5461
    %v5463 = vpop.f32.mrb[0].mxu0
    %v5464 = vadd.f32 %v5423, %v5463
    %v5465 = vpop.f32.mrb[0].mxu0
    %v5466 = vpop.f32.mrb[0].mxu0
    %5467 = vdwg.mxu0
    %5468 = vmatprep.subr.bf16.mxu0 %v3543
    %5469 = vmatpush1.bf16.msra.mxu0 %v3542
    %5470 = vmatprep.subr.bf16.mxu0 %v3556
    %5471 = vmatpush1.bf16.msra.mxu0 %v3555
    %5472 = vmatprep.subr.bf16.mxu0 %v3569
    %5473 = vmatpush1.bf16.msra.mxu0 %v3568
    %5474 = vmatprep.subr.bf16.mxu0 %v3582
    %5475 = vmatpush1.bf16.msra.mxu0 %v3581
    %5476 = vmatprep.subr.bf16.mxu0 %v3595
    %5477 = vmatpush1.bf16.msra.mxu0 %v3594
    %5478 = vmatprep.subr.bf16.mxu0 %v3608
    %5479 = vmatpush1.bf16.msra.mxu0 %v3607
    %5480 = vmatprep.subr.bf16.mxu0 %v3621
    %5481 = vmatpush1.bf16.msra.mxu0 %v3620
    %5482 = vmatprep.subr.bf16.mxu0 %v3634
    %5483 = vmatpush1.bf16.msra.mxu0 %v3633
    %5484 = vmatprep.subr.bf16.mxu0 %v3647
    %5485 = vmatpush1.bf16.msra.mxu0 %v3646
    %5486 = vmatprep.subr.bf16.mxu0 %v3660
    %5487 = vmatpush1.bf16.msra.mxu0 %v3659
    %5488 = vmatprep.subr.bf16.mxu0 %v3673
    %5489 = vmatpush1.bf16.msra.mxu0 %v3672
    %5490 = vmatprep.subr.bf16.mxu0 %v3686
    %5491 = vmatpush1.bf16.msra.mxu0 %v3685
    %5492 = vmatprep.subr.bf16.mxu0 %v3699
    %5493 = vmatpush1.bf16.msra.mxu0 %v3698
    %5494 = vmatprep.subr.bf16.mxu0 %v3712
    %5495 = vmatpush1.bf16.msra.mxu0 %v3711
    %5496 = vmatprep.subr.bf16.mxu0 %v3725
    %5497 = vmatpush1.bf16.msra.mxu0 %v3724
    %5498 = vmatprep.subr.bf16.mxu0 %v3738
    %5499 = vmatpush1.bf16.msra.mxu0 %v3737
    %5500 = vmatprep.mubr.bf16.mxu0 %v813
    %5501 = vmatmul.mubr.bf16.gmra.mrb[0].mxu0 %v812
    %v5502 = vpop.f32.mrb[0].mxu0
    %v5503 = vadd.f32 %v1544, %v5502
    %v5504 = vpop.f32.mrb[0].mxu0
    %v5505 = vadd.f32 %v1548, %v5504
    %v5506 = vpop.f32.mrb[0].mxu0
    %v5507 = vpop.f32.mrb[0].mxu0
    %5508 = vdwg.mxu0
    %5509 = vmatprep.subr.bf16.mxu0 %v3751
    %5510 = vmatpush1.bf16.msra.mxu0 %v3750
    %5511 = vmatprep.subr.bf16.mxu0 %v3764
    %5512 = vmatpush1.bf16.msra.mxu0 %v3763
    %5513 = vmatprep.subr.bf16.mxu0 %v3777
    %5514 = vmatpush1.bf16.msra.mxu0 %v3776
    %5515 = vmatprep.subr.bf16.mxu0 %v3790
    %5516 = vmatpush1.bf16.msra.mxu0 %v3789
    %5517 = vmatprep.subr.bf16.mxu0 %v3803
    %5518 = vmatpush1.bf16.msra.mxu0 %v3802
    %5519 = vmatprep.subr.bf16.mxu0 %v3816
    %5520 = vmatpush1.bf16.msra.mxu0 %v3815
    %5521 = vmatprep.subr.bf16.mxu0 %v3829
    %5522 = vmatpush1.bf16.msra.mxu0 %v3828
    %5523 = vmatprep.subr.bf16.mxu0 %v3842
    %5524 = vmatpush1.bf16.msra.mxu0 %v3841
    %5525 = vmatprep.subr.bf16.mxu0 %v3855
    %5526 = vmatpush1.bf16.msra.mxu0 %v3854
    %5527 = vmatprep.subr.bf16.mxu0 %v3868
    %5528 = vmatpush1.bf16.msra.mxu0 %v3867
    %5529 = vmatprep.subr.bf16.mxu0 %v3881
    %5530 = vmatpush1.bf16.msra.mxu0 %v3880
    %5531 = vmatprep.subr.bf16.mxu0 %v3894
    %5532 = vmatpush1.bf16.msra.mxu0 %v3893
    %5533 = vmatprep.subr.bf16.mxu0 %v3907
    %5534 = vmatpush1.bf16.msra.mxu0 %v3906
    %5535 = vmatprep.subr.bf16.mxu0 %v3920
    %5536 = vmatpush1.bf16.msra.mxu0 %v3919
    %5537 = vmatprep.subr.bf16.mxu0 %v3933
    %5538 = vmatpush1.bf16.msra.mxu0 %v3932
    %5539 = vmatprep.subr.bf16.mxu0 %v3946
    %5540 = vmatpush1.bf16.msra.mxu0 %v3945
    %5541 = vmatprep.mubr.bf16.mxu0 %v815
    %5542 = vmatmul.mubr.bf16.gmra.mrb[0].mxu0 %v814
    %v5543 = vpop.f32.mrb[0].mxu0
    %v5544 = vadd.f32 %v5503, %v5543
    %v5545 = vpop.f32.mrb[0].mxu0
    %v5546 = vadd.f32 %v5505, %v5545
    %v5547 = vpop.f32.mrb[0].mxu0
    %v5548 = vpop.f32.mrb[0].mxu0
    %5549 = vdwg.mxu0
    %5550 = vmatprep.subr.bf16.mxu0 %v3959
    %5551 = vmatpush1.bf16.msra.mxu0 %v3958
    %5552 = vmatprep.subr.bf16.mxu0 %v3972
    %5553 = vmatpush1.bf16.msra.mxu0 %v3971
    %5554 = vmatprep.subr.bf16.mxu0 %v3985
    %5555 = vmatpush1.bf16.msra.mxu0 %v3984
    %5556 = vmatprep.subr.bf16.mxu0 %v3998
    %5557 = vmatpush1.bf16.msra.mxu0 %v3997
    %5558 = vmatprep.subr.bf16.mxu0 %v4011
    %5559 = vmatpush1.bf16.msra.mxu0 %v4010
    %5560 = vmatprep.subr.bf16.mxu0 %v4024
    %5561 = vmatpush1.bf16.msra.mxu0 %v4023
    %5562 = vmatprep.subr.bf16.mxu0 %v4037
    %5563 = vmatpush1.bf16.msra.mxu0 %v4036
    %5564 = vmatprep.subr.bf16.mxu0 %v4050
    %5565 = vmatpush1.bf16.msra.mxu0 %v4049
    %5566 = vmatprep.subr.bf16.mxu0 %v4063
    %5567 = vmatpush1.bf16.msra.mxu0 %v4062
    %5568 = vmatprep.subr.bf16.mxu0 %v4076
    %5569 = vmatpush1.bf16.msra.mxu0 %v4075
    %5570 = vmatprep.subr.bf16.mxu0 %v4089
    %5571 = vmatpush1.bf16.msra.mxu0 %v4088
    %5572 = vmatprep.subr.bf16.mxu0 %v4102
    %5573 = vmatpush1.bf16.msra.mxu0 %v4101
    %5574 = vmatprep.subr.bf16.mxu0 %v4115
    %5575 = vmatpush1.bf16.msra.mxu0 %v4114
    %5576 = vmatprep.subr.bf16.mxu0 %v4128
    %5577 = vmatpush1.bf16.msra.mxu0 %v4127
    %5578 = vmatprep.subr.bf16.mxu0 %v4141
    %5579 = vmatpush1.bf16.msra.mxu0 %v4140
    %5580 = vmatprep.subr.bf16.mxu0 %v4154
    %5581 = vmatpush1.bf16.msra.mxu0 %v4153
    %5582 = vmatprep.mubr.bf16.mxu0 %v817
    %5583 = vmatmul.mubr.bf16.gmra.mrb[0].mxu0 %v816
    %v5584 = vpop.f32.mrb[0].mxu0
    %v5585 = vadd.f32 %v5544, %v5584
    %v5586 = vpop.f32.mrb[0].mxu0
    %v5587 = vadd.f32 %v5546, %v5586
    %v5588 = vpop.f32.mrb[0].mxu0
    %v5589 = vpop.f32.mrb[0].mxu0
    %5590 = vdwg.mxu0
    %5591 = vmatprep.subr.bf16.mxu0 %v4167
    %5592 = vmatpush1.bf16.msra.mxu0 %v4166
    %5593 = vmatprep.subr.bf16.mxu0 0
    %5594 = vmatpush1.bf16.msra.mxu0 0
    %5595 = vmatprep.subr.bf16.mxu0 0
    %5596 = vmatpush1.bf16.msra.mxu0 0
    %5597 = vmatprep.subr.bf16.mxu0 0
    %5598 = vmatpush1.bf16.msra.mxu0 0
    %5599 = vmatprep.subr.bf16.mxu0 0
    %5600 = vmatpush1.bf16.msra.mxu0 0
    %5601 = vmatprep.subr.bf16.mxu0 0
    %5602 = vmatpush1.bf16.msra.mxu0 0
    %5603 = vmatprep.subr.bf16.mxu0 0
    %5604 = vmatpush1.bf16.msra.mxu0 0
    %5605 = vmatprep.subr.bf16.mxu0 0
    %5606 = vmatpush1.bf16.msra.mxu0 0
    %5607 = vmatprep.subr.bf16.mxu0 0
    %5608 = vmatpush1.bf16.msra.mxu0 0
    %5609 = vmatprep.subr.bf16.mxu0 0
    %5610 = vmatpush1.bf16.msra.mxu0 0
    %5611 = vmatprep.subr.bf16.mxu0 0
    %5612 = vmatpush1.bf16.msra.mxu0 0
    %5613 = vmatprep.subr.bf16.mxu0 0
    %5614 = vmatpush1.bf16.msra.mxu0 0
    %5615 = vmatprep.subr.bf16.mxu0 0
    %5616 = vmatpush1.bf16.msra.mxu0 0
    %5617 = vmatprep.subr.bf16.mxu0 0
    %5618 = vmatpush1.bf16.msra.mxu0 0
    %5619 = vmatprep.subr.bf16.mxu0 0
    %5620 = vmatpush1.bf16.msra.mxu0 0
    %5621 = vmatprep.subr.bf16.mxu0 0
    %5622 = vmatpush1.bf16.msra.mxu0 0
    %5623 = vmatprep.mubr.bf16.mxu0 0
    %5624 = vmatmul.mubr.bf16.gmra.mrb[0].mxu0 %v4810
    %v5625 = vpop.f32.mrb[0].mxu0
    %v5626 = vadd.f32 %v5585, %v5625
    %v5627 = vpop.f32.mrb[0].mxu0
    %v5628 = vadd.f32 %v5587, %v5627
    %v5629 = vpop.f32.mrb[0].mxu0
    %v5630 = vpop.f32.mrb[0].mxu0
    %5631 = vdwg.mxu0
    %5632 = vmatprep.subr.bf16.mxu0 %v3545
    %5633 = vmatpush1.bf16.msra.mxu0 %v3544
    %5634 = vmatprep.subr.bf16.mxu0 %v3558
    %5635 = vmatpush1.bf16.msra.mxu0 %v3557
    %5636 = vmatprep.subr.bf16.mxu0 %v3571
    %5637 = vmatpush1.bf16.msra.mxu0 %v3570
    %5638 = vmatprep.subr.bf16.mxu0 %v3584
    %5639 = vmatpush1.bf16.msra.mxu0 %v3583
    %5640 = vmatprep.subr.bf16.mxu0 %v3597
    %5641 = vmatpush1.bf16.msra.mxu0 %v3596
    %5642 = vmatprep.subr.bf16.mxu0 %v3610
    %5643 = vmatpush1.bf16.msra.mxu0 %v3609
    %5644 = vmatprep.subr.bf16.mxu0 %v3623
    %5645 = vmatpush1.bf16.msra.mxu0 %v3622
    %5646 = vmatprep.subr.bf16.mxu0 %v3636
    %5647 = vmatpush1.bf16.msra.mxu0 %v3635
    %5648 = vmatprep.subr.bf16.mxu0 %v3649
    %5649 = vmatpush1.bf16.msra.mxu0 %v3648
    %5650 = vmatprep.subr.bf16.mxu0 %v3662
    %5651 = vmatpush1.bf16.msra.mxu0 %v3661
    %5652 = vmatprep.subr.bf16.mxu0 %v3675
    %5653 = vmatpush1.bf16.msra.mxu0 %v3674
    %5654 = vmatprep.subr.bf16.mxu0 %v3688
    %5655 = vmatpush1.bf16.msra.mxu0 %v3687
    %5656 = vmatprep.subr.bf16.mxu0 %v3701
    %5657 = vmatpush1.bf16.msra.mxu0 %v3700
    %5658 = vmatprep.subr.bf16.mxu0 %v3714
    %5659 = vmatpush1.bf16.msra.mxu0 %v3713
    %5660 = vmatprep.subr.bf16.mxu0 %v3727
    %5661 = vmatpush1.bf16.msra.mxu0 %v3726
    %5662 = vmatprep.subr.bf16.mxu0 %v3740
    %5663 = vmatpush1.bf16.msra.mxu0 %v3739
    %5664 = vmatprep.mubr.bf16.mxu0 %v813
    %5665 = vmatmul.mubr.bf16.gmra.mrb[0].mxu0 %v812
    %v5666 = vpop.f32.mrb[0].mxu0
    %v5667 = vadd.f32 %v1552, %v5666
    %v5668 = vpop.f32.mrb[0].mxu0
    %v5669 = vadd.f32 %v1556, %v5668
    %v5670 = vpop.f32.mrb[0].mxu0
    %v5671 = vpop.f32.mrb[0].mxu0
    %5672 = vdwg.mxu0
    %5673 = vmatprep.subr.bf16.mxu0 %v3753
    %5674 = vmatpush1.bf16.msra.mxu0 %v3752
    %5675 = vmatprep.subr.bf16.mxu0 %v3766
    %5676 = vmatpush1.bf16.msra.mxu0 %v3765
    %5677 = vmatprep.subr.bf16.mxu0 %v3779
    %5678 = vmatpush1.bf16.msra.mxu0 %v3778
    %5679 = vmatprep.subr.bf16.mxu0 %v3792
    %5680 = vmatpush1.bf16.msra.mxu0 %v3791
    %5681 = vmatprep.subr.bf16.mxu0 %v3805
    %5682 = vmatpush1.bf16.msra.mxu0 %v3804
    %5683 = vmatprep.subr.bf16.mxu0 %v3818
    %5684 = vmatpush1.bf16.msra.mxu0 %v3817
    %5685 = vmatprep.subr.bf16.mxu0 %v3831
    %5686 = vmatpush1.bf16.msra.mxu0 %v3830
    %5687 = vmatprep.subr.bf16.mxu0 %v3844
    %5688 = vmatpush1.bf16.msra.mxu0 %v3843
    %5689 = vmatprep.subr.bf16.mxu0 %v3857
    %5690 = vmatpush1.bf16.msra.mxu0 %v3856
    %5691 = vmatprep.subr.bf16.mxu0 %v3870
    %5692 = vmatpush1.bf16.msra.mxu0 %v3869
    %5693 = vmatprep.subr.bf16.mxu0 %v3883
    %5694 = vmatpush1.bf16.msra.mxu0 %v3882
    %5695 = vmatprep.subr.bf16.mxu0 %v3896
    %5696 = vmatpush1.bf16.msra.mxu0 %v3895
    %5697 = vmatprep.subr.bf16.mxu0 %v3909
    %5698 = vmatpush1.bf16.msra.mxu0 %v3908
    %5699 = vmatprep.subr.bf16.mxu0 %v3922
    %5700 = vmatpush1.bf16.msra.mxu0 %v3921
    %5701 = vmatprep.subr.bf16.mxu0 %v3935
    %5702 = vmatpush1.bf16.msra.mxu0 %v3934
    %5703 = vmatprep.subr.bf16.mxu0 %v3948
    %5704 = vmatpush1.bf16.msra.mxu0 %v3947
    %5705 = vmatprep.mubr.bf16.mxu0 %v815
    %5706 = vmatmul.mubr.bf16.gmra.mrb[0].mxu0 %v814
    %v5707 = vpop.f32.mrb[0].mxu0
    %v5708 = vadd.f32 %v5667, %v5707
    %v5709 = vpop.f32.mrb[0].mxu0
    %v5710 = vadd.f32 %v5669, %v5709
    %v5711 = vpop.f32.mrb[0].mxu0
    %v5712 = vpop.f32.mrb[0].mxu0
    %5713 = vdwg.mxu0
    %5714 = vmatprep.subr.bf16.mxu0 %v3961
    %5715 = vmatpush1.bf16.msra.mxu0 %v3960
    %5716 = vmatprep.subr.bf16.mxu0 %v3974
    %5717 = vmatpush1.bf16.msra.mxu0 %v3973
    %5718 = vmatprep.subr.bf16.mxu0 %v3987
    %5719 = vmatpush1.bf16.msra.mxu0 %v3986
    %5720 = vmatprep.subr.bf16.mxu0 %v4000
    %5721 = vmatpush1.bf16.msra.mxu0 %v3999
    %5722 = vmatprep.subr.bf16.mxu0 %v4013
    %5723 = vmatpush1.bf16.msra.mxu0 %v4012
    %5724 = vmatprep.subr.bf16.mxu0 %v4026
    %5725 = vmatpush1.bf16.msra.mxu0 %v4025
    %5726 = vmatprep.subr.bf16.mxu0 %v4039
    %5727 = vmatpush1.bf16.msra.mxu0 %v4038
    %5728 = vmatprep.subr.bf16.mxu0 %v4052
    %5729 = vmatpush1.bf16.msra.mxu0 %v4051
    %5730 = vmatprep.subr.bf16.mxu0 %v4065
    %5731 = vmatpush1.bf16.msra.mxu0 %v4064
    %5732 = vmatprep.subr.bf16.mxu0 %v4078
    %5733 = vmatpush1.bf16.msra.mxu0 %v4077
    %5734 = vmatprep.subr.bf16.mxu0 %v4091
    %5735 = vmatpush1.bf16.msra.mxu0 %v4090
    %5736 = vmatprep.subr.bf16.mxu0 %v4104
    %5737 = vmatpush1.bf16.msra.mxu0 %v4103
    %5738 = vmatprep.subr.bf16.mxu0 %v4117
    %5739 = vmatpush1.bf16.msra.mxu0 %v4116
    %5740 = vmatprep.subr.bf16.mxu0 %v4130
    %5741 = vmatpush1.bf16.msra.mxu0 %v4129
    %5742 = vmatprep.subr.bf16.mxu0 %v4143
    %5743 = vmatpush1.bf16.msra.mxu0 %v4142
    %5744 = vmatprep.subr.bf16.mxu0 %v4156
    %5745 = vmatpush1.bf16.msra.mxu0 %v4155
    %5746 = vmatprep.mubr.bf16.mxu0 %v817
    %5747 = vmatmul.mubr.bf16.gmra.mrb[0].mxu0 %v816
    %v5748 = vpop.f32.mrb[0].mxu0
    %v5749 = vadd.f32 %v5708, %v5748
    %v5750 = vpop.f32.mrb[0].mxu0
    %v5751 = vadd.f32 %v5710, %v5750
    %v5752 = vpop.f32.mrb[0].mxu0
    %v5753 = vpop.f32.mrb[0].mxu0
    %5754 = vdwg.mxu0
    %5755 = vmatprep.subr.bf16.mxu0 %v4169
    %5756 = vmatpush1.bf16.msra.mxu0 %v4168
    %5757 = vmatprep.subr.bf16.mxu0 0
    %5758 = vmatpush1.bf16.msra.mxu0 0
    %5759 = vmatprep.subr.bf16.mxu0 0
    %5760 = vmatpush1.bf16.msra.mxu0 0
    %5761 = vmatprep.subr.bf16.mxu0 0
    %5762 = vmatpush1.bf16.msra.mxu0 0
    %5763 = vmatprep.subr.bf16.mxu0 0
    %5764 = vmatpush1.bf16.msra.mxu0 0
    %5765 = vmatprep.subr.bf16.mxu0 0
    %5766 = vmatpush1.bf16.msra.mxu0 0
    %5767 = vmatprep.subr.bf16.mxu0 0
    %5768 = vmatpush1.bf16.msra.mxu0 0
    %5769 = vmatprep.subr.bf16.mxu0 0
    %5770 = vmatpush1.bf16.msra.mxu0 0
    %5771 = vmatprep.subr.bf16.mxu0 0
    %5772 = vmatpush1.bf16.msra.mxu0 0
    %5773 = vmatprep.subr.bf16.mxu0 0
    %5774 = vmatpush1.bf16.msra.mxu0 0
    %5775 = vmatprep.subr.bf16.mxu0 0
    %5776 = vmatpush1.bf16.msra.mxu0 0
    %5777 = vmatprep.subr.bf16.mxu0 0
    %5778 = vmatpush1.bf16.msra.mxu0 0
    %5779 = vmatprep.subr.bf16.mxu0 0
    %5780 = vmatpush1.bf16.msra.mxu0 0
    %5781 = vmatprep.subr.bf16.mxu0 0
    %5782 = vmatpush1.bf16.msra.mxu0 0
    %5783 = vmatprep.subr.bf16.mxu0 0
    %5784 = vmatpush1.bf16.msra.mxu0 0
    %5785 = vmatprep.subr.bf16.mxu0 0
    %5786 = vmatpush1.bf16.msra.mxu0 0
    %5787 = vmatprep.mubr.bf16.mxu0 0
    %5788 = vmatmul.mubr.bf16.gmra.mrb[0].mxu0 %v4810
    %v5789 = vpop.f32.mrb[0].mxu0
    %v5790 = vadd.f32 %v5749, %v5789
    %v5791 = vpop.f32.mrb[0].mxu0
    %v5792 = vadd.f32 %v5751, %v5791
    %v5793 = vpop.f32.mrb[0].mxu0
    %v5794 = vpop.f32.mrb[0].mxu0
    %5795 = vdwg.mxu0
    %5796 = vmatprep.subr.bf16.mxu0 0
    %5797 = vmatpush1.bf16.msra.mxu0 %v3546
    %5798 = vmatprep.subr.bf16.mxu0 0
    %5799 = vmatpush1.bf16.msra.mxu0 %v3559
    %5800 = vmatprep.subr.bf16.mxu0 0
    %5801 = vmatpush1.bf16.msra.mxu0 %v3572
    %5802 = vmatprep.subr.bf16.mxu0 0
    %5803 = vmatpush1.bf16.msra.mxu0 %v3585
    %5804 = vmatprep.subr.bf16.mxu0 0
    %5805 = vmatpush1.bf16.msra.mxu0 %v3598
    %5806 = vmatprep.subr.bf16.mxu0 0
    %5807 = vmatpush1.bf16.msra.mxu0 %v3611
    %5808 = vmatprep.subr.bf16.mxu0 0
    %5809 = vmatpush1.bf16.msra.mxu0 %v3624
    %5810 = vmatprep.subr.bf16.mxu0 0
    %5811 = vmatpush1.bf16.msra.mxu0 %v3637
    %5812 = vmatprep.subr.bf16.mxu0 0
    %5813 = vmatpush1.bf16.msra.mxu0 %v3650
    %5814 = vmatprep.subr.bf16.mxu0 0
    %5815 = vmatpush1.bf16.msra.mxu0 %v3663
    %5816 = vmatprep.subr.bf16.mxu0 0
    %5817 = vmatpush1.bf16.msra.mxu0 %v3676
    %5818 = vmatprep.subr.bf16.mxu0 0
    %5819 = vmatpush1.bf16.msra.mxu0 %v3689
    %5820 = vmatprep.subr.bf16.mxu0 0
    %5821 = vmatpush1.bf16.msra.mxu0 %v3702
    %5822 = vmatprep.subr.bf16.mxu0 0
    %5823 = vmatpush1.bf16.msra.mxu0 %v3715
    %5824 = vmatprep.subr.bf16.mxu0 0
    %5825 = vmatpush1.bf16.msra.mxu0 %v3728
    %5826 = vmatprep.subr.bf16.mxu0 0
    %5827 = vmatpush1.bf16.msra.mxu0 %v3741
    %5828 = vmatprep.mubr.bf16.mxu0 %v813
    %5829 = vmatmul.mubr.bf16.gmra.mrb[0].mxu0 %v812
    %v5830 = vpop.f32.mrb[0].mxu0
    %v5831 = vadd.f32 %v1560, %v5830
    %v5832 = vpop.f32.mrb[0].mxu0
    %v5833 = vpop.f32.mrb[0].mxu0
    %v5834 = vpop.f32.mrb[0].mxu0
    %5835 = vdwg.mxu0
    %5836 = vmatprep.subr.bf16.mxu0 0
    %5837 = vmatpush1.bf16.msra.mxu0 %v3754
    %5838 = vmatprep.subr.bf16.mxu0 0
    %5839 = vmatpush1.bf16.msra.mxu0 %v3767
    %5840 = vmatprep.subr.bf16.mxu0 0
    %5841 = vmatpush1.bf16.msra.mxu0 %v3780
    %5842 = vmatprep.subr.bf16.mxu0 0
    %5843 = vmatpush1.bf16.msra.mxu0 %v3793
    %5844 = vmatprep.subr.bf16.mxu0 0
    %5845 = vmatpush1.bf16.msra.mxu0 %v3806
    %5846 = vmatprep.subr.bf16.mxu0 0
    %5847 = vmatpush1.bf16.msra.mxu0 %v3819
    %5848 = vmatprep.subr.bf16.mxu0 0
    %5849 = vmatpush1.bf16.msra.mxu0 %v3832
    %5850 = vmatprep.subr.bf16.mxu0 0
    %5851 = vmatpush1.bf16.msra.mxu0 %v3845
    %5852 = vmatprep.subr.bf16.mxu0 0
    %5853 = vmatpush1.bf16.msra.mxu0 %v3858
    %5854 = vmatprep.subr.bf16.mxu0 0
    %5855 = vmatpush1.bf16.msra.mxu0 %v3871
    %5856 = vmatprep.subr.bf16.mxu0 0
    %5857 = vmatpush1.bf16.msra.mxu0 %v3884
    %5858 = vmatprep.subr.bf16.mxu0 0
    %5859 = vmatpush1.bf16.msra.mxu0 %v3897
    %5860 = vmatprep.subr.bf16.mxu0 0
    %5861 = vmatpush1.bf16.msra.mxu0 %v3910
    %5862 = vmatprep.subr.bf16.mxu0 0
    %5863 = vmatpush1.bf16.msra.mxu0 %v3923
    %5864 = vmatprep.subr.bf16.mxu0 0
    %5865 = vmatpush1.bf16.msra.mxu0 %v3936
    %5866 = vmatprep.subr.bf16.mxu0 0
    %5867 = vmatpush1.bf16.msra.mxu0 %v3949
    %5868 = vmatprep.mubr.bf16.mxu0 %v815
    %5869 = vmatmul.mubr.bf16.gmra.mrb[0].mxu0 %v814
    %v5870 = vpop.f32.mrb[0].mxu0
    %v5871 = vadd.f32 %v5831, %v5870
    %v5872 = vpop.f32.mrb[0].mxu0
    %v5873 = vpop.f32.mrb[0].mxu0
    %v5874 = vpop.f32.mrb[0].mxu0
    %5875 = vdwg.mxu0
    %5876 = vmatprep.subr.bf16.mxu0 0
    %5877 = vmatpush1.bf16.msra.mxu0 %v3962
    %5878 = vmatprep.subr.bf16.mxu0 0
    %5879 = vmatpush1.bf16.msra.mxu0 %v3975
    %5880 = vmatprep.subr.bf16.mxu0 0
    %5881 = vmatpush1.bf16.msra.mxu0 %v3988
    %5882 = vmatprep.subr.bf16.mxu0 0
    %5883 = vmatpush1.bf16.msra.mxu0 %v4001
    %5884 = vmatprep.subr.bf16.mxu0 0
    %5885 = vmatpush1.bf16.msra.mxu0 %v4014
    %5886 = vmatprep.subr.bf16.mxu0 0
    %5887 = vmatpush1.bf16.msra.mxu0 %v4027
    %5888 = vmatprep.subr.bf16.mxu0 0
    %5889 = vmatpush1.bf16.msra.mxu0 %v4040
    %5890 = vmatprep.subr.bf16.mxu0 0
    %5891 = vmatpush1.bf16.msra.mxu0 %v4053
    %5892 = vmatprep.subr.bf16.mxu0 0
    %5893 = vmatpush1.bf16.msra.mxu0 %v4066
    %5894 = vmatprep.subr.bf16.mxu0 0
    %5895 = vmatpush1.bf16.msra.mxu0 %v4079
    %5896 = vmatprep.subr.bf16.mxu0 0
    %5897 = vmatpush1.bf16.msra.mxu0 %v4092
    %5898 = vmatprep.subr.bf16.mxu0 0
    %5899 = vmatpush1.bf16.msra.mxu0 %v4105
    %5900 = vmatprep.subr.bf16.mxu0 0
    %5901 = vmatpush1.bf16.msra.mxu0 %v4118
    %5902 = vmatprep.subr.bf16.mxu0 0
    %5903 = vmatpush1.bf16.msra.mxu0 %v4131
    %5904 = vmatprep.subr.bf16.mxu0 0
    %5905 = vmatpush1.bf16.msra.mxu0 %v4144
    %5906 = vmatprep.subr.bf16.mxu0 0
    %5907 = vmatpush1.bf16.msra.mxu0 %v4157
    %5908 = vmatprep.mubr.bf16.mxu0 %v817
    %5909 = vmatmul.mubr.bf16.gmra.mrb[0].mxu0 %v816
    %v5910 = vpop.f32.mrb[0].mxu0
    %v5911 = vadd.f32 %v5871, %v5910
    %v5912 = vpop.f32.mrb[0].mxu0
    %v5913 = vpop.f32.mrb[0].mxu0
    %v5914 = vpop.f32.mrb[0].mxu0
    %5915 = vdwg.mxu0
    %5916 = vmatprep.subr.bf16.mxu0 0
    %5917 = vmatpush1.bf16.msra.mxu0 %v4170
    %5918 = vmatprep.subr.bf16.mxu0 0
    %5919 = vmatpush1.bf16.msra.mxu0 0
    %5920 = vmatprep.subr.bf16.mxu0 0
    %5921 = vmatpush1.bf16.msra.mxu0 0
    %5922 = vmatprep.subr.bf16.mxu0 0
    %5923 = vmatpush1.bf16.msra.mxu0 0
    %5924 = vmatprep.subr.bf16.mxu0 0
    %5925 = vmatpush1.bf16.msra.mxu0 0
    %5926 = vmatprep.subr.bf16.mxu0 0
    %5927 = vmatpush1.bf16.msra.mxu0 0
    %5928 = vmatprep.subr.bf16.mxu0 0
    %5929 = vmatpush1.bf16.msra.mxu0 0
    %5930 = vmatprep.subr.bf16.mxu0 0
    %5931 = vmatpush1.bf16.msra.mxu0 0
    %5932 = vmatprep.subr.bf16.mxu0 0
    %5933 = vmatpush1.bf16.msra.mxu0 0
    %5934 = vmatprep.subr.bf16.mxu0 0
    %5935 = vmatpush1.bf16.msra.mxu0 0
    %5936 = vmatprep.subr.bf16.mxu0 0
    %5937 = vmatpush1.bf16.msra.mxu0 0
    %5938 = vmatprep.subr.bf16.mxu0 0
    %5939 = vmatpush1.bf16.msra.mxu0 0
    %5940 = vmatprep.subr.bf16.mxu0 0
    %5941 = vmatpush1.bf16.msra.mxu0 0
    %5942 = vmatprep.subr.bf16.mxu0 0
    %5943 = vmatpush1.bf16.msra.mxu0 0
    %5944 = vmatprep.subr.bf16.mxu0 0
    %5945 = vmatpush1.bf16.msra.mxu0 0
    %5946 = vmatprep.subr.bf16.mxu0 0
    %5947 = vmatpush1.bf16.msra.mxu0 0
    %5948 = vmatprep.mubr.bf16.mxu0 0
    %5949 = vmatmul.mubr.bf16.gmra.mrb[0].mxu0 %v4810
    %v5950 = vpop.f32.mrb[0].mxu0
    %v5951 = vadd.f32 %v5911, %v5950
    %v5952 = vpop.f32.mrb[0].mxu0
    %v5953 = vpop.f32.mrb[0].mxu0
    %v5954 = vpop.f32.mrb[0].mxu0
    %5955 = vdwg.mxu0
    %v5956 = vmax.f32 %v4970, 0.0
    %v5957 = vmax.f32 %v4972, 0.0
    %v5958 = vmax.f32 %v5134, 0.0
    %v5959 = vmax.f32 %v5136, 0.0
    %v5960 = vmax.f32 %v5298, 0.0
    %v5961 = vmax.f32 %v5300, 0.0
    %v5962 = vmax.f32 %v5462, 0.0
    %v5963 = vmax.f32 %v5464, 0.0
    %v5964 = vmax.f32 %v5626, 0.0
    %v5965 = vmax.f32 %v5628, 0.0
    %v5966 = vmax.f32 %v5790, 0.0
    %v5967 = vmax.f32 %v5792, 0.0
    %v5968 = vmax.f32 %v5951, 0.0
    %v5969 = vpack.c.bf16 %v5956, %v5956
    %v5970 = vpack.c.bf16 %v5957, %v5957
    %v5971 = vpack.c.bf16 %v5958, %v5958
    %v5972 = vpack.c.bf16 %v5959, %v5959
    %v5973 = vpack.c.bf16 %v5960, %v5960
    %v5974 = vpack.c.bf16 %v5961, %v5961
    %v5975 = vpack.c.bf16 %v5962, %v5962
    %v5976 = vpack.c.bf16 %v5963, %v5963
    %v5977 = vpack.c.bf16 %v5964, %v5964
    %v5978 = vpack.c.bf16 %v5965, %v5965
    %v5979 = vpack.c.bf16 %v5966, %v5966
    %v5980 = vpack.c.bf16 %v5967, %v5967
    %v5981 = vpack.c.bf16 %v5968, %v5968
    %v5982 = vld [vmem:[#allocation9] sm:$0xf]
    %v5983 = vld [vmem:[#allocation9 + $0x4] sm:$0xf]
    %v5984 = vld [vmem:[#allocation9 + $0x8] sm:$0xf]
    %v5985 = vld [vmem:[#allocation9 + $0xc] sm:$0xf]
    %v5986 = vld [vmem:[#allocation9 + $0x10] sm:$0xf]
    %v5987 = vld [vmem:[#allocation9 + $0x14] sm:$0xf]
    %v5988 = vld [vmem:[#allocation9 + $0x18] sm:$0xf]
    %v5989 = vld [vmem:[#allocation9 + $0x1c] sm:$0xf]
    %v5990 = vld [vmem:[#allocation9 + $0x20] sm:$0xf]
    %v5991 = vld [vmem:[#allocation9 + $0x24] sm:$0xf]
    %v5992 = vld [vmem:[#allocation9 + $0x28] sm:$0xf]
    %v5993 = vld [vmem:[#allocation9 + $0x2c] sm:$0xf]
    %v5994 = vld [vmem:[#allocation9 + $0x30] sm:$0xf]
    %v5995 = vld [vmem:[#allocation9 + $0x34] sm:$0xf]
    %v5996 = vld [vmem:[#allocation9 + $0x38] sm:$0xf]
    %v5997 = vld [vmem:[#allocation9 + $0x3c] sm:$0xf]
    %v5998 = vld [vmem:[#allocation9 + $0x40] sm:$0xf]
    %v5999 = vld [vmem:[#allocation9 + $0x44] sm:$0xf]
    %v6000 = vld [vmem:[#allocation9 + $0x48] sm:$0xf]
    %v6001 = vld [vmem:[#allocation9 + $0x4c] sm:$0xf]
    %v6002 = vld [vmem:[#allocation9 + $0x50] sm:$0xf]
    %v6003 = vld [vmem:[#allocation9 + $0x54] sm:$0xf]
    %v6004 = vld [vmem:[#allocation9 + $0x58] sm:$0xf]
    %v6005 = vld [vmem:[#allocation9 + $0x5c] sm:$0xf]
    %v6006 = vld [vmem:[#allocation9 + $0x60] sm:$0xf]
    %v6007 = vld [vmem:[#allocation9 + $0x64] sm:$0xf]
    %v6008 = vld [vmem:[#allocation9 + $0x68] sm:$0xf]
    %v6009 = vld [vmem:[#allocation9 + $0x6c] sm:$0xf]
    %v6010 = vld [vmem:[#allocation9 + $0x70] sm:$0xf]
    %v6011 = vld [vmem:[#allocation9 + $0x74] sm:$0xf]
    %v6012 = vld [vmem:[#allocation9 + $0x78] sm:$0xf]
    %v6013 = vld [vmem:[#allocation9 + $0x7c] sm:$0xf]
    %v6014 = vld [vmem:[#allocation9 + $0x80] sm:$0xf]
    %v6015 = vld [vmem:[#allocation9 + $0x84] sm:$0xf]
    %v6016 = vld [vmem:[#allocation9 + $0x88] sm:$0xf]
    %v6017 = vld [vmem:[#allocation9 + $0x8c] sm:$0xf]
    %v6018 = vld [vmem:[#allocation9 + $0x90] sm:$0xf]
    %v6019 = vld [vmem:[#allocation9 + $0x94] sm:$0xf]
    %v6020 = vld [vmem:[#allocation9 + $0x98] sm:$0xf]
    %v6021 = vld [vmem:[#allocation9 + $0x9c] sm:$0xf]
    %v6022 = vld [vmem:[#allocation9 + $0xa0] sm:$0xf]
    %v6023 = vld [vmem:[#allocation9 + $0xa4] sm:$0xf]
    %v6024 = vld [vmem:[#allocation9 + $0xa8] sm:$0xf]
    %v6025 = vld [vmem:[#allocation9 + $0xac] sm:$0xf]
    %v6026 = vld [vmem:[#allocation9 + $0xb0] sm:$0xf]
    %v6027 = vld [vmem:[#allocation9 + $0xb4] sm:$0xf]
    %v6028 = vld [vmem:[#allocation9 + $0xb8] sm:$0xf]
    %v6029 = vld [vmem:[#allocation9 + $0xbc] sm:$0xf]
    %v6030 = vld [vmem:[#allocation9 + $0xc0] sm:$0xf]
    %v6031 = vld [vmem:[#allocation9 + $0xc4] sm:$0xf]
    %v6032 = vld [vmem:[#allocation9 + $0xc8] sm:$0xf]
    %v6033 = vld [vmem:[#allocation9 + $0xcc] sm:$0xf]
    %v6034 = vld [vmem:[#allocation9 + $0xd0] sm:$0xf]
    %v6035 = vld [vmem:[#allocation9 + $0xd4] sm:$0xf]
    %v6036 = vld [vmem:[#allocation9 + $0xd8] sm:$0xf]
    %v6037 = vld [vmem:[#allocation9 + $0xdc] sm:$0xf]
    %v6038 = vld [vmem:[#allocation9 + $0xe0] sm:$0xf]
    %v6039 = vld [vmem:[#allocation9 + $0xe4] sm:$0xf]
    %v6040 = vld [vmem:[#allocation9 + $0xe8] sm:$0xf]
    %v6041 = vld [vmem:[#allocation9 + $0xec] sm:$0xf]
    %v6042 = vld [vmem:[#allocation9 + $0xf0] sm:$0xf]
    %v6043 = vld [vmem:[#allocation9 + $0xf4] sm:$0xf]
    %v6044 = vld [vmem:[#allocation9 + $0xf8] sm:$0xf]
    %v6045 = vld [vmem:[#allocation9 + $0xfc] sm:$0xf]
    %v6046 = vld [vmem:[#allocation9 + $0x100] sm:$0xf]
    %v6047 = vld [vmem:[#allocation9 + $0x104] sm:$0xf]
    %v6048 = vld [vmem:[#allocation9 + $0x108] sm:$0xf]
    %v6049 = vld [vmem:[#allocation9 + $0x10c] sm:$0xf]
    %v6050 = vld [vmem:[#allocation9 + $0x110] sm:$0xf]
    %v6051 = vld [vmem:[#allocation9 + $0x114] sm:$0xf]
    %v6052 = vld [vmem:[#allocation9 + $0x118] sm:$0xf]
    %v6053 = vld [vmem:[#allocation9 + $0x11c] sm:$0xf]
    %v6054 = vld [vmem:[#allocation9 + $0x120] sm:$0xf]
    %v6055 = vld [vmem:[#allocation9 + $0x124] sm:$0xf]
    %v6056 = vld [vmem:[#allocation9 + $0x128] sm:$0xf]
    %v6057 = vld [vmem:[#allocation9 + $0x12c] sm:$0xf]
    %v6058 = vld [vmem:[#allocation9 + $0x130] sm:$0xf]
    %v6059 = vld [vmem:[#allocation9 + $0x134] sm:$0xf]
    %v6060 = vld [vmem:[#allocation9 + $0x138] sm:$0xf]
    %v6061 = vld [vmem:[#allocation9 + $0x13c] sm:$0xf]
    %v6062 = vld [vmem:[#allocation9 + $0x140] sm:$0xf]
    %v6063 = vld [vmem:[#allocation9 + $0x144] sm:$0xf]
    %v6064 = vld [vmem:[#allocation9 + $0x148] sm:$0xf]
    %v6065 = vld [vmem:[#allocation9 + $0x14c] sm:$0xf]
    %v6066 = vld [vmem:[#allocation9 + $0x150] sm:$0xf]
    %v6067 = vld [vmem:[#allocation9 + $0x154] sm:$0xf]
    %v6068 = vld [vmem:[#allocation9 + $0x158] sm:$0xf]
    %v6069 = vld [vmem:[#allocation9 + $0x15c] sm:$0xf]
    %v6070 = vld [vmem:[#allocation9 + $0x160] sm:$0xf]
    %v6071 = vld [vmem:[#allocation9 + $0x164] sm:$0xf]
    %v6072 = vld [vmem:[#allocation9 + $0x168] sm:$0xf]
    %v6073 = vld [vmem:[#allocation9 + $0x16c] sm:$0xf]
    %v6074 = vld [vmem:[#allocation9 + $0x170] sm:$0xf]
    %v6075 = vld [vmem:[#allocation9 + $0x174] sm:$0xf]
    %v6076 = vld [vmem:[#allocation9 + $0x178] sm:$0xf]
    %v6077 = vld [vmem:[#allocation9 + $0x17c] sm:$0xf]
    %v6078 = vld [vmem:[#allocation9 + $0x180] sm:$0xf]
    %v6079 = vld [vmem:[#allocation9 + $0x184] sm:$0xf]
    %v6080 = vld [vmem:[#allocation9 + $0x188] sm:$0xf]
    %v6081 = vld [vmem:[#allocation9 + $0x18c] sm:$0xf]
    %v6082 = vld [vmem:[#allocation9 + $0x190] sm:$0xf]
    %v6083 = vld [vmem:[#allocation9 + $0x194] sm:$0xf]
    %v6084 = vld [vmem:[#allocation9 + $0x198] sm:$0xf]
    %v6085 = vld [vmem:[#allocation9 + $0x19c] sm:$0xf]
    %v6086 = vld [vmem:[#allocation9 + $0x1a0] sm:$0xf]
    %v6087 = vld [vmem:[#allocation9 + $0x1a4] sm:$0xf]
    %v6088 = vld [vmem:[#allocation9 + $0x1a8] sm:$0xf]
    %v6089 = vld [vmem:[#allocation9 + $0x1ac] sm:$0xf]
    %v6090 = vld [vmem:[#allocation9 + $0x1b0] sm:$0xf]
    %v6091 = vld [vmem:[#allocation9 + $0x1b4] sm:$0xf]
    %v6092 = vld [vmem:[#allocation9 + $0x1b8] sm:$0xf]
    %v6093 = vld [vmem:[#allocation9 + $0x1bc] sm:$0xf]
    %v6094 = vld [vmem:[#allocation9 + $0x1c0] sm:$0xf]
    %v6095 = vld [vmem:[#allocation9 + $0x1c4] sm:$0xf]
    %v6096 = vld [vmem:[#allocation9 + $0x1c8] sm:$0xf]
    %v6097 = vld [vmem:[#allocation9 + $0x1cc] sm:$0xf]
    %v6098 = vld [vmem:[#allocation9 + $0x1d0] sm:$0xf]
    %v6099 = vld [vmem:[#allocation9 + $0x1d4] sm:$0xf]
    %v6100 = vld [vmem:[#allocation9 + $0x1d8] sm:$0xf]
    %v6101 = vld [vmem:[#allocation9 + $0x1dc] sm:$0xf]
    %v6102 = vld [vmem:[#allocation9 + $0x1e0] sm:$0xf]
    %v6103 = vld [vmem:[#allocation9 + $0x1e4] sm:$0xf]
    %v6104 = vld [vmem:[#allocation9 + $0x1e8] sm:$0xf]
    %v6105 = vld [vmem:[#allocation9 + $0x1ec] sm:$0xf]
    %v6106 = vld [vmem:[#allocation9 + $0x1f0] sm:$0xf]
    %v6107 = vld [vmem:[#allocation9 + $0x1f4] sm:$0xf]
    %v6108 = vld [vmem:[#allocation9 + $0x1f8] sm:$0xf]
    %v6109 = vld [vmem:[#allocation9 + $0x1fc] sm:$0xf]
    %v6110 = vld [vmem:[#allocation9 + $0x200] sm:$0xf]
    %v6111 = vld [vmem:[#allocation9 + $0x204] sm:$0xf]
    %v6112 = vld [vmem:[#allocation9 + $0x208] sm:$0xf]
    %v6113 = vld [vmem:[#allocation9 + $0x20c] sm:$0xf]
    %v6114 = vld [vmem:[#allocation9 + $0x210] sm:$0xf]
    %v6115 = vld [vmem:[#allocation9 + $0x214] sm:$0xf]
    %v6116 = vld [vmem:[#allocation9 + $0x218] sm:$0xf]
    %v6117 = vld [vmem:[#allocation9 + $0x21c] sm:$0xf]
    %v6118 = vld [vmem:[#allocation9 + $0x220] sm:$0xf]
    %v6119 = vld [vmem:[#allocation9 + $0x224] sm:$0xf]
    %v6120 = vld [vmem:[#allocation9 + $0x228] sm:$0xf]
    %v6121 = vld [vmem:[#allocation9 + $0x22c] sm:$0xf]
    %v6122 = vld [vmem:[#allocation9 + $0x230] sm:$0xf]
    %v6123 = vld [vmem:[#allocation9 + $0x234] sm:$0xf]
    %v6124 = vld [vmem:[#allocation9 + $0x238] sm:$0xf]
    %v6125 = vld [vmem:[#allocation9 + $0x23c] sm:$0xf]
    %v6126 = vld [vmem:[#allocation9 + $0x240] sm:$0xf]
    %v6127 = vld [vmem:[#allocation9 + $0x244] sm:$0xf]
    %v6128 = vld [vmem:[#allocation9 + $0x248] sm:$0xf]
    %v6129 = vld [vmem:[#allocation9 + $0x24c] sm:$0xf]
    %v6130 = vld [vmem:[#allocation9 + $0x250] sm:$0xf]
    %v6131 = vld [vmem:[#allocation9 + $0x254] sm:$0xf]
    %v6132 = vld [vmem:[#allocation9 + $0x258] sm:$0xf]
    %v6133 = vld [vmem:[#allocation9 + $0x25c] sm:$0xf]
    %v6134 = vld [vmem:[#allocation9 + $0x260] sm:$0xf]
    %v6135 = vld [vmem:[#allocation9 + $0x264] sm:$0xf]
    %v6136 = vld [vmem:[#allocation9 + $0x268] sm:$0xf]
    %v6137 = vld [vmem:[#allocation9 + $0x26c] sm:$0xf]
    %v6138 = vld [vmem:[#allocation9 + $0x270] sm:$0xf]
    %v6139 = vld [vmem:[#allocation9 + $0x274] sm:$0xf]
    %v6140 = vld [vmem:[#allocation9 + $0x278] sm:$0xf]
    %v6141 = vld [vmem:[#allocation9 + $0x27c] sm:$0xf]
    %v6142 = vld [vmem:[#allocation9 + $0x280] sm:$0xf]
    %v6143 = vld [vmem:[#allocation9 + $0x284] sm:$0xf]
    %v6144 = vld [vmem:[#allocation9 + $0x288] sm:$0xf]
    %v6145 = vld [vmem:[#allocation9 + $0x28c] sm:$0xf]
    %v6146 = vld [vmem:[#allocation9 + $0x290] sm:$0xf]
    %v6147 = vld [vmem:[#allocation9 + $0x294] sm:$0xf]
    %v6148 = vld [vmem:[#allocation9 + $0x298] sm:$0xf]
    %v6149 = vld [vmem:[#allocation9 + $0x29c] sm:$0xf]
    %v6150 = vld [vmem:[#allocation9 + $0x2a0] sm:$0xf]
    %v6151 = vld [vmem:[#allocation9 + $0x2a4] sm:$0xf]
    %v6152 = vld [vmem:[#allocation9 + $0x2a8] sm:$0xf]
    %v6153 = vld [vmem:[#allocation9 + $0x2ac] sm:$0xf]
    %v6154 = vld [vmem:[#allocation9 + $0x2b0] sm:$0xf]
    %v6155 = vld [vmem:[#allocation9 + $0x2b4] sm:$0xf]
    %v6156 = vld [vmem:[#allocation9 + $0x2b8] sm:$0xf]
    %v6157 = vld [vmem:[#allocation9 + $0x2bc] sm:$0xf]
    %v6158 = vld [vmem:[#allocation9 + $0x2c0] sm:$0xf]
    %v6159 = vld [vmem:[#allocation9 + $0x2c4] sm:$0xf]
    %v6160 = vld [vmem:[#allocation9 + $0x2c8] sm:$0xf]
    %v6161 = vld [vmem:[#allocation9 + $0x2cc] sm:$0xf]
    %v6162 = vld [vmem:[#allocation9 + $0x2d0] sm:$0xf]
    %v6163 = vld [vmem:[#allocation9 + $0x2d4] sm:$0xf]
    %v6164 = vld [vmem:[#allocation9 + $0x2d8] sm:$0xf]
    %v6165 = vld [vmem:[#allocation9 + $0x2dc] sm:$0xf]
    %v6166 = vld [vmem:[#allocation9 + $0x2e0] sm:$0xf]
    %v6167 = vld [vmem:[#allocation9 + $0x2e4] sm:$0xf]
    %v6168 = vld [vmem:[#allocation9 + $0x2e8] sm:$0xf]
    %v6169 = vld [vmem:[#allocation9 + $0x2ec] sm:$0xf]
    %v6170 = vld [vmem:[#allocation9 + $0x2f0] sm:$0xf]
    %v6171 = vld [vmem:[#allocation9 + $0x2f4] sm:$0xf]
    %v6172 = vld [vmem:[#allocation9 + $0x2f8] sm:$0xf]
    %v6173 = vld [vmem:[#allocation9 + $0x2fc] sm:$0xf]
    %v6174 = vld [vmem:[#allocation9 + $0x300] sm:$0xf]
    %v6175 = vld [vmem:[#allocation9 + $0x304] sm:$0xf]
    %v6176 = vld [vmem:[#allocation9 + $0x308] sm:$0xf]
    %v6177 = vld [vmem:[#allocation9 + $0x30c] sm:$0xf]
    %v6178 = vld [vmem:[%s1] sm:$0xf]
    %v6179 = vld [vmem:[#allocation10] sm:$0x7]
    %vm6180 = vcmask 39936
    %v6182 = vsel %vm6180, %v6178, 0
    %vm6184 = vcmask 1042432
    %v6185 = vsel %vm618, 4294967295, 65535
    %v6186 = vsel %vm6184, %v6185, 0
    %v6188 = vand.u32 %v6179, %v6186
    %6190 = vmatprep.subr.bf16.mxu0 0
    %6191 = vmatpush1.bf16.msra.mxu0 %v6188
    %6192 = vmatprep.subr.bf16.mxu0 0
    %6193 = vmatpush1.bf16.msra.mxu0 0
    %6194 = vmatprep.subr.bf16.mxu0 0
    %6195 = vmatpush1.bf16.msra.mxu0 0
    %6196 = vmatprep.subr.bf16.mxu0 0
    %6197 = vmatpush1.bf16.msra.mxu0 0
    %6198 = vmatprep.subr.bf16.mxu0 0
    %6199 = vmatpush1.bf16.msra.mxu0 0
    %6200 = vmatprep.subr.bf16.mxu0 0
    %6201 = vmatpush1.bf16.msra.mxu0 0
    %6202 = vmatprep.subr.bf16.mxu0 0
    %6203 = vmatpush1.bf16.msra.mxu0 0
    %6204 = vmatprep.subr.bf16.mxu0 0
    %6205 = vmatpush1.bf16.msra.mxu0 0
    %6206 = vmatprep.subr.bf16.mxu0 0
    %6207 = vmatpush1.bf16.msra.mxu0 0
    %6208 = vmatprep.subr.bf16.mxu0 0
    %6209 = vmatpush1.bf16.msra.mxu0 0
    %6210 = vmatprep.subr.bf16.mxu0 0
    %6211 = vmatpush1.bf16.msra.mxu0 0
    %6212 = vmatprep.subr.bf16.mxu0 0
    %6213 = vmatpush1.bf16.msra.mxu0 0
    %6214 = vmatprep.subr.bf16.mxu0 0
    %6215 = vmatpush1.bf16.msra.mxu0 0
    %6216 = vmatprep.subr.bf16.mxu0 0
    %6217 = vmatpush1.bf16.msra.mxu0 0
    %6218 = vmatprep.subr.bf16.mxu0 0
    %6219 = vmatpush1.bf16.msra.mxu0 0
    %6220 = vmatprep.subr.bf16.mxu0 0
    %6221 = vmatpush1.bf16.msra.mxu0 0
    %6222 = vmatprep.mubr.bf16.mxu0 0
    %6223 = vmatmul.mubr.bf16.gmra.mrb[0].mxu0 %v6182
    %v6224 = vpop.f32.mrb[0].mxu0
    %v6225 = vadd.f32 0.0, %v6224
    %v6226 = vpop.f32.mrb[0].mxu0
    %v6227 = vpop.f32.mrb[0].mxu0
    %v6228 = vpop.f32.mrb[0].mxu0
    %6229 = vdwg.mxu0
    %v6426 = vunpack.c.l.b16 %v5982
    %v6427 = vunpack.c.l.b16 %v5983
    %v6428 = vunpack.c.l.b16 %v5984
    %v6429 = vunpack.c.l.b16 %v5985
    %v6430 = vunpack.c.l.b16 %v5986
    %v6431 = vunpack.c.l.b16 %v5987
    %v6432 = vunpack.c.l.b16 %v5988
    %v6433 = vunpack.c.l.b16 %v5989
    %v6434 = vunpack.c.l.b16 %v5990
    %v6435 = vunpack.c.l.b16 %v5991
    %v6436 = vunpack.c.l.b16 %v5992
    %v6437 = vunpack.c.l.b16 %v5993
    %v6438 = vunpack.c.l.b16 %v5994
    %v6439 = vunpack.c.l.b16 %v5995
    %v6440 = vunpack.c.l.b16 %v5996
    %v6441 = vunpack.c.l.b16 %v5997
    %v6442 = vunpack.c.l.b16 %v5998
    %v6443 = vunpack.c.l.b16 %v5999
    %v6444 = vunpack.c.l.b16 %v6000
    %v6445 = vunpack.c.l.b16 %v6001
    %v6446 = vunpack.c.l.b16 %v6002
    %v6447 = vunpack.c.l.b16 %v6003
    %v6448 = vunpack.c.l.b16 %v6004
    %v6449 = vunpack.c.l.b16 %v6005
    %v6450 = vunpack.c.l.b16 %v6006
    %v6451 = vunpack.c.l.b16 %v6007
    %v6452 = vunpack.c.l.b16 %v6008
    %v6453 = vunpack.c.l.b16 %v6009
    %v6454 = vunpack.c.l.b16 %v6010
    %v6455 = vunpack.c.l.b16 %v6011
    %v6456 = vunpack.c.l.b16 %v6012
    %v6457 = vunpack.c.l.b16 %v6013
    %v6458 = vunpack.c.l.b16 %v6014
    %v6459 = vunpack.c.l.b16 %v6015
    %v6460 = vunpack.c.l.b16 %v6016
    %v6461 = vunpack.c.l.b16 %v6017
    %v6462 = vunpack.c.l.b16 %v6018
    %v6463 = vunpack.c.l.b16 %v6019
    %v6464 = vunpack.c.l.b16 %v6020
    %v6465 = vunpack.c.l.b16 %v6021
    %v6466 = vunpack.c.l.b16 %v6022
    %v6467 = vunpack.c.l.b16 %v6023
    %v6468 = vunpack.c.l.b16 %v6024
    %v6469 = vunpack.c.l.b16 %v6025
    %v6470 = vunpack.c.l.b16 %v6026
    %v6471 = vunpack.c.l.b16 %v6027
    %v6472 = vunpack.c.l.b16 %v6028
    %v6473 = vunpack.c.l.b16 %v6029
    %v6474 = vunpack.c.l.b16 %v6030
    %v6475 = vunpack.c.l.b16 %v6031
    %v6476 = vunpack.c.l.b16 %v6032
    %v6477 = vunpack.c.l.b16 %v6033
    %v6478 = vunpack.c.l.b16 %v6034
    %v6479 = vunpack.c.l.b16 %v6035
    %v6480 = vunpack.c.l.b16 %v6036
    %v6481 = vunpack.c.l.b16 %v6037
    %v6482 = vunpack.c.l.b16 %v6038
    %v6483 = vunpack.c.l.b16 %v6039
    %v6484 = vunpack.c.l.b16 %v6040
    %v6485 = vunpack.c.l.b16 %v6041
    %v6486 = vunpack.c.l.b16 %v6042
    %v6487 = vunpack.c.l.b16 %v6043
    %v6488 = vunpack.c.l.b16 %v6044
    %v6489 = vunpack.c.l.b16 %v6045
    %v6490 = vunpack.c.l.b16 %v6046
    %v6491 = vunpack.c.l.b16 %v6047
    %v6492 = vunpack.c.l.b16 %v6048
    %v6493 = vunpack.c.l.b16 %v6049
    %v6494 = vunpack.c.l.b16 %v6050
    %v6495 = vunpack.c.l.b16 %v6051
    %v6496 = vunpack.c.l.b16 %v6052
    %v6497 = vunpack.c.l.b16 %v6053
    %v6498 = vunpack.c.l.b16 %v6054
    %v6499 = vunpack.c.l.b16 %v6055
    %v6500 = vunpack.c.l.b16 %v6056
    %v6501 = vunpack.c.l.b16 %v6057
    %v6502 = vunpack.c.l.b16 %v6058
    %v6503 = vunpack.c.l.b16 %v6059
    %v6504 = vunpack.c.l.b16 %v6060
    %v6505 = vunpack.c.l.b16 %v6061
    %v6506 = vunpack.c.l.b16 %v6062
    %v6507 = vunpack.c.l.b16 %v6063
    %v6508 = vunpack.c.l.b16 %v6064
    %v6509 = vunpack.c.l.b16 %v6065
    %v6510 = vunpack.c.l.b16 %v6066
    %v6511 = vunpack.c.l.b16 %v6067
    %v6512 = vunpack.c.l.b16 %v6068
    %v6513 = vunpack.c.l.b16 %v6069
    %v6514 = vunpack.c.l.b16 %v6070
    %v6515 = vunpack.c.l.b16 %v6071
    %v6516 = vunpack.c.l.b16 %v6072
    %v6517 = vunpack.c.l.b16 %v6073
    %v6518 = vunpack.c.l.b16 %v6074
    %v6519 = vunpack.c.l.b16 %v6075
    %v6520 = vunpack.c.l.b16 %v6076
    %v6521 = vunpack.c.l.b16 %v6077
    %v6522 = vunpack.c.l.b16 %v6078
    %v6523 = vunpack.c.l.b16 %v6079
    %v6524 = vunpack.c.l.b16 %v6080
    %v6525 = vunpack.c.l.b16 %v6081
    %v6526 = vunpack.c.l.b16 %v6082
    %v6527 = vunpack.c.l.b16 %v6083
    %v6528 = vunpack.c.l.b16 %v6084
    %v6529 = vunpack.c.l.b16 %v6085
    %v6530 = vunpack.c.l.b16 %v6086
    %v6531 = vunpack.c.l.b16 %v6087
    %v6532 = vunpack.c.l.b16 %v6088
    %v6533 = vunpack.c.l.b16 %v6089
    %v6534 = vunpack.c.l.b16 %v6090
    %v6535 = vunpack.c.l.b16 %v6091
    %v6536 = vunpack.c.l.b16 %v6092
    %v6537 = vunpack.c.l.b16 %v6093
    %v6538 = vunpack.c.l.b16 %v6094
    %v6539 = vunpack.c.l.b16 %v6095
    %v6540 = vunpack.c.l.b16 %v6096
    %v6541 = vunpack.c.l.b16 %v6097
    %v6542 = vunpack.c.l.b16 %v6098
    %v6543 = vunpack.c.l.b16 %v6099
    %v6544 = vunpack.c.l.b16 %v6100
    %v6545 = vunpack.c.l.b16 %v6101
    %v6546 = vunpack.c.l.b16 %v6102
    %v6547 = vunpack.c.l.b16 %v6103
    %v6548 = vunpack.c.l.b16 %v6104
    %v6549 = vunpack.c.l.b16 %v6105
    %v6550 = vunpack.c.l.b16 %v6106
    %v6551 = vunpack.c.l.b16 %v6107
    %v6552 = vunpack.c.l.b16 %v6108
    %v6553 = vunpack.c.l.b16 %v6109
    %v6554 = vunpack.c.l.b16 %v6110
    %v6555 = vunpack.c.l.b16 %v6111
    %v6556 = vunpack.c.l.b16 %v6112
    %v6557 = vunpack.c.l.b16 %v6113
    %v6558 = vunpack.c.l.b16 %v6114
    %v6559 = vunpack.c.l.b16 %v6115
    %v6560 = vunpack.c.l.b16 %v6116
    %v6561 = vunpack.c.l.b16 %v6117
    %v6562 = vunpack.c.l.b16 %v6118
    %v6563 = vunpack.c.l.b16 %v6119
    %v6564 = vunpack.c.l.b16 %v6120
    %v6565 = vunpack.c.l.b16 %v6121
    %v6566 = vunpack.c.l.b16 %v6122
    %v6567 = vunpack.c.l.b16 %v6123
    %v6568 = vunpack.c.l.b16 %v6124
    %v6569 = vunpack.c.l.b16 %v6125
    %v6570 = vunpack.c.l.b16 %v6126
    %v6571 = vunpack.c.l.b16 %v6127
    %v6572 = vunpack.c.l.b16 %v6128
    %v6573 = vunpack.c.l.b16 %v6129
    %v6574 = vunpack.c.l.b16 %v6130
    %v6575 = vunpack.c.l.b16 %v6131
    %v6576 = vunpack.c.l.b16 %v6132
    %v6577 = vunpack.c.l.b16 %v6133
    %v6578 = vunpack.c.l.b16 %v6134
    %v6579 = vunpack.c.l.b16 %v6135
    %v6580 = vunpack.c.l.b16 %v6136
    %v6581 = vunpack.c.l.b16 %v6137
    %v6582 = vunpack.c.l.b16 %v6138
    %v6583 = vunpack.c.l.b16 %v6139
    %v6584 = vunpack.c.l.b16 %v6140
    %v6585 = vunpack.c.l.b16 %v6141
    %v6586 = vunpack.c.l.b16 %v6142
    %v6587 = vunpack.c.l.b16 %v6143
    %v6588 = vunpack.c.l.b16 %v6144
    %v6589 = vunpack.c.l.b16 %v6145
    %v6590 = vunpack.c.l.b16 %v6146
    %v6591 = vunpack.c.l.b16 %v6147
    %v6592 = vunpack.c.l.b16 %v6148
    %v6593 = vunpack.c.l.b16 %v6149
    %v6594 = vunpack.c.l.b16 %v6150
    %v6595 = vunpack.c.l.b16 %v6151
    %v6596 = vunpack.c.l.b16 %v6152
    %v6597 = vunpack.c.l.b16 %v6153
    %v6598 = vunpack.c.l.b16 %v6154
    %v6599 = vunpack.c.l.b16 %v6155
    %v6600 = vunpack.c.l.b16 %v6156
    %v6601 = vunpack.c.l.b16 %v6157
    %v6602 = vunpack.c.l.b16 %v6158
    %v6603 = vunpack.c.l.b16 %v6159
    %v6604 = vunpack.c.l.b16 %v6160
    %v6605 = vunpack.c.l.b16 %v6161
    %v6606 = vunpack.c.l.b16 %v6162
    %v6607 = vunpack.c.l.b16 %v6163
    %v6608 = vunpack.c.l.b16 %v6164
    %v6609 = vunpack.c.l.b16 %v6165
    %v6610 = vunpack.c.l.b16 %v6166
    %v6611 = vunpack.c.l.b16 %v6167
    %v6612 = vunpack.c.l.b16 %v6168
    %v6613 = vunpack.c.l.b16 %v6169
    %v6614 = vunpack.c.l.b16 %v6170
    %v6615 = vunpack.c.l.b16 %v6171
    %v6616 = vunpack.c.l.b16 %v6172
    %v6617 = vunpack.c.l.b16 %v6173
    %v6618 = vunpack.c.l.b16 %v6174
    %v6619 = vunpack.c.l.b16 %v6175
    %v6620 = vunpack.c.l.b16 %v6176
    %v6621 = vunpack.c.l.b16 %v6177
    %v6622 = vpack.c.b16 %v6427, %v6426
    %v6623 = vpack.c.b16 %v6429, %v6428
    %v6624 = vpack.c.b16 %v6431, %v6430
    %v6625 = vpack.c.b16 %v6433, %v6432
    %v6626 = vpack.c.b16 %v6435, %v6434
    %v6627 = vpack.c.b16 %v6437, %v6436
    %v6628 = vpack.c.b16 %v6439, %v6438
    %v6629 = vpack.c.b16 %v6441, %v6440
    %v6630 = vpack.c.b16 %v6443, %v6442
    %v6631 = vpack.c.b16 %v6445, %v6444
    %v6632 = vpack.c.b16 %v6447, %v6446
    %v6633 = vpack.c.b16 %v6449, %v6448
    %v6634 = vpack.c.b16 %v6451, %v6450
    %v6635 = vpack.c.b16 %v6453, %v6452
    %v6636 = vpack.c.b16 %v6455, %v6454
    %v6637 = vpack.c.b16 %v6457, %v6456
    %v6638 = vpack.c.b16 %v6459, %v6458
    %v6639 = vpack.c.b16 %v6461, %v6460
    %v6640 = vpack.c.b16 %v6463, %v6462
    %v6641 = vpack.c.b16 %v6465, %v6464
    %v6642 = vpack.c.b16 %v6467, %v6466
    %v6643 = vpack.c.b16 %v6469, %v6468
    %v6644 = vpack.c.b16 %v6471, %v6470
    %v6645 = vpack.c.b16 %v6473, %v6472
    %v6646 = vpack.c.b16 %v6475, %v6474
    %v6647 = vpack.c.b16 %v6477, %v6476
    %v6648 = vpack.c.b16 %v6479, %v6478
    %v6649 = vpack.c.b16 %v6481, %v6480
    %v6650 = vpack.c.b16 %v6483, %v6482
    %v6651 = vpack.c.b16 %v6485, %v6484
    %v6652 = vpack.c.b16 %v6487, %v6486
    %v6653 = vpack.c.b16 %v6489, %v6488
    %v6654 = vpack.c.b16 %v6491, %v6490
    %v6655 = vpack.c.b16 %v6493, %v6492
    %v6656 = vpack.c.b16 %v6495, %v6494
    %v6657 = vpack.c.b16 %v6497, %v6496
    %v6658 = vpack.c.b16 %v6499, %v6498
    %v6659 = vpack.c.b16 %v6501, %v6500
    %v6660 = vpack.c.b16 %v6503, %v6502
    %v6661 = vpack.c.b16 %v6505, %v6504
    %v6662 = vpack.c.b16 %v6507, %v6506
    %v6663 = vpack.c.b16 %v6509, %v6508
    %v6664 = vpack.c.b16 %v6511, %v6510
    %v6665 = vpack.c.b16 %v6513, %v6512
    %v6666 = vpack.c.b16 %v6515, %v6514
    %v6667 = vpack.c.b16 %v6517, %v6516
    %v6668 = vpack.c.b16 %v6519, %v6518
    %v6669 = vpack.c.b16 %v6521, %v6520
    %v6670 = vpack.c.b16 %v6523, %v6522
    %v6671 = vpack.c.b16 %v6525, %v6524
    %v6672 = vpack.c.b16 %v6527, %v6526
    %v6673 = vpack.c.b16 %v6529, %v6528
    %v6674 = vpack.c.b16 %v6531, %v6530
    %v6675 = vpack.c.b16 %v6533, %v6532
    %v6676 = vpack.c.b16 %v6535, %v6534
    %v6677 = vpack.c.b16 %v6537, %v6536
    %v6678 = vpack.c.b16 %v6539, %v6538
    %v6679 = vpack.c.b16 %v6541, %v6540
    %v6680 = vpack.c.b16 %v6543, %v6542
    %v6681 = vpack.c.b16 %v6545, %v6544
    %v6682 = vpack.c.b16 %v6547, %v6546
    %v6683 = vpack.c.b16 %v6549, %v6548
    %v6684 = vpack.c.b16 %v6551, %v6550
    %v6685 = vpack.c.b16 %v6553, %v6552
    %v6686 = vpack.c.b16 %v6555, %v6554
    %v6687 = vpack.c.b16 %v6557, %v6556
    %v6688 = vpack.c.b16 %v6559, %v6558
    %v6689 = vpack.c.b16 %v6561, %v6560
    %v6690 = vpack.c.b16 %v6563, %v6562
    %v6691 = vpack.c.b16 %v6565, %v6564
    %v6692 = vpack.c.b16 %v6567, %v6566
    %v6693 = vpack.c.b16 %v6569, %v6568
    %v6694 = vpack.c.b16 %v6571, %v6570
    %v6695 = vpack.c.b16 %v6573, %v6572
    %v6696 = vpack.c.b16 %v6575, %v6574
    %v6697 = vpack.c.b16 %v6577, %v6576
    %v6698 = vpack.c.b16 %v6579, %v6578
    %v6699 = vpack.c.b16 %v6581, %v6580
    %v6700 = vpack.c.b16 %v6583, %v6582
    %v6701 = vpack.c.b16 %v6585, %v6584
    %v6702 = vpack.c.b16 %v6587, %v6586
    %v6703 = vpack.c.b16 %v6589, %v6588
    %v6704 = vpack.c.b16 %v6591, %v6590
    %v6705 = vpack.c.b16 %v6593, %v6592
    %v6706 = vpack.c.b16 %v6595, %v6594
    %v6707 = vpack.c.b16 %v6597, %v6596
    %v6708 = vpack.c.b16 %v6599, %v6598
    %v6709 = vpack.c.b16 %v6601, %v6600
    %v6710 = vpack.c.b16 %v6603, %v6602
    %v6711 = vpack.c.b16 %v6605, %v6604
    %v6712 = vpack.c.b16 %v6607, %v6606
    %v6713 = vpack.c.b16 %v6609, %v6608
    %v6714 = vpack.c.b16 %v6611, %v6610
    %v6715 = vpack.c.b16 %v6613, %v6612
    %v6716 = vpack.c.b16 %v6615, %v6614
    %v6717 = vpack.c.b16 %v6617, %v6616
    %v6718 = vpack.c.b16 %v6619, %v6618
    %v6719 = vpack.c.b16 %v6621, %v6620
    %vm6818 = vcmask 261120
    %v6820 = vsel %vm6818, %v5981, 0
    %6822 = vmatprep.subr.bf16.mxu0 0
    %6823 = vmatpush1.bf16.msra.mxu0 %v6622
    %6824 = vmatprep.subr.bf16.mxu0 0
    %6825 = vmatpush1.bf16.msra.mxu0 %v6623
    %6826 = vmatprep.subr.bf16.mxu0 0
    %6827 = vmatpush1.bf16.msra.mxu0 %v6624
    %6828 = vmatprep.subr.bf16.mxu0 0
    %6829 = vmatpush1.bf16.msra.mxu0 %v6625
    %6830 = vmatprep.subr.bf16.mxu0 0
    %6831 = vmatpush1.bf16.msra.mxu0 %v6626
    %6832 = vmatprep.subr.bf16.mxu0 0
    %6833 = vmatpush1.bf16.msra.mxu0 %v6627
    %6834 = vmatprep.subr.bf16.mxu0 0
    %6835 = vmatpush1.bf16.msra.mxu0 %v6628
    %6836 = vmatprep.subr.bf16.mxu0 0
    %6837 = vmatpush1.bf16.msra.mxu0 %v6629
    %6838 = vmatprep.subr.bf16.mxu0 0
    %6839 = vmatpush1.bf16.msra.mxu0 %v6630
    %6840 = vmatprep.subr.bf16.mxu0 0
    %6841 = vmatpush1.bf16.msra.mxu0 %v6631
    %6842 = vmatprep.subr.bf16.mxu0 0
    %6843 = vmatpush1.bf16.msra.mxu0 %v6632
    %6844 = vmatprep.subr.bf16.mxu0 0
    %6845 = vmatpush1.bf16.msra.mxu0 %v6633
    %6846 = vmatprep.subr.bf16.mxu0 0
    %6847 = vmatpush1.bf16.msra.mxu0 %v6634
    %6848 = vmatprep.subr.bf16.mxu0 0
    %6849 = vmatpush1.bf16.msra.mxu0 %v6635
    %6850 = vmatprep.subr.bf16.mxu0 0
    %6851 = vmatpush1.bf16.msra.mxu0 %v6636
    %6852 = vmatprep.subr.bf16.mxu0 0
    %6853 = vmatpush1.bf16.msra.mxu0 %v6637
    %6854 = vmatprep.mubr.bf16.mxu0 %v5970
    %6855 = vmatmul.mubr.bf16.gmra.mrb[0].mxu0 %v5969
    %v6856 = vpop.f32.mrb[0].mxu0
    %v6857 = vadd.f32 %v6225, %v6856
    %v6858 = vpop.f32.mrb[0].mxu0
    %v6859 = vpop.f32.mrb[0].mxu0
    %v6860 = vpop.f32.mrb[0].mxu0
    %6861 = vdwg.mxu0
    %6862 = vmatprep.subr.bf16.mxu0 0
    %6863 = vmatpush1.bf16.msra.mxu0 %v6638
    %6864 = vmatprep.subr.bf16.mxu0 0
    %6865 = vmatpush1.bf16.msra.mxu0 %v6639
    %6866 = vmatprep.subr.bf16.mxu0 0
    %6867 = vmatpush1.bf16.msra.mxu0 %v6640
    %6868 = vmatprep.subr.bf16.mxu0 0
    %6869 = vmatpush1.bf16.msra.mxu0 %v6641
    %6870 = vmatprep.subr.bf16.mxu0 0
    %6871 = vmatpush1.bf16.msra.mxu0 %v6642
    %6872 = vmatprep.subr.bf16.mxu0 0
    %6873 = vmatpush1.bf16.msra.mxu0 %v6643
    %6874 = vmatprep.subr.bf16.mxu0 0
    %6875 = vmatpush1.bf16.msra.mxu0 %v6644
    %6876 = vmatprep.subr.bf16.mxu0 0
    %6877 = vmatpush1.bf16.msra.mxu0 %v6645
    %6878 = vmatprep.subr.bf16.mxu0 0
    %6879 = vmatpush1.bf16.msra.mxu0 %v6646
    %6880 = vmatprep.subr.bf16.mxu0 0
    %6881 = vmatpush1.bf16.msra.mxu0 %v6647
    %6882 = vmatprep.subr.bf16.mxu0 0
    %6883 = vmatpush1.bf16.msra.mxu0 %v6648
    %6884 = vmatprep.subr.bf16.mxu0 0
    %6885 = vmatpush1.bf16.msra.mxu0 %v6649
    %6886 = vmatprep.subr.bf16.mxu0 0
    %6887 = vmatpush1.bf16.msra.mxu0 %v6650
    %6888 = vmatprep.subr.bf16.mxu0 0
    %6889 = vmatpush1.bf16.msra.mxu0 %v6651
    %6890 = vmatprep.subr.bf16.mxu0 0
    %6891 = vmatpush1.bf16.msra.mxu0 %v6652
    %6892 = vmatprep.subr.bf16.mxu0 0
    %6893 = vmatpush1.bf16.msra.mxu0 %v6653
    %6894 = vmatprep.mubr.bf16.mxu0 %v5972
    %6895 = vmatmul.mubr.bf16.gmra.mrb[0].mxu0 %v5971
    %v6896 = vpop.f32.mrb[0].mxu0
    %v6897 = vadd.f32 %v6857, %v6896
    %v6898 = vpop.f32.mrb[0].mxu0
    %v6899 = vpop.f32.mrb[0].mxu0
    %v6900 = vpop.f32.mrb[0].mxu0
    %6901 = vdwg.mxu0
    %6902 = vmatprep.subr.bf16.mxu0 0
    %6903 = vmatpush1.bf16.msra.mxu0 %v6654
    %6904 = vmatprep.subr.bf16.mxu0 0
    %6905 = vmatpush1.bf16.msra.mxu0 %v6655
    %6906 = vmatprep.subr.bf16.mxu0 0
    %6907 = vmatpush1.bf16.msra.mxu0 %v6656
    %6908 = vmatprep.subr.bf16.mxu0 0
    %6909 = vmatpush1.bf16.msra.mxu0 %v6657
    %6910 = vmatprep.subr.bf16.mxu0 0
    %6911 = vmatpush1.bf16.msra.mxu0 %v6658
    %6912 = vmatprep.subr.bf16.mxu0 0
    %6913 = vmatpush1.bf16.msra.mxu0 %v6659
    %6914 = vmatprep.subr.bf16.mxu0 0
    %6915 = vmatpush1.bf16.msra.mxu0 %v6660
    %6916 = vmatprep.subr.bf16.mxu0 0
    %6917 = vmatpush1.bf16.msra.mxu0 %v6661
    %6918 = vmatprep.subr.bf16.mxu0 0
    %6919 = vmatpush1.bf16.msra.mxu0 %v6662
    %6920 = vmatprep.subr.bf16.mxu0 0
    %6921 = vmatpush1.bf16.msra.mxu0 %v6663
    %6922 = vmatprep.subr.bf16.mxu0 0
    %6923 = vmatpush1.bf16.msra.mxu0 %v6664
    %6924 = vmatprep.subr.bf16.mxu0 0
    %6925 = vmatpush1.bf16.msra.mxu0 %v6665
    %6926 = vmatprep.subr.bf16.mxu0 0
    %6927 = vmatpush1.bf16.msra.mxu0 %v6666
    %6928 = vmatprep.subr.bf16.mxu0 0
    %6929 = vmatpush1.bf16.msra.mxu0 %v6667
    %6930 = vmatprep.subr.bf16.mxu0 0
    %6931 = vmatpush1.bf16.msra.mxu0 %v6668
    %6932 = vmatprep.subr.bf16.mxu0 0
    %6933 = vmatpush1.bf16.msra.mxu0 %v6669
    %6934 = vmatprep.mubr.bf16.mxu0 %v5974
    %6935 = vmatmul.mubr.bf16.gmra.mrb[0].mxu0 %v5973
    %v6936 = vpop.f32.mrb[0].mxu0
    %v6937 = vadd.f32 %v6897, %v6936
    %v6938 = vpop.f32.mrb[0].mxu0
    %v6939 = vpop.f32.mrb[0].mxu0
    %v6940 = vpop.f32.mrb[0].mxu0
    %6941 = vdwg.mxu0
    %6942 = vmatprep.subr.bf16.mxu0 0
    %6943 = vmatpush1.bf16.msra.mxu0 %v6670
    %6944 = vmatprep.subr.bf16.mxu0 0
    %6945 = vmatpush1.bf16.msra.mxu0 %v6671
    %6946 = vmatprep.subr.bf16.mxu0 0
    %6947 = vmatpush1.bf16.msra.mxu0 %v6672
    %6948 = vmatprep.subr.bf16.mxu0 0
    %6949 = vmatpush1.bf16.msra.mxu0 %v6673
    %6950 = vmatprep.subr.bf16.mxu0 0
    %6951 = vmatpush1.bf16.msra.mxu0 %v6674
    %6952 = vmatprep.subr.bf16.mxu0 0
    %6953 = vmatpush1.bf16.msra.mxu0 %v6675
    %6954 = vmatprep.subr.bf16.mxu0 0
    %6955 = vmatpush1.bf16.msra.mxu0 %v6676
    %6956 = vmatprep.subr.bf16.mxu0 0
    %6957 = vmatpush1.bf16.msra.mxu0 %v6677
    %6958 = vmatprep.subr.bf16.mxu0 0
    %6959 = vmatpush1.bf16.msra.mxu0 %v6678
    %6960 = vmatprep.subr.bf16.mxu0 0
    %6961 = vmatpush1.bf16.msra.mxu0 %v6679
    %6962 = vmatprep.subr.bf16.mxu0 0
    %6963 = vmatpush1.bf16.msra.mxu0 %v6680
    %6964 = vmatprep.subr.bf16.mxu0 0
    %6965 = vmatpush1.bf16.msra.mxu0 %v6681
    %6966 = vmatprep.subr.bf16.mxu0 0
    %6967 = vmatpush1.bf16.msra.mxu0 %v6682
    %6968 = vmatprep.subr.bf16.mxu0 0
    %6969 = vmatpush1.bf16.msra.mxu0 %v6683
    %6970 = vmatprep.subr.bf16.mxu0 0
    %6971 = vmatpush1.bf16.msra.mxu0 %v6684
    %6972 = vmatprep.subr.bf16.mxu0 0
    %6973 = vmatpush1.bf16.msra.mxu0 %v6685
    %6974 = vmatprep.mubr.bf16.mxu0 %v5976
    %6975 = vmatmul.mubr.bf16.gmra.mrb[0].mxu0 %v5975
    %v6976 = vpop.f32.mrb[0].mxu0
    %v6977 = vadd.f32 %v6937, %v6976
    %v6978 = vpop.f32.mrb[0].mxu0
    %v6979 = vpop.f32.mrb[0].mxu0
    %v6980 = vpop.f32.mrb[0].mxu0
    %6981 = vdwg.mxu0
    %6982 = vmatprep.subr.bf16.mxu0 0
    %6983 = vmatpush1.bf16.msra.mxu0 %v6686
    %6984 = vmatprep.subr.bf16.mxu0 0
    %6985 = vmatpush1.bf16.msra.mxu0 %v6687
    %6986 = vmatprep.subr.bf16.mxu0 0
    %6987 = vmatpush1.bf16.msra.mxu0 %v6688
    %6988 = vmatprep.subr.bf16.mxu0 0
    %6989 = vmatpush1.bf16.msra.mxu0 %v6689
    %6990 = vmatprep.subr.bf16.mxu0 0
    %6991 = vmatpush1.bf16.msra.mxu0 %v6690
    %6992 = vmatprep.subr.bf16.mxu0 0
    %6993 = vmatpush1.bf16.msra.mxu0 %v6691
    %6994 = vmatprep.subr.bf16.mxu0 0
    %6995 = vmatpush1.bf16.msra.mxu0 %v6692
    %6996 = vmatprep.subr.bf16.mxu0 0
    %6997 = vmatpush1.bf16.msra.mxu0 %v6693
    %6998 = vmatprep.subr.bf16.mxu0 0
    %6999 = vmatpush1.bf16.msra.mxu0 %v6694
    %7000 = vmatprep.subr.bf16.mxu0 0
    %7001 = vmatpush1.bf16.msra.mxu0 %v6695
    %7002 = vmatprep.subr.bf16.mxu0 0
    %7003 = vmatpush1.bf16.msra.mxu0 %v6696
    %7004 = vmatprep.subr.bf16.mxu0 0
    %7005 = vmatpush1.bf16.msra.mxu0 %v6697
    %7006 = vmatprep.subr.bf16.mxu0 0
    %7007 = vmatpush1.bf16.msra.mxu0 %v6698
    %7008 = vmatprep.subr.bf16.mxu0 0
    %7009 = vmatpush1.bf16.msra.mxu0 %v6699
    %7010 = vmatprep.subr.bf16.mxu0 0
    %7011 = vmatpush1.bf16.msra.mxu0 %v6700
    %7012 = vmatprep.subr.bf16.mxu0 0
    %7013 = vmatpush1.bf16.msra.mxu0 %v6701
    %7014 = vmatprep.mubr.bf16.mxu0 %v5978
    %7015 = vmatmul.mubr.bf16.gmra.mrb[0].mxu0 %v5977
    %v7016 = vpop.f32.mrb[0].mxu0
    %v7017 = vadd.f32 %v6977, %v7016
    %v7018 = vpop.f32.mrb[0].mxu0
    %v7019 = vpop.f32.mrb[0].mxu0
    %v7020 = vpop.f32.mrb[0].mxu0
    %7021 = vdwg.mxu0
    %7022 = vmatprep.subr.bf16.mxu0 0
    %7023 = vmatpush1.bf16.msra.mxu0 %v6702
    %7024 = vmatprep.subr.bf16.mxu0 0
    %7025 = vmatpush1.bf16.msra.mxu0 %v6703
    %7026 = vmatprep.subr.bf16.mxu0 0
    %7027 = vmatpush1.bf16.msra.mxu0 %v6704
    %7028 = vmatprep.subr.bf16.mxu0 0
    %7029 = vmatpush1.bf16.msra.mxu0 %v6705
    %7030 = vmatprep.subr.bf16.mxu0 0
    %7031 = vmatpush1.bf16.msra.mxu0 %v6706
    %7032 = vmatprep.subr.bf16.mxu0 0
    %7033 = vmatpush1.bf16.msra.mxu0 %v6707
    %7034 = vmatprep.subr.bf16.mxu0 0
    %7035 = vmatpush1.bf16.msra.mxu0 %v6708
    %7036 = vmatprep.subr.bf16.mxu0 0
    %7037 = vmatpush1.bf16.msra.mxu0 %v6709
    %7038 = vmatprep.subr.bf16.mxu0 0
    %7039 = vmatpush1.bf16.msra.mxu0 %v6710
    %7040 = vmatprep.subr.bf16.mxu0 0
    %7041 = vmatpush1.bf16.msra.mxu0 %v6711
    %7042 = vmatprep.subr.bf16.mxu0 0
    %7043 = vmatpush1.bf16.msra.mxu0 %v6712
    %7044 = vmatprep.subr.bf16.mxu0 0
    %7045 = vmatpush1.bf16.msra.mxu0 %v6713
    %7046 = vmatprep.subr.bf16.mxu0 0
    %7047 = vmatpush1.bf16.msra.mxu0 %v6714
    %7048 = vmatprep.subr.bf16.mxu0 0
    %7049 = vmatpush1.bf16.msra.mxu0 %v6715
    %7050 = vmatprep.subr.bf16.mxu0 0
    %7051 = vmatpush1.bf16.msra.mxu0 %v6716
    %7052 = vmatprep.subr.bf16.mxu0 0
    %7053 = vmatpush1.bf16.msra.mxu0 %v6717
    %7054 = vmatprep.mubr.bf16.mxu0 %v5980
    %7055 = vmatmul.mubr.bf16.gmra.mrb[0].mxu0 %v5979
    %v7056 = vpop.f32.mrb[0].mxu0
    %v7057 = vadd.f32 %v7017, %v7056
    %v7058 = vpop.f32.mrb[0].mxu0
    %v7059 = vpop.f32.mrb[0].mxu0
    %v7060 = vpop.f32.mrb[0].mxu0
    %7061 = vdwg.mxu0
    %7062 = vmatprep.subr.bf16.mxu0 0
    %7063 = vmatpush1.bf16.msra.mxu0 %v6718
    %7064 = vmatprep.subr.bf16.mxu0 0
    %7065 = vmatpush1.bf16.msra.mxu0 %v6719
    %7066 = vmatprep.subr.bf16.mxu0 0
    %7067 = vmatpush1.bf16.msra.mxu0 0
    %7068 = vmatprep.subr.bf16.mxu0 0
    %7069 = vmatpush1.bf16.msra.mxu0 0
    %7070 = vmatprep.subr.bf16.mxu0 0
    %7071 = vmatpush1.bf16.msra.mxu0 0
    %7072 = vmatprep.subr.bf16.mxu0 0
    %7073 = vmatpush1.bf16.msra.mxu0 0
    %7074 = vmatprep.subr.bf16.mxu0 0
    %7075 = vmatpush1.bf16.msra.mxu0 0
    %7076 = vmatprep.subr.bf16.mxu0 0
    %7077 = vmatpush1.bf16.msra.mxu0 0
    %7078 = vmatprep.subr.bf16.mxu0 0
    %7079 = vmatpush1.bf16.msra.mxu0 0
    %7080 = vmatprep.subr.bf16.mxu0 0
    %7081 = vmatpush1.bf16.msra.mxu0 0
    %7082 = vmatprep.subr.bf16.mxu0 0
    %7083 = vmatpush1.bf16.msra.mxu0 0
    %7084 = vmatprep.subr.bf16.mxu0 0
    %7085 = vmatpush1.bf16.msra.mxu0 0
    %7086 = vmatprep.subr.bf16.mxu0 0
    %7087 = vmatpush1.bf16.msra.mxu0 0
    %7088 = vmatprep.subr.bf16.mxu0 0
    %7089 = vmatpush1.bf16.msra.mxu0 0
    %7090 = vmatprep.subr.bf16.mxu0 0
    %7091 = vmatpush1.bf16.msra.mxu0 0
    %7092 = vmatprep.subr.bf16.mxu0 0
    %7093 = vmatpush1.bf16.msra.mxu0 0
    %7094 = vmatprep.mubr.bf16.mxu0 0
    %7095 = vmatmul.mubr.bf16.gmra.mrb[0].mxu0 %v6820
    %v7096 = vpop.f32.mrb[0].mxu0
    %v7097 = vadd.f32 %v7057, %v7096
    %v7098 = vpop.f32.mrb[0].mxu0
    %v7099 = vpop.f32.mrb[0].mxu0
    %v7100 = vpop.f32.mrb[0].mxu0
    %7101 = vdwg.mxu0
    %v7102 = vld [vmem:[#allocation12] sm:$0x1]
    %v7104 = vlaneseq
    %v7105 = vshrl.u32 %v7104, 7
    %v7106 = vsub.s32 0, %v7105
    %v7107 = vrot.slane %v7102, %v7106
    %v7109 = vadd.f32 %v7097, %v7107
    %v7110 = vmax.f32 %v7109, 0.0
    %v7111 = vpack.c.bf16 %v7110, %v7110
    %v7112 = vld [vmem:[#allocation13] sm:$0xf]
    %v7113 = vld [vmem:[#allocation13 + $0x4] sm:$0xf]
    %v7114 = vld [vmem:[#allocation13 + $0x8] sm:$0xf]
    %v7115 = vld [vmem:[#allocation13 + $0xc] sm:$0xf]
    %v7116 = vld [vmem:[#allocation13 + $0x10] sm:$0xf]
    %v7117 = vld [vmem:[#allocation13 + $0x14] sm:$0xf]
    %v7118 = vld [vmem:[#allocation13 + $0x18] sm:$0xf]
    %v7119 = vld [vmem:[#allocation13 + $0x1c] sm:$0xf]
    %v7120 = vld [vmem:[#allocation13 + $0x20] sm:$0xf]
    %v7121 = vld [vmem:[#allocation13 + $0x24] sm:$0xf]
    %v7122 = vld [vmem:[#allocation13 + $0x28] sm:$0xf]
    %v7123 = vld [vmem:[#allocation13 + $0x2c] sm:$0xf]
    %v7124 = vld [vmem:[#allocation13 + $0x30] sm:$0xf]
    %v7125 = vld [vmem:[#allocation13 + $0x34] sm:$0xf]
    %v7126 = vld [vmem:[#allocation13 + $0x38] sm:$0xf]
    %v7127 = vld [vmem:[#allocation13 + $0x3c] sm:$0xf]
    %v7128 = vld [vmem:[#allocation15] sm:$0x1]
    %v7130 = vlaneseq
    %v7131 = vshrl.u32 %v7130, 7
    %v7132 = vsub.s32 0, %v7131
    %v7133 = vrot.slane %v7128, %v7132
    %v7151 = vunpack.c.l.b16 %v7112
    %v7152 = vunpack.c.l.b16 %v7113
    %v7153 = vunpack.c.l.b16 %v7114
    %v7154 = vunpack.c.l.b16 %v7115
    %v7155 = vunpack.c.l.b16 %v7116
    %v7156 = vunpack.c.l.b16 %v7117
    %v7157 = vunpack.c.l.b16 %v7118
    %v7158 = vunpack.c.l.b16 %v7119
    %v7159 = vunpack.c.l.b16 %v7120
    %v7160 = vunpack.c.l.b16 %v7121
    %v7161 = vunpack.c.l.b16 %v7122
    %v7162 = vunpack.c.l.b16 %v7123
    %v7163 = vunpack.c.l.b16 %v7124
    %v7164 = vunpack.c.l.b16 %v7125
    %v7165 = vunpack.c.l.b16 %v7126
    %v7166 = vunpack.c.l.b16 %v7127
    %v7167 = vpack.c.b16 %v7152, %v7151
    %v7168 = vpack.c.b16 %v7154, %v7153
    %v7169 = vpack.c.b16 %v7156, %v7155
    %v7170 = vpack.c.b16 %v7158, %v7157
    %v7171 = vpack.c.b16 %v7160, %v7159
    %v7172 = vpack.c.b16 %v7162, %v7161
    %v7173 = vpack.c.b16 %v7164, %v7163
    %v7174 = vpack.c.b16 %v7166, %v7165
    %7183 = vmatprep.subr.bf16.mxu0 0
    %7184 = vmatpush1.bf16.msra.mxu0 %v7167
    %7185 = vmatprep.subr.bf16.mxu0 0
    %7186 = vmatpush1.bf16.msra.mxu0 %v7168
    %7187 = vmatprep.subr.bf16.mxu0 0
    %7188 = vmatpush1.bf16.msra.mxu0 %v7169
    %7189 = vmatprep.subr.bf16.mxu0 0
    %7190 = vmatpush1.bf16.msra.mxu0 %v7170
    %7191 = vmatprep.subr.bf16.mxu0 0
    %7192 = vmatpush1.bf16.msra.mxu0 %v7171
    %7193 = vmatprep.subr.bf16.mxu0 0
    %7194 = vmatpush1.bf16.msra.mxu0 %v7172
    %7195 = vmatprep.subr.bf16.mxu0 0
    %7196 = vmatpush1.bf16.msra.mxu0 %v7173
    %7197 = vmatprep.subr.bf16.mxu0 0
    %7198 = vmatpush1.bf16.msra.mxu0 %v7174
    %7199 = vmatprep.subr.bf16.mxu0 0
    %7200 = vmatpush1.bf16.msra.mxu0 0
    %7201 = vmatprep.subr.bf16.mxu0 0
    %7202 = vmatpush1.bf16.msra.mxu0 0
    %7203 = vmatprep.subr.bf16.mxu0 0
    %7204 = vmatpush1.bf16.msra.mxu0 0
    %7205 = vmatprep.subr.bf16.mxu0 0
    %7206 = vmatpush1.bf16.msra.mxu0 0
    %7207 = vmatprep.subr.bf16.mxu0 0
    %7208 = vmatpush1.bf16.msra.mxu0 0
    %7209 = vmatprep.subr.bf16.mxu0 0
    %7210 = vmatpush1.bf16.msra.mxu0 0
    %7211 = vmatprep.subr.bf16.mxu0 0
    %7212 = vmatpush1.bf16.msra.mxu0 0
    %7213 = vmatprep.subr.bf16.mxu0 0
    %7214 = vmatpush1.bf16.msra.mxu0 0
    %7215 = vmatprep.mubr.bf16.mxu0 0
    %7216 = vmatmul.mubr.bf16.gmra.mrb[0].mxu0 %v7111
    %v7217 = vpop.f32.mrb[0].mxu0
    %v7218 = vadd.f32 %v7133, %v7217
    %v7219 = vpop.f32.mrb[0].mxu0
    %v7220 = vpop.f32.mrb[0].mxu0
    %v7221 = vpop.f32.mrb[0].mxu0
    %7222 = vdwg.mxu0
    %7223 = vst [vmem:[%s11] sm:$0xff] %v7218
    // Predicated region
    $region82: #{_forward_jit.1} parent=1 // pred_check
      _
    $region83: #{_forward_jit.1} parent=1 // pred_check_branch
      %7225 = sbr.rel (0) target = $region85
    $region84: #{_forward_jit.1} parent=1 // pred_region
      _
    $region85: #{_forward_jit.1} parent=1 // pred_fallthru
      _
    // Predicated region
    $region86: #{_forward_jit.1} parent=1 // pred_check
      _
    $region87: #{_forward_jit.1} parent=1 // pred_check_branch
      %7227 = sbr.rel (0) target = $region89
    $region88: #{_forward_jit.1} parent=1 // pred_region
      _
    $region89: #{_forward_jit.1} parent=1 // pred_fallthru
      _
    %7228 = vsyncpa [#allocation3], 1
    %7229 = vsyncpa [#allocation5], 1
    %7230 = vsyncpa [#allocation8], 1
    %7231 = vsyncpa [#allocation11], 1
    %7232 = vsyncpa [#allocation14], 1

</llo_original>
